<compile_context>
chip_gen: v6e
topology: v6e:2x2x1
jax: 0.10.0
libtpu: 0.0.40
codegen_flags: <defaults>
</compile_context>

<pallas_src>
import functools

import numpy as np
import jax
import jax.numpy as jnp
from jax import lax
from jax.experimental import pallas as pl
from jax.experimental.pallas import tpu as pltpu


def _round_up(x, m):
    return ((x + m - 1) // m) * m


def _decoder_res_block_kernel(x_ref, mask_ref, w1_ref, b1_ref, w2_ref, b2_ref,
                              w3_ref, b3_ref, out_ref, h1_ref, *,
                              D, Cout, P2E, P2O, o_base, Wp):
    """One batch element per grid step; all D output depth planes per step.

    x_ref   : (1, Cin, D*P2E)    bf16  zero-padded planes, channel-major, lanes flat
    mask    : (1, P2E)           f32   1.0 exactly on the real HxW interior
    w1 / w3 : (Cout, Cin)        bf16  BN-folded 1x1x1 conv weights
    w2      : (9, Cout, 3*Cout)  bf16  BN-folded 3x3x3 weights, (kh,kw)-major taps,
                                       contraction over (kd, cin)
    b*      : (Cout, 1)          f32   BN-folded biases
    out_ref : (1, Cout, D*P2O)   lane-dense output windows, one per depth plane
    h1_ref  : ((D+2)*Cout, P2E)  bf16  conv1 activation cache incl. zero depth pads
    """
    f32 = jnp.float32
    interior = mask_ref[...]                      # (1, P2E)
    w1 = w1_ref[...]
    w3 = w3_ref[...]
    b1 = b1_ref[...]
    b2 = b2_ref[...]
    b3 = b3_ref[...]

    # conv2's zero padding in depth: boundary planes of the h1 cache are zero.
    zero_plane = jnp.zeros((Cout, P2E), dtype=h1_ref.dtype)
    h1_ref[0:Cout, :] = zero_plane
    h1_ref[(D + 1) * Cout:(D + 2) * Cout, :] = zero_plane

    # conv1 (1x1x1 + BN + ReLU), computed exactly once per input depth plane.
    # The interior mask zeroes borders / lane margins so conv2 sees proper zero
    # padding in H and W.
    for dd in range(D):
        xs = x_ref[0, :, dd * P2E:(dd + 1) * P2E]          # (Cin, P2E) bf16
        y = jnp.dot(w1, xs, preferred_element_type=f32) + b1
        y = jnp.maximum(y, 0.0) * interior
        h1_ref[(dd + 1) * Cout:(dd + 2) * Cout, :] = y.astype(h1_ref.dtype)

    # Per output depth plane: conv2 (3x3x3, pad=1) as 9 (kh,kw) taps with the
    # contraction stacked over kd (K = 3*Cout), then the conv3 residual branch.
    for d in range(D):
        h3 = h1_ref[d * Cout:(d + 3) * Cout, :]            # (3*Cout, P2E) bf16
        acc = None
        for kh in range(3):
            for kw in range(3):
                t = kh * 3 + kw
                s = o_base + (kh - 1) * Wp + (kw - 1)       # static lane shift
                p = jnp.dot(w2_ref[t], h3[:, s:s + P2O],
                            preferred_element_type=f32)
                acc = p if acc is None else acc + p
        h2 = jnp.maximum(acc + b2, 0.0)                     # conv2 + BN + ReLU

        # conv3 (1x1x1 + BN) residual branch on the centre depth plane.
        xc = x_ref[0, :, d * P2E + o_base:d * P2E + o_base + P2O]   # (Cin, P2O)
        fi = jnp.dot(w3, xc, preferred_element_type=f32) + b3

        out_ref[0, :, d * P2O:(d + 1) * P2O] = (
            jnp.maximum(h2 + fi, 0.0).astype(out_ref.dtype))


def decoder_res_block(x, params, *, eps=1e-5):
    """x: (B, Cin, D, H, W) -> (B, Cout, D, H, W); matches DecoderResBlock.forward."""
    B, Cin, D, H, W = x.shape
    Cout = params["w1"].shape[0]
    Wp = W + 2
    rt = 1                                    # extra margin rows above the padded plane
    P2O = _round_up(H * Wp, 128)              # lane-dense output window per plane
    rb = -(-(P2O + 1 - H * Wp) // Wp)         # margin rows below so every tap read fits
    R = H + 2 + rt + rb                       # rows per stored plane
    P2E = _round_up(R * Wp, 128)              # lanes per stored plane
    o_base = (rt + 1) * Wp                    # lane offset of the output window

    # ---- fold BatchNorm (inference / running stats) into per-channel scale+bias ----
    def fold(w, bn):
        scale = bn["gamma"] / jnp.sqrt(bn["var"] + eps)
        return w * scale[:, None, None, None, None], bn["beta"] - bn["mean"] * scale

    w1e, b1e = fold(params["w1"], params["bn1"])            # (Cout, Cin, 1, 1, 1)
    w2e, b2e = fold(params["w2"], params["bn2"])            # (Cout, Cout, 3, 3, 3)
    w3e, b3e = fold(params["w3"], params["bn3"])

    bf16 = jnp.bfloat16
    w1m = w1e[:, :, 0, 0, 0].astype(bf16)                   # (Cout, Cin)
    w3m = w3e[:, :, 0, 0, 0].astype(bf16)
    # (O,I,kd,kh,kw) -> (kh,kw,O,kd,I) -> (9, Cout, 3*Cout); contraction index runs
    # kd-major / cin-minor to match the stacked h1 planes in the kernel.
    w2s = jnp.transpose(w2e, (3, 4, 0, 2, 1)).reshape(9, Cout, 3 * Cout).astype(bf16)
    b1c = b1e[:, None].astype(jnp.float32)
    b2c = b2e[:, None].astype(jnp.float32)
    b3c = b3e[:, None].astype(jnp.float32)

    # ---- x layout: channel-major, zero-padded planes flattened on lanes (no transpose) ----
    xp = jnp.pad(x, ((0, 0), (0, 0), (0, 0), (1 + rt, 1 + rb), (1, 1)))   # (B,Cin,D,R,Wp)
    xp = xp.reshape(B, Cin, D, R * Wp)
    xe = jnp.pad(xp, ((0, 0), (0, 0), (0, 0), (0, P2E - R * Wp)))
    xe = xe.reshape(B, Cin, D * P2E).astype(bf16)

    # interior mask: 1.0 exactly on the real HxW positions of a stored plane
    rows = jnp.arange(R, dtype=jnp.int32)
    cols = jnp.arange(Wp, dtype=jnp.int32)
    row_ok = (rows >= 1 + rt) & (rows < 1 + rt + H)
    col_ok = (cols >= 1) & (cols < 1 + W)
    inter = (row_ok[:, None] & col_ok[None, :]).astype(jnp.float32).reshape(1, R * Wp)
    mask = jnp.pad(inter, ((0, 0), (0, P2E - R * Wp)))       # (1, P2E)

    kernel = functools.partial(_decoder_res_block_kernel, D=D, Cout=Cout,
                               P2E=P2E, P2O=P2O, o_base=o_base, Wp=Wp)

    out_flat = pl.pallas_call(
        kernel,
        out_shape=jax.ShapeDtypeStruct((B, Cout, D * P2O), x.dtype),
        grid_spec=pltpu.PrefetchScalarGridSpec(
            num_scalar_prefetch=0,
            grid=(B,),
            in_specs=[
                pl.BlockSpec((1, Cin, D * P2E), lambda b: (b, 0, 0)),
                pl.BlockSpec((1, P2E), lambda b: (0, 0)),
                pl.BlockSpec((Cout, Cin), lambda b: (0, 0)),
                pl.BlockSpec((Cout, 1), lambda b: (0, 0)),
                pl.BlockSpec((9, Cout, 3 * Cout), lambda b: (0, 0, 0)),
                pl.BlockSpec((Cout, 1), lambda b: (0, 0)),
                pl.BlockSpec((Cout, Cin), lambda b: (0, 0)),
                pl.BlockSpec((Cout, 1), lambda b: (0, 0)),
            ],
            out_specs=pl.BlockSpec((1, Cout, D * P2O), lambda b: (b, 0, 0)),
            scratch_shapes=[pltpu.VMEM(((D + 2) * Cout, P2E), jnp.bfloat16)],
        ),
        compiler_params=pltpu.CompilerParams(
            dimension_semantics=("parallel",),
            vmem_limit_bytes=32 * 1024 * 1024,
        ),
    )(xe, mask, w1m, b1c, w2s, b2c, w3m, b3c)

    # Already in (B, Cout, D, plane) order -> only strip the padded borders.
    out = out_flat.reshape(B, Cout, D, P2O)[..., :H * Wp]
    out = out.reshape(B, Cout, D, H, Wp)[..., 1:1 + W]
    return out


def _reference(x, params, eps=1e-5):
    """Pure-JAX f32 reference of DecoderResBlock.forward (inference-mode BN)."""
    def bn(y, p):
        scale = p["gamma"] / jnp.sqrt(p["var"] + eps)
        shift = p["beta"] - p["mean"] * scale
        return y * scale[None, :, None, None, None] + shift[None, :, None, None, None]

    def conv(y, w, padding):
        return lax.conv_general_dilated(
            y, w, window_strides=(1, 1, 1), padding=[(padding, padding)] * 3,
            dimension_numbers=("NCDHW", "OIDHW", "NCDHW"))

    feature_in = bn(conv(x, params["w3"], 0), params["bn3"])
    h = jax.nn.relu(bn(conv(x, params["w1"], 0), params["bn1"]))
    h = jax.nn.relu(bn(conv(h, params["w2"], 1), params["bn2"]))
    return jax.nn.relu(h + feature_in)


if __name__ == "__main__":
    key = jax.random.PRNGKey(0)
    ks = jax.random.split(key, 8)

    # small but representative 3-D shape; H*Wp=224 -> 256-lane output windows
    B, Cin, Cout, D, H, W = 2, 16, 32, 4, 14, 14

    def bn_params(k, c):
        k1, k2, k3, k4 = jax.random.split(k, 4)
        return dict(
            gamma=jax.random.uniform(k1, (c,), jnp.float32, 0.5, 1.5),
            beta=jax.random.normal(k2, (c,), jnp.float32) * 0.1,
            mean=jax.random.normal(k3, (c,), jnp.float32) * 0.1,
            var=jax.random.uniform(k4, (c,), jnp.float32, 0.5, 1.5),
        )

    x = jax.random.normal(ks[0], (B, Cin, D, H, W), jnp.float32)
    params = dict(
        w1=jax.random.normal(ks[1], (Cout, Cin, 1, 1, 1), jnp.float32) * 0.1,
        w2=jax.random.normal(ks[2], (Cout, Cout, 3, 3, 3), jnp.float32) * 0.05,
        w3=jax.random.normal(ks[3], (Cout, Cin, 1, 1, 1), jnp.float32) * 0.1,
        bn1=bn_params(ks[4], Cout),
        bn2=bn_params(ks[5], Cout),
        bn3=bn_params(ks[6], Cout),
    )

    out = jax.jit(decoder_res_block)(x, params)
    out = jax.block_until_ready(out)

    ref = _reference(x, params)
    assert out.shape == ref.shape, (out.shape, ref.shape)
    # bf16 MXU operands with f32 accumulation -> tolerance relaxed accordingly
    assert np.allclose(np.asarray(out), np.asarray(ref), atol=3e-2, rtol=3e-2), (
        float(np.max(np.abs(np.asarray(out) - np.asarray(ref)))))

    print("KERNEL_OK")
</pallas_src>

<mosaic_0001>
module attributes {stable_mosaic.version = 11 : i64} {
  func.func @_decoder_res_block_kernel(%arg0: i32, %arg1: memref<1x16x1536xbf16, #tpu.memory_space<vmem>>, %arg2: memref<1x384xf32, #tpu.memory_space<vmem>>, %arg3: memref<32x16xbf16, #tpu.memory_space<vmem>>, %arg4: memref<32x1xf32, #tpu.memory_space<vmem>>, %arg5: memref<9x32x96xbf16, #tpu.memory_space<vmem>>, %arg6: memref<32x1xf32, #tpu.memory_space<vmem>>, %arg7: memref<32x16xbf16, #tpu.memory_space<vmem>>, %arg8: memref<32x1xf32, #tpu.memory_space<vmem>>, %arg9: memref<1x32x1024xf32, #tpu.memory_space<vmem>>, %arg10: memref<192x384xbf16, #tpu.memory_space<vmem>>) attributes {dimension_semantics = [#tpu.dimension_semantics<parallel>], iteration_bounds = array<i64: 2>, scalar_prefetch = 0 : i64, scratch_operands = 1 : i64, tpu.core_type = #tpu.core_type<tc>, window_params = [{transform_indices = @transform_0, window_bounds = array<i64: 1, 16, 1536>}, {pipeline_mode = #tpu.pipeline_mode<synchronous>, transform_indices = @transform_1, window_bounds = array<i64: 1, 384>}, {pipeline_mode = #tpu.pipeline_mode<synchronous>, transform_indices = @transform_2, window_bounds = array<i64: 32, 16>}, {pipeline_mode = #tpu.pipeline_mode<synchronous>, transform_indices = @transform_3, window_bounds = array<i64: 32, 1>}, {pipeline_mode = #tpu.pipeline_mode<synchronous>, transform_indices = @transform_4, window_bounds = array<i64: 9, 32, 96>}, {pipeline_mode = #tpu.pipeline_mode<synchronous>, transform_indices = @transform_5, window_bounds = array<i64: 32, 1>}, {pipeline_mode = #tpu.pipeline_mode<synchronous>, transform_indices = @transform_6, window_bounds = array<i64: 32, 16>}, {pipeline_mode = #tpu.pipeline_mode<synchronous>, transform_indices = @transform_7, window_bounds = array<i64: 32, 1>}, {transform_indices = @transform_8, window_bounds = array<i64: 1, 32, 1024>}]} {
    %c0 = arith.constant 0 : index
    %c0_0 = arith.constant 0 : index
    %0 = vector.load %arg2[%c0, %c0_0] : memref<1x384xf32, #tpu.memory_space<vmem>>, vector<1x384xf32>
    %c0_1 = arith.constant 0 : index
    %c0_2 = arith.constant 0 : index
    %1 = vector.load %arg3[%c0_1, %c0_2] : memref<32x16xbf16, #tpu.memory_space<vmem>>, vector<32x16xbf16>
    %c0_3 = arith.constant 0 : index
    %c0_4 = arith.constant 0 : index
    %2 = vector.load %arg7[%c0_3, %c0_4] : memref<32x16xbf16, #tpu.memory_space<vmem>>, vector<32x16xbf16>
    %c0_5 = arith.constant 0 : index
    %c0_6 = arith.constant 0 : index
    %3 = vector.load %arg4[%c0_5, %c0_6] : memref<32x1xf32, #tpu.memory_space<vmem>>, vector<32x1xf32>
    %c0_7 = arith.constant 0 : index
    %c0_8 = arith.constant 0 : index
    %4 = vector.load %arg6[%c0_7, %c0_8] : memref<32x1xf32, #tpu.memory_space<vmem>>, vector<32x1xf32>
    %c0_9 = arith.constant 0 : index
    %c0_10 = arith.constant 0 : index
    %5 = vector.load %arg8[%c0_9, %c0_10] : memref<32x1xf32, #tpu.memory_space<vmem>>, vector<32x1xf32>
    %cst = arith.constant 0.000000e+00 : bf16
    %6 = vector.broadcast %cst : bf16 to vector<32x384xbf16>
    %c0_11 = arith.constant 0 : index
    %c0_12 = arith.constant 0 : index
    %7 = vector.load %arg10[%c0_11, %c0_12] : memref<192x384xbf16, #tpu.memory_space<vmem>>, vector<32x384xbf16>
    tpu.vector_store %arg10[%c0_11, %c0_12], %6 {strides = array<i32>} : memref<192x384xbf16, #tpu.memory_space<vmem>>, vector<32x384xbf16>,
    %c160 = arith.constant 160 : index
    %c0_13 = arith.constant 0 : index
    %8 = vector.load %arg10[%c160, %c0_13] : memref<192x384xbf16, #tpu.memory_space<vmem>>, vector<32x384xbf16>
    tpu.vector_store %arg10[%c160, %c0_13], %6 {strides = array<i32>} : memref<192x384xbf16, #tpu.memory_space<vmem>>, vector<32x384xbf16>,
    %c0_14 = arith.constant 0 : index
    %c0_15 = arith.constant 0 : index
    %c0_16 = arith.constant 0 : index
    %9 = vector.load %arg1[%c0_14, %c0_15, %c0_16] : memref<1x16x1536xbf16, #tpu.memory_space<vmem>>, vector<1x16x384xbf16>
    %10 = vector.shape_cast %9 : vector<1x16x384xbf16> to vector<16x384xbf16>
    %cst_17 = arith.constant dense<0.000000e+00> : vector<32x384xf32>
    %11 = tpu.matmul %1, %10, %cst_17 {dimension_numbers = #tpu.dot_dimension_numbers<[1], [0], [0], [1], [0, 0, 1, 1], [], []>} : vector<32x16xbf16>, vector<16x384xbf16>, vector<32x384xf32> -> vector<32x384xf32>
    %12 = vector.broadcast %3 : vector<32x1xf32> to vector<32x384xf32>
    %13 = arith.addf %11, %12 : vector<32x384xf32>
    %cst_18 = arith.constant 0.000000e+00 : f32
    %14 = vector.broadcast %cst_18 : f32 to vector<32x384xf32>
    %15 = arith.maximumf %13, %14 : vector<32x384xf32>
    %16 = vector.broadcast %0 : vector<1x384xf32> to vector<32x384xf32>
    %17 = arith.mulf %15, %16 : vector<32x384xf32>
    %18 = arith.truncf %17 : vector<32x384xf32> to vector<32x384xbf16>
    %c32 = arith.constant 32 : index
    %c0_19 = arith.constant 0 : index
    %19 = vector.load %arg10[%c32, %c0_19] : memref<192x384xbf16, #tpu.memory_space<vmem>>, vector<32x384xbf16>
    tpu.vector_store %arg10[%c32, %c0_19], %18 {strides = array<i32>} : memref<192x384xbf16, #tpu.memory_space<vmem>>, vector<32x384xbf16>,
    %c0_20 = arith.constant 0 : index
    %c0_21 = arith.constant 0 : index
    %c384 = arith.constant 384 : index
    %20 = vector.load %arg1[%c0_20, %c0_21, %c384] : memref<1x16x1536xbf16, #tpu.memory_space<vmem>>, vector<1x16x384xbf16>
    %21 = vector.shape_cast %20 : vector<1x16x384xbf16> to vector<16x384xbf16>
    %cst_22 = arith.constant dense<0.000000e+00> : vector<32x384xf32>
    %22 = tpu.matmul %1, %21, %cst_22 {dimension_numbers = #tpu.dot_dimension_numbers<[1], [0], [0], [1], [0, 0, 1, 1], [], []>} : vector<32x16xbf16>, vector<16x384xbf16>, vector<32x384xf32> -> vector<32x384xf32>
    %23 = vector.broadcast %3 : vector<32x1xf32> to vector<32x384xf32>
    %24 = arith.addf %22, %23 : vector<32x384xf32>
    %cst_23 = arith.constant 0.000000e+00 : f32
    %25 = vector.broadcast %cst_23 : f32 to vector<32x384xf32>
    %26 = arith.maximumf %24, %25 : vector<32x384xf32>
    %27 = vector.broadcast %0 : vector<1x384xf32> to vector<32x384xf32>
    %28 = arith.mulf %26, %27 : vector<32x384xf32>
    %29 = arith.truncf %28 : vector<32x384xf32> to vector<32x384xbf16>
    %c64 = arith.constant 64 : index
    %c0_24 = arith.constant 0 : index
    %30 = vector.load %arg10[%c64, %c0_24] : memref<192x384xbf16, #tpu.memory_space<vmem>>, vector<32x384xbf16>
    tpu.vector_store %arg10[%c64, %c0_24], %29 {strides = array<i32>} : memref<192x384xbf16, #tpu.memory_space<vmem>>, vector<32x384xbf16>,
    %c0_25 = arith.constant 0 : index
    %c0_26 = arith.constant 0 : index
    %c768 = arith.constant 768 : index
    %31 = vector.load %arg1[%c0_25, %c0_26, %c768] : memref<1x16x1536xbf16, #tpu.memory_space<vmem>>, vector<1x16x384xbf16>
    %32 = vector.shape_cast %31 : vector<1x16x384xbf16> to vector<16x384xbf16>
    %cst_27 = arith.constant dense<0.000000e+00> : vector<32x384xf32>
    %33 = tpu.matmul %1, %32, %cst_27 {dimension_numbers = #tpu.dot_dimension_numbers<[1], [0], [0], [1], [0, 0, 1, 1], [], []>} : vector<32x16xbf16>, vector<16x384xbf16>, vector<32x384xf32> -> vector<32x384xf32>
    %34 = vector.broadcast %3 : vector<32x1xf32> to vector<32x384xf32>
    %35 = arith.addf %33, %34 : vector<32x384xf32>
    %cst_28 = arith.constant 0.000000e+00 : f32
    %36 = vector.broadcast %cst_28 : f32 to vector<32x384xf32>
    %37 = arith.maximumf %35, %36 : vector<32x384xf32>
    %38 = vector.broadcast %0 : vector<1x384xf32> to vector<32x384xf32>
    %39 = arith.mulf %37, %38 : vector<32x384xf32>
    %40 = arith.truncf %39 : vector<32x384xf32> to vector<32x384xbf16>
    %c96 = arith.constant 96 : index
    %c0_29 = arith.constant 0 : index
    %41 = vector.load %arg10[%c96, %c0_29] : memref<192x384xbf16, #tpu.memory_space<vmem>>, vector<32x384xbf16>
    tpu.vector_store %arg10[%c96, %c0_29], %40 {strides = array<i32>} : memref<192x384xbf16, #tpu.memory_space<vmem>>, vector<32x384xbf16>,
    %c0_30 = arith.constant 0 : index
    %c0_31 = arith.constant 0 : index
    %c1152 = arith.constant 1152 : index
    %42 = vector.load %arg1[%c0_30, %c0_31, %c1152] : memref<1x16x1536xbf16, #tpu.memory_space<vmem>>, vector<1x16x384xbf16>
    %43 = vector.shape_cast %42 : vector<1x16x384xbf16> to vector<16x384xbf16>
    %cst_32 = arith.constant dense<0.000000e+00> : vector<32x384xf32>
    %44 = tpu.matmul %1, %43, %cst_32 {dimension_numbers = #tpu.dot_dimension_numbers<[1], [0], [0], [1], [0, 0, 1, 1], [], []>} : vector<32x16xbf16>, vector<16x384xbf16>, vector<32x384xf32> -> vector<32x384xf32>
    %45 = vector.broadcast %3 : vector<32x1xf32> to vector<32x384xf32>
    %46 = arith.addf %44, %45 : vector<32x384xf32>
    %cst_33 = arith.constant 0.000000e+00 : f32
    %47 = vector.broadcast %cst_33 : f32 to vector<32x384xf32>
    %48 = arith.maximumf %46, %47 : vector<32x384xf32>
    %49 = vector.broadcast %0 : vector<1x384xf32> to vector<32x384xf32>
    %50 = arith.mulf %48, %49 : vector<32x384xf32>
    %51 = arith.truncf %50 : vector<32x384xf32> to vector<32x384xbf16>
    %c128 = arith.constant 128 : index
    %c0_34 = arith.constant 0 : index
    %52 = vector.load %arg10[%c128, %c0_34] : memref<192x384xbf16, #tpu.memory_space<vmem>>, vector<32x384xbf16>
    tpu.vector_store %arg10[%c128, %c0_34], %51 {strides = array<i32>} : memref<192x384xbf16, #tpu.memory_space<vmem>>, vector<32x384xbf16>,
    %c0_35 = arith.constant 0 : index
    %c0_36 = arith.constant 0 : index
    %53 = vector.load %arg10[%c0_35, %c0_36] : memref<192x384xbf16, #tpu.memory_space<vmem>>, vector<96x384xbf16>
    %c0_37 = arith.constant 0 : index
    %c0_38 = arith.constant 0 : index
    %c0_39 = arith.constant 0 : index
    %54 = vector.load %arg5[%c0_37, %c0_38, %c0_39] : memref<9x32x96xbf16, #tpu.memory_space<vmem>>, vector<1x32x96xbf16>
    %55 = vector.shape_cast %54 : vector<1x32x96xbf16> to vector<32x96xbf16>
    %56 = vector.extract_strided_slice %53 {offsets = [0, 15], sizes = [96, 256], strides = [1, 1]} : vector<96x384xbf16> to vector<96x256xbf16>
    %cst_40 = arith.constant dense<0.000000e+00> : vector<32x256xf32>
    %57 = tpu.matmul %55, %56, %cst_40 {dimension_numbers = #tpu.dot_dimension_numbers<[1], [0], [0], [1], [0, 0, 1, 1], [], []>} : vector<32x96xbf16>, vector<96x256xbf16>, vector<32x256xf32> -> vector<32x256xf32>
    %c1 = arith.constant 1 : index
    %c0_41 = arith.constant 0 : index
    %c0_42 = arith.constant 0 : index
    %58 = vector.load %arg5[%c1, %c0_41, %c0_42] : memref<9x32x96xbf16, #tpu.memory_space<vmem>>, vector<1x32x96xbf16>
    %59 = vector.shape_cast %58 : vector<1x32x96xbf16> to vector<32x96xbf16>
    %60 = vector.extract_strided_slice %53 {offsets = [0, 16], sizes = [96, 256], strides = [1, 1]} : vector<96x384xbf16> to vector<96x256xbf16>
    %cst_43 = arith.constant dense<0.000000e+00> : vector<32x256xf32>
    %61 = tpu.matmul %59, %60, %cst_43 {dimension_numbers = #tpu.dot_dimension_numbers<[1], [0], [0], [1], [0, 0, 1, 1], [], []>} : vector<32x96xbf16>, vector<96x256xbf16>, vector<32x256xf32> -> vector<32x256xf32>
    %62 = arith.addf %57, %61 : vector<32x256xf32>
    %c2 = arith.constant 2 : index
    %c0_44 = arith.constant 0 : index
    %c0_45 = arith.constant 0 : index
    %63 = vector.load %arg5[%c2, %c0_44, %c0_45] : memref<9x32x96xbf16, #tpu.memory_space<vmem>>, vector<1x32x96xbf16>
    %64 = vector.shape_cast %63 : vector<1x32x96xbf16> to vector<32x96xbf16>
    %65 = vector.extract_strided_slice %53 {offsets = [0, 17], sizes = [96, 256], strides = [1, 1]} : vector<96x384xbf16> to vector<96x256xbf16>
    %cst_46 = arith.constant dense<0.000000e+00> : vector<32x256xf32>
    %66 = tpu.matmul %64, %65, %cst_46 {dimension_numbers = #tpu.dot_dimension_numbers<[1], [0], [0], [1], [0, 0, 1, 1], [], []>} : vector<32x96xbf16>, vector<96x256xbf16>, vector<32x256xf32> -> vector<32x256xf32>
    %67 = arith.addf %62, %66 : vector<32x256xf32>
    %c3 = arith.constant 3 : index
    %c0_47 = arith.constant 0 : index
    %c0_48 = arith.constant 0 : index
    %68 = vector.load %arg5[%c3, %c0_47, %c0_48] : memref<9x32x96xbf16, #tpu.memory_space<vmem>>, vector<1x32x96xbf16>
    %69 = vector.shape_cast %68 : vector<1x32x96xbf16> to vector<32x96xbf16>
    %70 = vector.extract_strided_slice %53 {offsets = [0, 31], sizes = [96, 256], strides = [1, 1]} : vector<96x384xbf16> to vector<96x256xbf16>
    %cst_49 = arith.constant dense<0.000000e+00> : vector<32x256xf32>
    %71 = tpu.matmul %69, %70, %cst_49 {dimension_numbers = #tpu.dot_dimension_numbers<[1], [0], [0], [1], [0, 0, 1, 1], [], []>} : vector<32x96xbf16>, vector<96x256xbf16>, vector<32x256xf32> -> vector<32x256xf32>
    %72 = arith.addf %67, %71 : vector<32x256xf32>
    %c4 = arith.constant 4 : index
    %c0_50 = arith.constant 0 : index
    %c0_51 = arith.constant 0 : index
    %73 = vector.load %arg5[%c4, %c0_50, %c0_51] : memref<9x32x96xbf16, #tpu.memory_space<vmem>>, vector<1x32x96xbf16>
    %74 = vector.shape_cast %73 : vector<1x32x96xbf16> to vector<32x96xbf16>
    %75 = vector.extract_strided_slice %53 {offsets = [0, 32], sizes = [96, 256], strides = [1, 1]} : vector<96x384xbf16> to vector<96x256xbf16>
    %cst_52 = arith.constant dense<0.000000e+00> : vector<32x256xf32>
    %76 = tpu.matmul %74, %75, %cst_52 {dimension_numbers = #tpu.dot_dimension_numbers<[1], [0], [0], [1], [0, 0, 1, 1], [], []>} : vector<32x96xbf16>, vector<96x256xbf16>, vector<32x256xf32> -> vector<32x256xf32>
    %77 = arith.addf %72, %76 : vector<32x256xf32>
    %c5 = arith.constant 5 : index
    %c0_53 = arith.constant 0 : index
    %c0_54 = arith.constant 0 : index
    %78 = vector.load %arg5[%c5, %c0_53, %c0_54] : memref<9x32x96xbf16, #tpu.memory_space<vmem>>, vector<1x32x96xbf16>
    %79 = vector.shape_cast %78 : vector<1x32x96xbf16> to vector<32x96xbf16>
    %80 = vector.extract_strided_slice %53 {offsets = [0, 33], sizes = [96, 256], strides = [1, 1]} : vector<96x384xbf16> to vector<96x256xbf16>
    %cst_55 = arith.constant dense<0.000000e+00> : vector<32x256xf32>
    %81 = tpu.matmul %79, %80, %cst_55 {dimension_numbers = #tpu.dot_dimension_numbers<[1], [0], [0], [1], [0, 0, 1, 1], [], []>} : vector<32x96xbf16>, vector<96x256xbf16>, vector<32x256xf32> -> vector<32x256xf32>
    %82 = arith.addf %77, %81 : vector<32x256xf32>
    %c6 = arith.constant 6 : index
    %c0_56 = arith.constant 0 : index
    %c0_57 = arith.constant 0 : index
    %83 = vector.load %arg5[%c6, %c0_56, %c0_57] : memref<9x32x96xbf16, #tpu.memory_space<vmem>>, vector<1x32x96xbf16>
    %84 = vector.shape_cast %83 : vector<1x32x96xbf16> to vector<32x96xbf16>
    %85 = vector.extract_strided_slice %53 {offsets = [0, 47], sizes = [96, 256], strides = [1, 1]} : vector<96x384xbf16> to vector<96x256xbf16>
    %cst_58 = arith.constant dense<0.000000e+00> : vector<32x256xf32>
    %86 = tpu.matmul %84, %85, %cst_58 {dimension_numbers = #tpu.dot_dimension_numbers<[1], [0], [0], [1], [0, 0, 1, 1], [], []>} : vector<32x96xbf16>, vector<96x256xbf16>, vector<32x256xf32> -> vector<32x256xf32>
    %87 = arith.addf %82, %86 : vector<32x256xf32>
    %c7 = arith.constant 7 : index
    %c0_59 = arith.constant 0 : index
    %c0_60 = arith.constant 0 : index
    %88 = vector.load %arg5[%c7, %c0_59, %c0_60] : memref<9x32x96xbf16, #tpu.memory_space<vmem>>, vector<1x32x96xbf16>
    %89 = vector.shape_cast %88 : vector<1x32x96xbf16> to vector<32x96xbf16>
    %90 = vector.extract_strided_slice %53 {offsets = [0, 48], sizes = [96, 256], strides = [1, 1]} : vector<96x384xbf16> to vector<96x256xbf16>
    %cst_61 = arith.constant dense<0.000000e+00> : vector<32x256xf32>
    %91 = tpu.matmul %89, %90, %cst_61 {dimension_numbers = #tpu.dot_dimension_numbers<[1], [0], [0], [1], [0, 0, 1, 1], [], []>} : vector<32x96xbf16>, vector<96x256xbf16>, vector<32x256xf32> -> vector<32x256xf32>
    %92 = arith.addf %87, %91 : vector<32x256xf32>
    %c8 = arith.constant 8 : index
    %c0_62 = arith.constant 0 : index
    %c0_63 = arith.constant 0 : index
    %93 = vector.load %arg5[%c8, %c0_62, %c0_63] : memref<9x32x96xbf16, #tpu.memory_space<vmem>>, vector<1x32x96xbf16>
    %94 = vector.shape_cast %93 : vector<1x32x96xbf16> to vector<32x96xbf16>
    %95 = vector.extract_strided_slice %53 {offsets = [0, 49], sizes = [96, 256], strides = [1, 1]} : vector<96x384xbf16> to vector<96x256xbf16>
    %cst_64 = arith.constant dense<0.000000e+00> : vector<32x256xf32>
    %96 = tpu.matmul %94, %95, %cst_64 {dimension_numbers = #tpu.dot_dimension_numbers<[1], [0], [0], [1], [0, 0, 1, 1], [], []>} : vector<32x96xbf16>, vector<96x256xbf16>, vector<32x256xf32> -> vector<32x256xf32>
    %97 = arith.addf %92, %96 : vector<32x256xf32>
    %98 = vector.broadcast %4 : vector<32x1xf32> to vector<32x256xf32>
    %99 = arith.addf %97, %98 : vector<32x256xf32>
    %cst_65 = arith.constant 0.000000e+00 : f32
    %100 = vector.broadcast %cst_65 : f32 to vector<32x256xf32>
    %101 = arith.maximumf %99, %100 : vector<32x256xf32>
    %c0_66 = arith.constant 0 : index
    %c0_67 = arith.constant 0 : index
    %c32_68 = arith.constant 32 : index
    %102 = vector.load %arg1[%c0_66, %c0_67, %c32_68] : memref<1x16x1536xbf16, #tpu.memory_space<vmem>>, vector<1x16x256xbf16>
    %103 = vector.shape_cast %102 : vector<1x16x256xbf16> to vector<16x256xbf16>
    %cst_69 = arith.constant dense<0.000000e+00> : vector<32x256xf32>
    %104 = tpu.matmul %2, %103, %cst_69 {dimension_numbers = #tpu.dot_dimension_numbers<[1], [0], [0], [1], [0, 0, 1, 1], [], []>} : vector<32x16xbf16>, vector<16x256xbf16>, vector<32x256xf32> -> vector<32x256xf32>
    %105 = vector.broadcast %5 : vector<32x1xf32> to vector<32x256xf32>
    %106 = arith.addf %104, %105 : vector<32x256xf32>
    %107 = arith.addf %101, %106 : vector<32x256xf32>
    %cst_70 = arith.constant 0.000000e+00 : f32
    %108 = vector.broadcast %cst_70 : f32 to vector<32x256xf32>
    %109 = arith.maximumf %107, %108 : vector<32x256xf32>
    %c0_71 = arith.constant 0 : index
    %c0_72 = arith.constant 0 : index
    %c0_73 = arith.constant 0 : index
    %110 = vector.load %arg9[%c0_71, %c0_72, %c0_73] : memref<1x32x1024xf32, #tpu.memory_space<vmem>>, vector<1x32x256xf32>
    %111 = vector.shape_cast %110 : vector<1x32x256xf32> to vector<32x256xf32>
    %112 = vector.shape_cast %109 : vector<32x256xf32> to vector<1x32x256xf32>
    tpu.vector_store %arg9[%c0_71, %c0_72, %c0_73], %112 {strides = array<i32>} : memref<1x32x1024xf32, #tpu.memory_space<vmem>>, vector<1x32x256xf32>,
    %c32_74 = arith.constant 32 : index
    %c0_75 = arith.constant 0 : index
    %113 = vector.load %arg10[%c32_74, %c0_75] : memref<192x384xbf16, #tpu.memory_space<vmem>>, vector<96x384xbf16>
    %c0_76 = arith.constant 0 : index
    %c0_77 = arith.constant 0 : index
    %c0_78 = arith.constant 0 : index
    %114 = vector.load %arg5[%c0_76, %c0_77, %c0_78] : memref<9x32x96xbf16, #tpu.memory_space<vmem>>, vector<1x32x96xbf16>
    %115 = vector.shape_cast %114 : vector<1x32x96xbf16> to vector<32x96xbf16>
    %116 = vector.extract_strided_slice %113 {offsets = [0, 15], sizes = [96, 256], strides = [1, 1]} : vector<96x384xbf16> to vector<96x256xbf16>
    %cst_79 = arith.constant dense<0.000000e+00> : vector<32x256xf32>
    %117 = tpu.matmul %115, %116, %cst_79 {dimension_numbers = #tpu.dot_dimension_numbers<[1], [0], [0], [1], [0, 0, 1, 1], [], []>} : vector<32x96xbf16>, vector<96x256xbf16>, vector<32x256xf32> -> vector<32x256xf32>
    %c1_80 = arith.constant 1 : index
    %c0_81 = arith.constant 0 : index
    %c0_82 = arith.constant 0 : index
    %118 = vector.load %arg5[%c1_80, %c0_81, %c0_82] : memref<9x32x96xbf16, #tpu.memory_space<vmem>>, vector<1x32x96xbf16>
    %119 = vector.shape_cast %118 : vector<1x32x96xbf16> to vector<32x96xbf16>
    %120 = vector.extract_strided_slice %113 {offsets = [0, 16], sizes = [96, 256], strides = [1, 1]} : vector<96x384xbf16> to vector<96x256xbf16>
    %cst_83 = arith.constant dense<0.000000e+00> : vector<32x256xf32>
    %121 = tpu.matmul %119, %120, %cst_83 {dimension_numbers = #tpu.dot_dimension_numbers<[1], [0], [0], [1], [0, 0, 1, 1], [], []>} : vector<32x96xbf16>, vector<96x256xbf16>, vector<32x256xf32> -> vector<32x256xf32>
    %122 = arith.addf %117, %121 : vector<32x256xf32>
    %c2_84 = arith.constant 2 : index
    %c0_85 = arith.constant 0 : index
    %c0_86 = arith.constant 0 : index
    %123 = vector.load %arg5[%c2_84, %c0_85, %c0_86] : memref<9x32x96xbf16, #tpu.memory_space<vmem>>, vector<1x32x96xbf16>
    %124 = vector.shape_cast %123 : vector<1x32x96xbf16> to vector<32x96xbf16>
    %125 = vector.extract_strided_slice %113 {offsets = [0, 17], sizes = [96, 256], strides = [1, 1]} : vector<96x384xbf16> to vector<96x256xbf16>
    %cst_87 = arith.constant dense<0.000000e+00> : vector<32x256xf32>
    %126 = tpu.matmul %124, %125, %cst_87 {dimension_numbers = #tpu.dot_dimension_numbers<[1], [0], [0], [1], [0, 0, 1, 1], [], []>} : vector<32x96xbf16>, vector<96x256xbf16>, vector<32x256xf32> -> vector<32x256xf32>
    %127 = arith.addf %122, %126 : vector<32x256xf32>
    %c3_88 = arith.constant 3 : index
    %c0_89 = arith.constant 0 : index
    %c0_90 = arith.constant 0 : index
    %128 = vector.load %arg5[%c3_88, %c0_89, %c0_90] : memref<9x32x96xbf16, #tpu.memory_space<vmem>>, vector<1x32x96xbf16>
    %129 = vector.shape_cast %128 : vector<1x32x96xbf16> to vector<32x96xbf16>
    %130 = vector.extract_strided_slice %113 {offsets = [0, 31], sizes = [96, 256], strides = [1, 1]} : vector<96x384xbf16> to vector<96x256xbf16>
    %cst_91 = arith.constant dense<0.000000e+00> : vector<32x256xf32>
    %131 = tpu.matmul %129, %130, %cst_91 {dimension_numbers = #tpu.dot_dimension_numbers<[1], [0], [0], [1], [0, 0, 1, 1], [], []>} : vector<32x96xbf16>, vector<96x256xbf16>, vector<32x256xf32> -> vector<32x256xf32>
    %132 = arith.addf %127, %131 : vector<32x256xf32>
    %c4_92 = arith.constant 4 : index
    %c0_93 = arith.constant 0 : index
    %c0_94 = arith.constant 0 : index
    %133 = vector.load %arg5[%c4_92, %c0_93, %c0_94] : memref<9x32x96xbf16, #tpu.memory_space<vmem>>, vector<1x32x96xbf16>
    %134 = vector.shape_cast %133 : vector<1x32x96xbf16> to vector<32x96xbf16>
    %135 = vector.extract_strided_slice %113 {offsets = [0, 32], sizes = [96, 256], strides = [1, 1]} : vector<96x384xbf16> to vector<96x256xbf16>
    %cst_95 = arith.constant dense<0.000000e+00> : vector<32x256xf32>
    %136 = tpu.matmul %134, %135, %cst_95 {dimension_numbers = #tpu.dot_dimension_numbers<[1], [0], [0], [1], [0, 0, 1, 1], [], []>} : vector<32x96xbf16>, vector<96x256xbf16>, vector<32x256xf32> -> vector<32x256xf32>
    %137 = arith.addf %132, %136 : vector<32x256xf32>
    %c5_96 = arith.constant 5 : index
    %c0_97 = arith.constant 0 : index
    %c0_98 = arith.constant 0 : index
    %138 = vector.load %arg5[%c5_96, %c0_97, %c0_98] : memref<9x32x96xbf16, #tpu.memory_space<vmem>>, vector<1x32x96xbf16>
    %139 = vector.shape_cast %138 : vector<1x32x96xbf16> to vector<32x96xbf16>
    %140 = vector.extract_strided_slice %113 {offsets = [0, 33], sizes = [96, 256], strides = [1, 1]} : vector<96x384xbf16> to vector<96x256xbf16>
    %cst_99 = arith.constant dense<0.000000e+00> : vector<32x256xf32>
    %141 = tpu.matmul %139, %140, %cst_99 {dimension_numbers = #tpu.dot_dimension_numbers<[1], [0], [0], [1], [0, 0, 1, 1], [], []>} : vector<32x96xbf16>, vector<96x256xbf16>, vector<32x256xf32> -> vector<32x256xf32>
    %142 = arith.addf %137, %141 : vector<32x256xf32>
    %c6_100 = arith.constant 6 : index
    %c0_101 = arith.constant 0 : index
    %c0_102 = arith.constant 0 : index
    %143 = vector.load %arg5[%c6_100, %c0_101, %c0_102] : memref<9x32x96xbf16, #tpu.memory_space<vmem>>, vector<1x32x96xbf16>
    %144 = vector.shape_cast %143 : vector<1x32x96xbf16> to vector<32x96xbf16>
    %145 = vector.extract_strided_slice %113 {offsets = [0, 47], sizes = [96, 256], strides = [1, 1]} : vector<96x384xbf16> to vector<96x256xbf16>
    %cst_103 = arith.constant dense<0.000000e+00> : vector<32x256xf32>
    %146 = tpu.matmul %144, %145, %cst_103 {dimension_numbers = #tpu.dot_dimension_numbers<[1], [0], [0], [1], [0, 0, 1, 1], [], []>} : vector<32x96xbf16>, vector<96x256xbf16>, vector<32x256xf32> -> vector<32x256xf32>
    %147 = arith.addf %142, %146 : vector<32x256xf32>
    %c7_104 = arith.constant 7 : index
    %c0_105 = arith.constant 0 : index
    %c0_106 = arith.constant 0 : index
    %148 = vector.load %arg5[%c7_104, %c0_105, %c0_106] : memref<9x32x96xbf16, #tpu.memory_space<vmem>>, vector<1x32x96xbf16>
    %149 = vector.shape_cast %148 : vector<1x32x96xbf16> to vector<32x96xbf16>
    %150 = vector.extract_strided_slice %113 {offsets = [0, 48], sizes = [96, 256], strides = [1, 1]} : vector<96x384xbf16> to vector<96x256xbf16>
    %cst_107 = arith.constant dense<0.000000e+00> : vector<32x256xf32>
    %151 = tpu.matmul %149, %150, %cst_107 {dimension_numbers = #tpu.dot_dimension_numbers<[1], [0], [0], [1], [0, 0, 1, 1], [], []>} : vector<32x96xbf16>, vector<96x256xbf16>, vector<32x256xf32> -> vector<32x256xf32>
    %152 = arith.addf %147, %151 : vector<32x256xf32>
    %c8_108 = arith.constant 8 : index
    %c0_109 = arith.constant 0 : index
    %c0_110 = arith.constant 0 : index
    %153 = vector.load %arg5[%c8_108, %c0_109, %c0_110] : memref<9x32x96xbf16, #tpu.memory_space<vmem>>, vector<1x32x96xbf16>
    %154 = vector.shape_cast %153 : vector<1x32x96xbf16> to vector<32x96xbf16>
    %155 = vector.extract_strided_slice %113 {offsets = [0, 49], sizes = [96, 256], strides = [1, 1]} : vector<96x384xbf16> to vector<96x256xbf16>
    %cst_111 = arith.constant dense<0.000000e+00> : vector<32x256xf32>
    %156 = tpu.matmul %154, %155, %cst_111 {dimension_numbers = #tpu.dot_dimension_numbers<[1], [0], [0], [1], [0, 0, 1, 1], [], []>} : vector<32x96xbf16>, vector<96x256xbf16>, vector<32x256xf32> -> vector<32x256xf32>
    %157 = arith.addf %152, %156 : vector<32x256xf32>
    %158 = vector.broadcast %4 : vector<32x1xf32> to vector<32x256xf32>
    %159 = arith.addf %157, %158 : vector<32x256xf32>
    %cst_112 = arith.constant 0.000000e+00 : f32
    %160 = vector.broadcast %cst_112 : f32 to vector<32x256xf32>
    %161 = arith.maximumf %159, %160 : vector<32x256xf32>
    %c0_113 = arith.constant 0 : index
    %c0_114 = arith.constant 0 : index
    %c416 = arith.constant 416 : index
    %162 = vector.load %arg1[%c0_113, %c0_114, %c416] : memref<1x16x1536xbf16, #tpu.memory_space<vmem>>, vector<1x16x256xbf16>
    %163 = vector.shape_cast %162 : vector<1x16x256xbf16> to vector<16x256xbf16>
    %cst_115 = arith.constant dense<0.000000e+00> : vector<32x256xf32>
    %164 = tpu.matmul %2, %163, %cst_115 {dimension_numbers = #tpu.dot_dimension_numbers<[1], [0], [0], [1], [0, 0, 1, 1], [], []>} : vector<32x16xbf16>, vector<16x256xbf16>, vector<32x256xf32> -> vector<32x256xf32>
    %165 = vector.broadcast %5 : vector<32x1xf32> to vector<32x256xf32>
    %166 = arith.addf %164, %165 : vector<32x256xf32>
    %167 = arith.addf %161, %166 : vector<32x256xf32>
    %cst_116 = arith.constant 0.000000e+00 : f32
    %168 = vector.broadcast %cst_116 : f32 to vector<32x256xf32>
    %169 = arith.maximumf %167, %168 : vector<32x256xf32>
    %c0_117 = arith.constant 0 : index
    %c0_118 = arith.constant 0 : index
    %c256 = arith.constant 256 : index
    %170 = vector.load %arg9[%c0_117, %c0_118, %c256] : memref<1x32x1024xf32, #tpu.memory_space<vmem>>, vector<1x32x256xf32>
    %171 = vector.shape_cast %170 : vector<1x32x256xf32> to vector<32x256xf32>
    %172 = vector.shape_cast %169 : vector<32x256xf32> to vector<1x32x256xf32>
    tpu.vector_store %arg9[%c0_117, %c0_118, %c256], %172 {strides = array<i32>} : memref<1x32x1024xf32, #tpu.memory_space<vmem>>, vector<1x32x256xf32>,
    %c64_119 = arith.constant 64 : index
    %c0_120 = arith.constant 0 : index
    %173 = vector.load %arg10[%c64_119, %c0_120] : memref<192x384xbf16, #tpu.memory_space<vmem>>, vector<96x384xbf16>
    %c0_121 = arith.constant 0 : index
    %c0_122 = arith.constant 0 : index
    %c0_123 = arith.constant 0 : index
    %174 = vector.load %arg5[%c0_121, %c0_122, %c0_123] : memref<9x32x96xbf16, #tpu.memory_space<vmem>>, vector<1x32x96xbf16>
    %175 = vector.shape_cast %174 : vector<1x32x96xbf16> to vector<32x96xbf16>
    %176 = vector.extract_strided_slice %173 {offsets = [0, 15], sizes = [96, 256], strides = [1, 1]} : vector<96x384xbf16> to vector<96x256xbf16>
    %cst_124 = arith.constant dense<0.000000e+00> : vector<32x256xf32>
    %177 = tpu.matmul %175, %176, %cst_124 {dimension_numbers = #tpu.dot_dimension_numbers<[1], [0], [0], [1], [0, 0, 1, 1], [], []>} : vector<32x96xbf16>, vector<96x256xbf16>, vector<32x256xf32> -> vector<32x256xf32>
    %c1_125 = arith.constant 1 : index
    %c0_126 = arith.constant 0 : index
    %c0_127 = arith.constant 0 : index
    %178 = vector.load %arg5[%c1_125, %c0_126, %c0_127] : memref<9x32x96xbf16, #tpu.memory_space<vmem>>, vector<1x32x96xbf16>
    %179 = vector.shape_cast %178 : vector<1x32x96xbf16> to vector<32x96xbf16>
    %180 = vector.extract_strided_slice %173 {offsets = [0, 16], sizes = [96, 256], strides = [1, 1]} : vector<96x384xbf16> to vector<96x256xbf16>
    %cst_128 = arith.constant dense<0.000000e+00> : vector<32x256xf32>
    %181 = tpu.matmul %179, %180, %cst_128 {dimension_numbers = #tpu.dot_dimension_numbers<[1], [0], [0], [1], [0, 0, 1, 1], [], []>} : vector<32x96xbf16>, vector<96x256xbf16>, vector<32x256xf32> -> vector<32x256xf32>
    %182 = arith.addf %177, %181 : vector<32x256xf32>
    %c2_129 = arith.constant 2 : index
    %c0_130 = arith.constant 0 : index
    %c0_131 = arith.constant 0 : index
    %183 = vector.load %arg5[%c2_129, %c0_130, %c0_131] : memref<9x32x96xbf16, #tpu.memory_space<vmem>>, vector<1x32x96xbf16>
    %184 = vector.shape_cast %183 : vector<1x32x96xbf16> to vector<32x96xbf16>
    %185 = vector.extract_strided_slice %173 {offsets = [0, 17], sizes = [96, 256], strides = [1, 1]} : vector<96x384xbf16> to vector<96x256xbf16>
    %cst_132 = arith.constant dense<0.000000e+00> : vector<32x256xf32>
    %186 = tpu.matmul %184, %185, %cst_132 {dimension_numbers = #tpu.dot_dimension_numbers<[1], [0], [0], [1], [0, 0, 1, 1], [], []>} : vector<32x96xbf16>, vector<96x256xbf16>, vector<32x256xf32> -> vector<32x256xf32>
    %187 = arith.addf %182, %186 : vector<32x256xf32>
    %c3_133 = arith.constant 3 : index
    %c0_134 = arith.constant 0 : index
    %c0_135 = arith.constant 0 : index
    %188 = vector.load %arg5[%c3_133, %c0_134, %c0_135] : memref<9x32x96xbf16, #tpu.memory_space<vmem>>, vector<1x32x96xbf16>
    %189 = vector.shape_cast %188 : vector<1x32x96xbf16> to vector<32x96xbf16>
    %190 = vector.extract_strided_slice %173 {offsets = [0, 31], sizes = [96, 256], strides = [1, 1]} : vector<96x384xbf16> to vector<96x256xbf16>
    %cst_136 = arith.constant dense<0.000000e+00> : vector<32x256xf32>
    %191 = tpu.matmul %189, %190, %cst_136 {dimension_numbers = #tpu.dot_dimension_numbers<[1], [0], [0], [1], [0, 0, 1, 1], [], []>} : vector<32x96xbf16>, vector<96x256xbf16>, vector<32x256xf32> -> vector<32x256xf32>
    %192 = arith.addf %187, %191 : vector<32x256xf32>
    %c4_137 = arith.constant 4 : index
    %c0_138 = arith.constant 0 : index
    %c0_139 = arith.constant 0 : index
    %193 = vector.load %arg5[%c4_137, %c0_138, %c0_139] : memref<9x32x96xbf16, #tpu.memory_space<vmem>>, vector<1x32x96xbf16>
    %194 = vector.shape_cast %193 : vector<1x32x96xbf16> to vector<32x96xbf16>
    %195 = vector.extract_strided_slice %173 {offsets = [0, 32], sizes = [96, 256], strides = [1, 1]} : vector<96x384xbf16> to vector<96x256xbf16>
    %cst_140 = arith.constant dense<0.000000e+00> : vector<32x256xf32>
    %196 = tpu.matmul %194, %195, %cst_140 {dimension_numbers = #tpu.dot_dimension_numbers<[1], [0], [0], [1], [0, 0, 1, 1], [], []>} : vector<32x96xbf16>, vector<96x256xbf16>, vector<32x256xf32> -> vector<32x256xf32>
    %197 = arith.addf %192, %196 : vector<32x256xf32>
    %c5_141 = arith.constant 5 : index
    %c0_142 = arith.constant 0 : index
    %c0_143 = arith.constant 0 : index
    %198 = vector.load %arg5[%c5_141, %c0_142, %c0_143] : memref<9x32x96xbf16, #tpu.memory_space<vmem>>, vector<1x32x96xbf16>
    %199 = vector.shape_cast %198 : vector<1x32x96xbf16> to vector<32x96xbf16>
    %200 = vector.extract_strided_slice %173 {offsets = [0, 33], sizes = [96, 256], strides = [1, 1]} : vector<96x384xbf16> to vector<96x256xbf16>
    %cst_144 = arith.constant dense<0.000000e+00> : vector<32x256xf32>
    %201 = tpu.matmul %199, %200, %cst_144 {dimension_numbers = #tpu.dot_dimension_numbers<[1], [0], [0], [1], [0, 0, 1, 1], [], []>} : vector<32x96xbf16>, vector<96x256xbf16>, vector<32x256xf32> -> vector<32x256xf32>
    %202 = arith.addf %197, %201 : vector<32x256xf32>
    %c6_145 = arith.constant 6 : index
    %c0_146 = arith.constant 0 : index
    %c0_147 = arith.constant 0 : index
    %203 = vector.load %arg5[%c6_145, %c0_146, %c0_147] : memref<9x32x96xbf16, #tpu.memory_space<vmem>>, vector<1x32x96xbf16>
    %204 = vector.shape_cast %203 : vector<1x32x96xbf16> to vector<32x96xbf16>
    %205 = vector.extract_strided_slice %173 {offsets = [0, 47], sizes = [96, 256], strides = [1, 1]} : vector<96x384xbf16> to vector<96x256xbf16>
    %cst_148 = arith.constant dense<0.000000e+00> : vector<32x256xf32>
    %206 = tpu.matmul %204, %205, %cst_148 {dimension_numbers = #tpu.dot_dimension_numbers<[1], [0], [0], [1], [0, 0, 1, 1], [], []>} : vector<32x96xbf16>, vector<96x256xbf16>, vector<32x256xf32> -> vector<32x256xf32>
    %207 = arith.addf %202, %206 : vector<32x256xf32>
    %c7_149 = arith.constant 7 : index
    %c0_150 = arith.constant 0 : index
    %c0_151 = arith.constant 0 : index
    %208 = vector.load %arg5[%c7_149, %c0_150, %c0_151] : memref<9x32x96xbf16, #tpu.memory_space<vmem>>, vector<1x32x96xbf16>
    %209 = vector.shape_cast %208 : vector<1x32x96xbf16> to vector<32x96xbf16>
    %210 = vector.extract_strided_slice %173 {offsets = [0, 48], sizes = [96, 256], strides = [1, 1]} : vector<96x384xbf16> to vector<96x256xbf16>
    %cst_152 = arith.constant dense<0.000000e+00> : vector<32x256xf32>
    %211 = tpu.matmul %209, %210, %cst_152 {dimension_numbers = #tpu.dot_dimension_numbers<[1], [0], [0], [1], [0, 0, 1, 1], [], []>} : vector<32x96xbf16>, vector<96x256xbf16>, vector<32x256xf32> -> vector<32x256xf32>
    %212 = arith.addf %207, %211 : vector<32x256xf32>
    %c8_153 = arith.constant 8 : index
    %c0_154 = arith.constant 0 : index
    %c0_155 = arith.constant 0 : index
    %213 = vector.load %arg5[%c8_153, %c0_154, %c0_155] : memref<9x32x96xbf16, #tpu.memory_space<vmem>>, vector<1x32x96xbf16>
    %214 = vector.shape_cast %213 : vector<1x32x96xbf16> to vector<32x96xbf16>
    %215 = vector.extract_strided_slice %173 {offsets = [0, 49], sizes = [96, 256], strides = [1, 1]} : vector<96x384xbf16> to vector<96x256xbf16>
    %cst_156 = arith.constant dense<0.000000e+00> : vector<32x256xf32>
    %216 = tpu.matmul %214, %215, %cst_156 {dimension_numbers = #tpu.dot_dimension_numbers<[1], [0], [0], [1], [0, 0, 1, 1], [], []>} : vector<32x96xbf16>, vector<96x256xbf16>, vector<32x256xf32> -> vector<32x256xf32>
    %217 = arith.addf %212, %216 : vector<32x256xf32>
    %218 = vector.broadcast %4 : vector<32x1xf32> to vector<32x256xf32>
    %219 = arith.addf %217, %218 : vector<32x256xf32>
    %cst_157 = arith.constant 0.000000e+00 : f32
    %220 = vector.broadcast %cst_157 : f32 to vector<32x256xf32>
    %221 = arith.maximumf %219, %220 : vector<32x256xf32>
    %c0_158 = arith.constant 0 : index
    %c0_159 = arith.constant 0 : index
    %c800 = arith.constant 800 : index
    %222 = vector.load %arg1[%c0_158, %c0_159, %c800] : memref<1x16x1536xbf16, #tpu.memory_space<vmem>>, vector<1x16x256xbf16>
    %223 = vector.shape_cast %222 : vector<1x16x256xbf16> to vector<16x256xbf16>
    %cst_160 = arith.constant dense<0.000000e+00> : vector<32x256xf32>
    %224 = tpu.matmul %2, %223, %cst_160 {dimension_numbers = #tpu.dot_dimension_numbers<[1], [0], [0], [1], [0, 0, 1, 1], [], []>} : vector<32x16xbf16>, vector<16x256xbf16>, vector<32x256xf32> -> vector<32x256xf32>
    %225 = vector.broadcast %5 : vector<32x1xf32> to vector<32x256xf32>
    %226 = arith.addf %224, %225 : vector<32x256xf32>
    %227 = arith.addf %221, %226 : vector<32x256xf32>
    %cst_161 = arith.constant 0.000000e+00 : f32
    %228 = vector.broadcast %cst_161 : f32 to vector<32x256xf32>
    %229 = arith.maximumf %227, %228 : vector<32x256xf32>
    %c0_162 = arith.constant 0 : index
    %c0_163 = arith.constant 0 : index
    %c512 = arith.constant 512 : index
    %230 = vector.load %arg9[%c0_162, %c0_163, %c512] : memref<1x32x1024xf32, #tpu.memory_space<vmem>>, vector<1x32x256xf32>
    %231 = vector.shape_cast %230 : vector<1x32x256xf32> to vector<32x256xf32>
    %232 = vector.shape_cast %229 : vector<32x256xf32> to vector<1x32x256xf32>
    tpu.vector_store %arg9[%c0_162, %c0_163, %c512], %232 {strides = array<i32>} : memref<1x32x1024xf32, #tpu.memory_space<vmem>>, vector<1x32x256xf32>,
    %c96_164 = arith.constant 96 : index
    %c0_165 = arith.constant 0 : index
    %233 = vector.load %arg10[%c96_164, %c0_165] : memref<192x384xbf16, #tpu.memory_space<vmem>>, vector<96x384xbf16>
    %c0_166 = arith.constant 0 : index
    %c0_167 = arith.constant 0 : index
    %c0_168 = arith.constant 0 : index
    %234 = vector.load %arg5[%c0_166, %c0_167, %c0_168] : memref<9x32x96xbf16, #tpu.memory_space<vmem>>, vector<1x32x96xbf16>
    %235 = vector.shape_cast %234 : vector<1x32x96xbf16> to vector<32x96xbf16>
    %236 = vector.extract_strided_slice %233 {offsets = [0, 15], sizes = [96, 256], strides = [1, 1]} : vector<96x384xbf16> to vector<96x256xbf16>
    %cst_169 = arith.constant dense<0.000000e+00> : vector<32x256xf32>
    %237 = tpu.matmul %235, %236, %cst_169 {dimension_numbers = #tpu.dot_dimension_numbers<[1], [0], [0], [1], [0, 0, 1, 1], [], []>} : vector<32x96xbf16>, vector<96x256xbf16>, vector<32x256xf32> -> vector<32x256xf32>
    %c1_170 = arith.constant 1 : index
    %c0_171 = arith.constant 0 : index
    %c0_172 = arith.constant 0 : index
    %238 = vector.load %arg5[%c1_170, %c0_171, %c0_172] : memref<9x32x96xbf16, #tpu.memory_space<vmem>>, vector<1x32x96xbf16>
    %239 = vector.shape_cast %238 : vector<1x32x96xbf16> to vector<32x96xbf16>
    %240 = vector.extract_strided_slice %233 {offsets = [0, 16], sizes = [96, 256], strides = [1, 1]} : vector<96x384xbf16> to vector<96x256xbf16>
    %cst_173 = arith.constant dense<0.000000e+00> : vector<32x256xf32>
    %241 = tpu.matmul %239, %240, %cst_173 {dimension_numbers = #tpu.dot_dimension_numbers<[1], [0], [0], [1], [0, 0, 1, 1], [], []>} : vector<32x96xbf16>, vector<96x256xbf16>, vector<32x256xf32> -> vector<32x256xf32>
    %242 = arith.addf %237, %241 : vector<32x256xf32>
    %c2_174 = arith.constant 2 : index
    %c0_175 = arith.constant 0 : index
    %c0_176 = arith.constant 0 : index
    %243 = vector.load %arg5[%c2_174, %c0_175, %c0_176] : memref<9x32x96xbf16, #tpu.memory_space<vmem>>, vector<1x32x96xbf16>
    %244 = vector.shape_cast %243 : vector<1x32x96xbf16> to vector<32x96xbf16>
    %245 = vector.extract_strided_slice %233 {offsets = [0, 17], sizes = [96, 256], strides = [1, 1]} : vector<96x384xbf16> to vector<96x256xbf16>
    %cst_177 = arith.constant dense<0.000000e+00> : vector<32x256xf32>
    %246 = tpu.matmul %244, %245, %cst_177 {dimension_numbers = #tpu.dot_dimension_numbers<[1], [0], [0], [1], [0, 0, 1, 1], [], []>} : vector<32x96xbf16>, vector<96x256xbf16>, vector<32x256xf32> -> vector<32x256xf32>
    %247 = arith.addf %242, %246 : vector<32x256xf32>
    %c3_178 = arith.constant 3 : index
    %c0_179 = arith.constant 0 : index
    %c0_180 = arith.constant 0 : index
    %248 = vector.load %arg5[%c3_178, %c0_179, %c0_180] : memref<9x32x96xbf16, #tpu.memory_space<vmem>>, vector<1x32x96xbf16>
    %249 = vector.shape_cast %248 : vector<1x32x96xbf16> to vector<32x96xbf16>
    %250 = vector.extract_strided_slice %233 {offsets = [0, 31], sizes = [96, 256], strides = [1, 1]} : vector<96x384xbf16> to vector<96x256xbf16>
    %cst_181 = arith.constant dense<0.000000e+00> : vector<32x256xf32>
    %251 = tpu.matmul %249, %250, %cst_181 {dimension_numbers = #tpu.dot_dimension_numbers<[1], [0], [0], [1], [0, 0, 1, 1], [], []>} : vector<32x96xbf16>, vector<96x256xbf16>, vector<32x256xf32> -> vector<32x256xf32>
    %252 = arith.addf %247, %251 : vector<32x256xf32>
    %c4_182 = arith.constant 4 : index
    %c0_183 = arith.constant 0 : index
    %c0_184 = arith.constant 0 : index
    %253 = vector.load %arg5[%c4_182, %c0_183, %c0_184] : memref<9x32x96xbf16, #tpu.memory_space<vmem>>, vector<1x32x96xbf16>
    %254 = vector.shape_cast %253 : vector<1x32x96xbf16> to vector<32x96xbf16>
    %255 = vector.extract_strided_slice %233 {offsets = [0, 32], sizes = [96, 256], strides = [1, 1]} : vector<96x384xbf16> to vector<96x256xbf16>
    %cst_185 = arith.constant dense<0.000000e+00> : vector<32x256xf32>
    %256 = tpu.matmul %254, %255, %cst_185 {dimension_numbers = #tpu.dot_dimension_numbers<[1], [0], [0], [1], [0, 0, 1, 1], [], []>} : vector<32x96xbf16>, vector<96x256xbf16>, vector<32x256xf32> -> vector<32x256xf32>
    %257 = arith.addf %252, %256 : vector<32x256xf32>
    %c5_186 = arith.constant 5 : index
    %c0_187 = arith.constant 0 : index
    %c0_188 = arith.constant 0 : index
    %258 = vector.load %arg5[%c5_186, %c0_187, %c0_188] : memref<9x32x96xbf16, #tpu.memory_space<vmem>>, vector<1x32x96xbf16>
    %259 = vector.shape_cast %258 : vector<1x32x96xbf16> to vector<32x96xbf16>
    %260 = vector.extract_strided_slice %233 {offsets = [0, 33], sizes = [96, 256], strides = [1, 1]} : vector<96x384xbf16> to vector<96x256xbf16>
    %cst_189 = arith.constant dense<0.000000e+00> : vector<32x256xf32>
    %261 = tpu.matmul %259, %260, %cst_189 {dimension_numbers = #tpu.dot_dimension_numbers<[1], [0], [0], [1], [0, 0, 1, 1], [], []>} : vector<32x96xbf16>, vector<96x256xbf16>, vector<32x256xf32> -> vector<32x256xf32>
    %262 = arith.addf %257, %261 : vector<32x256xf32>
    %c6_190 = arith.constant 6 : index
    %c0_191 = arith.constant 0 : index
    %c0_192 = arith.constant 0 : index
    %263 = vector.load %arg5[%c6_190, %c0_191, %c0_192] : memref<9x32x96xbf16, #tpu.memory_space<vmem>>, vector<1x32x96xbf16>
    %264 = vector.shape_cast %263 : vector<1x32x96xbf16> to vector<32x96xbf16>
    %265 = vector.extract_strided_slice %233 {offsets = [0, 47], sizes = [96, 256], strides = [1, 1]} : vector<96x384xbf16> to vector<96x256xbf16>
    %cst_193 = arith.constant dense<0.000000e+00> : vector<32x256xf32>
    %266 = tpu.matmul %264, %265, %cst_193 {dimension_numbers = #tpu.dot_dimension_numbers<[1], [0], [0], [1], [0, 0, 1, 1], [], []>} : vector<32x96xbf16>, vector<96x256xbf16>, vector<32x256xf32> -> vector<32x256xf32>
    %267 = arith.addf %262, %266 : vector<32x256xf32>
    %c7_194 = arith.constant 7 : index
    %c0_195 = arith.constant 0 : index
    %c0_196 = arith.constant 0 : index
    %268 = vector.load %arg5[%c7_194, %c0_195, %c0_196] : memref<9x32x96xbf16, #tpu.memory_space<vmem>>, vector<1x32x96xbf16>
    %269 = vector.shape_cast %268 : vector<1x32x96xbf16> to vector<32x96xbf16>
    %270 = vector.extract_strided_slice %233 {offsets = [0, 48], sizes = [96, 256], strides = [1, 1]} : vector<96x384xbf16> to vector<96x256xbf16>
    %cst_197 = arith.constant dense<0.000000e+00> : vector<32x256xf32>
    %271 = tpu.matmul %269, %270, %cst_197 {dimension_numbers = #tpu.dot_dimension_numbers<[1], [0], [0], [1], [0, 0, 1, 1], [], []>} : vector<32x96xbf16>, vector<96x256xbf16>, vector<32x256xf32> -> vector<32x256xf32>
    %272 = arith.addf %267, %271 : vector<32x256xf32>
    %c8_198 = arith.constant 8 : index
    %c0_199 = arith.constant 0 : index
    %c0_200 = arith.constant 0 : index
    %273 = vector.load %arg5[%c8_198, %c0_199, %c0_200] : memref<9x32x96xbf16, #tpu.memory_space<vmem>>, vector<1x32x96xbf16>
    %274 = vector.shape_cast %273 : vector<1x32x96xbf16> to vector<32x96xbf16>
    %275 = vector.extract_strided_slice %233 {offsets = [0, 49], sizes = [96, 256], strides = [1, 1]} : vector<96x384xbf16> to vector<96x256xbf16>
    %cst_201 = arith.constant dense<0.000000e+00> : vector<32x256xf32>
    %276 = tpu.matmul %274, %275, %cst_201 {dimension_numbers = #tpu.dot_dimension_numbers<[1], [0], [0], [1], [0, 0, 1, 1], [], []>} : vector<32x96xbf16>, vector<96x256xbf16>, vector<32x256xf32> -> vector<32x256xf32>
    %277 = arith.addf %272, %276 : vector<32x256xf32>
    %278 = vector.broadcast %4 : vector<32x1xf32> to vector<32x256xf32>
    %279 = arith.addf %277, %278 : vector<32x256xf32>
    %cst_202 = arith.constant 0.000000e+00 : f32
    %280 = vector.broadcast %cst_202 : f32 to vector<32x256xf32>
    %281 = arith.maximumf %279, %280 : vector<32x256xf32>
    %c0_203 = arith.constant 0 : index
    %c0_204 = arith.constant 0 : index
    %c1184 = arith.constant 1184 : index
    %282 = vector.load %arg1[%c0_203, %c0_204, %c1184] : memref<1x16x1536xbf16, #tpu.memory_space<vmem>>, vector<1x16x256xbf16>
    %283 = vector.shape_cast %282 : vector<1x16x256xbf16> to vector<16x256xbf16>
    %cst_205 = arith.constant dense<0.000000e+00> : vector<32x256xf32>
    %284 = tpu.matmul %2, %283, %cst_205 {dimension_numbers = #tpu.dot_dimension_numbers<[1], [0], [0], [1], [0, 0, 1, 1], [], []>} : vector<32x16xbf16>, vector<16x256xbf16>, vector<32x256xf32> -> vector<32x256xf32>
    %285 = vector.broadcast %5 : vector<32x1xf32> to vector<32x256xf32>
    %286 = arith.addf %284, %285 : vector<32x256xf32>
    %287 = arith.addf %281, %286 : vector<32x256xf32>
    %cst_206 = arith.constant 0.000000e+00 : f32
    %288 = vector.broadcast %cst_206 : f32 to vector<32x256xf32>
    %289 = arith.maximumf %287, %288 : vector<32x256xf32>
    %c0_207 = arith.constant 0 : index
    %c0_208 = arith.constant 0 : index
    %c768_209 = arith.constant 768 : index
    %290 = vector.load %arg9[%c0_207, %c0_208, %c768_209] : memref<1x32x1024xf32, #tpu.memory_space<vmem>>, vector<1x32x256xf32>
    %291 = vector.shape_cast %290 : vector<1x32x256xf32> to vector<32x256xf32>
    %292 = vector.shape_cast %289 : vector<32x256xf32> to vector<1x32x256xf32>
    tpu.vector_store %arg9[%c0_207, %c0_208, %c768_209], %292 {strides = array<i32>} : memref<1x32x1024xf32, #tpu.memory_space<vmem>>, vector<1x32x256xf32>,
    return
  }
  func.func @transform_0(%arg0: i32) -> (i32, i32, i32) {
    %c0_i32 = arith.constant 0 : i32
    %c0_i32_0 = arith.constant 0 : i32
    %c0_i32_1 = arith.constant 0 : i32
    return %arg0, %c0_i32, %c0_i32_0 : i32, i32, i32
  }
  func.func @transform_1(%arg0: i32) -> (i32, i32) {
    %c0_i32 = arith.constant 0 : i32
    %c0_i32_0 = arith.constant 0 : i32
    %c0_i32_1 = arith.constant 0 : i32
    return %c0_i32, %c0_i32_0 : i32, i32
  }
  func.func @transform_2(%arg0: i32) -> (i32, i32) {
    %c0_i32 = arith.constant 0 : i32
    %c0_i32_0 = arith.constant 0 : i32
    %c0_i32_1 = arith.constant 0 : i32
    return %c0_i32, %c0_i32_0 : i32, i32
  }
  func.func @transform_3(%arg0: i32) -> (i32, i32) {
    %c0_i32 = arith.constant 0 : i32
    %c0_i32_0 = arith.constant 0 : i32
    %c0_i32_1 = arith.constant 0 : i32
    return %c0_i32, %c0_i32_0 : i32, i32
  }
  func.func @transform_4(%arg0: i32) -> (i32, i32, i32) {
    %c0_i32 = arith.constant 0 : i32
    %c0_i32_0 = arith.constant 0 : i32
    %c0_i32_1 = arith.constant 0 : i32
    %c0_i32_2 = arith.constant 0 : i32
    return %c0_i32, %c0_i32_0, %c0_i32_1 : i32, i32, i32
  }
  func.func @transform_5(%arg0: i32) -> (i32, i32) {
    %c0_i32 = arith.constant 0 : i32
    %c0_i32_0 = arith.constant 0 : i32
    %c0_i32_1 = arith.constant 0 : i32
    return %c0_i32, %c0_i32_0 : i32, i32
  }
  func.func @transform_6(%arg0: i32) -> (i32, i32) {
    %c0_i32 = arith.constant 0 : i32
    %c0_i32_0 = arith.constant 0 : i32
    %c0_i32_1 = arith.constant 0 : i32
    return %c0_i32, %c0_i32_0 : i32, i32
  }
  func.func @transform_7(%arg0: i32) -> (i32, i32) {
    %c0_i32 = arith.constant 0 : i32
    %c0_i32_0 = arith.constant 0 : i32
    %c0_i32_1 = arith.constant 0 : i32
    return %c0_i32, %c0_i32_0 : i32, i32
  }
  func.func @transform_8(%arg0: i32) -> (i32, i32, i32) {
    %c0_i32 = arith.constant 0 : i32
    %c0_i32_0 = arith.constant 0 : i32
    %c0_i32_1 = arith.constant 0 : i32
    return %arg0, %c0_i32, %c0_i32_0 : i32, i32, i32
  }
}

</mosaic_0001>

<llo_original>
// kernel: decoder_res_block.1
$region0: #{decoder_res_block.1}
  #allocation0 [shape = 'u32[]', space=smem, size = 0x4, offset = 0x4, fixed_abs, tag = 'smem constant byte address 0x4 - core index']
  #allocation1 [shape = 'u32[144,128]{1,0:T(1,128)}', space=vmem, size = 0x12000, scoped, tag = 'internal scratch']
  #allocation2 [shape = 'bf16[192,384]{1,0:T(8,128)(2,1)}', space=vmem, size = 0x24000, scoped, tag = 'scratch operand']
  %s0 = inlined_call_operand.vmem [shape: bf16[2,16,1536], index: 0, kind: input, shape index: {}]
  %s1 = inlined_call_operand.vmem [shape: f32[1,384], index: 1, kind: input, shape index: {}]
  %s2 = inlined_call_operand.vmem [shape: bf16[32,16], index: 2, kind: input, shape index: {}]
  %s3 = inlined_call_operand.vmem [shape: f32[32,1], index: 3, kind: input, shape index: {}]
  %s4 = inlined_call_operand.vmem [shape: bf16[9,32,96], index: 4, kind: input, shape index: {}]
  %s5 = inlined_call_operand.vmem [shape: f32[32,1], index: 5, kind: input, shape index: {}]
  %s6 = inlined_call_operand.vmem [shape: bf16[32,16], index: 6, kind: input, shape index: {}]
  %s7 = inlined_call_operand.vmem [shape: f32[32,1], index: 7, kind: input, shape index: {}]
  %s8 = inlined_call_operand.vmem [shape: f32[2,32,1024], index: 8, kind: output, shape index: {}]
  %s9 = sld [smem:[#allocation0]]
  $region65: #{decoder_res_block.1} parent=0
    _
  %s11 = ssub.s32 1, %s9
  %s12 = scalar_select 0, %s11, %s9
  loop: start=0, step=1, limit=4
  $region2: #{decoder_res_block.1} parent=0 // loop_pre_header
    _
  $region3: #{decoder_res_block.1} parent=0 // loop_header
    %s14 = sphi 0, %s18
    %p15 = scmp.ge.s32.totalorder %s14, 4
    %s24 = sphi 0, %s26
    %s27 = sphi 0, %s24
    %s28 = sphi 0, %s27
    %s44 = sphi 0, %s28
    %s48 = sphi 0, %s48
    %s50 = sphi 0, %s48
    %s51 = sphi 0, %s50
    %s65 = sphi 0, %s51
    %s69 = sphi 0, %s69
    %s71 = sphi 0, %s69
    %s72 = sphi 0, %s71
    %s86 = sphi 0, %s72
    %s90 = sphi 0, %s90
    %s92 = sphi 0, %s90
    %s93 = sphi 0, %s92
    %s107 = sphi 0, %s93
    %s111 = sphi 0, %s111
    %s113 = sphi 0, %s111
    %s114 = sphi 0, %s113
    %s128 = sphi 0, %s114
    %s132 = sphi 0, %s132
    %s134 = sphi 0, %s132
    %s135 = sphi 0, %s134
    %s149 = sphi 0, %s135
    %s153 = sphi 0, %s153
    %s155 = sphi 0, %s153
    %s156 = sphi 0, %s155
    %s170 = sphi 0, %s156
    %s174 = sphi 0, %s174
    %s176 = sphi 0, %s174
    %s177 = sphi 0, %s176
    %s191 = sphi 0, %s177
    %s197 = sphi 0, %s199
    %s200 = sphi 0, %s197
    %s201 = sphi 0, %s200
    %s217 = sphi 0, %s201
  $region4: #{decoder_res_block.1} parent=0 // loop_header_branch
    %17 = sbr.rel (%p15) target = $region8
  $region5: #{decoder_res_block.1} parent=0 // loop_body
    %s19 = ssub.s32 %s14, 1
    %s20 = ssub.s32 %s14, 2
    %s21 = sadd.s32 %s14, 1
    %s22 = ssub.s32 %s14, %s21
    %p23 = scmp.eq.s32.totalorder %s22, 0
    %s25 = sadd.s32 %s24, 1
    %s26 = scalar_select %p23, %s24, %s25
    %p29 = pneg %p23
    %p30 = scmp.eq.s32.totalorder %s14, 1
    %p31 = por %p29, %p30
    %p32 = scmp.ne.s32.totalorder %s24, %s27
    %p33 = scmp.eq.s32.totalorder %s14, 0
    %p34 = por %p32, %p33
    %p35 = scmp.ne.s32.totalorder %s24, %s27
    %p36 = scmp.eq.s32.totalorder %s19, 1
    %p37 = por %p35, %p36
    %p38 = scmp.ne.s32.totalorder %s27, %s28
    %p39 = scmp.eq.s32.totalorder %s19, 0
    %p40 = por %p38, %p39
    %p41 = scmp.ne.s32.totalorder %s27, %s28
    %p42 = scmp.eq.s32.totalorder %s20, 1
    %p43 = por %p41, %p42
    %p45 = scmp.ne.s32.totalorder %s28, %s44
    %p46 = scmp.eq.s32.totalorder %s20, 0
    %p47 = por %p45, %p46
    %s49 = sadd.s32 %s48, 1
    %p52 = scmp.eq.s32.totalorder %s14, 1
    %p53 = scmp.ne.s32.totalorder %s48, %s50
    %p54 = scmp.eq.s32.totalorder %s14, 0
    %p55 = por %p53, %p54
    %p56 = scmp.ne.s32.totalorder %s48, %s50
    %p57 = scmp.eq.s32.totalorder %s19, 1
    %p58 = por %p56, %p57
    %p59 = scmp.ne.s32.totalorder %s50, %s51
    %p60 = scmp.eq.s32.totalorder %s19, 0
    %p61 = por %p59, %p60
    %p62 = scmp.ne.s32.totalorder %s50, %s51
    %p63 = scmp.eq.s32.totalorder %s20, 1
    %p64 = por %p62, %p63
    %p66 = scmp.ne.s32.totalorder %s51, %s65
    %p67 = scmp.eq.s32.totalorder %s20, 0
    %p68 = por %p66, %p67
    %s70 = sadd.s32 %s69, 1
    %p73 = scmp.eq.s32.totalorder %s14, 1
    %p74 = scmp.ne.s32.totalorder %s69, %s71
    %p75 = scmp.eq.s32.totalorder %s14, 0
    %p76 = por %p74, %p75
    %p77 = scmp.ne.s32.totalorder %s69, %s71
    %p78 = scmp.eq.s32.totalorder %s19, 1
    %p79 = por %p77, %p78
    %p80 = scmp.ne.s32.totalorder %s71, %s72
    %p81 = scmp.eq.s32.totalorder %s19, 0
    %p82 = por %p80, %p81
    %p83 = scmp.ne.s32.totalorder %s71, %s72
    %p84 = scmp.eq.s32.totalorder %s20, 1
    %p85 = por %p83, %p84
    %p87 = scmp.ne.s32.totalorder %s72, %s86
    %p88 = scmp.eq.s32.totalorder %s20, 0
    %p89 = por %p87, %p88
    %s91 = sadd.s32 %s90, 1
    %p94 = scmp.eq.s32.totalorder %s14, 1
    %p95 = scmp.ne.s32.totalorder %s90, %s92
    %p96 = scmp.eq.s32.totalorder %s14, 0
    %p97 = por %p95, %p96
    %p98 = scmp.ne.s32.totalorder %s90, %s92
    %p99 = scmp.eq.s32.totalorder %s19, 1
    %p100 = por %p98, %p99
    %p101 = scmp.ne.s32.totalorder %s92, %s93
    %p102 = scmp.eq.s32.totalorder %s19, 0
    %p103 = por %p101, %p102
    %p104 = scmp.ne.s32.totalorder %s92, %s93
    %p105 = scmp.eq.s32.totalorder %s20, 1
    %p106 = por %p104, %p105
    %p108 = scmp.ne.s32.totalorder %s93, %s107
    %p109 = scmp.eq.s32.totalorder %s20, 0
    %p110 = por %p108, %p109
    %s112 = sadd.s32 %s111, 1
    %p115 = scmp.eq.s32.totalorder %s14, 1
    %p116 = scmp.ne.s32.totalorder %s111, %s113
    %p117 = scmp.eq.s32.totalorder %s14, 0
    %p118 = por %p116, %p117
    %p119 = scmp.ne.s32.totalorder %s111, %s113
    %p120 = scmp.eq.s32.totalorder %s19, 1
    %p121 = por %p119, %p120
    %p122 = scmp.ne.s32.totalorder %s113, %s114
    %p123 = scmp.eq.s32.totalorder %s19, 0
    %p124 = por %p122, %p123
    %p125 = scmp.ne.s32.totalorder %s113, %s114
    %p126 = scmp.eq.s32.totalorder %s20, 1
    %p127 = por %p125, %p126
    %p129 = scmp.ne.s32.totalorder %s114, %s128
    %p130 = scmp.eq.s32.totalorder %s20, 0
    %p131 = por %p129, %p130
    %s133 = sadd.s32 %s132, 1
    %p136 = scmp.eq.s32.totalorder %s14, 1
    %p137 = scmp.ne.s32.totalorder %s132, %s134
    %p138 = scmp.eq.s32.totalorder %s14, 0
    %p139 = por %p137, %p138
    %p140 = scmp.ne.s32.totalorder %s132, %s134
    %p141 = scmp.eq.s32.totalorder %s19, 1
    %p142 = por %p140, %p141
    %p143 = scmp.ne.s32.totalorder %s134, %s135
    %p144 = scmp.eq.s32.totalorder %s19, 0
    %p145 = por %p143, %p144
    %p146 = scmp.ne.s32.totalorder %s134, %s135
    %p147 = scmp.eq.s32.totalorder %s20, 1
    %p148 = por %p146, %p147
    %p150 = scmp.ne.s32.totalorder %s135, %s149
    %p151 = scmp.eq.s32.totalorder %s20, 0
    %p152 = por %p150, %p151
    %s154 = sadd.s32 %s153, 1
    %p157 = scmp.eq.s32.totalorder %s14, 1
    %p158 = scmp.ne.s32.totalorder %s153, %s155
    %p159 = scmp.eq.s32.totalorder %s14, 0
    %p160 = por %p158, %p159
    %p161 = scmp.ne.s32.totalorder %s153, %s155
    %p162 = scmp.eq.s32.totalorder %s19, 1
    %p163 = por %p161, %p162
    %p164 = scmp.ne.s32.totalorder %s155, %s156
    %p165 = scmp.eq.s32.totalorder %s19, 0
    %p166 = por %p164, %p165
    %p167 = scmp.ne.s32.totalorder %s155, %s156
    %p168 = scmp.eq.s32.totalorder %s20, 1
    %p169 = por %p167, %p168
    %p171 = scmp.ne.s32.totalorder %s156, %s170
    %p172 = scmp.eq.s32.totalorder %s20, 0
    %p173 = por %p171, %p172
    %s175 = sadd.s32 %s174, 1
    %p178 = scmp.eq.s32.totalorder %s14, 1
    %p179 = scmp.ne.s32.totalorder %s174, %s176
    %p180 = scmp.eq.s32.totalorder %s14, 0
    %p181 = por %p179, %p180
    %p182 = scmp.ne.s32.totalorder %s174, %s176
    %p183 = scmp.eq.s32.totalorder %s19, 1
    %p184 = por %p182, %p183
    %p185 = scmp.ne.s32.totalorder %s176, %s177
    %p186 = scmp.eq.s32.totalorder %s19, 0
    %p187 = por %p185, %p186
    %p188 = scmp.ne.s32.totalorder %s176, %s177
    %p189 = scmp.eq.s32.totalorder %s20, 1
    %p190 = por %p188, %p189
    %p192 = scmp.ne.s32.totalorder %s177, %s191
    %p193 = scmp.eq.s32.totalorder %s20, 0
    %p194 = por %p192, %p193
    %s195 = ssub.s32 %s14, %s21
    %p196 = scmp.eq.s32.totalorder %s195, 0
    %s198 = sadd.s32 %s197, 1
    %s199 = scalar_select %p196, %s197, %s198
    %p202 = pneg %p196
    %p203 = scmp.eq.s32.totalorder %s14, 1
    %p204 = por %p202, %p203
    %p205 = scmp.ne.s32.totalorder %s197, %s200
    %p206 = scmp.eq.s32.totalorder %s14, 0
    %p207 = por %p205, %p206
    %p208 = scmp.ne.s32.totalorder %s197, %s200
    %p209 = scmp.eq.s32.totalorder %s19, 1
    %p210 = por %p208, %p209
    %p211 = scmp.ne.s32.totalorder %s200, %s201
    %p212 = scmp.eq.s32.totalorder %s19, 0
    %p213 = por %p211, %p212
    %p214 = scmp.ne.s32.totalorder %s200, %s201
    %p215 = scmp.eq.s32.totalorder %s20, 1
    %p216 = por %p214, %p215
    %p218 = scmp.ne.s32.totalorder %s201, %s217
    %p219 = scmp.eq.s32.totalorder %s20, 0
    %p220 = por %p218, %p219
    %p221 = scmp.le.s32.totalorder 1, %s14
    %p222 = scmp.lt.s32.totalorder %s14, 3
    %p223 = pnand %p221, %p222
    %p224 = pneg %p223
    // Predicated region
    $region9: #{decoder_res_block.1} parent=5 // pred_check
      _
    $region10: #{decoder_res_block.1} parent=5 // pred_check_branch
      %226 = sbr.rel (%p223) target = $region12
    $region11: #{decoder_res_block.1} parent=5 // pred_region
      %s227 = ssub.s32 %s14, 1
      // Predicated region
      $region13: #{decoder_res_block.1} parent=11 // pred_check
        %p228 = pneg %p61
      $region14: #{decoder_res_block.1} parent=11 // pred_check_branch
        %230 = sbr.rel (%p228) target = $region16
      $region15: #{decoder_res_block.1} parent=11 // pred_region
        _
      $region16: #{decoder_res_block.1} parent=11 // pred_fallthru
        _
      // Predicated region
      $region17: #{decoder_res_block.1} parent=11 // pred_check
        %p231 = pneg %p82
      $region18: #{decoder_res_block.1} parent=11 // pred_check_branch
        %233 = sbr.rel (%p231) target = $region20
      $region19: #{decoder_res_block.1} parent=11 // pred_region
        _
      $region20: #{decoder_res_block.1} parent=11 // pred_fallthru
        _
      // Predicated region
      $region21: #{decoder_res_block.1} parent=11 // pred_check
        %p234 = pneg %p103
      $region22: #{decoder_res_block.1} parent=11 // pred_check_branch
        %236 = sbr.rel (%p234) target = $region24
      $region23: #{decoder_res_block.1} parent=11 // pred_region
        _
      $region24: #{decoder_res_block.1} parent=11 // pred_fallthru
        _
      // Predicated region
      $region25: #{decoder_res_block.1} parent=11 // pred_check
        %p237 = pneg %p124
      $region26: #{decoder_res_block.1} parent=11 // pred_check_branch
        %239 = sbr.rel (%p237) target = $region28
      $region27: #{decoder_res_block.1} parent=11 // pred_region
        _
      $region28: #{decoder_res_block.1} parent=11 // pred_fallthru
        _
      // Predicated region
      $region29: #{decoder_res_block.1} parent=11 // pred_check
        %p240 = pneg %p145
      $region30: #{decoder_res_block.1} parent=11 // pred_check_branch
        %242 = sbr.rel (%p240) target = $region32
      $region31: #{decoder_res_block.1} parent=11 // pred_region
        _
      $region32: #{decoder_res_block.1} parent=11 // pred_fallthru
        _
      // Predicated region
      $region33: #{decoder_res_block.1} parent=11 // pred_check
        %p243 = pneg %p166
      $region34: #{decoder_res_block.1} parent=11 // pred_check_branch
        %245 = sbr.rel (%p243) target = $region36
      $region35: #{decoder_res_block.1} parent=11 // pred_region
        _
      $region36: #{decoder_res_block.1} parent=11 // pred_fallthru
        _
      // Predicated region
      $region37: #{decoder_res_block.1} parent=11 // pred_check
        %p246 = pneg %p187
      $region38: #{decoder_res_block.1} parent=11 // pred_check_branch
        %248 = sbr.rel (%p246) target = $region40
      $region39: #{decoder_res_block.1} parent=11 // pred_region
        _
      $region40: #{decoder_res_block.1} parent=11 // pred_fallthru
        _
    $region12: #{decoder_res_block.1} parent=5 // pred_fallthru
      _
    %p249 = scmp.lt.s32.totalorder %s14, 2
    // Predicated region
    $region41: #{decoder_res_block.1} parent=5 // pred_check
      %p250 = pneg %p249
    $region42: #{decoder_res_block.1} parent=5 // pred_check_branch
      %252 = sbr.rel (%p250) target = $region44
    $region43: #{decoder_res_block.1} parent=5 // pred_region
      // Predicated region
      $region45: #{decoder_res_block.1} parent=43 // pred_check
        %p253 = pneg %p34
      $region46: #{decoder_res_block.1} parent=43 // pred_check_branch
        %255 = sbr.rel (%p253) target = $region48
      $region47: #{decoder_res_block.1} parent=43 // pred_region
        %p256 = scmp.lt.s32.totalorder %s14, 1
        %s257 = scalar_select %p256, %s14, 1
        %s258 = smul.addr %s257, 24
        %s259 = smul.addr %s258, 4
        %s260 = scalar_lea.vmem %s0, %s259
      $region48: #{decoder_res_block.1} parent=43 // pred_fallthru
        _
    $region44: #{decoder_res_block.1} parent=5 // pred_fallthru
      _
    %p261 = scmp.le.s32.totalorder 1, %s14
    %p262 = scmp.lt.s32.totalorder %s14, 3
    %p263 = pnand %p261, %p262
    %p264 = pneg %p263
    // Predicated region
    $region49: #{decoder_res_block.1} parent=5 // pred_check
      _
    $region50: #{decoder_res_block.1} parent=5 // pred_check_branch
      %266 = sbr.rel (%p263) target = $region52
    $region51: #{decoder_res_block.1} parent=5 // pred_region
      %s267 = ssub.s32 %s14, 1
      %p268 = scmp.lt.s32.totalorder %s19, 1
      %s269 = scalar_select %p268, %s19, 1
      %s270 = smul.addr %s269, 24
      %s271 = smul.addr %s270, 4
      %s272 = scalar_lea.vmem %s0, %s271
      %p273 = pneg %p40
      %p274 = pneg %p37
      %p275 = pneg %p61
      %p276 = pneg %p58
      %p277 = pneg %p82
      %p278 = pneg %p79
      %p279 = pneg %p103
      %p280 = pneg %p100
      %p281 = pneg %p124
      %p282 = pneg %p121
      %p283 = pneg %p145
      %p284 = pneg %p142
      %p285 = pneg %p166
      %p286 = pneg %p163
      %p287 = pneg %p187
      %p288 = pneg %p184
      %p289 = pneg %p213
      %p290 = pneg %p210
      %p291 = scmp.lt.s32.totalorder %s19, 1
      %s292 = scalar_select %p291, %s19, 1
      %s293 = smul.addr %s292, 32
      %s294 = smul.addr %s293, 8
      %s295 = scalar_lea.vmem %s8, %s294
      %p296 = scmp.lt.s32.totalorder %s19, 1
      %s297 = scalar_select %p296, %s19, 1
      %s298 = smul.addr %s297, 24
      %s299 = smul.addr %s298, 4
      %s300 = scalar_lea.vmem %s0, %s299
      %p301 = scmp.lt.s32.totalorder %s19, 1
      %s302 = scalar_select %p301, %s19, 1
      %s303 = smul.addr %s302, 32
      %s304 = smul.addr %s303, 8
      %s305 = scalar_lea.vmem %s8, %s304
      %v307 = vld [vmem:[%s1] sm:$0x7]
      %v308 = vld [vmem:[%s2] sm:$0xf]
      %v309 = vld [vmem:[%s2 + $0x4] sm:$0xf]
      %v310 = vld [vmem:[%s2 + $0x8] sm:$0xf]
      %v311 = vld [vmem:[%s2 + $0xc] sm:$0xf]
      %v312 = vld [vmem:[%s6] sm:$0xf]
      %v313 = vld [vmem:[%s6 + $0x4] sm:$0xf]
      %v314 = vld [vmem:[%s6 + $0x8] sm:$0xf]
      %v315 = vld [vmem:[%s6 + $0xc] sm:$0xf]
      %v316 = vld [vmem:[%s3] sm:$0xff]
      %v317 = vld [vmem:[%s3 + $0x8] sm:$0xff]
      %v318 = vld [vmem:[%s3 + $0x10] sm:$0xff]
      %v319 = vld [vmem:[%s3 + $0x18] sm:$0xff]
      %v320 = vld [vmem:[%s5] sm:$0xff]
      %v321 = vld [vmem:[%s5 + $0x8] sm:$0xff]
      %v322 = vld [vmem:[%s5 + $0x10] sm:$0xff]
      %v323 = vld [vmem:[%s5 + $0x18] sm:$0xff]
      %v324 = vld [vmem:[%s7] sm:$0xff]
      %v325 = vld [vmem:[%s7 + $0x8] sm:$0xff]
      %v326 = vld [vmem:[%s7 + $0x10] sm:$0xff]
      %v327 = vld [vmem:[%s7 + $0x18] sm:$0xff]
      %328 = vst [vmem:[#allocation2] sm:$0xff] 0
      %329 = vst [vmem:[#allocation2 + $0x8] sm:$0xf] 0
      %330 = vst [vmem:[#allocation2 + $0xc] sm:$0xff] 0
      %331 = vst [vmem:[#allocation2 + $0x14] sm:$0xf] 0
      %332 = vst [vmem:[#allocation2 + $0x18] sm:$0xff] 0
      %333 = vst [vmem:[#allocation2 + $0x20] sm:$0xf] 0
      %334 = vst [vmem:[#allocation2 + $0x24] sm:$0xff] 0
      %335 = vst [vmem:[#allocation2 + $0x2c] sm:$0xf] 0
      %336 = vst [vmem:[#allocation2 + $0xf0] sm:$0xff] 0
      %337 = vst [vmem:[#allocation2 + $0xf8] sm:$0xf] 0
      %338 = vst [vmem:[#allocation2 + $0xfc] sm:$0xff] 0
      %339 = vst [vmem:[#allocation2 + $0x104] sm:$0xf] 0
      %340 = vst [vmem:[#allocation2 + $0x108] sm:$0xff] 0
      %341 = vst [vmem:[#allocation2 + $0x110] sm:$0xf] 0
      %342 = vst [vmem:[#allocation2 + $0x114] sm:$0xff] 0
      %343 = vst [vmem:[#allocation2 + $0x11c] sm:$0xf] 0
      %v344 = vld [vmem:[%s300] sm:$0xff]
      %v345 = vld [vmem:[%s300 + $0x8] sm:$0xf]
      %v346 = vld [vmem:[%s300 + $0x30] sm:$0xff]
      %v347 = vld [vmem:[%s300 + $0x38] sm:$0xf]
      %349 = vset.pattern.permute.xlu0 0
      %350 = vperm.xlu0 %349, %v316
      %v351 = vpop.permute.xlu0 %350
      %354 = vset.pattern.permute.xlu0 0
      %355 = vperm.xlu0 %354, %v317
      %v356 = vpop.permute.xlu0 %355
      %359 = vset.pattern.permute.xlu0 0
      %360 = vperm.xlu0 %359, %v318
      %v361 = vpop.permute.xlu0 %360
      %364 = vset.pattern.permute.xlu0 0
      %365 = vperm.xlu0 %364, %v319
      %v366 = vpop.permute.xlu0 %365
      %v372 = vunpack.c.l.b16 %v308
      %v373 = vunpack.c.l.b16 %v309
      %v374 = vunpack.c.l.b16 %v310
      %v375 = vunpack.c.l.b16 %v311
      %v376 = vpack.c.b16 %v373, %v372
      %v377 = vpack.c.b16 %v375, %v374
      %v382 = vunpack.c.l.b16 %v344
      %v383 = vunpack.c.h.b16 %v344
      %v384 = vunpack.c.l.b16 %v345
      %v385 = vunpack.c.l.b16 %v346
      %v386 = vunpack.c.h.b16 %v346
      %v387 = vunpack.c.l.b16 %v347
      %v388 = vpack.c.b16 %v385, %v382
      %v389 = vpack.c.b16 %v386, %v383
      %v390 = vpack.c.b16 %v387, %v384
      %vm394 = vcmask 130048
      %v396 = vsel %vm394, %v376, 0
      %v399 = vsel %vm394, %v377, 0
      %401 = vmatprep.subr.bf16.mxu0 0
      %402 = vmatpush1.bf16.msra.mxu0 0
      %403 = vmatprep.subr.bf16.mxu0 0
      %404 = vmatpush1.bf16.msra.mxu0 0
      %405 = vmatprep.subr.bf16.mxu0 0
      %406 = vmatpush1.bf16.msra.mxu0 0
      %407 = vmatprep.subr.bf16.mxu0 0
      %408 = vmatpush1.bf16.msra.mxu0 0
      %409 = vmatprep.subr.bf16.mxu0 0
      %410 = vmatpush1.bf16.msra.mxu0 0
      %411 = vmatprep.subr.bf16.mxu0 0
      %412 = vmatpush1.bf16.msra.mxu0 0
      %413 = vmatprep.subr.bf16.mxu0 0
      %414 = vmatpush1.bf16.msra.mxu0 0
      %415 = vmatprep.subr.bf16.mxu0 %v389
      %416 = vmatpush1.bf16.msra.mxu0 %v388
      %417 = vmatprep.subr.bf16.mxu0 0
      %418 = vmatpush2.bf16.msra.mxu0 0
      %419 = vmatprep.subr.bf16.mxu0 0
      %420 = vmatpush2.bf16.msra.mxu0 0
      %421 = vmatprep.subr.bf16.mxu0 0
      %422 = vmatpush2.bf16.msra.mxu0 0
      %423 = vmatprep.subr.bf16.mxu0 0
      %424 = vmatpush2.bf16.msra.mxu0 0
      %425 = vmatprep.subr.bf16.mxu0 0
      %426 = vmatpush2.bf16.msra.mxu0 0
      %427 = vmatprep.subr.bf16.mxu0 0
      %428 = vmatpush2.bf16.msra.mxu0 0
      %429 = vmatprep.subr.bf16.mxu0 0
      %430 = vmatpush2.bf16.msra.mxu0 0
      %431 = vmatprep.subr.bf16.mxu0 0
      %432 = vmatpush2.bf16.msra.mxu0 0
      %433 = vmatprep.mubr.bf16.mxu0 0
      %434 = vmatmul.mubr.bf16.gmra.mxu0 %v396
      %v435 = vpop.f32.mrf.mxu0
      %v436 = vadd.f32 %v351, %v435
      %v437 = vpop.f32.mrf.mxu0
      %v438 = vadd.f32 %v351, %v437
      %v439 = vpop.f32.mrf.mxu0
      %v440 = vadd.f32 %v356, %v439
      %v441 = vpop.f32.mrf.mxu0
      %v442 = vadd.f32 %v356, %v441
      %443 = vmatprep.mubr.bf16.mxu0 0
      %444 = vmatmul.mubr.bf16.gmra.mxu0 %v399
      %v445 = vpop.f32.mrf.mxu0
      %v446 = vadd.f32 %v361, %v445
      %v447 = vpop.f32.mrf.mxu0
      %v448 = vadd.f32 %v361, %v447
      %v449 = vpop.f32.mrf.mxu0
      %v450 = vadd.f32 %v366, %v449
      %v451 = vpop.f32.mrf.mxu0
      %v452 = vadd.f32 %v366, %v451
      %453 = vdwg.mxu0
      %454 = vmatprep.subr.bf16.mxu0 0
      %455 = vmatpush1.bf16.msra.mxu0 0
      %456 = vmatprep.subr.bf16.mxu0 0
      %457 = vmatpush1.bf16.msra.mxu0 0
      %458 = vmatprep.subr.bf16.mxu0 0
      %459 = vmatpush1.bf16.msra.mxu0 0
      %460 = vmatprep.subr.bf16.mxu0 0
      %461 = vmatpush1.bf16.msra.mxu0 0
      %462 = vmatprep.subr.bf16.mxu0 0
      %463 = vmatpush1.bf16.msra.mxu0 0
      %464 = vmatprep.subr.bf16.mxu0 0
      %465 = vmatpush1.bf16.msra.mxu0 0
      %466 = vmatprep.subr.bf16.mxu0 0
      %467 = vmatpush1.bf16.msra.mxu0 0
      %468 = vmatprep.subr.bf16.mxu0 0
      %469 = vmatpush1.bf16.msra.mxu0 %v390
      %470 = vmatprep.subr.bf16.mxu0 0
      %471 = vmatpush2.bf16.msra.mxu0 0
      %472 = vmatprep.subr.bf16.mxu0 0
      %473 = vmatpush2.bf16.msra.mxu0 0
      %474 = vmatprep.subr.bf16.mxu0 0
      %475 = vmatpush2.bf16.msra.mxu0 0
      %476 = vmatprep.subr.bf16.mxu0 0
      %477 = vmatpush2.bf16.msra.mxu0 0
      %478 = vmatprep.subr.bf16.mxu0 0
      %479 = vmatpush2.bf16.msra.mxu0 0
      %480 = vmatprep.subr.bf16.mxu0 0
      %481 = vmatpush2.bf16.msra.mxu0 0
      %482 = vmatprep.subr.bf16.mxu0 0
      %483 = vmatpush2.bf16.msra.mxu0 0
      %484 = vmatprep.subr.bf16.mxu0 0
      %485 = vmatpush2.bf16.msra.mxu0 0
      %486 = vmatprep.mubr.bf16.mxu0 0
      %487 = vmatmul.mubr.bf16.gmra.mxu0 %v396
      %v488 = vpop.f32.mrf.mxu0
      %v489 = vadd.f32 %v351, %v488
      %v490 = vpop.f32.mrf.mxu0
      %v491 = vpop.f32.mrf.mxu0
      %v492 = vadd.f32 %v356, %v491
      %v493 = vpop.f32.mrf.mxu0
      %494 = vmatprep.mubr.bf16.mxu0 0
      %495 = vmatmul.mubr.bf16.gmra.mxu0 %v399
      %v496 = vpop.f32.mrf.mxu0
      %v497 = vadd.f32 %v361, %v496
      %v498 = vpop.f32.mrf.mxu0
      %v499 = vpop.f32.mrf.mxu0
      %v500 = vadd.f32 %v366, %v499
      %v501 = vpop.f32.mrf.mxu0
      %502 = vdwg.mxu0
      %v503 = vmax.f32 %v436, 0.0
      %v504 = vmax.f32 %v438, 0.0
      %v505 = vmax.f32 %v489, 0.0
      %v506 = vmax.f32 %v440, 0.0
      %v507 = vmax.f32 %v442, 0.0
      %v508 = vmax.f32 %v492, 0.0
      %v509 = vmax.f32 %v446, 0.0
      %v510 = vmax.f32 %v448, 0.0
      %v511 = vmax.f32 %v497, 0.0
      %v512 = vmax.f32 %v450, 0.0
      %v513 = vmax.f32 %v452, 0.0
      %v514 = vmax.f32 %v500, 0.0
      %v516 = vlaneseq
      %v517 = vshrl.u32 %v516, 7
      %v518 = vsub.s32 0, %v517
      %v519 = vrot.slane %v307, %v518
      %v520 = vlaneseq
      %v521 = vshrl.u32 %v520, 7
      %v522 = vsub.s32 1, %v521
      %v523 = vrot.slane %v307, %v522
      %v524 = vlaneseq
      %v525 = vshrl.u32 %v524, 7
      %v526 = vsub.s32 2, %v525
      %v527 = vrot.slane %v307, %v526
      %v531 = vmul.f32 %v503, %v519
      %v532 = vmul.f32 %v504, %v523
      %v533 = vmul.f32 %v505, %v527
      %v534 = vmul.f32 %v506, %v519
      %v535 = vmul.f32 %v507, %v523
      %v536 = vmul.f32 %v508, %v527
      %v537 = vmul.f32 %v509, %v519
      %v538 = vmul.f32 %v510, %v523
      %v539 = vmul.f32 %v511, %v527
      %v540 = vmul.f32 %v512, %v519
      %v541 = vmul.f32 %v513, %v523
      %v542 = vmul.f32 %v514, %v527
      %v543 = vpack.c.bf16 %v534, %v531
      %v544 = vpack.c.bf16 %v535, %v532
      %v545 = vpack.c.bf16 %v536, %v533
      %v546 = vpack.c.bf16 %v540, %v537
      %v547 = vpack.c.bf16 %v541, %v538
      %v548 = vpack.c.bf16 %v542, %v539
      %v555 = vunpack.c.l.b16 %v543
      %v556 = vunpack.c.l.b16 %v544
      %v557 = vunpack.c.l.b16 %v545
      %v558 = vunpack.c.h.b16 %v543
      %v559 = vunpack.c.h.b16 %v544
      %v560 = vunpack.c.h.b16 %v545
      %v561 = vunpack.c.l.b16 %v546
      %v562 = vunpack.c.l.b16 %v547
      %v563 = vunpack.c.l.b16 %v548
      %v564 = vunpack.c.h.b16 %v546
      %v565 = vunpack.c.h.b16 %v547
      %v566 = vunpack.c.h.b16 %v548
      %v567 = vpack.c.b16 %v556, %v555
      %v568 = vpack.c.b16 %v557, %v557
      %v569 = vpack.c.b16 %v559, %v558
      %v570 = vpack.c.b16 %v560, %v560
      %v571 = vpack.c.b16 %v562, %v561
      %v572 = vpack.c.b16 %v563, %v563
      %v573 = vpack.c.b16 %v565, %v564
      %v574 = vpack.c.b16 %v566, %v566
      %583 = vst [vmem:[#allocation2 + $0x30] sm:$0xff] %v567
      %584 = vst [vmem:[#allocation2 + $0x38] sm:$0xf] %v568
      %585 = vst [vmem:[#allocation2 + $0x3c] sm:$0xff] %v569
      %586 = vst [vmem:[#allocation2 + $0x44] sm:$0xf] %v570
      %587 = vst [vmem:[#allocation2 + $0x48] sm:$0xff] %v571
      %588 = vst [vmem:[#allocation2 + $0x50] sm:$0xf] %v572
      %589 = vst [vmem:[#allocation2 + $0x54] sm:$0xff] %v573
      %590 = vst [vmem:[#allocation2 + $0x5c] sm:$0xf] %v574
      %v591 = vld [vmem:[%s300 + $0xc] sm:$0xff]
      %v592 = vld [vmem:[%s300 + $0x14] sm:$0xf]
      %v593 = vld [vmem:[%s300 + $0x3c] sm:$0xff]
      %v594 = vld [vmem:[%s300 + $0x44] sm:$0xf]
      %v599 = vunpack.c.l.b16 %v591
      %v600 = vunpack.c.h.b16 %v591
      %v601 = vunpack.c.l.b16 %v592
      %v602 = vunpack.c.l.b16 %v593
      %v603 = vunpack.c.h.b16 %v593
      %v604 = vunpack.c.l.b16 %v594
      %v605 = vpack.c.b16 %v602, %v599
      %v606 = vpack.c.b16 %v603, %v600
      %v607 = vpack.c.b16 %v604, %v601
      %611 = vmatprep.subr.bf16.mxu0 0
      %612 = vmatpush1.bf16.msra.mxu0 0
      %613 = vmatprep.subr.bf16.mxu0 0
      %614 = vmatpush1.bf16.msra.mxu0 0
      %615 = vmatprep.subr.bf16.mxu0 0
      %616 = vmatpush1.bf16.msra.mxu0 0
      %617 = vmatprep.subr.bf16.mxu0 0
      %618 = vmatpush1.bf16.msra.mxu0 0
      %619 = vmatprep.subr.bf16.mxu0 0
      %620 = vmatpush1.bf16.msra.mxu0 0
      %621 = vmatprep.subr.bf16.mxu0 0
      %622 = vmatpush1.bf16.msra.mxu0 0
      %623 = vmatprep.subr.bf16.mxu0 0
      %624 = vmatpush1.bf16.msra.mxu0 0
      %625 = vmatprep.subr.bf16.mxu0 %v606
      %626 = vmatpush1.bf16.msra.mxu0 %v605
      %627 = vmatprep.subr.bf16.mxu0 0
      %628 = vmatpush2.bf16.msra.mxu0 0
      %629 = vmatprep.subr.bf16.mxu0 0
      %630 = vmatpush2.bf16.msra.mxu0 0
      %631 = vmatprep.subr.bf16.mxu0 0
      %632 = vmatpush2.bf16.msra.mxu0 0
      %633 = vmatprep.subr.bf16.mxu0 0
      %634 = vmatpush2.bf16.msra.mxu0 0
      %635 = vmatprep.subr.bf16.mxu0 0
      %636 = vmatpush2.bf16.msra.mxu0 0
      %637 = vmatprep.subr.bf16.mxu0 0
      %638 = vmatpush2.bf16.msra.mxu0 0
      %639 = vmatprep.subr.bf16.mxu0 0
      %640 = vmatpush2.bf16.msra.mxu0 0
      %641 = vmatprep.subr.bf16.mxu0 0
      %642 = vmatpush2.bf16.msra.mxu0 0
      %643 = vmatprep.mubr.bf16.mxu0 0
      %644 = vmatmul.mubr.bf16.gmra.mxu0 %v396
      %v645 = vpop.f32.mrf.mxu0
      %v646 = vadd.f32 %v351, %v645
      %v647 = vpop.f32.mrf.mxu0
      %v648 = vadd.f32 %v351, %v647
      %v649 = vpop.f32.mrf.mxu0
      %v650 = vadd.f32 %v356, %v649
      %v651 = vpop.f32.mrf.mxu0
      %v652 = vadd.f32 %v356, %v651
      %653 = vmatprep.mubr.bf16.mxu0 0
      %654 = vmatmul.mubr.bf16.gmra.mxu0 %v399
      %v655 = vpop.f32.mrf.mxu0
      %v656 = vadd.f32 %v361, %v655
      %v657 = vpop.f32.mrf.mxu0
      %v658 = vadd.f32 %v361, %v657
      %v659 = vpop.f32.mrf.mxu0
      %v660 = vadd.f32 %v366, %v659
      %v661 = vpop.f32.mrf.mxu0
      %v662 = vadd.f32 %v366, %v661
      %663 = vdwg.mxu0
      %664 = vmatprep.subr.bf16.mxu0 0
      %665 = vmatpush1.bf16.msra.mxu0 0
      %666 = vmatprep.subr.bf16.mxu0 0
      %667 = vmatpush1.bf16.msra.mxu0 0
      %668 = vmatprep.subr.bf16.mxu0 0
      %669 = vmatpush1.bf16.msra.mxu0 0
      %670 = vmatprep.subr.bf16.mxu0 0
      %671 = vmatpush1.bf16.msra.mxu0 0
      %672 = vmatprep.subr.bf16.mxu0 0
      %673 = vmatpush1.bf16.msra.mxu0 0
      %674 = vmatprep.subr.bf16.mxu0 0
      %675 = vmatpush1.bf16.msra.mxu0 0
      %676 = vmatprep.subr.bf16.mxu0 0
      %677 = vmatpush1.bf16.msra.mxu0 0
      %678 = vmatprep.subr.bf16.mxu0 0
      %679 = vmatpush1.bf16.msra.mxu0 %v607
      %680 = vmatprep.subr.bf16.mxu0 0
      %681 = vmatpush2.bf16.msra.mxu0 0
      %682 = vmatprep.subr.bf16.mxu0 0
      %683 = vmatpush2.bf16.msra.mxu0 0
      %684 = vmatprep.subr.bf16.mxu0 0
      %685 = vmatpush2.bf16.msra.mxu0 0
      %686 = vmatprep.subr.bf16.mxu0 0
      %687 = vmatpush2.bf16.msra.mxu0 0
      %688 = vmatprep.subr.bf16.mxu0 0
      %689 = vmatpush2.bf16.msra.mxu0 0
      %690 = vmatprep.subr.bf16.mxu0 0
      %691 = vmatpush2.bf16.msra.mxu0 0
      %692 = vmatprep.subr.bf16.mxu0 0
      %693 = vmatpush2.bf16.msra.mxu0 0
      %694 = vmatprep.subr.bf16.mxu0 0
      %695 = vmatpush2.bf16.msra.mxu0 0
      %696 = vmatprep.mubr.bf16.mxu0 0
      %697 = vmatmul.mubr.bf16.gmra.mxu0 %v396
      %v698 = vpop.f32.mrf.mxu0
      %v699 = vadd.f32 %v351, %v698
      %v700 = vpop.f32.mrf.mxu0
      %v701 = vpop.f32.mrf.mxu0
      %v702 = vadd.f32 %v356, %v701
      %v703 = vpop.f32.mrf.mxu0
      %704 = vmatprep.mubr.bf16.mxu0 0
      %705 = vmatmul.mubr.bf16.gmra.mxu0 %v399
      %v706 = vpop.f32.mrf.mxu0
      %v707 = vadd.f32 %v361, %v706
      %v708 = vpop.f32.mrf.mxu0
      %v709 = vpop.f32.mrf.mxu0
      %v710 = vadd.f32 %v366, %v709
      %v711 = vpop.f32.mrf.mxu0
      %712 = vdwg.mxu0
      %v713 = vmax.f32 %v646, 0.0
      %v714 = vmax.f32 %v648, 0.0
      %v715 = vmax.f32 %v699, 0.0
      %v716 = vmax.f32 %v650, 0.0
      %v717 = vmax.f32 %v652, 0.0
      %v718 = vmax.f32 %v702, 0.0
      %v719 = vmax.f32 %v656, 0.0
      %v720 = vmax.f32 %v658, 0.0
      %v721 = vmax.f32 %v707, 0.0
      %v722 = vmax.f32 %v660, 0.0
      %v723 = vmax.f32 %v662, 0.0
      %v724 = vmax.f32 %v710, 0.0
      %v725 = vmul.f32 %v713, %v519
      %v726 = vmul.f32 %v714, %v523
      %v727 = vmul.f32 %v715, %v527
      %v728 = vmul.f32 %v716, %v519
      %v729 = vmul.f32 %v717, %v523
      %v730 = vmul.f32 %v718, %v527
      %v731 = vmul.f32 %v719, %v519
      %v732 = vmul.f32 %v720, %v523
      %v733 = vmul.f32 %v721, %v527
      %v734 = vmul.f32 %v722, %v519
      %v735 = vmul.f32 %v723, %v523
      %v736 = vmul.f32 %v724, %v527
      %v737 = vpack.c.bf16 %v728, %v725
      %v738 = vpack.c.bf16 %v729, %v726
      %v739 = vpack.c.bf16 %v730, %v727
      %v740 = vpack.c.bf16 %v734, %v731
      %v741 = vpack.c.bf16 %v735, %v732
      %v742 = vpack.c.bf16 %v736, %v733
      %v749 = vunpack.c.l.b16 %v737
      %v750 = vunpack.c.l.b16 %v738
      %v751 = vunpack.c.l.b16 %v739
      %v752 = vunpack.c.h.b16 %v737
      %v753 = vunpack.c.h.b16 %v738
      %v754 = vunpack.c.h.b16 %v739
      %v755 = vunpack.c.l.b16 %v740
      %v756 = vunpack.c.l.b16 %v741
      %v757 = vunpack.c.l.b16 %v742
      %v758 = vunpack.c.h.b16 %v740
      %v759 = vunpack.c.h.b16 %v741
      %v760 = vunpack.c.h.b16 %v742
      %v761 = vpack.c.b16 %v750, %v749
      %v762 = vpack.c.b16 %v751, %v751
      %v763 = vpack.c.b16 %v753, %v752
      %v764 = vpack.c.b16 %v754, %v754
      %v765 = vpack.c.b16 %v756, %v755
      %v766 = vpack.c.b16 %v757, %v757
      %v767 = vpack.c.b16 %v759, %v758
      %v768 = vpack.c.b16 %v760, %v760
      %777 = vst [vmem:[#allocation2 + $0x60] sm:$0xff] %v761
      %778 = vst [vmem:[#allocation2 + $0x68] sm:$0xf] %v762
      %779 = vst [vmem:[#allocation2 + $0x6c] sm:$0xff] %v763
      %780 = vst [vmem:[#allocation2 + $0x74] sm:$0xf] %v764
      %781 = vst [vmem:[#allocation2 + $0x78] sm:$0xff] %v765
      %782 = vst [vmem:[#allocation2 + $0x80] sm:$0xf] %v766
      %783 = vst [vmem:[#allocation2 + $0x84] sm:$0xff] %v767
      %784 = vst [vmem:[#allocation2 + $0x8c] sm:$0xf] %v768
      %v785 = vld [vmem:[%s300 + $0x18] sm:$0xff]
      %v786 = vld [vmem:[%s300 + $0x20] sm:$0xf]
      %v787 = vld [vmem:[%s300 + $0x48] sm:$0xff]
      %v788 = vld [vmem:[%s300 + $0x50] sm:$0xf]
      %v793 = vunpack.c.l.b16 %v785
      %v794 = vunpack.c.h.b16 %v785
      %v795 = vunpack.c.l.b16 %v786
      %v796 = vunpack.c.l.b16 %v787
      %v797 = vunpack.c.h.b16 %v787
      %v798 = vunpack.c.l.b16 %v788
      %v799 = vpack.c.b16 %v796, %v793
      %v800 = vpack.c.b16 %v797, %v794
      %v801 = vpack.c.b16 %v798, %v795
      %805 = vmatprep.subr.bf16.mxu0 0
      %806 = vmatpush1.bf16.msra.mxu0 0
      %807 = vmatprep.subr.bf16.mxu0 0
      %808 = vmatpush1.bf16.msra.mxu0 0
      %809 = vmatprep.subr.bf16.mxu0 0
      %810 = vmatpush1.bf16.msra.mxu0 0
      %811 = vmatprep.subr.bf16.mxu0 0
      %812 = vmatpush1.bf16.msra.mxu0 0
      %813 = vmatprep.subr.bf16.mxu0 0
      %814 = vmatpush1.bf16.msra.mxu0 0
      %815 = vmatprep.subr.bf16.mxu0 0
      %816 = vmatpush1.bf16.msra.mxu0 0
      %817 = vmatprep.subr.bf16.mxu0 0
      %818 = vmatpush1.bf16.msra.mxu0 0
      %819 = vmatprep.subr.bf16.mxu0 %v800
      %820 = vmatpush1.bf16.msra.mxu0 %v799
      %821 = vmatprep.subr.bf16.mxu0 0
      %822 = vmatpush2.bf16.msra.mxu0 0
      %823 = vmatprep.subr.bf16.mxu0 0
      %824 = vmatpush2.bf16.msra.mxu0 0
      %825 = vmatprep.subr.bf16.mxu0 0
      %826 = vmatpush2.bf16.msra.mxu0 0
      %827 = vmatprep.subr.bf16.mxu0 0
      %828 = vmatpush2.bf16.msra.mxu0 0
      %829 = vmatprep.subr.bf16.mxu0 0
      %830 = vmatpush2.bf16.msra.mxu0 0
      %831 = vmatprep.subr.bf16.mxu0 0
      %832 = vmatpush2.bf16.msra.mxu0 0
      %833 = vmatprep.subr.bf16.mxu0 0
      %834 = vmatpush2.bf16.msra.mxu0 0
      %835 = vmatprep.subr.bf16.mxu0 0
      %836 = vmatpush2.bf16.msra.mxu0 0
      %837 = vmatprep.mubr.bf16.mxu0 0
      %838 = vmatmul.mubr.bf16.gmra.mxu0 %v396
      %v839 = vpop.f32.mrf.mxu0
      %v840 = vadd.f32 %v351, %v839
      %v841 = vpop.f32.mrf.mxu0
      %v842 = vadd.f32 %v351, %v841
      %v843 = vpop.f32.mrf.mxu0
      %v844 = vadd.f32 %v356, %v843
      %v845 = vpop.f32.mrf.mxu0
      %v846 = vadd.f32 %v356, %v845
      %847 = vmatprep.mubr.bf16.mxu0 0
      %848 = vmatmul.mubr.bf16.gmra.mxu0 %v399
      %v849 = vpop.f32.mrf.mxu0
      %v850 = vadd.f32 %v361, %v849
      %v851 = vpop.f32.mrf.mxu0
      %v852 = vadd.f32 %v361, %v851
      %v853 = vpop.f32.mrf.mxu0
      %v854 = vadd.f32 %v366, %v853
      %v855 = vpop.f32.mrf.mxu0
      %v856 = vadd.f32 %v366, %v855
      %857 = vdwg.mxu0
      %858 = vmatprep.subr.bf16.mxu0 0
      %859 = vmatpush1.bf16.msra.mxu0 0
      %860 = vmatprep.subr.bf16.mxu0 0
      %861 = vmatpush1.bf16.msra.mxu0 0
      %862 = vmatprep.subr.bf16.mxu0 0
      %863 = vmatpush1.bf16.msra.mxu0 0
      %864 = vmatprep.subr.bf16.mxu0 0
      %865 = vmatpush1.bf16.msra.mxu0 0
      %866 = vmatprep.subr.bf16.mxu0 0
      %867 = vmatpush1.bf16.msra.mxu0 0
      %868 = vmatprep.subr.bf16.mxu0 0
      %869 = vmatpush1.bf16.msra.mxu0 0
      %870 = vmatprep.subr.bf16.mxu0 0
      %871 = vmatpush1.bf16.msra.mxu0 0
      %872 = vmatprep.subr.bf16.mxu0 0
      %873 = vmatpush1.bf16.msra.mxu0 %v801
      %874 = vmatprep.subr.bf16.mxu0 0
      %875 = vmatpush2.bf16.msra.mxu0 0
      %876 = vmatprep.subr.bf16.mxu0 0
      %877 = vmatpush2.bf16.msra.mxu0 0
      %878 = vmatprep.subr.bf16.mxu0 0
      %879 = vmatpush2.bf16.msra.mxu0 0
      %880 = vmatprep.subr.bf16.mxu0 0
      %881 = vmatpush2.bf16.msra.mxu0 0
      %882 = vmatprep.subr.bf16.mxu0 0
      %883 = vmatpush2.bf16.msra.mxu0 0
      %884 = vmatprep.subr.bf16.mxu0 0
      %885 = vmatpush2.bf16.msra.mxu0 0
      %886 = vmatprep.subr.bf16.mxu0 0
      %887 = vmatpush2.bf16.msra.mxu0 0
      %888 = vmatprep.subr.bf16.mxu0 0
      %889 = vmatpush2.bf16.msra.mxu0 0
      %890 = vmatprep.mubr.bf16.mxu0 0
      %891 = vmatmul.mubr.bf16.gmra.mxu0 %v396
      %v892 = vpop.f32.mrf.mxu0
      %v893 = vadd.f32 %v351, %v892
      %v894 = vpop.f32.mrf.mxu0
      %v895 = vpop.f32.mrf.mxu0
      %v896 = vadd.f32 %v356, %v895
      %v897 = vpop.f32.mrf.mxu0
      %898 = vmatprep.mubr.bf16.mxu0 0
      %899 = vmatmul.mubr.bf16.gmra.mxu0 %v399
      %v900 = vpop.f32.mrf.mxu0
      %v901 = vadd.f32 %v361, %v900
      %v902 = vpop.f32.mrf.mxu0
      %v903 = vpop.f32.mrf.mxu0
      %v904 = vadd.f32 %v366, %v903
      %v905 = vpop.f32.mrf.mxu0
      %906 = vdwg.mxu0
      %v907 = vmax.f32 %v840, 0.0
      %v908 = vmax.f32 %v842, 0.0
      %v909 = vmax.f32 %v893, 0.0
      %v910 = vmax.f32 %v844, 0.0
      %v911 = vmax.f32 %v846, 0.0
      %v912 = vmax.f32 %v896, 0.0
      %v913 = vmax.f32 %v850, 0.0
      %v914 = vmax.f32 %v852, 0.0
      %v915 = vmax.f32 %v901, 0.0
      %v916 = vmax.f32 %v854, 0.0
      %v917 = vmax.f32 %v856, 0.0
      %v918 = vmax.f32 %v904, 0.0
      %v919 = vmul.f32 %v907, %v519
      %v920 = vmul.f32 %v908, %v523
      %v921 = vmul.f32 %v909, %v527
      %v922 = vmul.f32 %v910, %v519
      %v923 = vmul.f32 %v911, %v523
      %v924 = vmul.f32 %v912, %v527
      %v925 = vmul.f32 %v913, %v519
      %v926 = vmul.f32 %v914, %v523
      %v927 = vmul.f32 %v915, %v527
      %v928 = vmul.f32 %v916, %v519
      %v929 = vmul.f32 %v917, %v523
      %v930 = vmul.f32 %v918, %v527
      %v931 = vpack.c.bf16 %v922, %v919
      %v932 = vpack.c.bf16 %v923, %v920
      %v933 = vpack.c.bf16 %v924, %v921
      %v934 = vpack.c.bf16 %v928, %v925
      %v935 = vpack.c.bf16 %v929, %v926
      %v936 = vpack.c.bf16 %v930, %v927
      %v943 = vunpack.c.l.b16 %v931
      %v944 = vunpack.c.l.b16 %v932
      %v945 = vunpack.c.l.b16 %v933
      %v946 = vunpack.c.h.b16 %v931
      %v947 = vunpack.c.h.b16 %v932
      %v948 = vunpack.c.h.b16 %v933
      %v949 = vunpack.c.l.b16 %v934
      %v950 = vunpack.c.l.b16 %v935
      %v951 = vunpack.c.l.b16 %v936
      %v952 = vunpack.c.h.b16 %v934
      %v953 = vunpack.c.h.b16 %v935
      %v954 = vunpack.c.h.b16 %v936
      %v955 = vpack.c.b16 %v944, %v943
      %v956 = vpack.c.b16 %v945, %v945
      %v957 = vpack.c.b16 %v947, %v946
      %v958 = vpack.c.b16 %v948, %v948
      %v959 = vpack.c.b16 %v950, %v949
      %v960 = vpack.c.b16 %v951, %v951
      %v961 = vpack.c.b16 %v953, %v952
      %v962 = vpack.c.b16 %v954, %v954
      %971 = vst [vmem:[#allocation2 + $0x90] sm:$0xff] %v955
      %972 = vst [vmem:[#allocation2 + $0x98] sm:$0xf] %v956
      %973 = vst [vmem:[#allocation2 + $0x9c] sm:$0xff] %v957
      %974 = vst [vmem:[#allocation2 + $0xa4] sm:$0xf] %v958
      %975 = vst [vmem:[#allocation2 + $0xa8] sm:$0xff] %v959
      %976 = vst [vmem:[#allocation2 + $0xb0] sm:$0xf] %v960
      %977 = vst [vmem:[#allocation2 + $0xb4] sm:$0xff] %v961
      %978 = vst [vmem:[#allocation2 + $0xbc] sm:$0xf] %v962
      %v979 = vld [vmem:[%s300 + $0x24] sm:$0xff]
      %v980 = vld [vmem:[%s300 + $0x2c] sm:$0xf]
      %v981 = vld [vmem:[%s300 + $0x54] sm:$0xff]
      %v982 = vld [vmem:[%s300 + $0x5c] sm:$0xf]
      %v987 = vunpack.c.l.b16 %v979
      %v988 = vunpack.c.h.b16 %v979
      %v989 = vunpack.c.l.b16 %v980
      %v990 = vunpack.c.l.b16 %v981
      %v991 = vunpack.c.h.b16 %v981
      %v992 = vunpack.c.l.b16 %v982
      %v993 = vpack.c.b16 %v990, %v987
      %v994 = vpack.c.b16 %v991, %v988
      %v995 = vpack.c.b16 %v992, %v989
      %999 = vmatprep.subr.bf16.mxu0 0
      %1000 = vmatpush1.bf16.msra.mxu0 0
      %1001 = vmatprep.subr.bf16.mxu0 0
      %1002 = vmatpush1.bf16.msra.mxu0 0
      %1003 = vmatprep.subr.bf16.mxu0 0
      %1004 = vmatpush1.bf16.msra.mxu0 0
      %1005 = vmatprep.subr.bf16.mxu0 0
      %1006 = vmatpush1.bf16.msra.mxu0 0
      %1007 = vmatprep.subr.bf16.mxu0 0
      %1008 = vmatpush1.bf16.msra.mxu0 0
      %1009 = vmatprep.subr.bf16.mxu0 0
      %1010 = vmatpush1.bf16.msra.mxu0 0
      %1011 = vmatprep.subr.bf16.mxu0 0
      %1012 = vmatpush1.bf16.msra.mxu0 0
      %1013 = vmatprep.subr.bf16.mxu0 %v994
      %1014 = vmatpush1.bf16.msra.mxu0 %v993
      %1015 = vmatprep.subr.bf16.mxu0 0
      %1016 = vmatpush2.bf16.msra.mxu0 0
      %1017 = vmatprep.subr.bf16.mxu0 0
      %1018 = vmatpush2.bf16.msra.mxu0 0
      %1019 = vmatprep.subr.bf16.mxu0 0
      %1020 = vmatpush2.bf16.msra.mxu0 0
      %1021 = vmatprep.subr.bf16.mxu0 0
      %1022 = vmatpush2.bf16.msra.mxu0 0
      %1023 = vmatprep.subr.bf16.mxu0 0
      %1024 = vmatpush2.bf16.msra.mxu0 0
      %1025 = vmatprep.subr.bf16.mxu0 0
      %1026 = vmatpush2.bf16.msra.mxu0 0
      %1027 = vmatprep.subr.bf16.mxu0 0
      %1028 = vmatpush2.bf16.msra.mxu0 0
      %1029 = vmatprep.subr.bf16.mxu0 0
      %1030 = vmatpush2.bf16.msra.mxu0 0
      %1031 = vmatprep.mubr.bf16.mxu0 0
      %1032 = vmatmul.mubr.bf16.gmra.mxu0 %v396
      %v1033 = vpop.f32.mrf.mxu0
      %v1034 = vadd.f32 %v351, %v1033
      %v1035 = vpop.f32.mrf.mxu0
      %v1036 = vadd.f32 %v351, %v1035
      %v1037 = vpop.f32.mrf.mxu0
      %v1038 = vadd.f32 %v356, %v1037
      %v1039 = vpop.f32.mrf.mxu0
      %v1040 = vadd.f32 %v356, %v1039
      %1041 = vmatprep.mubr.bf16.mxu0 0
      %1042 = vmatmul.mubr.bf16.gmra.mxu0 %v399
      %v1043 = vpop.f32.mrf.mxu0
      %v1044 = vadd.f32 %v361, %v1043
      %v1045 = vpop.f32.mrf.mxu0
      %v1046 = vadd.f32 %v361, %v1045
      %v1047 = vpop.f32.mrf.mxu0
      %v1048 = vadd.f32 %v366, %v1047
      %v1049 = vpop.f32.mrf.mxu0
      %v1050 = vadd.f32 %v366, %v1049
      %1051 = vdwg.mxu0
      %1052 = vmatprep.subr.bf16.mxu0 0
      %1053 = vmatpush1.bf16.msra.mxu0 0
      %1054 = vmatprep.subr.bf16.mxu0 0
      %1055 = vmatpush1.bf16.msra.mxu0 0
      %1056 = vmatprep.subr.bf16.mxu0 0
      %1057 = vmatpush1.bf16.msra.mxu0 0
      %1058 = vmatprep.subr.bf16.mxu0 0
      %1059 = vmatpush1.bf16.msra.mxu0 0
      %1060 = vmatprep.subr.bf16.mxu0 0
      %1061 = vmatpush1.bf16.msra.mxu0 0
      %1062 = vmatprep.subr.bf16.mxu0 0
      %1063 = vmatpush1.bf16.msra.mxu0 0
      %1064 = vmatprep.subr.bf16.mxu0 0
      %1065 = vmatpush1.bf16.msra.mxu0 0
      %1066 = vmatprep.subr.bf16.mxu0 0
      %1067 = vmatpush1.bf16.msra.mxu0 %v995
      %1068 = vmatprep.subr.bf16.mxu0 0
      %1069 = vmatpush2.bf16.msra.mxu0 0
      %1070 = vmatprep.subr.bf16.mxu0 0
      %1071 = vmatpush2.bf16.msra.mxu0 0
      %1072 = vmatprep.subr.bf16.mxu0 0
      %1073 = vmatpush2.bf16.msra.mxu0 0
      %1074 = vmatprep.subr.bf16.mxu0 0
      %1075 = vmatpush2.bf16.msra.mxu0 0
      %1076 = vmatprep.subr.bf16.mxu0 0
      %1077 = vmatpush2.bf16.msra.mxu0 0
      %1078 = vmatprep.subr.bf16.mxu0 0
      %1079 = vmatpush2.bf16.msra.mxu0 0
      %1080 = vmatprep.subr.bf16.mxu0 0
      %1081 = vmatpush2.bf16.msra.mxu0 0
      %1082 = vmatprep.subr.bf16.mxu0 0
      %1083 = vmatpush2.bf16.msra.mxu0 0
      %1084 = vmatprep.mubr.bf16.mxu0 0
      %1085 = vmatmul.mubr.bf16.gmra.mxu0 %v396
      %v1086 = vpop.f32.mrf.mxu0
      %v1087 = vadd.f32 %v351, %v1086
      %v1088 = vpop.f32.mrf.mxu0
      %v1089 = vpop.f32.mrf.mxu0
      %v1090 = vadd.f32 %v356, %v1089
      %v1091 = vpop.f32.mrf.mxu0
      %1092 = vmatprep.mubr.bf16.mxu0 0
      %1093 = vmatmul.mubr.bf16.gmra.mxu0 %v399
      %v1094 = vpop.f32.mrf.mxu0
      %v1095 = vadd.f32 %v361, %v1094
      %v1096 = vpop.f32.mrf.mxu0
      %v1097 = vpop.f32.mrf.mxu0
      %v1098 = vadd.f32 %v366, %v1097
      %v1099 = vpop.f32.mrf.mxu0
      %1100 = vdwg.mxu0
      %v1101 = vmax.f32 %v1034, 0.0
      %v1102 = vmax.f32 %v1036, 0.0
      %v1103 = vmax.f32 %v1087, 0.0
      %v1104 = vmax.f32 %v1038, 0.0
      %v1105 = vmax.f32 %v1040, 0.0
      %v1106 = vmax.f32 %v1090, 0.0
      %v1107 = vmax.f32 %v1044, 0.0
      %v1108 = vmax.f32 %v1046, 0.0
      %v1109 = vmax.f32 %v1095, 0.0
      %v1110 = vmax.f32 %v1048, 0.0
      %v1111 = vmax.f32 %v1050, 0.0
      %v1112 = vmax.f32 %v1098, 0.0
      %v1113 = vmul.f32 %v1101, %v519
      %v1114 = vmul.f32 %v1102, %v523
      %v1115 = vmul.f32 %v1103, %v527
      %v1116 = vmul.f32 %v1104, %v519
      %v1117 = vmul.f32 %v1105, %v523
      %v1118 = vmul.f32 %v1106, %v527
      %v1119 = vmul.f32 %v1107, %v519
      %v1120 = vmul.f32 %v1108, %v523
      %v1121 = vmul.f32 %v1109, %v527
      %v1122 = vmul.f32 %v1110, %v519
      %v1123 = vmul.f32 %v1111, %v523
      %v1124 = vmul.f32 %v1112, %v527
      %v1125 = vpack.c.bf16 %v1116, %v1113
      %v1126 = vpack.c.bf16 %v1117, %v1114
      %v1127 = vpack.c.bf16 %v1118, %v1115
      %v1128 = vpack.c.bf16 %v1122, %v1119
      %v1129 = vpack.c.bf16 %v1123, %v1120
      %v1130 = vpack.c.bf16 %v1124, %v1121
      %v1137 = vunpack.c.l.b16 %v1125
      %v1138 = vunpack.c.l.b16 %v1126
      %v1139 = vunpack.c.l.b16 %v1127
      %v1140 = vunpack.c.h.b16 %v1125
      %v1141 = vunpack.c.h.b16 %v1126
      %v1142 = vunpack.c.h.b16 %v1127
      %v1143 = vunpack.c.l.b16 %v1128
      %v1144 = vunpack.c.l.b16 %v1129
      %v1145 = vunpack.c.l.b16 %v1130
      %v1146 = vunpack.c.h.b16 %v1128
      %v1147 = vunpack.c.h.b16 %v1129
      %v1148 = vunpack.c.h.b16 %v1130
      %v1149 = vpack.c.b16 %v1138, %v1137
      %v1150 = vpack.c.b16 %v1139, %v1139
      %v1151 = vpack.c.b16 %v1141, %v1140
      %v1152 = vpack.c.b16 %v1142, %v1142
      %v1153 = vpack.c.b16 %v1144, %v1143
      %v1154 = vpack.c.b16 %v1145, %v1145
      %v1155 = vpack.c.b16 %v1147, %v1146
      %v1156 = vpack.c.b16 %v1148, %v1148
      %1165 = vst [vmem:[#allocation2 + $0xc0] sm:$0xff] %v1149
      %1166 = vst [vmem:[#allocation2 + $0xc8] sm:$0xf] %v1150
      %1167 = vst [vmem:[#allocation2 + $0xcc] sm:$0xff] %v1151
      %1168 = vst [vmem:[#allocation2 + $0xd4] sm:$0xf] %v1152
      %1169 = vst [vmem:[#allocation2 + $0xd8] sm:$0xff] %v1153
      %1170 = vst [vmem:[#allocation2 + $0xe0] sm:$0xf] %v1154
      %1171 = vst [vmem:[#allocation2 + $0xe4] sm:$0xff] %v1155
      %1172 = vst [vmem:[#allocation2 + $0xec] sm:$0xf] %v1156
      %v1173 = vld [vmem:[#allocation2] sm:$0xff]
      %v1174 = vld [vmem:[#allocation2 + $0x8] sm:$0xf]
      %v1175 = vld [vmem:[#allocation2 + $0xc] sm:$0xff]
      %v1176 = vld [vmem:[#allocation2 + $0x14] sm:$0xf]
      %v1177 = vld [vmem:[#allocation2 + $0x18] sm:$0xff]
      %v1178 = vld [vmem:[#allocation2 + $0x20] sm:$0xf]
      %v1179 = vld [vmem:[#allocation2 + $0x24] sm:$0xff]
      %v1180 = vld [vmem:[#allocation2 + $0x2c] sm:$0xf]
      %v1181 = vld [vmem:[#allocation2 + $0x30] sm:$0xff]
      %v1182 = vld [vmem:[#allocation2 + $0x38] sm:$0xf]
      %v1183 = vld [vmem:[#allocation2 + $0x3c] sm:$0xff]
      %v1184 = vld [vmem:[#allocation2 + $0x44] sm:$0xf]
      %v1185 = vld [vmem:[#allocation2 + $0x48] sm:$0xff]
      %v1186 = vld [vmem:[#allocation2 + $0x50] sm:$0xf]
      %v1187 = vld [vmem:[#allocation2 + $0x54] sm:$0xff]
      %v1188 = vld [vmem:[#allocation2 + $0x5c] sm:$0xf]
      %v1189 = vld [vmem:[#allocation2 + $0x60] sm:$0xff]
      %v1190 = vld [vmem:[#allocation2 + $0x68] sm:$0xf]
      %v1191 = vld [vmem:[#allocation2 + $0x6c] sm:$0xff]
      %v1192 = vld [vmem:[#allocation2 + $0x74] sm:$0xf]
      %v1193 = vld [vmem:[#allocation2 + $0x78] sm:$0xff]
      %v1194 = vld [vmem:[#allocation2 + $0x80] sm:$0xf]
      %v1195 = vld [vmem:[#allocation2 + $0x84] sm:$0xff]
      %v1196 = vld [vmem:[#allocation2 + $0x8c] sm:$0xf]
      %v1197 = vld [vmem:[%s4] sm:$0xf]
      %v1198 = vld [vmem:[%s4 + $0x4] sm:$0xf]
      %v1199 = vld [vmem:[%s4 + $0x8] sm:$0xf]
      %v1200 = vld [vmem:[%s4 + $0xc] sm:$0xf]
      %s1201 = scalar_lea.vmem %s4, 16
      %v1202 = vld [vmem:[%s1201] sm:$0xf]
      %v1203 = vld [vmem:[%s1201 + $0x4] sm:$0xf]
      %v1204 = vld [vmem:[%s1201 + $0x8] sm:$0xf]
      %v1205 = vld [vmem:[%s1201 + $0xc] sm:$0xf]
      %v1210 = vunpack.c.l.b16 %v1202
      %v1211 = vunpack.c.l.b16 %v1203
      %v1212 = vunpack.c.l.b16 %v1204
      %v1213 = vunpack.c.l.b16 %v1205
      %v1214 = vpack.c.b16 %v1211, %v1210
      %v1215 = vpack.c.b16 %v1213, %v1212
      %v1240 = vunpack.c.l.b16 %v1173
      %v1241 = vunpack.c.h.b16 %v1173
      %v1242 = vunpack.c.l.b16 %v1174
      %v1243 = vunpack.c.l.b16 %v1175
      %v1244 = vunpack.c.h.b16 %v1175
      %v1245 = vunpack.c.l.b16 %v1176
      %v1246 = vunpack.c.l.b16 %v1177
      %v1247 = vunpack.c.h.b16 %v1177
      %v1248 = vunpack.c.l.b16 %v1178
      %v1249 = vunpack.c.l.b16 %v1179
      %v1250 = vunpack.c.h.b16 %v1179
      %v1251 = vunpack.c.l.b16 %v1180
      %v1252 = vunpack.c.l.b16 %v1181
      %v1253 = vunpack.c.h.b16 %v1181
      %v1254 = vunpack.c.l.b16 %v1182
      %v1255 = vunpack.c.l.b16 %v1183
      %v1256 = vunpack.c.h.b16 %v1183
      %v1257 = vunpack.c.l.b16 %v1184
      %v1258 = vunpack.c.l.b16 %v1185
      %v1259 = vunpack.c.h.b16 %v1185
      %v1260 = vunpack.c.l.b16 %v1186
      %v1261 = vunpack.c.l.b16 %v1187
      %v1262 = vunpack.c.h.b16 %v1187
      %v1263 = vunpack.c.l.b16 %v1188
      %v1264 = vunpack.c.l.b16 %v1189
      %v1265 = vunpack.c.h.b16 %v1189
      %v1266 = vunpack.c.l.b16 %v1190
      %v1267 = vunpack.c.l.b16 %v1191
      %v1268 = vunpack.c.h.b16 %v1191
      %v1269 = vunpack.c.l.b16 %v1192
      %v1270 = vunpack.c.l.b16 %v1193
      %v1271 = vunpack.c.h.b16 %v1193
      %v1272 = vunpack.c.l.b16 %v1194
      %v1273 = vunpack.c.l.b16 %v1195
      %v1274 = vunpack.c.h.b16 %v1195
      %v1275 = vunpack.c.l.b16 %v1196
      %v1276 = vpack.c.b16 %v1243, %v1240
      %v1277 = vpack.c.b16 %v1244, %v1241
      %v1278 = vpack.c.b16 %v1245, %v1242
      %v1279 = vpack.c.b16 %v1249, %v1246
      %v1280 = vpack.c.b16 %v1250, %v1247
      %v1281 = vpack.c.b16 %v1251, %v1248
      %v1282 = vpack.c.b16 %v1255, %v1252
      %v1283 = vpack.c.b16 %v1256, %v1253
      %v1284 = vpack.c.b16 %v1257, %v1254
      %v1285 = vpack.c.b16 %v1261, %v1258
      %v1286 = vpack.c.b16 %v1262, %v1259
      %v1287 = vpack.c.b16 %v1263, %v1260
      %v1288 = vpack.c.b16 %v1267, %v1264
      %v1289 = vpack.c.b16 %v1268, %v1265
      %v1290 = vpack.c.b16 %v1269, %v1266
      %v1291 = vpack.c.b16 %v1273, %v1270
      %v1292 = vpack.c.b16 %v1274, %v1271
      %v1293 = vpack.c.b16 %v1275, %v1272
      %1294 = vrot.lane.b32.xlu0 %v1276, 112
      %v1295 = vpop.permute.xlu0 %1294
      %1296 = vrot.lane.b32.xlu0 %v1277, 112
      %v1297 = vpop.permute.xlu0 %1296
      %1298 = vrot.lane.b32.xlu0 %v1278, 112
      %v1299 = vpop.permute.xlu0 %1298
      %1300 = vrot.lane.b32.xlu0 %v1279, 112
      %v1301 = vpop.permute.xlu0 %1300
      %1302 = vrot.lane.b32.xlu0 %v1280, 112
      %v1303 = vpop.permute.xlu0 %1302
      %1304 = vrot.lane.b32.xlu0 %v1281, 112
      %v1305 = vpop.permute.xlu0 %1304
      %1306 = vrot.lane.b32.xlu0 %v1282, 112
      %v1307 = vpop.permute.xlu0 %1306
      %1308 = vrot.lane.b32.xlu0 %v1283, 112
      %v1309 = vpop.permute.xlu0 %1308
      %1310 = vrot.lane.b32.xlu0 %v1284, 112
      %v1311 = vpop.permute.xlu0 %1310
      %1312 = vrot.lane.b32.xlu0 %v1285, 112
      %v1313 = vpop.permute.xlu0 %1312
      %1314 = vrot.lane.b32.xlu0 %v1286, 112
      %v1315 = vpop.permute.xlu0 %1314
      %1316 = vrot.lane.b32.xlu0 %v1287, 112
      %v1317 = vpop.permute.xlu0 %1316
      %1318 = vrot.lane.b32.xlu0 %v1288, 112
      %v1319 = vpop.permute.xlu0 %1318
      %1320 = vrot.lane.b32.xlu0 %v1289, 112
      %v1321 = vpop.permute.xlu0 %1320
      %1322 = vrot.lane.b32.xlu0 %v1290, 112
      %v1323 = vpop.permute.xlu0 %1322
      %1324 = vrot.lane.b32.xlu0 %v1291, 112
      %v1325 = vpop.permute.xlu0 %1324
      %1326 = vrot.lane.b32.xlu0 %v1292, 112
      %v1327 = vpop.permute.xlu0 %1326
      %1328 = vrot.lane.b32.xlu0 %v1293, 112
      %v1329 = vpop.permute.xlu0 %1328
      %vm1330 = vcmask 916480
      %v1331 = vsel %vm1330, %v1295, %v1297
      %v1332 = vsel %vm1330, %v1297, %v1299
      %v1333 = vsel %vm1330, %v1301, %v1303
      %v1334 = vsel %vm1330, %v1303, %v1305
      %v1335 = vsel %vm1330, %v1307, %v1309
      %v1336 = vsel %vm1330, %v1309, %v1311
      %v1337 = vsel %vm1330, %v1313, %v1315
      %v1338 = vsel %vm1330, %v1315, %v1317
      %v1339 = vsel %vm1330, %v1319, %v1321
      %v1340 = vsel %vm1330, %v1321, %v1323
      %v1341 = vsel %vm1330, %v1325, %v1327
      %v1342 = vsel %vm1330, %v1327, %v1329
      %vm1355 = vcmask 785408
      %v1357 = vsel %vm1355, %v1214, 0
      %v1360 = vsel %vm1355, %v1215, 0
      %1362 = vmatprep.subr.bf16.mxu0 0
      %1363 = vmatpush1.bf16.msra.mxu0 0
      %1364 = vmatprep.subr.bf16.mxu0 0
      %1365 = vmatpush1.bf16.msra.mxu0 0
      %1366 = vmatprep.subr.bf16.mxu0 %v1342
      %1367 = vmatpush1.bf16.msra.mxu0 %v1341
      %1368 = vmatprep.subr.bf16.mxu0 %v1340
      %1369 = vmatpush1.bf16.msra.mxu0 %v1339
      %1370 = vmatprep.subr.bf16.mxu0 %v1338
      %1371 = vmatpush1.bf16.msra.mxu0 %v1337
      %1372 = vmatprep.subr.bf16.mxu0 %v1336
      %1373 = vmatpush1.bf16.msra.mxu0 %v1335
      %1374 = vmatprep.subr.bf16.mxu0 %v1334
      %1375 = vmatpush1.bf16.msra.mxu0 %v1333
      %1376 = vmatprep.subr.bf16.mxu0 %v1332
      %1377 = vmatpush1.bf16.msra.mxu0 %v1331
      %1378 = vmatprep.subr.bf16.mxu0 0
      %1379 = vmatpush2.bf16.msra.mxu0 0
      %1380 = vmatprep.subr.bf16.mxu0 0
      %1381 = vmatpush2.bf16.msra.mxu0 0
      %1382 = vmatprep.subr.bf16.mxu0 0
      %1383 = vmatpush2.bf16.msra.mxu0 0
      %1384 = vmatprep.subr.bf16.mxu0 0
      %1385 = vmatpush2.bf16.msra.mxu0 0
      %1386 = vmatprep.subr.bf16.mxu0 0
      %1387 = vmatpush2.bf16.msra.mxu0 0
      %1388 = vmatprep.subr.bf16.mxu0 0
      %1389 = vmatpush2.bf16.msra.mxu0 0
      %1390 = vmatprep.subr.bf16.mxu0 0
      %1391 = vmatpush2.bf16.msra.mxu0 0
      %1392 = vmatprep.subr.bf16.mxu0 0
      %1393 = vmatpush2.bf16.msra.mxu0 0
      %1394 = vmatprep.mubr.bf16.mxu0 0
      %1395 = vmatmul.mubr.bf16.gmra.mxu0 %v1357
      %v1396 = vpop.f32.mrf.mxu0
      %v1397 = vadd.f32 0.0, %v1396
      %v1398 = vpop.f32.mrf.mxu0
      %v1399 = vadd.f32 0.0, %v1398
      %v1400 = vpop.f32.mrf.mxu0
      %v1401 = vadd.f32 0.0, %v1400
      %v1402 = vpop.f32.mrf.mxu0
      %v1403 = vadd.f32 0.0, %v1402
      %1404 = vmatprep.mubr.bf16.mxu0 0
      %1405 = vmatmul.mubr.bf16.gmra.mxu0 %v1360
      %v1406 = vpop.f32.mrf.mxu0
      %v1407 = vadd.f32 0.0, %v1406
      %v1408 = vpop.f32.mrf.mxu0
      %v1409 = vadd.f32 0.0, %v1408
      %v1410 = vpop.f32.mrf.mxu0
      %v1411 = vadd.f32 0.0, %v1410
      %v1412 = vpop.f32.mrf.mxu0
      %v1413 = vadd.f32 0.0, %v1412
      %1414 = vdwg.mxu0
      %v1419 = vunpack.c.l.b16 %v1197
      %v1420 = vunpack.c.l.b16 %v1198
      %v1421 = vunpack.c.l.b16 %v1199
      %v1422 = vunpack.c.l.b16 %v1200
      %v1423 = vpack.c.b16 %v1420, %v1419
      %v1424 = vpack.c.b16 %v1422, %v1421
      %1425 = vrot.lane.b32.xlu0 %v1276, 113
      %v1426 = vpop.permute.xlu0 %1425
      %1427 = vrot.lane.b32.xlu0 %v1277, 113
      %v1428 = vpop.permute.xlu0 %1427
      %1429 = vrot.lane.b32.xlu0 %v1278, 113
      %v1430 = vpop.permute.xlu0 %1429
      %1431 = vrot.lane.b32.xlu0 %v1279, 113
      %v1432 = vpop.permute.xlu0 %1431
      %1433 = vrot.lane.b32.xlu0 %v1280, 113
      %v1434 = vpop.permute.xlu0 %1433
      %1435 = vrot.lane.b32.xlu0 %v1281, 113
      %v1436 = vpop.permute.xlu0 %1435
      %1437 = vrot.lane.b32.xlu0 %v1282, 113
      %v1438 = vpop.permute.xlu0 %1437
      %1439 = vrot.lane.b32.xlu0 %v1283, 113
      %v1440 = vpop.permute.xlu0 %1439
      %1441 = vrot.lane.b32.xlu0 %v1284, 113
      %v1442 = vpop.permute.xlu0 %1441
      %1443 = vrot.lane.b32.xlu0 %v1285, 113
      %v1444 = vpop.permute.xlu0 %1443
      %1445 = vrot.lane.b32.xlu0 %v1286, 113
      %v1446 = vpop.permute.xlu0 %1445
      %1447 = vrot.lane.b32.xlu0 %v1287, 113
      %v1448 = vpop.permute.xlu0 %1447
      %1449 = vrot.lane.b32.xlu0 %v1288, 113
      %v1450 = vpop.permute.xlu0 %1449
      %1451 = vrot.lane.b32.xlu0 %v1289, 113
      %v1452 = vpop.permute.xlu0 %1451
      %1453 = vrot.lane.b32.xlu0 %v1290, 113
      %v1454 = vpop.permute.xlu0 %1453
      %1455 = vrot.lane.b32.xlu0 %v1291, 113
      %v1456 = vpop.permute.xlu0 %1455
      %1457 = vrot.lane.b32.xlu0 %v1292, 113
      %v1458 = vpop.permute.xlu0 %1457
      %1459 = vrot.lane.b32.xlu0 %v1293, 113
      %v1460 = vpop.permute.xlu0 %1459
      %vm1461 = vcmask 924672
      %v1462 = vsel %vm1461, %v1426, %v1428
      %v1463 = vsel %vm1461, %v1428, %v1430
      %v1464 = vsel %vm1461, %v1432, %v1434
      %v1465 = vsel %vm1461, %v1434, %v1436
      %v1466 = vsel %vm1461, %v1438, %v1440
      %v1467 = vsel %vm1461, %v1440, %v1442
      %v1468 = vsel %vm1461, %v1444, %v1446
      %v1469 = vsel %vm1461, %v1446, %v1448
      %v1470 = vsel %vm1461, %v1450, %v1452
      %v1471 = vsel %vm1461, %v1452, %v1454
      %v1472 = vsel %vm1461, %v1456, %v1458
      %v1473 = vsel %vm1461, %v1458, %v1460
      %v1487 = vsel %vm1355, %v1423, 0
      %v1490 = vsel %vm1355, %v1424, 0
      %1492 = vmatprep.subr.bf16.mxu0 0
      %1493 = vmatpush1.bf16.msra.mxu0 0
      %1494 = vmatprep.subr.bf16.mxu0 0
      %1495 = vmatpush1.bf16.msra.mxu0 0
      %1496 = vmatprep.subr.bf16.mxu0 %v1473
      %1497 = vmatpush1.bf16.msra.mxu0 %v1472
      %1498 = vmatprep.subr.bf16.mxu0 %v1471
      %1499 = vmatpush1.bf16.msra.mxu0 %v1470
      %1500 = vmatprep.subr.bf16.mxu0 %v1469
      %1501 = vmatpush1.bf16.msra.mxu0 %v1468
      %1502 = vmatprep.subr.bf16.mxu0 %v1467
      %1503 = vmatpush1.bf16.msra.mxu0 %v1466
      %1504 = vmatprep.subr.bf16.mxu0 %v1465
      %1505 = vmatpush1.bf16.msra.mxu0 %v1464
      %1506 = vmatprep.subr.bf16.mxu0 %v1463
      %1507 = vmatpush1.bf16.msra.mxu0 %v1462
      %1508 = vmatprep.subr.bf16.mxu0 0
      %1509 = vmatpush2.bf16.msra.mxu0 0
      %1510 = vmatprep.subr.bf16.mxu0 0
      %1511 = vmatpush2.bf16.msra.mxu0 0
      %1512 = vmatprep.subr.bf16.mxu0 0
      %1513 = vmatpush2.bf16.msra.mxu0 0
      %1514 = vmatprep.subr.bf16.mxu0 0
      %1515 = vmatpush2.bf16.msra.mxu0 0
      %1516 = vmatprep.subr.bf16.mxu0 0
      %1517 = vmatpush2.bf16.msra.mxu0 0
      %1518 = vmatprep.subr.bf16.mxu0 0
      %1519 = vmatpush2.bf16.msra.mxu0 0
      %1520 = vmatprep.subr.bf16.mxu0 0
      %1521 = vmatpush2.bf16.msra.mxu0 0
      %1522 = vmatprep.subr.bf16.mxu0 0
      %1523 = vmatpush2.bf16.msra.mxu0 0
      %1524 = vmatprep.mubr.bf16.mxu0 0
      %1525 = vmatmul.mubr.bf16.gmra.mxu0 %v1487
      %v1526 = vpop.f32.mrf.mxu0
      %v1527 = vadd.f32 %v1397, %v1526
      %v1528 = vpop.f32.mrf.mxu0
      %v1529 = vadd.f32 %v1399, %v1528
      %v1530 = vpop.f32.mrf.mxu0
      %v1531 = vadd.f32 %v1401, %v1530
      %v1532 = vpop.f32.mrf.mxu0
      %v1533 = vadd.f32 %v1403, %v1532
      %1534 = vmatprep.mubr.bf16.mxu0 0
      %1535 = vmatmul.mubr.bf16.gmra.mxu0 %v1490
      %v1536 = vpop.f32.mrf.mxu0
      %v1537 = vadd.f32 %v1407, %v1536
      %v1538 = vpop.f32.mrf.mxu0
      %v1539 = vadd.f32 %v1409, %v1538
      %v1540 = vpop.f32.mrf.mxu0
      %v1541 = vadd.f32 %v1411, %v1540
      %v1542 = vpop.f32.mrf.mxu0
      %v1543 = vadd.f32 %v1413, %v1542
      %1544 = vdwg.mxu0
      %s1545 = scalar_lea.vmem %s4, 32
      %v1546 = vld [vmem:[%s1545] sm:$0xf]
      %v1547 = vld [vmem:[%s1545 + $0x4] sm:$0xf]
      %v1548 = vld [vmem:[%s1545 + $0x8] sm:$0xf]
      %v1549 = vld [vmem:[%s1545 + $0xc] sm:$0xf]
      %v1554 = vunpack.c.l.b16 %v1546
      %v1555 = vunpack.c.l.b16 %v1547
      %v1556 = vunpack.c.l.b16 %v1548
      %v1557 = vunpack.c.l.b16 %v1549
      %v1558 = vpack.c.b16 %v1555, %v1554
      %v1559 = vpack.c.b16 %v1557, %v1556
      %1560 = vrot.lane.b32.xlu0 %v1276, 111
      %v1561 = vpop.permute.xlu0 %1560
      %1562 = vrot.lane.b32.xlu0 %v1277, 111
      %v1563 = vpop.permute.xlu0 %1562
      %1564 = vrot.lane.b32.xlu0 %v1278, 111
      %v1565 = vpop.permute.xlu0 %1564
      %1566 = vrot.lane.b32.xlu0 %v1279, 111
      %v1567 = vpop.permute.xlu0 %1566
      %1568 = vrot.lane.b32.xlu0 %v1280, 111
      %v1569 = vpop.permute.xlu0 %1568
      %1570 = vrot.lane.b32.xlu0 %v1281, 111
      %v1571 = vpop.permute.xlu0 %1570
      %1572 = vrot.lane.b32.xlu0 %v1282, 111
      %v1573 = vpop.permute.xlu0 %1572
      %1574 = vrot.lane.b32.xlu0 %v1283, 111
      %v1575 = vpop.permute.xlu0 %1574
      %1576 = vrot.lane.b32.xlu0 %v1284, 111
      %v1577 = vpop.permute.xlu0 %1576
      %1578 = vrot.lane.b32.xlu0 %v1285, 111
      %v1579 = vpop.permute.xlu0 %1578
      %1580 = vrot.lane.b32.xlu0 %v1286, 111
      %v1581 = vpop.permute.xlu0 %1580
      %1582 = vrot.lane.b32.xlu0 %v1287, 111
      %v1583 = vpop.permute.xlu0 %1582
      %1584 = vrot.lane.b32.xlu0 %v1288, 111
      %v1585 = vpop.permute.xlu0 %1584
      %1586 = vrot.lane.b32.xlu0 %v1289, 111
      %v1587 = vpop.permute.xlu0 %1586
      %1588 = vrot.lane.b32.xlu0 %v1290, 111
      %v1589 = vpop.permute.xlu0 %1588
      %1590 = vrot.lane.b32.xlu0 %v1291, 111
      %v1591 = vpop.permute.xlu0 %1590
      %1592 = vrot.lane.b32.xlu0 %v1292, 111
      %v1593 = vpop.permute.xlu0 %1592
      %1594 = vrot.lane.b32.xlu0 %v1293, 111
      %v1595 = vpop.permute.xlu0 %1594
      %vm1596 = vcmask 908288
      %v1597 = vsel %vm1596, %v1561, %v1563
      %v1598 = vsel %vm1596, %v1563, %v1565
      %v1599 = vsel %vm1596, %v1567, %v1569
      %v1600 = vsel %vm1596, %v1569, %v1571
      %v1601 = vsel %vm1596, %v1573, %v1575
      %v1602 = vsel %vm1596, %v1575, %v1577
      %v1603 = vsel %vm1596, %v1579, %v1581
      %v1604 = vsel %vm1596, %v1581, %v1583
      %v1605 = vsel %vm1596, %v1585, %v1587
      %v1606 = vsel %vm1596, %v1587, %v1589
      %v1607 = vsel %vm1596, %v1591, %v1593
      %v1608 = vsel %vm1596, %v1593, %v1595
      %v1622 = vsel %vm1355, %v1558, 0
      %v1625 = vsel %vm1355, %v1559, 0
      %1627 = vmatprep.subr.bf16.mxu0 0
      %1628 = vmatpush1.bf16.msra.mxu0 0
      %1629 = vmatprep.subr.bf16.mxu0 0
      %1630 = vmatpush1.bf16.msra.mxu0 0
      %1631 = vmatprep.subr.bf16.mxu0 %v1608
      %1632 = vmatpush1.bf16.msra.mxu0 %v1607
      %1633 = vmatprep.subr.bf16.mxu0 %v1606
      %1634 = vmatpush1.bf16.msra.mxu0 %v1605
      %1635 = vmatprep.subr.bf16.mxu0 %v1604
      %1636 = vmatpush1.bf16.msra.mxu0 %v1603
      %1637 = vmatprep.subr.bf16.mxu0 %v1602
      %1638 = vmatpush1.bf16.msra.mxu0 %v1601
      %1639 = vmatprep.subr.bf16.mxu0 %v1600
      %1640 = vmatpush1.bf16.msra.mxu0 %v1599
      %1641 = vmatprep.subr.bf16.mxu0 %v1598
      %1642 = vmatpush1.bf16.msra.mxu0 %v1597
      %1643 = vmatprep.subr.bf16.mxu0 0
      %1644 = vmatpush2.bf16.msra.mxu0 0
      %1645 = vmatprep.subr.bf16.mxu0 0
      %1646 = vmatpush2.bf16.msra.mxu0 0
      %1647 = vmatprep.subr.bf16.mxu0 0
      %1648 = vmatpush2.bf16.msra.mxu0 0
      %1649 = vmatprep.subr.bf16.mxu0 0
      %1650 = vmatpush2.bf16.msra.mxu0 0
      %1651 = vmatprep.subr.bf16.mxu0 0
      %1652 = vmatpush2.bf16.msra.mxu0 0
      %1653 = vmatprep.subr.bf16.mxu0 0
      %1654 = vmatpush2.bf16.msra.mxu0 0
      %1655 = vmatprep.subr.bf16.mxu0 0
      %1656 = vmatpush2.bf16.msra.mxu0 0
      %1657 = vmatprep.subr.bf16.mxu0 0
      %1658 = vmatpush2.bf16.msra.mxu0 0
      %1659 = vmatprep.mubr.bf16.mxu0 0
      %1660 = vmatmul.mubr.bf16.gmra.mxu0 %v1622
      %v1661 = vpop.f32.mrf.mxu0
      %v1662 = vadd.f32 0.0, %v1661
      %v1663 = vpop.f32.mrf.mxu0
      %v1664 = vadd.f32 0.0, %v1663
      %v1665 = vpop.f32.mrf.mxu0
      %v1666 = vadd.f32 0.0, %v1665
      %v1667 = vpop.f32.mrf.mxu0
      %v1668 = vadd.f32 0.0, %v1667
      %1669 = vmatprep.mubr.bf16.mxu0 0
      %1670 = vmatmul.mubr.bf16.gmra.mxu0 %v1625
      %v1671 = vpop.f32.mrf.mxu0
      %v1672 = vadd.f32 0.0, %v1671
      %v1673 = vpop.f32.mrf.mxu0
      %v1674 = vadd.f32 0.0, %v1673
      %v1675 = vpop.f32.mrf.mxu0
      %v1676 = vadd.f32 0.0, %v1675
      %v1677 = vpop.f32.mrf.mxu0
      %v1678 = vadd.f32 0.0, %v1677
      %1679 = vdwg.mxu0
      %v1680 = vadd.f32 %v1527, %v1662
      %v1681 = vadd.f32 %v1529, %v1664
      %v1682 = vadd.f32 %v1531, %v1666
      %v1683 = vadd.f32 %v1533, %v1668
      %v1684 = vadd.f32 %v1537, %v1672
      %v1685 = vadd.f32 %v1539, %v1674
      %v1686 = vadd.f32 %v1541, %v1676
      %v1687 = vadd.f32 %v1543, %v1678
      %s1688 = scalar_lea.vmem %s4, 48
      %v1689 = vld [vmem:[%s1688] sm:$0xf]
      %v1690 = vld [vmem:[%s1688 + $0x4] sm:$0xf]
      %v1691 = vld [vmem:[%s1688 + $0x8] sm:$0xf]
      %v1692 = vld [vmem:[%s1688 + $0xc] sm:$0xf]
      %v1697 = vunpack.c.l.b16 %v1689
      %v1698 = vunpack.c.l.b16 %v1690
      %v1699 = vunpack.c.l.b16 %v1691
      %v1700 = vunpack.c.l.b16 %v1692
      %v1701 = vpack.c.b16 %v1698, %v1697
      %v1702 = vpack.c.b16 %v1700, %v1699
      %1703 = vrot.lane.b32.xlu0 %v1276, 97
      %v1704 = vpop.permute.xlu0 %1703
      %1705 = vrot.lane.b32.xlu0 %v1277, 97
      %v1706 = vpop.permute.xlu0 %1705
      %1707 = vrot.lane.b32.xlu0 %v1278, 97
      %v1708 = vpop.permute.xlu0 %1707
      %1709 = vrot.lane.b32.xlu0 %v1279, 97
      %v1710 = vpop.permute.xlu0 %1709
      %1711 = vrot.lane.b32.xlu0 %v1280, 97
      %v1712 = vpop.permute.xlu0 %1711
      %1713 = vrot.lane.b32.xlu0 %v1281, 97
      %v1714 = vpop.permute.xlu0 %1713
      %1715 = vrot.lane.b32.xlu0 %v1282, 97
      %v1716 = vpop.permute.xlu0 %1715
      %1717 = vrot.lane.b32.xlu0 %v1283, 97
      %v1718 = vpop.permute.xlu0 %1717
      %1719 = vrot.lane.b32.xlu0 %v1284, 97
      %v1720 = vpop.permute.xlu0 %1719
      %1721 = vrot.lane.b32.xlu0 %v1285, 97
      %v1722 = vpop.permute.xlu0 %1721
      %1723 = vrot.lane.b32.xlu0 %v1286, 97
      %v1724 = vpop.permute.xlu0 %1723
      %1725 = vrot.lane.b32.xlu0 %v1287, 97
      %v1726 = vpop.permute.xlu0 %1725
      %1727 = vrot.lane.b32.xlu0 %v1288, 97
      %v1728 = vpop.permute.xlu0 %1727
      %1729 = vrot.lane.b32.xlu0 %v1289, 97
      %v1730 = vpop.permute.xlu0 %1729
      %1731 = vrot.lane.b32.xlu0 %v1290, 97
      %v1732 = vpop.permute.xlu0 %1731
      %1733 = vrot.lane.b32.xlu0 %v1291, 97
      %v1734 = vpop.permute.xlu0 %1733
      %1735 = vrot.lane.b32.xlu0 %v1292, 97
      %v1736 = vpop.permute.xlu0 %1735
      %1737 = vrot.lane.b32.xlu0 %v1293, 97
      %v1738 = vpop.permute.xlu0 %1737
      %vm1739 = vcmask 793600
      %v1740 = vsel %vm1739, %v1704, %v1706
      %v1741 = vsel %vm1739, %v1706, %v1708
      %v1742 = vsel %vm1739, %v1710, %v1712
      %v1743 = vsel %vm1739, %v1712, %v1714
      %v1744 = vsel %vm1739, %v1716, %v1718
      %v1745 = vsel %vm1739, %v1718, %v1720
      %v1746 = vsel %vm1739, %v1722, %v1724
      %v1747 = vsel %vm1739, %v1724, %v1726
      %v1748 = vsel %vm1739, %v1728, %v1730
      %v1749 = vsel %vm1739, %v1730, %v1732
      %v1750 = vsel %vm1739, %v1734, %v1736
      %v1751 = vsel %vm1739, %v1736, %v1738
      %v1765 = vsel %vm1355, %v1701, 0
      %v1768 = vsel %vm1355, %v1702, 0
      %1770 = vmatprep.subr.bf16.mxu0 0
      %1771 = vmatpush1.bf16.msra.mxu0 0
      %1772 = vmatprep.subr.bf16.mxu0 0
      %1773 = vmatpush1.bf16.msra.mxu0 0
      %1774 = vmatprep.subr.bf16.mxu0 %v1751
      %1775 = vmatpush1.bf16.msra.mxu0 %v1750
      %1776 = vmatprep.subr.bf16.mxu0 %v1749
      %1777 = vmatpush1.bf16.msra.mxu0 %v1748
      %1778 = vmatprep.subr.bf16.mxu0 %v1747
      %1779 = vmatpush1.bf16.msra.mxu0 %v1746
      %1780 = vmatprep.subr.bf16.mxu0 %v1745
      %1781 = vmatpush1.bf16.msra.mxu0 %v1744
      %1782 = vmatprep.subr.bf16.mxu0 %v1743
      %1783 = vmatpush1.bf16.msra.mxu0 %v1742
      %1784 = vmatprep.subr.bf16.mxu0 %v1741
      %1785 = vmatpush1.bf16.msra.mxu0 %v1740
      %1786 = vmatprep.subr.bf16.mxu0 0
      %1787 = vmatpush2.bf16.msra.mxu0 0
      %1788 = vmatprep.subr.bf16.mxu0 0
      %1789 = vmatpush2.bf16.msra.mxu0 0
      %1790 = vmatprep.subr.bf16.mxu0 0
      %1791 = vmatpush2.bf16.msra.mxu0 0
      %1792 = vmatprep.subr.bf16.mxu0 0
      %1793 = vmatpush2.bf16.msra.mxu0 0
      %1794 = vmatprep.subr.bf16.mxu0 0
      %1795 = vmatpush2.bf16.msra.mxu0 0
      %1796 = vmatprep.subr.bf16.mxu0 0
      %1797 = vmatpush2.bf16.msra.mxu0 0
      %1798 = vmatprep.subr.bf16.mxu0 0
      %1799 = vmatpush2.bf16.msra.mxu0 0
      %1800 = vmatprep.subr.bf16.mxu0 0
      %1801 = vmatpush2.bf16.msra.mxu0 0
      %1802 = vmatprep.mubr.bf16.mxu0 0
      %1803 = vmatmul.mubr.bf16.gmra.mxu0 %v1765
      %v1804 = vpop.f32.mrf.mxu0
      %v1805 = vadd.f32 0.0, %v1804
      %v1806 = vpop.f32.mrf.mxu0
      %v1807 = vadd.f32 0.0, %v1806
      %v1808 = vpop.f32.mrf.mxu0
      %v1809 = vadd.f32 0.0, %v1808
      %v1810 = vpop.f32.mrf.mxu0
      %v1811 = vadd.f32 0.0, %v1810
      %1812 = vmatprep.mubr.bf16.mxu0 0
      %1813 = vmatmul.mubr.bf16.gmra.mxu0 %v1768
      %v1814 = vpop.f32.mrf.mxu0
      %v1815 = vadd.f32 0.0, %v1814
      %v1816 = vpop.f32.mrf.mxu0
      %v1817 = vadd.f32 0.0, %v1816
      %v1818 = vpop.f32.mrf.mxu0
      %v1819 = vadd.f32 0.0, %v1818
      %v1820 = vpop.f32.mrf.mxu0
      %v1821 = vadd.f32 0.0, %v1820
      %1822 = vdwg.mxu0
      %v1823 = vadd.f32 %v1680, %v1805
      %v1824 = vadd.f32 %v1681, %v1807
      %v1825 = vadd.f32 %v1682, %v1809
      %v1826 = vadd.f32 %v1683, %v1811
      %v1827 = vadd.f32 %v1684, %v1815
      %v1828 = vadd.f32 %v1685, %v1817
      %v1829 = vadd.f32 %v1686, %v1819
      %v1830 = vadd.f32 %v1687, %v1821
      %s1831 = scalar_lea.vmem %s4, 64
      %v1832 = vld [vmem:[%s1831] sm:$0xf]
      %v1833 = vld [vmem:[%s1831 + $0x4] sm:$0xf]
      %v1834 = vld [vmem:[%s1831 + $0x8] sm:$0xf]
      %v1835 = vld [vmem:[%s1831 + $0xc] sm:$0xf]
      %v1840 = vunpack.c.l.b16 %v1832
      %v1841 = vunpack.c.l.b16 %v1833
      %v1842 = vunpack.c.l.b16 %v1834
      %v1843 = vunpack.c.l.b16 %v1835
      %v1844 = vpack.c.b16 %v1841, %v1840
      %v1845 = vpack.c.b16 %v1843, %v1842
      %1846 = vrot.lane.b32.xlu0 %v1276, 96
      %v1847 = vpop.permute.xlu0 %1846
      %1848 = vrot.lane.b32.xlu0 %v1277, 96
      %v1849 = vpop.permute.xlu0 %1848
      %1850 = vrot.lane.b32.xlu0 %v1278, 96
      %v1851 = vpop.permute.xlu0 %1850
      %1852 = vrot.lane.b32.xlu0 %v1279, 96
      %v1853 = vpop.permute.xlu0 %1852
      %1854 = vrot.lane.b32.xlu0 %v1280, 96
      %v1855 = vpop.permute.xlu0 %1854
      %1856 = vrot.lane.b32.xlu0 %v1281, 96
      %v1857 = vpop.permute.xlu0 %1856
      %1858 = vrot.lane.b32.xlu0 %v1282, 96
      %v1859 = vpop.permute.xlu0 %1858
      %1860 = vrot.lane.b32.xlu0 %v1283, 96
      %v1861 = vpop.permute.xlu0 %1860
      %1862 = vrot.lane.b32.xlu0 %v1284, 96
      %v1863 = vpop.permute.xlu0 %1862
      %1864 = vrot.lane.b32.xlu0 %v1285, 96
      %v1865 = vpop.permute.xlu0 %1864
      %1866 = vrot.lane.b32.xlu0 %v1286, 96
      %v1867 = vpop.permute.xlu0 %1866
      %1868 = vrot.lane.b32.xlu0 %v1287, 96
      %v1869 = vpop.permute.xlu0 %1868
      %1870 = vrot.lane.b32.xlu0 %v1288, 96
      %v1871 = vpop.permute.xlu0 %1870
      %1872 = vrot.lane.b32.xlu0 %v1289, 96
      %v1873 = vpop.permute.xlu0 %1872
      %1874 = vrot.lane.b32.xlu0 %v1290, 96
      %v1875 = vpop.permute.xlu0 %1874
      %1876 = vrot.lane.b32.xlu0 %v1291, 96
      %v1877 = vpop.permute.xlu0 %1876
      %1878 = vrot.lane.b32.xlu0 %v1292, 96
      %v1879 = vpop.permute.xlu0 %1878
      %1880 = vrot.lane.b32.xlu0 %v1293, 96
      %v1881 = vpop.permute.xlu0 %1880
      %vm1882 = vcmask 785408
      %v1883 = vsel %vm1882, %v1847, %v1849
      %v1884 = vsel %vm1882, %v1849, %v1851
      %v1885 = vsel %vm1882, %v1853, %v1855
      %v1886 = vsel %vm1882, %v1855, %v1857
      %v1887 = vsel %vm1882, %v1859, %v1861
      %v1888 = vsel %vm1882, %v1861, %v1863
      %v1889 = vsel %vm1882, %v1865, %v1867
      %v1890 = vsel %vm1882, %v1867, %v1869
      %v1891 = vsel %vm1882, %v1871, %v1873
      %v1892 = vsel %vm1882, %v1873, %v1875
      %v1893 = vsel %vm1882, %v1877, %v1879
      %v1894 = vsel %vm1882, %v1879, %v1881
      %v1908 = vsel %vm1355, %v1844, 0
      %v1911 = vsel %vm1355, %v1845, 0
      %1913 = vmatprep.subr.bf16.mxu0 0
      %1914 = vmatpush1.bf16.msra.mxu0 0
      %1915 = vmatprep.subr.bf16.mxu0 0
      %1916 = vmatpush1.bf16.msra.mxu0 0
      %1917 = vmatprep.subr.bf16.mxu0 %v1894
      %1918 = vmatpush1.bf16.msra.mxu0 %v1893
      %1919 = vmatprep.subr.bf16.mxu0 %v1892
      %1920 = vmatpush1.bf16.msra.mxu0 %v1891
      %1921 = vmatprep.subr.bf16.mxu0 %v1890
      %1922 = vmatpush1.bf16.msra.mxu0 %v1889
      %1923 = vmatprep.subr.bf16.mxu0 %v1888
      %1924 = vmatpush1.bf16.msra.mxu0 %v1887
      %1925 = vmatprep.subr.bf16.mxu0 %v1886
      %1926 = vmatpush1.bf16.msra.mxu0 %v1885
      %1927 = vmatprep.subr.bf16.mxu0 %v1884
      %1928 = vmatpush1.bf16.msra.mxu0 %v1883
      %1929 = vmatprep.subr.bf16.mxu0 0
      %1930 = vmatpush2.bf16.msra.mxu0 0
      %1931 = vmatprep.subr.bf16.mxu0 0
      %1932 = vmatpush2.bf16.msra.mxu0 0
      %1933 = vmatprep.subr.bf16.mxu0 0
      %1934 = vmatpush2.bf16.msra.mxu0 0
      %1935 = vmatprep.subr.bf16.mxu0 0
      %1936 = vmatpush2.bf16.msra.mxu0 0
      %1937 = vmatprep.subr.bf16.mxu0 0
      %1938 = vmatpush2.bf16.msra.mxu0 0
      %1939 = vmatprep.subr.bf16.mxu0 0
      %1940 = vmatpush2.bf16.msra.mxu0 0
      %1941 = vmatprep.subr.bf16.mxu0 0
      %1942 = vmatpush2.bf16.msra.mxu0 0
      %1943 = vmatprep.subr.bf16.mxu0 0
      %1944 = vmatpush2.bf16.msra.mxu0 0
      %1945 = vmatprep.mubr.bf16.mxu0 0
      %1946 = vmatmul.mubr.bf16.gmra.mxu0 %v1908
      %v1947 = vpop.f32.mrf.mxu0
      %v1948 = vadd.f32 0.0, %v1947
      %v1949 = vpop.f32.mrf.mxu0
      %v1950 = vadd.f32 0.0, %v1949
      %v1951 = vpop.f32.mrf.mxu0
      %v1952 = vadd.f32 0.0, %v1951
      %v1953 = vpop.f32.mrf.mxu0
      %v1954 = vadd.f32 0.0, %v1953
      %1955 = vmatprep.mubr.bf16.mxu0 0
      %1956 = vmatmul.mubr.bf16.gmra.mxu0 %v1911
      %v1957 = vpop.f32.mrf.mxu0
      %v1958 = vadd.f32 0.0, %v1957
      %v1959 = vpop.f32.mrf.mxu0
      %v1960 = vadd.f32 0.0, %v1959
      %v1961 = vpop.f32.mrf.mxu0
      %v1962 = vadd.f32 0.0, %v1961
      %v1963 = vpop.f32.mrf.mxu0
      %v1964 = vadd.f32 0.0, %v1963
      %1965 = vdwg.mxu0
      %v1966 = vadd.f32 %v1823, %v1948
      %v1967 = vadd.f32 %v1824, %v1950
      %v1968 = vadd.f32 %v1825, %v1952
      %v1969 = vadd.f32 %v1826, %v1954
      %v1970 = vadd.f32 %v1827, %v1958
      %v1971 = vadd.f32 %v1828, %v1960
      %v1972 = vadd.f32 %v1829, %v1962
      %v1973 = vadd.f32 %v1830, %v1964
      %s1974 = scalar_lea.vmem %s4, 80
      %v1975 = vld [vmem:[%s1974] sm:$0xf]
      %v1976 = vld [vmem:[%s1974 + $0x4] sm:$0xf]
      %v1977 = vld [vmem:[%s1974 + $0x8] sm:$0xf]
      %v1978 = vld [vmem:[%s1974 + $0xc] sm:$0xf]
      %v1983 = vunpack.c.l.b16 %v1975
      %v1984 = vunpack.c.l.b16 %v1976
      %v1985 = vunpack.c.l.b16 %v1977
      %v1986 = vunpack.c.l.b16 %v1978
      %v1987 = vpack.c.b16 %v1984, %v1983
      %v1988 = vpack.c.b16 %v1986, %v1985
      %1989 = vrot.lane.b32.xlu0 %v1276, 95
      %v1990 = vpop.permute.xlu0 %1989
      %1991 = vrot.lane.b32.xlu0 %v1277, 95
      %v1992 = vpop.permute.xlu0 %1991
      %1993 = vrot.lane.b32.xlu0 %v1278, 95
      %v1994 = vpop.permute.xlu0 %1993
      %1995 = vrot.lane.b32.xlu0 %v1279, 95
      %v1996 = vpop.permute.xlu0 %1995
      %1997 = vrot.lane.b32.xlu0 %v1280, 95
      %v1998 = vpop.permute.xlu0 %1997
      %1999 = vrot.lane.b32.xlu0 %v1281, 95
      %v2000 = vpop.permute.xlu0 %1999
      %2001 = vrot.lane.b32.xlu0 %v1282, 95
      %v2002 = vpop.permute.xlu0 %2001
      %2003 = vrot.lane.b32.xlu0 %v1283, 95
      %v2004 = vpop.permute.xlu0 %2003
      %2005 = vrot.lane.b32.xlu0 %v1284, 95
      %v2006 = vpop.permute.xlu0 %2005
      %2007 = vrot.lane.b32.xlu0 %v1285, 95
      %v2008 = vpop.permute.xlu0 %2007
      %2009 = vrot.lane.b32.xlu0 %v1286, 95
      %v2010 = vpop.permute.xlu0 %2009
      %2011 = vrot.lane.b32.xlu0 %v1287, 95
      %v2012 = vpop.permute.xlu0 %2011
      %2013 = vrot.lane.b32.xlu0 %v1288, 95
      %v2014 = vpop.permute.xlu0 %2013
      %2015 = vrot.lane.b32.xlu0 %v1289, 95
      %v2016 = vpop.permute.xlu0 %2015
      %2017 = vrot.lane.b32.xlu0 %v1290, 95
      %v2018 = vpop.permute.xlu0 %2017
      %2019 = vrot.lane.b32.xlu0 %v1291, 95
      %v2020 = vpop.permute.xlu0 %2019
      %2021 = vrot.lane.b32.xlu0 %v1292, 95
      %v2022 = vpop.permute.xlu0 %2021
      %2023 = vrot.lane.b32.xlu0 %v1293, 95
      %v2024 = vpop.permute.xlu0 %2023
      %vm2025 = vcmask 777216
      %v2026 = vsel %vm2025, %v1990, %v1992
      %v2027 = vsel %vm2025, %v1992, %v1994
      %v2028 = vsel %vm2025, %v1996, %v1998
      %v2029 = vsel %vm2025, %v1998, %v2000
      %v2030 = vsel %vm2025, %v2002, %v2004
      %v2031 = vsel %vm2025, %v2004, %v2006
      %v2032 = vsel %vm2025, %v2008, %v2010
      %v2033 = vsel %vm2025, %v2010, %v2012
      %v2034 = vsel %vm2025, %v2014, %v2016
      %v2035 = vsel %vm2025, %v2016, %v2018
      %v2036 = vsel %vm2025, %v2020, %v2022
      %v2037 = vsel %vm2025, %v2022, %v2024
      %v2051 = vsel %vm1355, %v1987, 0
      %v2054 = vsel %vm1355, %v1988, 0
      %2056 = vmatprep.subr.bf16.mxu0 0
      %2057 = vmatpush1.bf16.msra.mxu0 0
      %2058 = vmatprep.subr.bf16.mxu0 0
      %2059 = vmatpush1.bf16.msra.mxu0 0
      %2060 = vmatprep.subr.bf16.mxu0 %v2037
      %2061 = vmatpush1.bf16.msra.mxu0 %v2036
      %2062 = vmatprep.subr.bf16.mxu0 %v2035
      %2063 = vmatpush1.bf16.msra.mxu0 %v2034
      %2064 = vmatprep.subr.bf16.mxu0 %v2033
      %2065 = vmatpush1.bf16.msra.mxu0 %v2032
      %2066 = vmatprep.subr.bf16.mxu0 %v2031
      %2067 = vmatpush1.bf16.msra.mxu0 %v2030
      %2068 = vmatprep.subr.bf16.mxu0 %v2029
      %2069 = vmatpush1.bf16.msra.mxu0 %v2028
      %2070 = vmatprep.subr.bf16.mxu0 %v2027
      %2071 = vmatpush1.bf16.msra.mxu0 %v2026
      %2072 = vmatprep.subr.bf16.mxu0 0
      %2073 = vmatpush2.bf16.msra.mxu0 0
      %2074 = vmatprep.subr.bf16.mxu0 0
      %2075 = vmatpush2.bf16.msra.mxu0 0
      %2076 = vmatprep.subr.bf16.mxu0 0
      %2077 = vmatpush2.bf16.msra.mxu0 0
      %2078 = vmatprep.subr.bf16.mxu0 0
      %2079 = vmatpush2.bf16.msra.mxu0 0
      %2080 = vmatprep.subr.bf16.mxu0 0
      %2081 = vmatpush2.bf16.msra.mxu0 0
      %2082 = vmatprep.subr.bf16.mxu0 0
      %2083 = vmatpush2.bf16.msra.mxu0 0
      %2084 = vmatprep.subr.bf16.mxu0 0
      %2085 = vmatpush2.bf16.msra.mxu0 0
      %2086 = vmatprep.subr.bf16.mxu0 0
      %2087 = vmatpush2.bf16.msra.mxu0 0
      %2088 = vmatprep.mubr.bf16.mxu0 0
      %2089 = vmatmul.mubr.bf16.gmra.mxu0 %v2051
      %v2090 = vpop.f32.mrf.mxu0
      %v2091 = vadd.f32 0.0, %v2090
      %v2092 = vpop.f32.mrf.mxu0
      %v2093 = vadd.f32 0.0, %v2092
      %v2094 = vpop.f32.mrf.mxu0
      %v2095 = vadd.f32 0.0, %v2094
      %v2096 = vpop.f32.mrf.mxu0
      %v2097 = vadd.f32 0.0, %v2096
      %2098 = vmatprep.mubr.bf16.mxu0 0
      %2099 = vmatmul.mubr.bf16.gmra.mxu0 %v2054
      %v2100 = vpop.f32.mrf.mxu0
      %v2101 = vadd.f32 0.0, %v2100
      %v2102 = vpop.f32.mrf.mxu0
      %v2103 = vadd.f32 0.0, %v2102
      %v2104 = vpop.f32.mrf.mxu0
      %v2105 = vadd.f32 0.0, %v2104
      %v2106 = vpop.f32.mrf.mxu0
      %v2107 = vadd.f32 0.0, %v2106
      %2108 = vdwg.mxu0
      %v2109 = vadd.f32 %v1966, %v2091
      %v2110 = vadd.f32 %v1967, %v2093
      %v2111 = vadd.f32 %v1968, %v2095
      %v2112 = vadd.f32 %v1969, %v2097
      %v2113 = vadd.f32 %v1970, %v2101
      %v2114 = vadd.f32 %v1971, %v2103
      %v2115 = vadd.f32 %v1972, %v2105
      %v2116 = vadd.f32 %v1973, %v2107
      %s2117 = scalar_lea.vmem %s4, 96
      %v2118 = vld [vmem:[%s2117] sm:$0xf]
      %v2119 = vld [vmem:[%s2117 + $0x4] sm:$0xf]
      %v2120 = vld [vmem:[%s2117 + $0x8] sm:$0xf]
      %v2121 = vld [vmem:[%s2117 + $0xc] sm:$0xf]
      %v2126 = vunpack.c.l.b16 %v2118
      %v2127 = vunpack.c.l.b16 %v2119
      %v2128 = vunpack.c.l.b16 %v2120
      %v2129 = vunpack.c.l.b16 %v2121
      %v2130 = vpack.c.b16 %v2127, %v2126
      %v2131 = vpack.c.b16 %v2129, %v2128
      %2132 = vrot.lane.b32.xlu0 %v1276, 81
      %v2133 = vpop.permute.xlu0 %2132
      %2134 = vrot.lane.b32.xlu0 %v1277, 81
      %v2135 = vpop.permute.xlu0 %2134
      %2136 = vrot.lane.b32.xlu0 %v1278, 81
      %v2137 = vpop.permute.xlu0 %2136
      %2138 = vrot.lane.b32.xlu0 %v1279, 81
      %v2139 = vpop.permute.xlu0 %2138
      %2140 = vrot.lane.b32.xlu0 %v1280, 81
      %v2141 = vpop.permute.xlu0 %2140
      %2142 = vrot.lane.b32.xlu0 %v1281, 81
      %v2143 = vpop.permute.xlu0 %2142
      %2144 = vrot.lane.b32.xlu0 %v1282, 81
      %v2145 = vpop.permute.xlu0 %2144
      %2146 = vrot.lane.b32.xlu0 %v1283, 81
      %v2147 = vpop.permute.xlu0 %2146
      %2148 = vrot.lane.b32.xlu0 %v1284, 81
      %v2149 = vpop.permute.xlu0 %2148
      %2150 = vrot.lane.b32.xlu0 %v1285, 81
      %v2151 = vpop.permute.xlu0 %2150
      %2152 = vrot.lane.b32.xlu0 %v1286, 81
      %v2153 = vpop.permute.xlu0 %2152
      %2154 = vrot.lane.b32.xlu0 %v1287, 81
      %v2155 = vpop.permute.xlu0 %2154
      %2156 = vrot.lane.b32.xlu0 %v1288, 81
      %v2157 = vpop.permute.xlu0 %2156
      %2158 = vrot.lane.b32.xlu0 %v1289, 81
      %v2159 = vpop.permute.xlu0 %2158
      %2160 = vrot.lane.b32.xlu0 %v1290, 81
      %v2161 = vpop.permute.xlu0 %2160
      %2162 = vrot.lane.b32.xlu0 %v1291, 81
      %v2163 = vpop.permute.xlu0 %2162
      %2164 = vrot.lane.b32.xlu0 %v1292, 81
      %v2165 = vpop.permute.xlu0 %2164
      %2166 = vrot.lane.b32.xlu0 %v1293, 81
      %v2167 = vpop.permute.xlu0 %2166
      %vm2168 = vcmask 662528
      %v2169 = vsel %vm2168, %v2133, %v2135
      %v2170 = vsel %vm2168, %v2135, %v2137
      %v2171 = vsel %vm2168, %v2139, %v2141
      %v2172 = vsel %vm2168, %v2141, %v2143
      %v2173 = vsel %vm2168, %v2145, %v2147
      %v2174 = vsel %vm2168, %v2147, %v2149
      %v2175 = vsel %vm2168, %v2151, %v2153
      %v2176 = vsel %vm2168, %v2153, %v2155
      %v2177 = vsel %vm2168, %v2157, %v2159
      %v2178 = vsel %vm2168, %v2159, %v2161
      %v2179 = vsel %vm2168, %v2163, %v2165
      %v2180 = vsel %vm2168, %v2165, %v2167
      %v2194 = vsel %vm1355, %v2130, 0
      %v2197 = vsel %vm1355, %v2131, 0
      %2199 = vmatprep.subr.bf16.mxu0 0
      %2200 = vmatpush1.bf16.msra.mxu0 0
      %2201 = vmatprep.subr.bf16.mxu0 0
      %2202 = vmatpush1.bf16.msra.mxu0 0
      %2203 = vmatprep.subr.bf16.mxu0 %v2180
      %2204 = vmatpush1.bf16.msra.mxu0 %v2179
      %2205 = vmatprep.subr.bf16.mxu0 %v2178
      %2206 = vmatpush1.bf16.msra.mxu0 %v2177
      %2207 = vmatprep.subr.bf16.mxu0 %v2176
      %2208 = vmatpush1.bf16.msra.mxu0 %v2175
      %2209 = vmatprep.subr.bf16.mxu0 %v2174
      %2210 = vmatpush1.bf16.msra.mxu0 %v2173
      %2211 = vmatprep.subr.bf16.mxu0 %v2172
      %2212 = vmatpush1.bf16.msra.mxu0 %v2171
      %2213 = vmatprep.subr.bf16.mxu0 %v2170
      %2214 = vmatpush1.bf16.msra.mxu0 %v2169
      %2215 = vmatprep.subr.bf16.mxu0 0
      %2216 = vmatpush2.bf16.msra.mxu0 0
      %2217 = vmatprep.subr.bf16.mxu0 0
      %2218 = vmatpush2.bf16.msra.mxu0 0
      %2219 = vmatprep.subr.bf16.mxu0 0
      %2220 = vmatpush2.bf16.msra.mxu0 0
      %2221 = vmatprep.subr.bf16.mxu0 0
      %2222 = vmatpush2.bf16.msra.mxu0 0
      %2223 = vmatprep.subr.bf16.mxu0 0
      %2224 = vmatpush2.bf16.msra.mxu0 0
      %2225 = vmatprep.subr.bf16.mxu0 0
      %2226 = vmatpush2.bf16.msra.mxu0 0
      %2227 = vmatprep.subr.bf16.mxu0 0
      %2228 = vmatpush2.bf16.msra.mxu0 0
      %2229 = vmatprep.subr.bf16.mxu0 0
      %2230 = vmatpush2.bf16.msra.mxu0 0
      %2231 = vmatprep.mubr.bf16.mxu0 0
      %2232 = vmatmul.mubr.bf16.gmra.mxu0 %v2194
      %v2233 = vpop.f32.mrf.mxu0
      %v2234 = vadd.f32 0.0, %v2233
      %v2235 = vpop.f32.mrf.mxu0
      %v2236 = vadd.f32 0.0, %v2235
      %v2237 = vpop.f32.mrf.mxu0
      %v2238 = vadd.f32 0.0, %v2237
      %v2239 = vpop.f32.mrf.mxu0
      %v2240 = vadd.f32 0.0, %v2239
      %2241 = vmatprep.mubr.bf16.mxu0 0
      %2242 = vmatmul.mubr.bf16.gmra.mxu0 %v2197
      %v2243 = vpop.f32.mrf.mxu0
      %v2244 = vadd.f32 0.0, %v2243
      %v2245 = vpop.f32.mrf.mxu0
      %v2246 = vadd.f32 0.0, %v2245
      %v2247 = vpop.f32.mrf.mxu0
      %v2248 = vadd.f32 0.0, %v2247
      %v2249 = vpop.f32.mrf.mxu0
      %v2250 = vadd.f32 0.0, %v2249
      %2251 = vdwg.mxu0
      %v2252 = vadd.f32 %v2109, %v2234
      %v2253 = vadd.f32 %v2110, %v2236
      %v2254 = vadd.f32 %v2111, %v2238
      %v2255 = vadd.f32 %v2112, %v2240
      %v2256 = vadd.f32 %v2113, %v2244
      %v2257 = vadd.f32 %v2114, %v2246
      %v2258 = vadd.f32 %v2115, %v2248
      %v2259 = vadd.f32 %v2116, %v2250
      %s2260 = scalar_lea.vmem %s4, 112
      %v2261 = vld [vmem:[%s2260] sm:$0xf]
      %v2262 = vld [vmem:[%s2260 + $0x4] sm:$0xf]
      %v2263 = vld [vmem:[%s2260 + $0x8] sm:$0xf]
      %v2264 = vld [vmem:[%s2260 + $0xc] sm:$0xf]
      %v2269 = vunpack.c.l.b16 %v2261
      %v2270 = vunpack.c.l.b16 %v2262
      %v2271 = vunpack.c.l.b16 %v2263
      %v2272 = vunpack.c.l.b16 %v2264
      %v2273 = vpack.c.b16 %v2270, %v2269
      %v2274 = vpack.c.b16 %v2272, %v2271
      %2275 = vrot.lane.b32.xlu0 %v1276, 80
      %v2276 = vpop.permute.xlu0 %2275
      %2277 = vrot.lane.b32.xlu0 %v1277, 80
      %v2278 = vpop.permute.xlu0 %2277
      %2279 = vrot.lane.b32.xlu0 %v1278, 80
      %v2280 = vpop.permute.xlu0 %2279
      %2281 = vrot.lane.b32.xlu0 %v1279, 80
      %v2282 = vpop.permute.xlu0 %2281
      %2283 = vrot.lane.b32.xlu0 %v1280, 80
      %v2284 = vpop.permute.xlu0 %2283
      %2285 = vrot.lane.b32.xlu0 %v1281, 80
      %v2286 = vpop.permute.xlu0 %2285
      %2287 = vrot.lane.b32.xlu0 %v1282, 80
      %v2288 = vpop.permute.xlu0 %2287
      %2289 = vrot.lane.b32.xlu0 %v1283, 80
      %v2290 = vpop.permute.xlu0 %2289
      %2291 = vrot.lane.b32.xlu0 %v1284, 80
      %v2292 = vpop.permute.xlu0 %2291
      %2293 = vrot.lane.b32.xlu0 %v1285, 80
      %v2294 = vpop.permute.xlu0 %2293
      %2295 = vrot.lane.b32.xlu0 %v1286, 80
      %v2296 = vpop.permute.xlu0 %2295
      %2297 = vrot.lane.b32.xlu0 %v1287, 80
      %v2298 = vpop.permute.xlu0 %2297
      %2299 = vrot.lane.b32.xlu0 %v1288, 80
      %v2300 = vpop.permute.xlu0 %2299
      %2301 = vrot.lane.b32.xlu0 %v1289, 80
      %v2302 = vpop.permute.xlu0 %2301
      %2303 = vrot.lane.b32.xlu0 %v1290, 80
      %v2304 = vpop.permute.xlu0 %2303
      %2305 = vrot.lane.b32.xlu0 %v1291, 80
      %v2306 = vpop.permute.xlu0 %2305
      %2307 = vrot.lane.b32.xlu0 %v1292, 80
      %v2308 = vpop.permute.xlu0 %2307
      %2309 = vrot.lane.b32.xlu0 %v1293, 80
      %v2310 = vpop.permute.xlu0 %2309
      %vm2311 = vcmask 654336
      %v2312 = vsel %vm2311, %v2276, %v2278
      %v2313 = vsel %vm2311, %v2278, %v2280
      %v2314 = vsel %vm2311, %v2282, %v2284
      %v2315 = vsel %vm2311, %v2284, %v2286
      %v2316 = vsel %vm2311, %v2288, %v2290
      %v2317 = vsel %vm2311, %v2290, %v2292
      %v2318 = vsel %vm2311, %v2294, %v2296
      %v2319 = vsel %vm2311, %v2296, %v2298
      %v2320 = vsel %vm2311, %v2300, %v2302
      %v2321 = vsel %vm2311, %v2302, %v2304
      %v2322 = vsel %vm2311, %v2306, %v2308
      %v2323 = vsel %vm2311, %v2308, %v2310
      %v2337 = vsel %vm1355, %v2273, 0
      %v2340 = vsel %vm1355, %v2274, 0
      %2342 = vmatprep.subr.bf16.mxu0 0
      %2343 = vmatpush1.bf16.msra.mxu0 0
      %2344 = vmatprep.subr.bf16.mxu0 0
      %2345 = vmatpush1.bf16.msra.mxu0 0
      %2346 = vmatprep.subr.bf16.mxu0 %v2323
      %2347 = vmatpush1.bf16.msra.mxu0 %v2322
      %2348 = vmatprep.subr.bf16.mxu0 %v2321
      %2349 = vmatpush1.bf16.msra.mxu0 %v2320
      %2350 = vmatprep.subr.bf16.mxu0 %v2319
      %2351 = vmatpush1.bf16.msra.mxu0 %v2318
      %2352 = vmatprep.subr.bf16.mxu0 %v2317
      %2353 = vmatpush1.bf16.msra.mxu0 %v2316
      %2354 = vmatprep.subr.bf16.mxu0 %v2315
      %2355 = vmatpush1.bf16.msra.mxu0 %v2314
      %2356 = vmatprep.subr.bf16.mxu0 %v2313
      %2357 = vmatpush1.bf16.msra.mxu0 %v2312
      %2358 = vmatprep.subr.bf16.mxu0 0
      %2359 = vmatpush2.bf16.msra.mxu0 0
      %2360 = vmatprep.subr.bf16.mxu0 0
      %2361 = vmatpush2.bf16.msra.mxu0 0
      %2362 = vmatprep.subr.bf16.mxu0 0
      %2363 = vmatpush2.bf16.msra.mxu0 0
      %2364 = vmatprep.subr.bf16.mxu0 0
      %2365 = vmatpush2.bf16.msra.mxu0 0
      %2366 = vmatprep.subr.bf16.mxu0 0
      %2367 = vmatpush2.bf16.msra.mxu0 0
      %2368 = vmatprep.subr.bf16.mxu0 0
      %2369 = vmatpush2.bf16.msra.mxu0 0
      %2370 = vmatprep.subr.bf16.mxu0 0
      %2371 = vmatpush2.bf16.msra.mxu0 0
      %2372 = vmatprep.subr.bf16.mxu0 0
      %2373 = vmatpush2.bf16.msra.mxu0 0
      %2374 = vmatprep.mubr.bf16.mxu0 0
      %2375 = vmatmul.mubr.bf16.gmra.mxu0 %v2337
      %v2376 = vpop.f32.mrf.mxu0
      %v2377 = vadd.f32 0.0, %v2376
      %v2378 = vpop.f32.mrf.mxu0
      %v2379 = vadd.f32 0.0, %v2378
      %v2380 = vpop.f32.mrf.mxu0
      %v2381 = vadd.f32 0.0, %v2380
      %v2382 = vpop.f32.mrf.mxu0
      %v2383 = vadd.f32 0.0, %v2382
      %2384 = vmatprep.mubr.bf16.mxu0 0
      %2385 = vmatmul.mubr.bf16.gmra.mxu0 %v2340
      %v2386 = vpop.f32.mrf.mxu0
      %v2387 = vadd.f32 0.0, %v2386
      %v2388 = vpop.f32.mrf.mxu0
      %v2389 = vadd.f32 0.0, %v2388
      %v2390 = vpop.f32.mrf.mxu0
      %v2391 = vadd.f32 0.0, %v2390
      %v2392 = vpop.f32.mrf.mxu0
      %v2393 = vadd.f32 0.0, %v2392
      %2394 = vdwg.mxu0
      %v2395 = vadd.f32 %v2252, %v2377
      %v2396 = vadd.f32 %v2253, %v2379
      %v2397 = vadd.f32 %v2254, %v2381
      %v2398 = vadd.f32 %v2255, %v2383
      %v2399 = vadd.f32 %v2256, %v2387
      %v2400 = vadd.f32 %v2257, %v2389
      %v2401 = vadd.f32 %v2258, %v2391
      %v2402 = vadd.f32 %v2259, %v2393
      %s2403 = scalar_lea.vmem %s4, 128
      %v2404 = vld [vmem:[%s2403] sm:$0xf]
      %v2405 = vld [vmem:[%s2403 + $0x4] sm:$0xf]
      %v2406 = vld [vmem:[%s2403 + $0x8] sm:$0xf]
      %v2407 = vld [vmem:[%s2403 + $0xc] sm:$0xf]
      %v2412 = vunpack.c.l.b16 %v2404
      %v2413 = vunpack.c.l.b16 %v2405
      %v2414 = vunpack.c.l.b16 %v2406
      %v2415 = vunpack.c.l.b16 %v2407
      %v2416 = vpack.c.b16 %v2413, %v2412
      %v2417 = vpack.c.b16 %v2415, %v2414
      %2418 = vrot.lane.b32.xlu0 %v1276, 79
      %v2419 = vpop.permute.xlu0 %2418
      %2420 = vrot.lane.b32.xlu0 %v1277, 79
      %v2421 = vpop.permute.xlu0 %2420
      %2422 = vrot.lane.b32.xlu0 %v1278, 79
      %v2423 = vpop.permute.xlu0 %2422
      %2424 = vrot.lane.b32.xlu0 %v1279, 79
      %v2425 = vpop.permute.xlu0 %2424
      %2426 = vrot.lane.b32.xlu0 %v1280, 79
      %v2427 = vpop.permute.xlu0 %2426
      %2428 = vrot.lane.b32.xlu0 %v1281, 79
      %v2429 = vpop.permute.xlu0 %2428
      %2430 = vrot.lane.b32.xlu0 %v1282, 79
      %v2431 = vpop.permute.xlu0 %2430
      %2432 = vrot.lane.b32.xlu0 %v1283, 79
      %v2433 = vpop.permute.xlu0 %2432
      %2434 = vrot.lane.b32.xlu0 %v1284, 79
      %v2435 = vpop.permute.xlu0 %2434
      %2436 = vrot.lane.b32.xlu0 %v1285, 79
      %v2437 = vpop.permute.xlu0 %2436
      %2438 = vrot.lane.b32.xlu0 %v1286, 79
      %v2439 = vpop.permute.xlu0 %2438
      %2440 = vrot.lane.b32.xlu0 %v1287, 79
      %v2441 = vpop.permute.xlu0 %2440
      %2442 = vrot.lane.b32.xlu0 %v1288, 79
      %v2443 = vpop.permute.xlu0 %2442
      %2444 = vrot.lane.b32.xlu0 %v1289, 79
      %v2445 = vpop.permute.xlu0 %2444
      %2446 = vrot.lane.b32.xlu0 %v1290, 79
      %v2447 = vpop.permute.xlu0 %2446
      %2448 = vrot.lane.b32.xlu0 %v1291, 79
      %v2449 = vpop.permute.xlu0 %2448
      %2450 = vrot.lane.b32.xlu0 %v1292, 79
      %v2451 = vpop.permute.xlu0 %2450
      %2452 = vrot.lane.b32.xlu0 %v1293, 79
      %v2453 = vpop.permute.xlu0 %2452
      %vm2454 = vcmask 646144
      %v2455 = vsel %vm2454, %v2419, %v2421
      %v2456 = vsel %vm2454, %v2421, %v2423
      %v2457 = vsel %vm2454, %v2425, %v2427
      %v2458 = vsel %vm2454, %v2427, %v2429
      %v2459 = vsel %vm2454, %v2431, %v2433
      %v2460 = vsel %vm2454, %v2433, %v2435
      %v2461 = vsel %vm2454, %v2437, %v2439
      %v2462 = vsel %vm2454, %v2439, %v2441
      %v2463 = vsel %vm2454, %v2443, %v2445
      %v2464 = vsel %vm2454, %v2445, %v2447
      %v2465 = vsel %vm2454, %v2449, %v2451
      %v2466 = vsel %vm2454, %v2451, %v2453
      %v2480 = vsel %vm1355, %v2416, 0
      %v2483 = vsel %vm1355, %v2417, 0
      %2485 = vmatprep.subr.bf16.mxu0 0
      %2486 = vmatpush1.bf16.msra.mxu0 0
      %2487 = vmatprep.subr.bf16.mxu0 0
      %2488 = vmatpush1.bf16.msra.mxu0 0
      %2489 = vmatprep.subr.bf16.mxu0 %v2466
      %2490 = vmatpush1.bf16.msra.mxu0 %v2465
      %2491 = vmatprep.subr.bf16.mxu0 %v2464
      %2492 = vmatpush1.bf16.msra.mxu0 %v2463
      %2493 = vmatprep.subr.bf16.mxu0 %v2462
      %2494 = vmatpush1.bf16.msra.mxu0 %v2461
      %2495 = vmatprep.subr.bf16.mxu0 %v2460
      %2496 = vmatpush1.bf16.msra.mxu0 %v2459
      %2497 = vmatprep.subr.bf16.mxu0 %v2458
      %2498 = vmatpush1.bf16.msra.mxu0 %v2457
      %2499 = vmatprep.subr.bf16.mxu0 %v2456
      %2500 = vmatpush1.bf16.msra.mxu0 %v2455
      %2501 = vmatprep.subr.bf16.mxu0 0
      %2502 = vmatpush2.bf16.msra.mxu0 0
      %2503 = vmatprep.subr.bf16.mxu0 0
      %2504 = vmatpush2.bf16.msra.mxu0 0
      %2505 = vmatprep.subr.bf16.mxu0 0
      %2506 = vmatpush2.bf16.msra.mxu0 0
      %2507 = vmatprep.subr.bf16.mxu0 0
      %2508 = vmatpush2.bf16.msra.mxu0 0
      %2509 = vmatprep.subr.bf16.mxu0 0
      %2510 = vmatpush2.bf16.msra.mxu0 0
      %2511 = vmatprep.subr.bf16.mxu0 0
      %2512 = vmatpush2.bf16.msra.mxu0 0
      %2513 = vmatprep.subr.bf16.mxu0 0
      %2514 = vmatpush2.bf16.msra.mxu0 0
      %2515 = vmatprep.subr.bf16.mxu0 0
      %2516 = vmatpush2.bf16.msra.mxu0 0
      %2517 = vmatprep.mubr.bf16.mxu0 0
      %2518 = vmatmul.mubr.bf16.gmra.mxu0 %v2480
      %v2519 = vpop.f32.mrf.mxu0
      %v2520 = vadd.f32 0.0, %v2519
      %v2521 = vpop.f32.mrf.mxu0
      %v2522 = vadd.f32 0.0, %v2521
      %v2523 = vpop.f32.mrf.mxu0
      %v2524 = vadd.f32 0.0, %v2523
      %v2525 = vpop.f32.mrf.mxu0
      %v2526 = vadd.f32 0.0, %v2525
      %2527 = vmatprep.mubr.bf16.mxu0 0
      %2528 = vmatmul.mubr.bf16.gmra.mxu0 %v2483
      %v2529 = vpop.f32.mrf.mxu0
      %v2530 = vadd.f32 0.0, %v2529
      %v2531 = vpop.f32.mrf.mxu0
      %v2532 = vadd.f32 0.0, %v2531
      %v2533 = vpop.f32.mrf.mxu0
      %v2534 = vadd.f32 0.0, %v2533
      %v2535 = vpop.f32.mrf.mxu0
      %v2536 = vadd.f32 0.0, %v2535
      %2537 = vdwg.mxu0
      %v2538 = vadd.f32 %v2395, %v2520
      %v2539 = vadd.f32 %v2396, %v2522
      %v2540 = vadd.f32 %v2397, %v2524
      %v2541 = vadd.f32 %v2398, %v2526
      %v2542 = vadd.f32 %v2399, %v2530
      %v2543 = vadd.f32 %v2400, %v2532
      %v2544 = vadd.f32 %v2401, %v2534
      %v2545 = vadd.f32 %v2402, %v2536
      %2547 = vset.pattern.permute.xlu0 0
      %2548 = vperm.xlu0 %2547, %v320
      %v2549 = vpop.permute.xlu0 %2548
      %2552 = vset.pattern.permute.xlu0 0
      %2553 = vperm.xlu0 %2552, %v321
      %v2554 = vpop.permute.xlu0 %2553
      %2557 = vset.pattern.permute.xlu0 0
      %2558 = vperm.xlu0 %2557, %v322
      %v2559 = vpop.permute.xlu0 %2558
      %2562 = vset.pattern.permute.xlu0 0
      %2563 = vperm.xlu0 %2562, %v323
      %v2564 = vpop.permute.xlu0 %2563
      %v2566 = vadd.f32 %v2538, %v2549
      %v2567 = vadd.f32 %v2539, %v2549
      %v2568 = vadd.f32 %v2540, %v2554
      %v2569 = vadd.f32 %v2541, %v2554
      %v2570 = vadd.f32 %v2542, %v2559
      %v2571 = vadd.f32 %v2543, %v2559
      %v2572 = vadd.f32 %v2544, %v2564
      %v2573 = vadd.f32 %v2545, %v2564
      %v2574 = vmax.f32 %v2566, 0.0
      %v2575 = vmax.f32 %v2567, 0.0
      %v2576 = vmax.f32 %v2568, 0.0
      %v2577 = vmax.f32 %v2569, 0.0
      %v2578 = vmax.f32 %v2570, 0.0
      %v2579 = vmax.f32 %v2571, 0.0
      %v2580 = vmax.f32 %v2572, 0.0
      %v2581 = vmax.f32 %v2573, 0.0
      %v2582 = vld [vmem:[%s300] sm:$0xff]
      %v2583 = vld [vmem:[%s300 + $0x8] sm:$0xf]
      %v2584 = vld [vmem:[%s300 + $0x30] sm:$0xff]
      %v2585 = vld [vmem:[%s300 + $0x38] sm:$0xf]
      %2587 = vset.pattern.permute.xlu0 0
      %2588 = vperm.xlu0 %2587, %v324
      %v2589 = vpop.permute.xlu0 %2588
      %2592 = vset.pattern.permute.xlu0 0
      %2593 = vperm.xlu0 %2592, %v325
      %v2594 = vpop.permute.xlu0 %2593
      %2597 = vset.pattern.permute.xlu0 0
      %2598 = vperm.xlu0 %2597, %v326
      %v2599 = vpop.permute.xlu0 %2598
      %2602 = vset.pattern.permute.xlu0 0
      %2603 = vperm.xlu0 %2602, %v327
      %v2604 = vpop.permute.xlu0 %2603
      %v2610 = vunpack.c.l.b16 %v312
      %v2611 = vunpack.c.l.b16 %v313
      %v2612 = vunpack.c.l.b16 %v314
      %v2613 = vunpack.c.l.b16 %v315
      %v2614 = vpack.c.b16 %v2611, %v2610
      %v2615 = vpack.c.b16 %v2613, %v2612
      %v2620 = vunpack.c.l.b16 %v2582
      %v2621 = vunpack.c.h.b16 %v2582
      %v2622 = vunpack.c.l.b16 %v2583
      %v2623 = vunpack.c.l.b16 %v2584
      %v2624 = vunpack.c.h.b16 %v2584
      %v2625 = vunpack.c.l.b16 %v2585
      %v2626 = vpack.c.b16 %v2623, %v2620
      %v2627 = vpack.c.b16 %v2624, %v2621
      %v2628 = vpack.c.b16 %v2625, %v2622
      %2629 = vrot.lane.b32.xlu0 %v2626, 96
      %v2630 = vpop.permute.xlu0 %2629
      %2631 = vrot.lane.b32.xlu0 %v2627, 96
      %v2632 = vpop.permute.xlu0 %2631
      %2633 = vrot.lane.b32.xlu0 %v2628, 96
      %v2634 = vpop.permute.xlu0 %2633
      %v2635 = vsel %vm1882, %v2630, %v2632
      %v2636 = vsel %vm1882, %v2632, %v2634
      %v2640 = vsel %vm394, %v2614, 0
      %v2643 = vsel %vm394, %v2615, 0
      %2645 = vmatprep.subr.bf16.mxu0 0
      %2646 = vmatpush1.bf16.msra.mxu0 0
      %2647 = vmatprep.subr.bf16.mxu0 0
      %2648 = vmatpush1.bf16.msra.mxu0 0
      %2649 = vmatprep.subr.bf16.mxu0 0
      %2650 = vmatpush1.bf16.msra.mxu0 0
      %2651 = vmatprep.subr.bf16.mxu0 0
      %2652 = vmatpush1.bf16.msra.mxu0 0
      %2653 = vmatprep.subr.bf16.mxu0 0
      %2654 = vmatpush1.bf16.msra.mxu0 0
      %2655 = vmatprep.subr.bf16.mxu0 0
      %2656 = vmatpush1.bf16.msra.mxu0 0
      %2657 = vmatprep.subr.bf16.mxu0 0
      %2658 = vmatpush1.bf16.msra.mxu0 0
      %2659 = vmatprep.subr.bf16.mxu0 %v2636
      %2660 = vmatpush1.bf16.msra.mxu0 %v2635
      %2661 = vmatprep.subr.bf16.mxu0 0
      %2662 = vmatpush2.bf16.msra.mxu0 0
      %2663 = vmatprep.subr.bf16.mxu0 0
      %2664 = vmatpush2.bf16.msra.mxu0 0
      %2665 = vmatprep.subr.bf16.mxu0 0
      %2666 = vmatpush2.bf16.msra.mxu0 0
      %2667 = vmatprep.subr.bf16.mxu0 0
      %2668 = vmatpush2.bf16.msra.mxu0 0
      %2669 = vmatprep.subr.bf16.mxu0 0
      %2670 = vmatpush2.bf16.msra.mxu0 0
      %2671 = vmatprep.subr.bf16.mxu0 0
      %2672 = vmatpush2.bf16.msra.mxu0 0
      %2673 = vmatprep.subr.bf16.mxu0 0
      %2674 = vmatpush2.bf16.msra.mxu0 0
      %2675 = vmatprep.subr.bf16.mxu0 0
      %2676 = vmatpush2.bf16.msra.mxu0 0
      %2677 = vmatprep.mubr.bf16.mxu0 0
      %2678 = vmatmul.mubr.bf16.gmra.mxu0 %v2640
      %v2679 = vpop.f32.mrf.mxu0
      %v2680 = vadd.f32 %v2589, %v2679
      %v2681 = vpop.f32.mrf.mxu0
      %v2682 = vadd.f32 %v2589, %v2681
      %v2683 = vpop.f32.mrf.mxu0
      %v2684 = vadd.f32 %v2594, %v2683
      %v2685 = vpop.f32.mrf.mxu0
      %v2686 = vadd.f32 %v2594, %v2685
      %2687 = vmatprep.mubr.bf16.mxu0 0
      %2688 = vmatmul.mubr.bf16.gmra.mxu0 %v2643
      %v2689 = vpop.f32.mrf.mxu0
      %v2690 = vadd.f32 %v2599, %v2689
      %v2691 = vpop.f32.mrf.mxu0
      %v2692 = vadd.f32 %v2599, %v2691
      %v2693 = vpop.f32.mrf.mxu0
      %v2694 = vadd.f32 %v2604, %v2693
      %v2695 = vpop.f32.mrf.mxu0
      %v2696 = vadd.f32 %v2604, %v2695
      %2697 = vdwg.mxu0
      %v2698 = vadd.f32 %v2574, %v2680
      %v2699 = vadd.f32 %v2575, %v2682
      %v2700 = vadd.f32 %v2576, %v2684
      %v2701 = vadd.f32 %v2577, %v2686
      %v2702 = vadd.f32 %v2578, %v2690
      %v2703 = vadd.f32 %v2579, %v2692
      %v2704 = vadd.f32 %v2580, %v2694
      %v2705 = vadd.f32 %v2581, %v2696
      %v2706 = vmax.f32 %v2698, 0.0
      %v2707 = vmax.f32 %v2699, 0.0
      %v2708 = vmax.f32 %v2700, 0.0
      %v2709 = vmax.f32 %v2701, 0.0
      %v2710 = vmax.f32 %v2702, 0.0
      %v2711 = vmax.f32 %v2703, 0.0
      %v2712 = vmax.f32 %v2704, 0.0
      %v2713 = vmax.f32 %v2705, 0.0
      %2714 = vst [vmem:[%s305] sm:$0xff] %v2706
      %2715 = vst [vmem:[%s305 + $0x8] sm:$0xff] %v2707
      %2716 = vst [vmem:[%s305 + $0x40] sm:$0xff] %v2708
      %2717 = vst [vmem:[%s305 + $0x48] sm:$0xff] %v2709
      %2718 = vst [vmem:[%s305 + $0x80] sm:$0xff] %v2710
      %2719 = vst [vmem:[%s305 + $0x88] sm:$0xff] %v2711
      %2720 = vst [vmem:[%s305 + $0xc0] sm:$0xff] %v2712
      %2721 = vst [vmem:[%s305 + $0xc8] sm:$0xff] %v2713
      %v2722 = vld [vmem:[#allocation2 + $0x30] sm:$0xff]
      %v2723 = vld [vmem:[#allocation2 + $0x38] sm:$0xf]
      %v2724 = vld [vmem:[#allocation2 + $0x3c] sm:$0xff]
      %v2725 = vld [vmem:[#allocation2 + $0x44] sm:$0xf]
      %v2726 = vld [vmem:[#allocation2 + $0x48] sm:$0xff]
      %v2727 = vld [vmem:[#allocation2 + $0x50] sm:$0xf]
      %v2728 = vld [vmem:[#allocation2 + $0x54] sm:$0xff]
      %v2729 = vld [vmem:[#allocation2 + $0x5c] sm:$0xf]
      %v2730 = vld [vmem:[#allocation2 + $0x60] sm:$0xff]
      %v2731 = vld [vmem:[#allocation2 + $0x68] sm:$0xf]
      %v2732 = vld [vmem:[#allocation2 + $0x6c] sm:$0xff]
      %v2733 = vld [vmem:[#allocation2 + $0x74] sm:$0xf]
      %v2734 = vld [vmem:[#allocation2 + $0x78] sm:$0xff]
      %v2735 = vld [vmem:[#allocation2 + $0x80] sm:$0xf]
      %v2736 = vld [vmem:[#allocation2 + $0x84] sm:$0xff]
      %v2737 = vld [vmem:[#allocation2 + $0x8c] sm:$0xf]
      %v2738 = vld [vmem:[#allocation2 + $0x90] sm:$0xff]
      %v2739 = vld [vmem:[#allocation2 + $0x98] sm:$0xf]
      %v2740 = vld [vmem:[#allocation2 + $0x9c] sm:$0xff]
      %v2741 = vld [vmem:[#allocation2 + $0xa4] sm:$0xf]
      %v2742 = vld [vmem:[#allocation2 + $0xa8] sm:$0xff]
      %v2743 = vld [vmem:[#allocation2 + $0xb0] sm:$0xf]
      %v2744 = vld [vmem:[#allocation2 + $0xb4] sm:$0xff]
      %v2745 = vld [vmem:[#allocation2 + $0xbc] sm:$0xf]
      %v2746 = vld [vmem:[%s4] sm:$0xf]
      %v2747 = vld [vmem:[%s4 + $0x4] sm:$0xf]
      %v2748 = vld [vmem:[%s4 + $0x8] sm:$0xf]
      %v2749 = vld [vmem:[%s4 + $0xc] sm:$0xf]
      %v2750 = vld [vmem:[%s1201] sm:$0xf]
      %v2751 = vld [vmem:[%s1201 + $0x4] sm:$0xf]
      %v2752 = vld [vmem:[%s1201 + $0x8] sm:$0xf]
      %v2753 = vld [vmem:[%s1201 + $0xc] sm:$0xf]
      %v2758 = vunpack.c.l.b16 %v2750
      %v2759 = vunpack.c.l.b16 %v2751
      %v2760 = vunpack.c.l.b16 %v2752
      %v2761 = vunpack.c.l.b16 %v2753
      %v2762 = vpack.c.b16 %v2759, %v2758
      %v2763 = vpack.c.b16 %v2761, %v2760
      %v2788 = vunpack.c.l.b16 %v2722
      %v2789 = vunpack.c.h.b16 %v2722
      %v2790 = vunpack.c.l.b16 %v2723
      %v2791 = vunpack.c.l.b16 %v2724
      %v2792 = vunpack.c.h.b16 %v2724
      %v2793 = vunpack.c.l.b16 %v2725
      %v2794 = vunpack.c.l.b16 %v2726
      %v2795 = vunpack.c.h.b16 %v2726
      %v2796 = vunpack.c.l.b16 %v2727
      %v2797 = vunpack.c.l.b16 %v2728
      %v2798 = vunpack.c.h.b16 %v2728
      %v2799 = vunpack.c.l.b16 %v2729
      %v2800 = vunpack.c.l.b16 %v2730
      %v2801 = vunpack.c.h.b16 %v2730
      %v2802 = vunpack.c.l.b16 %v2731
      %v2803 = vunpack.c.l.b16 %v2732
      %v2804 = vunpack.c.h.b16 %v2732
      %v2805 = vunpack.c.l.b16 %v2733
      %v2806 = vunpack.c.l.b16 %v2734
      %v2807 = vunpack.c.h.b16 %v2734
      %v2808 = vunpack.c.l.b16 %v2735
      %v2809 = vunpack.c.l.b16 %v2736
      %v2810 = vunpack.c.h.b16 %v2736
      %v2811 = vunpack.c.l.b16 %v2737
      %v2812 = vunpack.c.l.b16 %v2738
      %v2813 = vunpack.c.h.b16 %v2738
      %v2814 = vunpack.c.l.b16 %v2739
      %v2815 = vunpack.c.l.b16 %v2740
      %v2816 = vunpack.c.h.b16 %v2740
      %v2817 = vunpack.c.l.b16 %v2741
      %v2818 = vunpack.c.l.b16 %v2742
      %v2819 = vunpack.c.h.b16 %v2742
      %v2820 = vunpack.c.l.b16 %v2743
      %v2821 = vunpack.c.l.b16 %v2744
      %v2822 = vunpack.c.h.b16 %v2744
      %v2823 = vunpack.c.l.b16 %v2745
      %v2824 = vpack.c.b16 %v2791, %v2788
      %v2825 = vpack.c.b16 %v2792, %v2789
      %v2826 = vpack.c.b16 %v2793, %v2790
      %v2827 = vpack.c.b16 %v2797, %v2794
      %v2828 = vpack.c.b16 %v2798, %v2795
      %v2829 = vpack.c.b16 %v2799, %v2796
      %v2830 = vpack.c.b16 %v2803, %v2800
      %v2831 = vpack.c.b16 %v2804, %v2801
      %v2832 = vpack.c.b16 %v2805, %v2802
      %v2833 = vpack.c.b16 %v2809, %v2806
      %v2834 = vpack.c.b16 %v2810, %v2807
      %v2835 = vpack.c.b16 %v2811, %v2808
      %v2836 = vpack.c.b16 %v2815, %v2812
      %v2837 = vpack.c.b16 %v2816, %v2813
      %v2838 = vpack.c.b16 %v2817, %v2814
      %v2839 = vpack.c.b16 %v2821, %v2818
      %v2840 = vpack.c.b16 %v2822, %v2819
      %v2841 = vpack.c.b16 %v2823, %v2820
      %2842 = vrot.lane.b32.xlu0 %v2824, 112
      %v2843 = vpop.permute.xlu0 %2842
      %2844 = vrot.lane.b32.xlu0 %v2825, 112
      %v2845 = vpop.permute.xlu0 %2844
      %2846 = vrot.lane.b32.xlu0 %v2826, 112
      %v2847 = vpop.permute.xlu0 %2846
      %2848 = vrot.lane.b32.xlu0 %v2827, 112
      %v2849 = vpop.permute.xlu0 %2848
      %2850 = vrot.lane.b32.xlu0 %v2828, 112
      %v2851 = vpop.permute.xlu0 %2850
      %2852 = vrot.lane.b32.xlu0 %v2829, 112
      %v2853 = vpop.permute.xlu0 %2852
      %2854 = vrot.lane.b32.xlu0 %v2830, 112
      %v2855 = vpop.permute.xlu0 %2854
      %2856 = vrot.lane.b32.xlu0 %v2831, 112
      %v2857 = vpop.permute.xlu0 %2856
      %2858 = vrot.lane.b32.xlu0 %v2832, 112
      %v2859 = vpop.permute.xlu0 %2858
      %2860 = vrot.lane.b32.xlu0 %v2833, 112
      %v2861 = vpop.permute.xlu0 %2860
      %2862 = vrot.lane.b32.xlu0 %v2834, 112
      %v2863 = vpop.permute.xlu0 %2862
      %2864 = vrot.lane.b32.xlu0 %v2835, 112
      %v2865 = vpop.permute.xlu0 %2864
      %2866 = vrot.lane.b32.xlu0 %v2836, 112
      %v2867 = vpop.permute.xlu0 %2866
      %2868 = vrot.lane.b32.xlu0 %v2837, 112
      %v2869 = vpop.permute.xlu0 %2868
      %2870 = vrot.lane.b32.xlu0 %v2838, 112
      %v2871 = vpop.permute.xlu0 %2870
      %2872 = vrot.lane.b32.xlu0 %v2839, 112
      %v2873 = vpop.permute.xlu0 %2872
      %2874 = vrot.lane.b32.xlu0 %v2840, 112
      %v2875 = vpop.permute.xlu0 %2874
      %2876 = vrot.lane.b32.xlu0 %v2841, 112
      %v2877 = vpop.permute.xlu0 %2876
      %v2878 = vsel %vm1330, %v2843, %v2845
      %v2879 = vsel %vm1330, %v2845, %v2847
      %v2880 = vsel %vm1330, %v2849, %v2851
      %v2881 = vsel %vm1330, %v2851, %v2853
      %v2882 = vsel %vm1330, %v2855, %v2857
      %v2883 = vsel %vm1330, %v2857, %v2859
      %v2884 = vsel %vm1330, %v2861, %v2863
      %v2885 = vsel %vm1330, %v2863, %v2865
      %v2886 = vsel %vm1330, %v2867, %v2869
      %v2887 = vsel %vm1330, %v2869, %v2871
      %v2888 = vsel %vm1330, %v2873, %v2875
      %v2889 = vsel %vm1330, %v2875, %v2877
      %v2903 = vsel %vm1355, %v2762, 0
      %v2906 = vsel %vm1355, %v2763, 0
      %2908 = vmatprep.subr.bf16.mxu0 0
      %2909 = vmatpush1.bf16.msra.mxu0 0
      %2910 = vmatprep.subr.bf16.mxu0 0
      %2911 = vmatpush1.bf16.msra.mxu0 0
      %2912 = vmatprep.subr.bf16.mxu0 %v2889
      %2913 = vmatpush1.bf16.msra.mxu0 %v2888
      %2914 = vmatprep.subr.bf16.mxu0 %v2887
      %2915 = vmatpush1.bf16.msra.mxu0 %v2886
      %2916 = vmatprep.subr.bf16.mxu0 %v2885
      %2917 = vmatpush1.bf16.msra.mxu0 %v2884
      %2918 = vmatprep.subr.bf16.mxu0 %v2883
      %2919 = vmatpush1.bf16.msra.mxu0 %v2882
      %2920 = vmatprep.subr.bf16.mxu0 %v2881
      %2921 = vmatpush1.bf16.msra.mxu0 %v2880
      %2922 = vmatprep.subr.bf16.mxu0 %v2879
      %2923 = vmatpush1.bf16.msra.mxu0 %v2878
      %2924 = vmatprep.subr.bf16.mxu0 0
      %2925 = vmatpush2.bf16.msra.mxu0 0
      %2926 = vmatprep.subr.bf16.mxu0 0
      %2927 = vmatpush2.bf16.msra.mxu0 0
      %2928 = vmatprep.subr.bf16.mxu0 0
      %2929 = vmatpush2.bf16.msra.mxu0 0
      %2930 = vmatprep.subr.bf16.mxu0 0
      %2931 = vmatpush2.bf16.msra.mxu0 0
      %2932 = vmatprep.subr.bf16.mxu0 0
      %2933 = vmatpush2.bf16.msra.mxu0 0
      %2934 = vmatprep.subr.bf16.mxu0 0
      %2935 = vmatpush2.bf16.msra.mxu0 0
      %2936 = vmatprep.subr.bf16.mxu0 0
      %2937 = vmatpush2.bf16.msra.mxu0 0
      %2938 = vmatprep.subr.bf16.mxu0 0
      %2939 = vmatpush2.bf16.msra.mxu0 0
      %2940 = vmatprep.mubr.bf16.mxu0 0
      %2941 = vmatmul.mubr.bf16.gmra.mxu0 %v2903
      %v2942 = vpop.f32.mrf.mxu0
      %v2943 = vadd.f32 0.0, %v2942
      %v2944 = vpop.f32.mrf.mxu0
      %v2945 = vadd.f32 0.0, %v2944
      %v2946 = vpop.f32.mrf.mxu0
      %v2947 = vadd.f32 0.0, %v2946
      %v2948 = vpop.f32.mrf.mxu0
      %v2949 = vadd.f32 0.0, %v2948
      %2950 = vmatprep.mubr.bf16.mxu0 0
      %2951 = vmatmul.mubr.bf16.gmra.mxu0 %v2906
      %v2952 = vpop.f32.mrf.mxu0
      %v2953 = vadd.f32 0.0, %v2952
      %v2954 = vpop.f32.mrf.mxu0
      %v2955 = vadd.f32 0.0, %v2954
      %v2956 = vpop.f32.mrf.mxu0
      %v2957 = vadd.f32 0.0, %v2956
      %v2958 = vpop.f32.mrf.mxu0
      %v2959 = vadd.f32 0.0, %v2958
      %2960 = vdwg.mxu0
      %v2965 = vunpack.c.l.b16 %v2746
      %v2966 = vunpack.c.l.b16 %v2747
      %v2967 = vunpack.c.l.b16 %v2748
      %v2968 = vunpack.c.l.b16 %v2749
      %v2969 = vpack.c.b16 %v2966, %v2965
      %v2970 = vpack.c.b16 %v2968, %v2967
      %2971 = vrot.lane.b32.xlu0 %v2824, 113
      %v2972 = vpop.permute.xlu0 %2971
      %2973 = vrot.lane.b32.xlu0 %v2825, 113
      %v2974 = vpop.permute.xlu0 %2973
      %2975 = vrot.lane.b32.xlu0 %v2826, 113
      %v2976 = vpop.permute.xlu0 %2975
      %2977 = vrot.lane.b32.xlu0 %v2827, 113
      %v2978 = vpop.permute.xlu0 %2977
      %2979 = vrot.lane.b32.xlu0 %v2828, 113
      %v2980 = vpop.permute.xlu0 %2979
      %2981 = vrot.lane.b32.xlu0 %v2829, 113
      %v2982 = vpop.permute.xlu0 %2981
      %2983 = vrot.lane.b32.xlu0 %v2830, 113
      %v2984 = vpop.permute.xlu0 %2983
      %2985 = vrot.lane.b32.xlu0 %v2831, 113
      %v2986 = vpop.permute.xlu0 %2985
      %2987 = vrot.lane.b32.xlu0 %v2832, 113
      %v2988 = vpop.permute.xlu0 %2987
      %2989 = vrot.lane.b32.xlu0 %v2833, 113
      %v2990 = vpop.permute.xlu0 %2989
      %2991 = vrot.lane.b32.xlu0 %v2834, 113
      %v2992 = vpop.permute.xlu0 %2991
      %2993 = vrot.lane.b32.xlu0 %v2835, 113
      %v2994 = vpop.permute.xlu0 %2993
      %2995 = vrot.lane.b32.xlu0 %v2836, 113
      %v2996 = vpop.permute.xlu0 %2995
      %2997 = vrot.lane.b32.xlu0 %v2837, 113
      %v2998 = vpop.permute.xlu0 %2997
      %2999 = vrot.lane.b32.xlu0 %v2838, 113
      %v3000 = vpop.permute.xlu0 %2999
      %3001 = vrot.lane.b32.xlu0 %v2839, 113
      %v3002 = vpop.permute.xlu0 %3001
      %3003 = vrot.lane.b32.xlu0 %v2840, 113
      %v3004 = vpop.permute.xlu0 %3003
      %3005 = vrot.lane.b32.xlu0 %v2841, 113
      %v3006 = vpop.permute.xlu0 %3005
      %v3007 = vsel %vm1461, %v2972, %v2974
      %v3008 = vsel %vm1461, %v2974, %v2976
      %v3009 = vsel %vm1461, %v2978, %v2980
      %v3010 = vsel %vm1461, %v2980, %v2982
      %v3011 = vsel %vm1461, %v2984, %v2986
      %v3012 = vsel %vm1461, %v2986, %v2988
      %v3013 = vsel %vm1461, %v2990, %v2992
      %v3014 = vsel %vm1461, %v2992, %v2994
      %v3015 = vsel %vm1461, %v2996, %v2998
      %v3016 = vsel %vm1461, %v2998, %v3000
      %v3017 = vsel %vm1461, %v3002, %v3004
      %v3018 = vsel %vm1461, %v3004, %v3006
      %v3032 = vsel %vm1355, %v2969, 0
      %v3035 = vsel %vm1355, %v2970, 0
      %3037 = vmatprep.subr.bf16.mxu0 0
      %3038 = vmatpush1.bf16.msra.mxu0 0
      %3039 = vmatprep.subr.bf16.mxu0 0
      %3040 = vmatpush1.bf16.msra.mxu0 0
      %3041 = vmatprep.subr.bf16.mxu0 %v3018
      %3042 = vmatpush1.bf16.msra.mxu0 %v3017
      %3043 = vmatprep.subr.bf16.mxu0 %v3016
      %3044 = vmatpush1.bf16.msra.mxu0 %v3015
      %3045 = vmatprep.subr.bf16.mxu0 %v3014
      %3046 = vmatpush1.bf16.msra.mxu0 %v3013
      %3047 = vmatprep.subr.bf16.mxu0 %v3012
      %3048 = vmatpush1.bf16.msra.mxu0 %v3011
      %3049 = vmatprep.subr.bf16.mxu0 %v3010
      %3050 = vmatpush1.bf16.msra.mxu0 %v3009
      %3051 = vmatprep.subr.bf16.mxu0 %v3008
      %3052 = vmatpush1.bf16.msra.mxu0 %v3007
      %3053 = vmatprep.subr.bf16.mxu0 0
      %3054 = vmatpush2.bf16.msra.mxu0 0
      %3055 = vmatprep.subr.bf16.mxu0 0
      %3056 = vmatpush2.bf16.msra.mxu0 0
      %3057 = vmatprep.subr.bf16.mxu0 0
      %3058 = vmatpush2.bf16.msra.mxu0 0
      %3059 = vmatprep.subr.bf16.mxu0 0
      %3060 = vmatpush2.bf16.msra.mxu0 0
      %3061 = vmatprep.subr.bf16.mxu0 0
      %3062 = vmatpush2.bf16.msra.mxu0 0
      %3063 = vmatprep.subr.bf16.mxu0 0
      %3064 = vmatpush2.bf16.msra.mxu0 0
      %3065 = vmatprep.subr.bf16.mxu0 0
      %3066 = vmatpush2.bf16.msra.mxu0 0
      %3067 = vmatprep.subr.bf16.mxu0 0
      %3068 = vmatpush2.bf16.msra.mxu0 0
      %3069 = vmatprep.mubr.bf16.mxu0 0
      %3070 = vmatmul.mubr.bf16.gmra.mxu0 %v3032
      %v3071 = vpop.f32.mrf.mxu0
      %v3072 = vadd.f32 %v2943, %v3071
      %v3073 = vpop.f32.mrf.mxu0
      %v3074 = vadd.f32 %v2945, %v3073
      %v3075 = vpop.f32.mrf.mxu0
      %v3076 = vadd.f32 %v2947, %v3075
      %v3077 = vpop.f32.mrf.mxu0
      %v3078 = vadd.f32 %v2949, %v3077
      %3079 = vmatprep.mubr.bf16.mxu0 0
      %3080 = vmatmul.mubr.bf16.gmra.mxu0 %v3035
      %v3081 = vpop.f32.mrf.mxu0
      %v3082 = vadd.f32 %v2953, %v3081
      %v3083 = vpop.f32.mrf.mxu0
      %v3084 = vadd.f32 %v2955, %v3083
      %v3085 = vpop.f32.mrf.mxu0
      %v3086 = vadd.f32 %v2957, %v3085
      %v3087 = vpop.f32.mrf.mxu0
      %v3088 = vadd.f32 %v2959, %v3087
      %3089 = vdwg.mxu0
      %v3090 = vld [vmem:[%s1545] sm:$0xf]
      %v3091 = vld [vmem:[%s1545 + $0x4] sm:$0xf]
      %v3092 = vld [vmem:[%s1545 + $0x8] sm:$0xf]
      %v3093 = vld [vmem:[%s1545 + $0xc] sm:$0xf]
      %v3098 = vunpack.c.l.b16 %v3090
      %v3099 = vunpack.c.l.b16 %v3091
      %v3100 = vunpack.c.l.b16 %v3092
      %v3101 = vunpack.c.l.b16 %v3093
      %v3102 = vpack.c.b16 %v3099, %v3098
      %v3103 = vpack.c.b16 %v3101, %v3100
      %3104 = vrot.lane.b32.xlu0 %v2824, 111
      %v3105 = vpop.permute.xlu0 %3104
      %3106 = vrot.lane.b32.xlu0 %v2825, 111
      %v3107 = vpop.permute.xlu0 %3106
      %3108 = vrot.lane.b32.xlu0 %v2826, 111
      %v3109 = vpop.permute.xlu0 %3108
      %3110 = vrot.lane.b32.xlu0 %v2827, 111
      %v3111 = vpop.permute.xlu0 %3110
      %3112 = vrot.lane.b32.xlu0 %v2828, 111
      %v3113 = vpop.permute.xlu0 %3112
      %3114 = vrot.lane.b32.xlu0 %v2829, 111
      %v3115 = vpop.permute.xlu0 %3114
      %3116 = vrot.lane.b32.xlu0 %v2830, 111
      %v3117 = vpop.permute.xlu0 %3116
      %3118 = vrot.lane.b32.xlu0 %v2831, 111
      %v3119 = vpop.permute.xlu0 %3118
      %3120 = vrot.lane.b32.xlu0 %v2832, 111
      %v3121 = vpop.permute.xlu0 %3120
      %3122 = vrot.lane.b32.xlu0 %v2833, 111
      %v3123 = vpop.permute.xlu0 %3122
      %3124 = vrot.lane.b32.xlu0 %v2834, 111
      %v3125 = vpop.permute.xlu0 %3124
      %3126 = vrot.lane.b32.xlu0 %v2835, 111
      %v3127 = vpop.permute.xlu0 %3126
      %3128 = vrot.lane.b32.xlu0 %v2836, 111
      %v3129 = vpop.permute.xlu0 %3128
      %3130 = vrot.lane.b32.xlu0 %v2837, 111
      %v3131 = vpop.permute.xlu0 %3130
      %3132 = vrot.lane.b32.xlu0 %v2838, 111
      %v3133 = vpop.permute.xlu0 %3132
      %3134 = vrot.lane.b32.xlu0 %v2839, 111
      %v3135 = vpop.permute.xlu0 %3134
      %3136 = vrot.lane.b32.xlu0 %v2840, 111
      %v3137 = vpop.permute.xlu0 %3136
      %3138 = vrot.lane.b32.xlu0 %v2841, 111
      %v3139 = vpop.permute.xlu0 %3138
      %v3140 = vsel %vm1596, %v3105, %v3107
      %v3141 = vsel %vm1596, %v3107, %v3109
      %v3142 = vsel %vm1596, %v3111, %v3113
      %v3143 = vsel %vm1596, %v3113, %v3115
      %v3144 = vsel %vm1596, %v3117, %v3119
      %v3145 = vsel %vm1596, %v3119, %v3121
      %v3146 = vsel %vm1596, %v3123, %v3125
      %v3147 = vsel %vm1596, %v3125, %v3127
      %v3148 = vsel %vm1596, %v3129, %v3131
      %v3149 = vsel %vm1596, %v3131, %v3133
      %v3150 = vsel %vm1596, %v3135, %v3137
      %v3151 = vsel %vm1596, %v3137, %v3139
      %v3165 = vsel %vm1355, %v3102, 0
      %v3168 = vsel %vm1355, %v3103, 0
      %3170 = vmatprep.subr.bf16.mxu0 0
      %3171 = vmatpush1.bf16.msra.mxu0 0
      %3172 = vmatprep.subr.bf16.mxu0 0
      %3173 = vmatpush1.bf16.msra.mxu0 0
      %3174 = vmatprep.subr.bf16.mxu0 %v3151
      %3175 = vmatpush1.bf16.msra.mxu0 %v3150
      %3176 = vmatprep.subr.bf16.mxu0 %v3149
      %3177 = vmatpush1.bf16.msra.mxu0 %v3148
      %3178 = vmatprep.subr.bf16.mxu0 %v3147
      %3179 = vmatpush1.bf16.msra.mxu0 %v3146
      %3180 = vmatprep.subr.bf16.mxu0 %v3145
      %3181 = vmatpush1.bf16.msra.mxu0 %v3144
      %3182 = vmatprep.subr.bf16.mxu0 %v3143
      %3183 = vmatpush1.bf16.msra.mxu0 %v3142
      %3184 = vmatprep.subr.bf16.mxu0 %v3141
      %3185 = vmatpush1.bf16.msra.mxu0 %v3140
      %3186 = vmatprep.subr.bf16.mxu0 0
      %3187 = vmatpush2.bf16.msra.mxu0 0
      %3188 = vmatprep.subr.bf16.mxu0 0
      %3189 = vmatpush2.bf16.msra.mxu0 0
      %3190 = vmatprep.subr.bf16.mxu0 0
      %3191 = vmatpush2.bf16.msra.mxu0 0
      %3192 = vmatprep.subr.bf16.mxu0 0
      %3193 = vmatpush2.bf16.msra.mxu0 0
      %3194 = vmatprep.subr.bf16.mxu0 0
      %3195 = vmatpush2.bf16.msra.mxu0 0
      %3196 = vmatprep.subr.bf16.mxu0 0
      %3197 = vmatpush2.bf16.msra.mxu0 0
      %3198 = vmatprep.subr.bf16.mxu0 0
      %3199 = vmatpush2.bf16.msra.mxu0 0
      %3200 = vmatprep.subr.bf16.mxu0 0
      %3201 = vmatpush2.bf16.msra.mxu0 0
      %3202 = vmatprep.mubr.bf16.mxu0 0
      %3203 = vmatmul.mubr.bf16.gmra.mxu0 %v3165
      %v3204 = vpop.f32.mrf.mxu0
      %v3205 = vadd.f32 0.0, %v3204
      %v3206 = vpop.f32.mrf.mxu0
      %v3207 = vadd.f32 0.0, %v3206
      %v3208 = vpop.f32.mrf.mxu0
      %v3209 = vadd.f32 0.0, %v3208
      %v3210 = vpop.f32.mrf.mxu0
      %v3211 = vadd.f32 0.0, %v3210
      %3212 = vmatprep.mubr.bf16.mxu0 0
      %3213 = vmatmul.mubr.bf16.gmra.mxu0 %v3168
      %v3214 = vpop.f32.mrf.mxu0
      %v3215 = vadd.f32 0.0, %v3214
      %v3216 = vpop.f32.mrf.mxu0
      %v3217 = vadd.f32 0.0, %v3216
      %v3218 = vpop.f32.mrf.mxu0
      %v3219 = vadd.f32 0.0, %v3218
      %v3220 = vpop.f32.mrf.mxu0
      %v3221 = vadd.f32 0.0, %v3220
      %3222 = vdwg.mxu0
      %v3223 = vadd.f32 %v3072, %v3205
      %v3224 = vadd.f32 %v3074, %v3207
      %v3225 = vadd.f32 %v3076, %v3209
      %v3226 = vadd.f32 %v3078, %v3211
      %v3227 = vadd.f32 %v3082, %v3215
      %v3228 = vadd.f32 %v3084, %v3217
      %v3229 = vadd.f32 %v3086, %v3219
      %v3230 = vadd.f32 %v3088, %v3221
      %v3231 = vld [vmem:[%s1688] sm:$0xf]
      %v3232 = vld [vmem:[%s1688 + $0x4] sm:$0xf]
      %v3233 = vld [vmem:[%s1688 + $0x8] sm:$0xf]
      %v3234 = vld [vmem:[%s1688 + $0xc] sm:$0xf]
      %v3239 = vunpack.c.l.b16 %v3231
      %v3240 = vunpack.c.l.b16 %v3232
      %v3241 = vunpack.c.l.b16 %v3233
      %v3242 = vunpack.c.l.b16 %v3234
      %v3243 = vpack.c.b16 %v3240, %v3239
      %v3244 = vpack.c.b16 %v3242, %v3241
      %3245 = vrot.lane.b32.xlu0 %v2824, 97
      %v3246 = vpop.permute.xlu0 %3245
      %3247 = vrot.lane.b32.xlu0 %v2825, 97
      %v3248 = vpop.permute.xlu0 %3247
      %3249 = vrot.lane.b32.xlu0 %v2826, 97
      %v3250 = vpop.permute.xlu0 %3249
      %3251 = vrot.lane.b32.xlu0 %v2827, 97
      %v3252 = vpop.permute.xlu0 %3251
      %3253 = vrot.lane.b32.xlu0 %v2828, 97
      %v3254 = vpop.permute.xlu0 %3253
      %3255 = vrot.lane.b32.xlu0 %v2829, 97
      %v3256 = vpop.permute.xlu0 %3255
      %3257 = vrot.lane.b32.xlu0 %v2830, 97
      %v3258 = vpop.permute.xlu0 %3257
      %3259 = vrot.lane.b32.xlu0 %v2831, 97
      %v3260 = vpop.permute.xlu0 %3259
      %3261 = vrot.lane.b32.xlu0 %v2832, 97
      %v3262 = vpop.permute.xlu0 %3261
      %3263 = vrot.lane.b32.xlu0 %v2833, 97
      %v3264 = vpop.permute.xlu0 %3263
      %3265 = vrot.lane.b32.xlu0 %v2834, 97
      %v3266 = vpop.permute.xlu0 %3265
      %3267 = vrot.lane.b32.xlu0 %v2835, 97
      %v3268 = vpop.permute.xlu0 %3267
      %3269 = vrot.lane.b32.xlu0 %v2836, 97
      %v3270 = vpop.permute.xlu0 %3269
      %3271 = vrot.lane.b32.xlu0 %v2837, 97
      %v3272 = vpop.permute.xlu0 %3271
      %3273 = vrot.lane.b32.xlu0 %v2838, 97
      %v3274 = vpop.permute.xlu0 %3273
      %3275 = vrot.lane.b32.xlu0 %v2839, 97
      %v3276 = vpop.permute.xlu0 %3275
      %3277 = vrot.lane.b32.xlu0 %v2840, 97
      %v3278 = vpop.permute.xlu0 %3277
      %3279 = vrot.lane.b32.xlu0 %v2841, 97
      %v3280 = vpop.permute.xlu0 %3279
      %v3281 = vsel %vm1739, %v3246, %v3248
      %v3282 = vsel %vm1739, %v3248, %v3250
      %v3283 = vsel %vm1739, %v3252, %v3254
      %v3284 = vsel %vm1739, %v3254, %v3256
      %v3285 = vsel %vm1739, %v3258, %v3260
      %v3286 = vsel %vm1739, %v3260, %v3262
      %v3287 = vsel %vm1739, %v3264, %v3266
      %v3288 = vsel %vm1739, %v3266, %v3268
      %v3289 = vsel %vm1739, %v3270, %v3272
      %v3290 = vsel %vm1739, %v3272, %v3274
      %v3291 = vsel %vm1739, %v3276, %v3278
      %v3292 = vsel %vm1739, %v3278, %v3280
      %v3306 = vsel %vm1355, %v3243, 0
      %v3309 = vsel %vm1355, %v3244, 0
      %3311 = vmatprep.subr.bf16.mxu0 0
      %3312 = vmatpush1.bf16.msra.mxu0 0
      %3313 = vmatprep.subr.bf16.mxu0 0
      %3314 = vmatpush1.bf16.msra.mxu0 0
      %3315 = vmatprep.subr.bf16.mxu0 %v3292
      %3316 = vmatpush1.bf16.msra.mxu0 %v3291
      %3317 = vmatprep.subr.bf16.mxu0 %v3290
      %3318 = vmatpush1.bf16.msra.mxu0 %v3289
      %3319 = vmatprep.subr.bf16.mxu0 %v3288
      %3320 = vmatpush1.bf16.msra.mxu0 %v3287
      %3321 = vmatprep.subr.bf16.mxu0 %v3286
      %3322 = vmatpush1.bf16.msra.mxu0 %v3285
      %3323 = vmatprep.subr.bf16.mxu0 %v3284
      %3324 = vmatpush1.bf16.msra.mxu0 %v3283
      %3325 = vmatprep.subr.bf16.mxu0 %v3282
      %3326 = vmatpush1.bf16.msra.mxu0 %v3281
      %3327 = vmatprep.subr.bf16.mxu0 0
      %3328 = vmatpush2.bf16.msra.mxu0 0
      %3329 = vmatprep.subr.bf16.mxu0 0
      %3330 = vmatpush2.bf16.msra.mxu0 0
      %3331 = vmatprep.subr.bf16.mxu0 0
      %3332 = vmatpush2.bf16.msra.mxu0 0
      %3333 = vmatprep.subr.bf16.mxu0 0
      %3334 = vmatpush2.bf16.msra.mxu0 0
      %3335 = vmatprep.subr.bf16.mxu0 0
      %3336 = vmatpush2.bf16.msra.mxu0 0
      %3337 = vmatprep.subr.bf16.mxu0 0
      %3338 = vmatpush2.bf16.msra.mxu0 0
      %3339 = vmatprep.subr.bf16.mxu0 0
      %3340 = vmatpush2.bf16.msra.mxu0 0
      %3341 = vmatprep.subr.bf16.mxu0 0
      %3342 = vmatpush2.bf16.msra.mxu0 0
      %3343 = vmatprep.mubr.bf16.mxu0 0
      %3344 = vmatmul.mubr.bf16.gmra.mxu0 %v3306
      %v3345 = vpop.f32.mrf.mxu0
      %v3346 = vadd.f32 0.0, %v3345
      %v3347 = vpop.f32.mrf.mxu0
      %v3348 = vadd.f32 0.0, %v3347
      %v3349 = vpop.f32.mrf.mxu0
      %v3350 = vadd.f32 0.0, %v3349
      %v3351 = vpop.f32.mrf.mxu0
      %v3352 = vadd.f32 0.0, %v3351
      %3353 = vmatprep.mubr.bf16.mxu0 0
      %3354 = vmatmul.mubr.bf16.gmra.mxu0 %v3309
      %v3355 = vpop.f32.mrf.mxu0
      %v3356 = vadd.f32 0.0, %v3355
      %v3357 = vpop.f32.mrf.mxu0
      %v3358 = vadd.f32 0.0, %v3357
      %v3359 = vpop.f32.mrf.mxu0
      %v3360 = vadd.f32 0.0, %v3359
      %v3361 = vpop.f32.mrf.mxu0
      %v3362 = vadd.f32 0.0, %v3361
      %3363 = vdwg.mxu0
      %v3364 = vadd.f32 %v3223, %v3346
      %v3365 = vadd.f32 %v3224, %v3348
      %v3366 = vadd.f32 %v3225, %v3350
      %v3367 = vadd.f32 %v3226, %v3352
      %v3368 = vadd.f32 %v3227, %v3356
      %v3369 = vadd.f32 %v3228, %v3358
      %v3370 = vadd.f32 %v3229, %v3360
      %v3371 = vadd.f32 %v3230, %v3362
      %v3372 = vld [vmem:[%s1831] sm:$0xf]
      %v3373 = vld [vmem:[%s1831 + $0x4] sm:$0xf]
      %v3374 = vld [vmem:[%s1831 + $0x8] sm:$0xf]
      %v3375 = vld [vmem:[%s1831 + $0xc] sm:$0xf]
      %v3380 = vunpack.c.l.b16 %v3372
      %v3381 = vunpack.c.l.b16 %v3373
      %v3382 = vunpack.c.l.b16 %v3374
      %v3383 = vunpack.c.l.b16 %v3375
      %v3384 = vpack.c.b16 %v3381, %v3380
      %v3385 = vpack.c.b16 %v3383, %v3382
      %3386 = vrot.lane.b32.xlu0 %v2824, 96
      %v3387 = vpop.permute.xlu0 %3386
      %3388 = vrot.lane.b32.xlu0 %v2825, 96
      %v3389 = vpop.permute.xlu0 %3388
      %3390 = vrot.lane.b32.xlu0 %v2826, 96
      %v3391 = vpop.permute.xlu0 %3390
      %3392 = vrot.lane.b32.xlu0 %v2827, 96
      %v3393 = vpop.permute.xlu0 %3392
      %3394 = vrot.lane.b32.xlu0 %v2828, 96
      %v3395 = vpop.permute.xlu0 %3394
      %3396 = vrot.lane.b32.xlu0 %v2829, 96
      %v3397 = vpop.permute.xlu0 %3396
      %3398 = vrot.lane.b32.xlu0 %v2830, 96
      %v3399 = vpop.permute.xlu0 %3398
      %3400 = vrot.lane.b32.xlu0 %v2831, 96
      %v3401 = vpop.permute.xlu0 %3400
      %3402 = vrot.lane.b32.xlu0 %v2832, 96
      %v3403 = vpop.permute.xlu0 %3402
      %3404 = vrot.lane.b32.xlu0 %v2833, 96
      %v3405 = vpop.permute.xlu0 %3404
      %3406 = vrot.lane.b32.xlu0 %v2834, 96
      %v3407 = vpop.permute.xlu0 %3406
      %3408 = vrot.lane.b32.xlu0 %v2835, 96
      %v3409 = vpop.permute.xlu0 %3408
      %3410 = vrot.lane.b32.xlu0 %v2836, 96
      %v3411 = vpop.permute.xlu0 %3410
      %3412 = vrot.lane.b32.xlu0 %v2837, 96
      %v3413 = vpop.permute.xlu0 %3412
      %3414 = vrot.lane.b32.xlu0 %v2838, 96
      %v3415 = vpop.permute.xlu0 %3414
      %3416 = vrot.lane.b32.xlu0 %v2839, 96
      %v3417 = vpop.permute.xlu0 %3416
      %3418 = vrot.lane.b32.xlu0 %v2840, 96
      %v3419 = vpop.permute.xlu0 %3418
      %3420 = vrot.lane.b32.xlu0 %v2841, 96
      %v3421 = vpop.permute.xlu0 %3420
      %v3422 = vsel %vm1882, %v3387, %v3389
      %v3423 = vsel %vm1882, %v3389, %v3391
      %v3424 = vsel %vm1882, %v3393, %v3395
      %v3425 = vsel %vm1882, %v3395, %v3397
      %v3426 = vsel %vm1882, %v3399, %v3401
      %v3427 = vsel %vm1882, %v3401, %v3403
      %v3428 = vsel %vm1882, %v3405, %v3407
      %v3429 = vsel %vm1882, %v3407, %v3409
      %v3430 = vsel %vm1882, %v3411, %v3413
      %v3431 = vsel %vm1882, %v3413, %v3415
      %v3432 = vsel %vm1882, %v3417, %v3419
      %v3433 = vsel %vm1882, %v3419, %v3421
      %v3447 = vsel %vm1355, %v3384, 0
      %v3450 = vsel %vm1355, %v3385, 0
      %3452 = vmatprep.subr.bf16.mxu0 0
      %3453 = vmatpush1.bf16.msra.mxu0 0
      %3454 = vmatprep.subr.bf16.mxu0 0
      %3455 = vmatpush1.bf16.msra.mxu0 0
      %3456 = vmatprep.subr.bf16.mxu0 %v3433
      %3457 = vmatpush1.bf16.msra.mxu0 %v3432
      %3458 = vmatprep.subr.bf16.mxu0 %v3431
      %3459 = vmatpush1.bf16.msra.mxu0 %v3430
      %3460 = vmatprep.subr.bf16.mxu0 %v3429
      %3461 = vmatpush1.bf16.msra.mxu0 %v3428
      %3462 = vmatprep.subr.bf16.mxu0 %v3427
      %3463 = vmatpush1.bf16.msra.mxu0 %v3426
      %3464 = vmatprep.subr.bf16.mxu0 %v3425
      %3465 = vmatpush1.bf16.msra.mxu0 %v3424
      %3466 = vmatprep.subr.bf16.mxu0 %v3423
      %3467 = vmatpush1.bf16.msra.mxu0 %v3422
      %3468 = vmatprep.subr.bf16.mxu0 0
      %3469 = vmatpush2.bf16.msra.mxu0 0
      %3470 = vmatprep.subr.bf16.mxu0 0
      %3471 = vmatpush2.bf16.msra.mxu0 0
      %3472 = vmatprep.subr.bf16.mxu0 0
      %3473 = vmatpush2.bf16.msra.mxu0 0
      %3474 = vmatprep.subr.bf16.mxu0 0
      %3475 = vmatpush2.bf16.msra.mxu0 0
      %3476 = vmatprep.subr.bf16.mxu0 0
      %3477 = vmatpush2.bf16.msra.mxu0 0
      %3478 = vmatprep.subr.bf16.mxu0 0
      %3479 = vmatpush2.bf16.msra.mxu0 0
      %3480 = vmatprep.subr.bf16.mxu0 0
      %3481 = vmatpush2.bf16.msra.mxu0 0
      %3482 = vmatprep.subr.bf16.mxu0 0
      %3483 = vmatpush2.bf16.msra.mxu0 0
      %3484 = vmatprep.mubr.bf16.mxu0 0
      %3485 = vmatmul.mubr.bf16.gmra.mxu0 %v3447
      %v3486 = vpop.f32.mrf.mxu0
      %v3487 = vadd.f32 0.0, %v3486
      %v3488 = vpop.f32.mrf.mxu0
      %v3489 = vadd.f32 0.0, %v3488
      %v3490 = vpop.f32.mrf.mxu0
      %v3491 = vadd.f32 0.0, %v3490
      %v3492 = vpop.f32.mrf.mxu0
      %v3493 = vadd.f32 0.0, %v3492
      %3494 = vmatprep.mubr.bf16.mxu0 0
      %3495 = vmatmul.mubr.bf16.gmra.mxu0 %v3450
      %v3496 = vpop.f32.mrf.mxu0
      %v3497 = vadd.f32 0.0, %v3496
      %v3498 = vpop.f32.mrf.mxu0
      %v3499 = vadd.f32 0.0, %v3498
      %v3500 = vpop.f32.mrf.mxu0
      %v3501 = vadd.f32 0.0, %v3500
      %v3502 = vpop.f32.mrf.mxu0
      %v3503 = vadd.f32 0.0, %v3502
      %3504 = vdwg.mxu0
      %v3505 = vadd.f32 %v3364, %v3487
      %v3506 = vadd.f32 %v3365, %v3489
      %v3507 = vadd.f32 %v3366, %v3491
      %v3508 = vadd.f32 %v3367, %v3493
      %v3509 = vadd.f32 %v3368, %v3497
      %v3510 = vadd.f32 %v3369, %v3499
      %v3511 = vadd.f32 %v3370, %v3501
      %v3512 = vadd.f32 %v3371, %v3503
      %v3513 = vld [vmem:[%s1974] sm:$0xf]
      %v3514 = vld [vmem:[%s1974 + $0x4] sm:$0xf]
      %v3515 = vld [vmem:[%s1974 + $0x8] sm:$0xf]
      %v3516 = vld [vmem:[%s1974 + $0xc] sm:$0xf]
      %v3521 = vunpack.c.l.b16 %v3513
      %v3522 = vunpack.c.l.b16 %v3514
      %v3523 = vunpack.c.l.b16 %v3515
      %v3524 = vunpack.c.l.b16 %v3516
      %v3525 = vpack.c.b16 %v3522, %v3521
      %v3526 = vpack.c.b16 %v3524, %v3523
      %3527 = vrot.lane.b32.xlu0 %v2824, 95
      %v3528 = vpop.permute.xlu0 %3527
      %3529 = vrot.lane.b32.xlu0 %v2825, 95
      %v3530 = vpop.permute.xlu0 %3529
      %3531 = vrot.lane.b32.xlu0 %v2826, 95
      %v3532 = vpop.permute.xlu0 %3531
      %3533 = vrot.lane.b32.xlu0 %v2827, 95
      %v3534 = vpop.permute.xlu0 %3533
      %3535 = vrot.lane.b32.xlu0 %v2828, 95
      %v3536 = vpop.permute.xlu0 %3535
      %3537 = vrot.lane.b32.xlu0 %v2829, 95
      %v3538 = vpop.permute.xlu0 %3537
      %3539 = vrot.lane.b32.xlu0 %v2830, 95
      %v3540 = vpop.permute.xlu0 %3539
      %3541 = vrot.lane.b32.xlu0 %v2831, 95
      %v3542 = vpop.permute.xlu0 %3541
      %3543 = vrot.lane.b32.xlu0 %v2832, 95
      %v3544 = vpop.permute.xlu0 %3543
      %3545 = vrot.lane.b32.xlu0 %v2833, 95
      %v3546 = vpop.permute.xlu0 %3545
      %3547 = vrot.lane.b32.xlu0 %v2834, 95
      %v3548 = vpop.permute.xlu0 %3547
      %3549 = vrot.lane.b32.xlu0 %v2835, 95
      %v3550 = vpop.permute.xlu0 %3549
      %3551 = vrot.lane.b32.xlu0 %v2836, 95
      %v3552 = vpop.permute.xlu0 %3551
      %3553 = vrot.lane.b32.xlu0 %v2837, 95
      %v3554 = vpop.permute.xlu0 %3553
      %3555 = vrot.lane.b32.xlu0 %v2838, 95
      %v3556 = vpop.permute.xlu0 %3555
      %3557 = vrot.lane.b32.xlu0 %v2839, 95
      %v3558 = vpop.permute.xlu0 %3557
      %3559 = vrot.lane.b32.xlu0 %v2840, 95
      %v3560 = vpop.permute.xlu0 %3559
      %3561 = vrot.lane.b32.xlu0 %v2841, 95
      %v3562 = vpop.permute.xlu0 %3561
      %v3563 = vsel %vm2025, %v3528, %v3530
      %v3564 = vsel %vm2025, %v3530, %v3532
      %v3565 = vsel %vm2025, %v3534, %v3536
      %v3566 = vsel %vm2025, %v3536, %v3538
      %v3567 = vsel %vm2025, %v3540, %v3542
      %v3568 = vsel %vm2025, %v3542, %v3544
      %v3569 = vsel %vm2025, %v3546, %v3548
      %v3570 = vsel %vm2025, %v3548, %v3550
      %v3571 = vsel %vm2025, %v3552, %v3554
      %v3572 = vsel %vm2025, %v3554, %v3556
      %v3573 = vsel %vm2025, %v3558, %v3560
      %v3574 = vsel %vm2025, %v3560, %v3562
      %v3588 = vsel %vm1355, %v3525, 0
      %v3591 = vsel %vm1355, %v3526, 0
      %3593 = vmatprep.subr.bf16.mxu0 0
      %3594 = vmatpush1.bf16.msra.mxu0 0
      %3595 = vmatprep.subr.bf16.mxu0 0
      %3596 = vmatpush1.bf16.msra.mxu0 0
      %3597 = vmatprep.subr.bf16.mxu0 %v3574
      %3598 = vmatpush1.bf16.msra.mxu0 %v3573
      %3599 = vmatprep.subr.bf16.mxu0 %v3572
      %3600 = vmatpush1.bf16.msra.mxu0 %v3571
      %3601 = vmatprep.subr.bf16.mxu0 %v3570
      %3602 = vmatpush1.bf16.msra.mxu0 %v3569
      %3603 = vmatprep.subr.bf16.mxu0 %v3568
      %3604 = vmatpush1.bf16.msra.mxu0 %v3567
      %3605 = vmatprep.subr.bf16.mxu0 %v3566
      %3606 = vmatpush1.bf16.msra.mxu0 %v3565
      %3607 = vmatprep.subr.bf16.mxu0 %v3564
      %3608 = vmatpush1.bf16.msra.mxu0 %v3563
      %3609 = vmatprep.subr.bf16.mxu0 0
      %3610 = vmatpush2.bf16.msra.mxu0 0
      %3611 = vmatprep.subr.bf16.mxu0 0
      %3612 = vmatpush2.bf16.msra.mxu0 0
      %3613 = vmatprep.subr.bf16.mxu0 0
      %3614 = vmatpush2.bf16.msra.mxu0 0
      %3615 = vmatprep.subr.bf16.mxu0 0
      %3616 = vmatpush2.bf16.msra.mxu0 0
      %3617 = vmatprep.subr.bf16.mxu0 0
      %3618 = vmatpush2.bf16.msra.mxu0 0
      %3619 = vmatprep.subr.bf16.mxu0 0
      %3620 = vmatpush2.bf16.msra.mxu0 0
      %3621 = vmatprep.subr.bf16.mxu0 0
      %3622 = vmatpush2.bf16.msra.mxu0 0
      %3623 = vmatprep.subr.bf16.mxu0 0
      %3624 = vmatpush2.bf16.msra.mxu0 0
      %3625 = vmatprep.mubr.bf16.mxu0 0
      %3626 = vmatmul.mubr.bf16.gmra.mxu0 %v3588
      %v3627 = vpop.f32.mrf.mxu0
      %v3628 = vadd.f32 0.0, %v3627
      %v3629 = vpop.f32.mrf.mxu0
      %v3630 = vadd.f32 0.0, %v3629
      %v3631 = vpop.f32.mrf.mxu0
      %v3632 = vadd.f32 0.0, %v3631
      %v3633 = vpop.f32.mrf.mxu0
      %v3634 = vadd.f32 0.0, %v3633
      %3635 = vmatprep.mubr.bf16.mxu0 0
      %3636 = vmatmul.mubr.bf16.gmra.mxu0 %v3591
      %v3637 = vpop.f32.mrf.mxu0
      %v3638 = vadd.f32 0.0, %v3637
      %v3639 = vpop.f32.mrf.mxu0
      %v3640 = vadd.f32 0.0, %v3639
      %v3641 = vpop.f32.mrf.mxu0
      %v3642 = vadd.f32 0.0, %v3641
      %v3643 = vpop.f32.mrf.mxu0
      %v3644 = vadd.f32 0.0, %v3643
      %3645 = vdwg.mxu0
      %v3646 = vadd.f32 %v3505, %v3628
      %v3647 = vadd.f32 %v3506, %v3630
      %v3648 = vadd.f32 %v3507, %v3632
      %v3649 = vadd.f32 %v3508, %v3634
      %v3650 = vadd.f32 %v3509, %v3638
      %v3651 = vadd.f32 %v3510, %v3640
      %v3652 = vadd.f32 %v3511, %v3642
      %v3653 = vadd.f32 %v3512, %v3644
      %v3654 = vld [vmem:[%s2117] sm:$0xf]
      %v3655 = vld [vmem:[%s2117 + $0x4] sm:$0xf]
      %v3656 = vld [vmem:[%s2117 + $0x8] sm:$0xf]
      %v3657 = vld [vmem:[%s2117 + $0xc] sm:$0xf]
      %v3662 = vunpack.c.l.b16 %v3654
      %v3663 = vunpack.c.l.b16 %v3655
      %v3664 = vunpack.c.l.b16 %v3656
      %v3665 = vunpack.c.l.b16 %v3657
      %v3666 = vpack.c.b16 %v3663, %v3662
      %v3667 = vpack.c.b16 %v3665, %v3664
      %3668 = vrot.lane.b32.xlu0 %v2824, 81
      %v3669 = vpop.permute.xlu0 %3668
      %3670 = vrot.lane.b32.xlu0 %v2825, 81
      %v3671 = vpop.permute.xlu0 %3670
      %3672 = vrot.lane.b32.xlu0 %v2826, 81
      %v3673 = vpop.permute.xlu0 %3672
      %3674 = vrot.lane.b32.xlu0 %v2827, 81
      %v3675 = vpop.permute.xlu0 %3674
      %3676 = vrot.lane.b32.xlu0 %v2828, 81
      %v3677 = vpop.permute.xlu0 %3676
      %3678 = vrot.lane.b32.xlu0 %v2829, 81
      %v3679 = vpop.permute.xlu0 %3678
      %3680 = vrot.lane.b32.xlu0 %v2830, 81
      %v3681 = vpop.permute.xlu0 %3680
      %3682 = vrot.lane.b32.xlu0 %v2831, 81
      %v3683 = vpop.permute.xlu0 %3682
      %3684 = vrot.lane.b32.xlu0 %v2832, 81
      %v3685 = vpop.permute.xlu0 %3684
      %3686 = vrot.lane.b32.xlu0 %v2833, 81
      %v3687 = vpop.permute.xlu0 %3686
      %3688 = vrot.lane.b32.xlu0 %v2834, 81
      %v3689 = vpop.permute.xlu0 %3688
      %3690 = vrot.lane.b32.xlu0 %v2835, 81
      %v3691 = vpop.permute.xlu0 %3690
      %3692 = vrot.lane.b32.xlu0 %v2836, 81
      %v3693 = vpop.permute.xlu0 %3692
      %3694 = vrot.lane.b32.xlu0 %v2837, 81
      %v3695 = vpop.permute.xlu0 %3694
      %3696 = vrot.lane.b32.xlu0 %v2838, 81
      %v3697 = vpop.permute.xlu0 %3696
      %3698 = vrot.lane.b32.xlu0 %v2839, 81
      %v3699 = vpop.permute.xlu0 %3698
      %3700 = vrot.lane.b32.xlu0 %v2840, 81
      %v3701 = vpop.permute.xlu0 %3700
      %3702 = vrot.lane.b32.xlu0 %v2841, 81
      %v3703 = vpop.permute.xlu0 %3702
      %v3704 = vsel %vm2168, %v3669, %v3671
      %v3705 = vsel %vm2168, %v3671, %v3673
      %v3706 = vsel %vm2168, %v3675, %v3677
      %v3707 = vsel %vm2168, %v3677, %v3679
      %v3708 = vsel %vm2168, %v3681, %v3683
      %v3709 = vsel %vm2168, %v3683, %v3685
      %v3710 = vsel %vm2168, %v3687, %v3689
      %v3711 = vsel %vm2168, %v3689, %v3691
      %v3712 = vsel %vm2168, %v3693, %v3695
      %v3713 = vsel %vm2168, %v3695, %v3697
      %v3714 = vsel %vm2168, %v3699, %v3701
      %v3715 = vsel %vm2168, %v3701, %v3703
      %v3729 = vsel %vm1355, %v3666, 0
      %v3732 = vsel %vm1355, %v3667, 0
      %3734 = vmatprep.subr.bf16.mxu0 0
      %3735 = vmatpush1.bf16.msra.mxu0 0
      %3736 = vmatprep.subr.bf16.mxu0 0
      %3737 = vmatpush1.bf16.msra.mxu0 0
      %3738 = vmatprep.subr.bf16.mxu0 %v3715
      %3739 = vmatpush1.bf16.msra.mxu0 %v3714
      %3740 = vmatprep.subr.bf16.mxu0 %v3713
      %3741 = vmatpush1.bf16.msra.mxu0 %v3712
      %3742 = vmatprep.subr.bf16.mxu0 %v3711
      %3743 = vmatpush1.bf16.msra.mxu0 %v3710
      %3744 = vmatprep.subr.bf16.mxu0 %v3709
      %3745 = vmatpush1.bf16.msra.mxu0 %v3708
      %3746 = vmatprep.subr.bf16.mxu0 %v3707
      %3747 = vmatpush1.bf16.msra.mxu0 %v3706
      %3748 = vmatprep.subr.bf16.mxu0 %v3705
      %3749 = vmatpush1.bf16.msra.mxu0 %v3704
      %3750 = vmatprep.subr.bf16.mxu0 0
      %3751 = vmatpush2.bf16.msra.mxu0 0
      %3752 = vmatprep.subr.bf16.mxu0 0
      %3753 = vmatpush2.bf16.msra.mxu0 0
      %3754 = vmatprep.subr.bf16.mxu0 0
      %3755 = vmatpush2.bf16.msra.mxu0 0
      %3756 = vmatprep.subr.bf16.mxu0 0
      %3757 = vmatpush2.bf16.msra.mxu0 0
      %3758 = vmatprep.subr.bf16.mxu0 0
      %3759 = vmatpush2.bf16.msra.mxu0 0
      %3760 = vmatprep.subr.bf16.mxu0 0
      %3761 = vmatpush2.bf16.msra.mxu0 0
      %3762 = vmatprep.subr.bf16.mxu0 0
      %3763 = vmatpush2.bf16.msra.mxu0 0
      %3764 = vmatprep.subr.bf16.mxu0 0
      %3765 = vmatpush2.bf16.msra.mxu0 0
      %3766 = vmatprep.mubr.bf16.mxu0 0
      %3767 = vmatmul.mubr.bf16.gmra.mxu0 %v3729
      %v3768 = vpop.f32.mrf.mxu0
      %v3769 = vadd.f32 0.0, %v3768
      %v3770 = vpop.f32.mrf.mxu0
      %v3771 = vadd.f32 0.0, %v3770
      %v3772 = vpop.f32.mrf.mxu0
      %v3773 = vadd.f32 0.0, %v3772
      %v3774 = vpop.f32.mrf.mxu0
      %v3775 = vadd.f32 0.0, %v3774
      %3776 = vmatprep.mubr.bf16.mxu0 0
      %3777 = vmatmul.mubr.bf16.gmra.mxu0 %v3732
      %v3778 = vpop.f32.mrf.mxu0
      %v3779 = vadd.f32 0.0, %v3778
      %v3780 = vpop.f32.mrf.mxu0
      %v3781 = vadd.f32 0.0, %v3780
      %v3782 = vpop.f32.mrf.mxu0
      %v3783 = vadd.f32 0.0, %v3782
      %v3784 = vpop.f32.mrf.mxu0
      %v3785 = vadd.f32 0.0, %v3784
      %3786 = vdwg.mxu0
      %v3787 = vadd.f32 %v3646, %v3769
      %v3788 = vadd.f32 %v3647, %v3771
      %v3789 = vadd.f32 %v3648, %v3773
      %v3790 = vadd.f32 %v3649, %v3775
      %v3791 = vadd.f32 %v3650, %v3779
      %v3792 = vadd.f32 %v3651, %v3781
      %v3793 = vadd.f32 %v3652, %v3783
      %v3794 = vadd.f32 %v3653, %v3785
      %v3795 = vld [vmem:[%s2260] sm:$0xf]
      %v3796 = vld [vmem:[%s2260 + $0x4] sm:$0xf]
      %v3797 = vld [vmem:[%s2260 + $0x8] sm:$0xf]
      %v3798 = vld [vmem:[%s2260 + $0xc] sm:$0xf]
      %v3803 = vunpack.c.l.b16 %v3795
      %v3804 = vunpack.c.l.b16 %v3796
      %v3805 = vunpack.c.l.b16 %v3797
      %v3806 = vunpack.c.l.b16 %v3798
      %v3807 = vpack.c.b16 %v3804, %v3803
      %v3808 = vpack.c.b16 %v3806, %v3805
      %3809 = vrot.lane.b32.xlu0 %v2824, 80
      %v3810 = vpop.permute.xlu0 %3809
      %3811 = vrot.lane.b32.xlu0 %v2825, 80
      %v3812 = vpop.permute.xlu0 %3811
      %3813 = vrot.lane.b32.xlu0 %v2826, 80
      %v3814 = vpop.permute.xlu0 %3813
      %3815 = vrot.lane.b32.xlu0 %v2827, 80
      %v3816 = vpop.permute.xlu0 %3815
      %3817 = vrot.lane.b32.xlu0 %v2828, 80
      %v3818 = vpop.permute.xlu0 %3817
      %3819 = vrot.lane.b32.xlu0 %v2829, 80
      %v3820 = vpop.permute.xlu0 %3819
      %3821 = vrot.lane.b32.xlu0 %v2830, 80
      %v3822 = vpop.permute.xlu0 %3821
      %3823 = vrot.lane.b32.xlu0 %v2831, 80
      %v3824 = vpop.permute.xlu0 %3823
      %3825 = vrot.lane.b32.xlu0 %v2832, 80
      %v3826 = vpop.permute.xlu0 %3825
      %3827 = vrot.lane.b32.xlu0 %v2833, 80
      %v3828 = vpop.permute.xlu0 %3827
      %3829 = vrot.lane.b32.xlu0 %v2834, 80
      %v3830 = vpop.permute.xlu0 %3829
      %3831 = vrot.lane.b32.xlu0 %v2835, 80
      %v3832 = vpop.permute.xlu0 %3831
      %3833 = vrot.lane.b32.xlu0 %v2836, 80
      %v3834 = vpop.permute.xlu0 %3833
      %3835 = vrot.lane.b32.xlu0 %v2837, 80
      %v3836 = vpop.permute.xlu0 %3835
      %3837 = vrot.lane.b32.xlu0 %v2838, 80
      %v3838 = vpop.permute.xlu0 %3837
      %3839 = vrot.lane.b32.xlu0 %v2839, 80
      %v3840 = vpop.permute.xlu0 %3839
      %3841 = vrot.lane.b32.xlu0 %v2840, 80
      %v3842 = vpop.permute.xlu0 %3841
      %3843 = vrot.lane.b32.xlu0 %v2841, 80
      %v3844 = vpop.permute.xlu0 %3843
      %v3845 = vsel %vm2311, %v3810, %v3812
      %v3846 = vsel %vm2311, %v3812, %v3814
      %v3847 = vsel %vm2311, %v3816, %v3818
      %v3848 = vsel %vm2311, %v3818, %v3820
      %v3849 = vsel %vm2311, %v3822, %v3824
      %v3850 = vsel %vm2311, %v3824, %v3826
      %v3851 = vsel %vm2311, %v3828, %v3830
      %v3852 = vsel %vm2311, %v3830, %v3832
      %v3853 = vsel %vm2311, %v3834, %v3836
      %v3854 = vsel %vm2311, %v3836, %v3838
      %v3855 = vsel %vm2311, %v3840, %v3842
      %v3856 = vsel %vm2311, %v3842, %v3844
      %v3870 = vsel %vm1355, %v3807, 0
      %v3873 = vsel %vm1355, %v3808, 0
      %3875 = vmatprep.subr.bf16.mxu0 0
      %3876 = vmatpush1.bf16.msra.mxu0 0
      %3877 = vmatprep.subr.bf16.mxu0 0
      %3878 = vmatpush1.bf16.msra.mxu0 0
      %3879 = vmatprep.subr.bf16.mxu0 %v3856
      %3880 = vmatpush1.bf16.msra.mxu0 %v3855
      %3881 = vmatprep.subr.bf16.mxu0 %v3854
      %3882 = vmatpush1.bf16.msra.mxu0 %v3853
      %3883 = vmatprep.subr.bf16.mxu0 %v3852
      %3884 = vmatpush1.bf16.msra.mxu0 %v3851
      %3885 = vmatprep.subr.bf16.mxu0 %v3850
      %3886 = vmatpush1.bf16.msra.mxu0 %v3849
      %3887 = vmatprep.subr.bf16.mxu0 %v3848
      %3888 = vmatpush1.bf16.msra.mxu0 %v3847
      %3889 = vmatprep.subr.bf16.mxu0 %v3846
      %3890 = vmatpush1.bf16.msra.mxu0 %v3845
      %3891 = vmatprep.subr.bf16.mxu0 0
      %3892 = vmatpush2.bf16.msra.mxu0 0
      %3893 = vmatprep.subr.bf16.mxu0 0
      %3894 = vmatpush2.bf16.msra.mxu0 0
      %3895 = vmatprep.subr.bf16.mxu0 0
      %3896 = vmatpush2.bf16.msra.mxu0 0
      %3897 = vmatprep.subr.bf16.mxu0 0
      %3898 = vmatpush2.bf16.msra.mxu0 0
      %3899 = vmatprep.subr.bf16.mxu0 0
      %3900 = vmatpush2.bf16.msra.mxu0 0
      %3901 = vmatprep.subr.bf16.mxu0 0
      %3902 = vmatpush2.bf16.msra.mxu0 0
      %3903 = vmatprep.subr.bf16.mxu0 0
      %3904 = vmatpush2.bf16.msra.mxu0 0
      %3905 = vmatprep.subr.bf16.mxu0 0
      %3906 = vmatpush2.bf16.msra.mxu0 0
      %3907 = vmatprep.mubr.bf16.mxu0 0
      %3908 = vmatmul.mubr.bf16.gmra.mxu0 %v3870
      %v3909 = vpop.f32.mrf.mxu0
      %v3910 = vadd.f32 0.0, %v3909
      %v3911 = vpop.f32.mrf.mxu0
      %v3912 = vadd.f32 0.0, %v3911
      %v3913 = vpop.f32.mrf.mxu0
      %v3914 = vadd.f32 0.0, %v3913
      %v3915 = vpop.f32.mrf.mxu0
      %v3916 = vadd.f32 0.0, %v3915
      %3917 = vmatprep.mubr.bf16.mxu0 0
      %3918 = vmatmul.mubr.bf16.gmra.mxu0 %v3873
      %v3919 = vpop.f32.mrf.mxu0
      %v3920 = vadd.f32 0.0, %v3919
      %v3921 = vpop.f32.mrf.mxu0
      %v3922 = vadd.f32 0.0, %v3921
      %v3923 = vpop.f32.mrf.mxu0
      %v3924 = vadd.f32 0.0, %v3923
      %v3925 = vpop.f32.mrf.mxu0
      %v3926 = vadd.f32 0.0, %v3925
      %3927 = vdwg.mxu0
      %v3928 = vadd.f32 %v3787, %v3910
      %v3929 = vadd.f32 %v3788, %v3912
      %v3930 = vadd.f32 %v3789, %v3914
      %v3931 = vadd.f32 %v3790, %v3916
      %v3932 = vadd.f32 %v3791, %v3920
      %v3933 = vadd.f32 %v3792, %v3922
      %v3934 = vadd.f32 %v3793, %v3924
      %v3935 = vadd.f32 %v3794, %v3926
      %v3936 = vld [vmem:[%s2403] sm:$0xf]
      %v3937 = vld [vmem:[%s2403 + $0x4] sm:$0xf]
      %v3938 = vld [vmem:[%s2403 + $0x8] sm:$0xf]
      %v3939 = vld [vmem:[%s2403 + $0xc] sm:$0xf]
      %v3944 = vunpack.c.l.b16 %v3936
      %v3945 = vunpack.c.l.b16 %v3937
      %v3946 = vunpack.c.l.b16 %v3938
      %v3947 = vunpack.c.l.b16 %v3939
      %v3948 = vpack.c.b16 %v3945, %v3944
      %v3949 = vpack.c.b16 %v3947, %v3946
      %3950 = vrot.lane.b32.xlu0 %v2824, 79
      %v3951 = vpop.permute.xlu0 %3950
      %3952 = vrot.lane.b32.xlu0 %v2825, 79
      %v3953 = vpop.permute.xlu0 %3952
      %3954 = vrot.lane.b32.xlu0 %v2826, 79
      %v3955 = vpop.permute.xlu0 %3954
      %3956 = vrot.lane.b32.xlu0 %v2827, 79
      %v3957 = vpop.permute.xlu0 %3956
      %3958 = vrot.lane.b32.xlu0 %v2828, 79
      %v3959 = vpop.permute.xlu0 %3958
      %3960 = vrot.lane.b32.xlu0 %v2829, 79
      %v3961 = vpop.permute.xlu0 %3960
      %3962 = vrot.lane.b32.xlu0 %v2830, 79
      %v3963 = vpop.permute.xlu0 %3962
      %3964 = vrot.lane.b32.xlu0 %v2831, 79
      %v3965 = vpop.permute.xlu0 %3964
      %3966 = vrot.lane.b32.xlu0 %v2832, 79
      %v3967 = vpop.permute.xlu0 %3966
      %3968 = vrot.lane.b32.xlu0 %v2833, 79
      %v3969 = vpop.permute.xlu0 %3968
      %3970 = vrot.lane.b32.xlu0 %v2834, 79
      %v3971 = vpop.permute.xlu0 %3970
      %3972 = vrot.lane.b32.xlu0 %v2835, 79
      %v3973 = vpop.permute.xlu0 %3972
      %3974 = vrot.lane.b32.xlu0 %v2836, 79
      %v3975 = vpop.permute.xlu0 %3974
      %3976 = vrot.lane.b32.xlu0 %v2837, 79
      %v3977 = vpop.permute.xlu0 %3976
      %3978 = vrot.lane.b32.xlu0 %v2838, 79
      %v3979 = vpop.permute.xlu0 %3978
      %3980 = vrot.lane.b32.xlu0 %v2839, 79
      %v3981 = vpop.permute.xlu0 %3980
      %3982 = vrot.lane.b32.xlu0 %v2840, 79
      %v3983 = vpop.permute.xlu0 %3982
      %3984 = vrot.lane.b32.xlu0 %v2841, 79
      %v3985 = vpop.permute.xlu0 %3984
      %v3986 = vsel %vm2454, %v3951, %v3953
      %v3987 = vsel %vm2454, %v3953, %v3955
      %v3988 = vsel %vm2454, %v3957, %v3959
      %v3989 = vsel %vm2454, %v3959, %v3961
      %v3990 = vsel %vm2454, %v3963, %v3965
      %v3991 = vsel %vm2454, %v3965, %v3967
      %v3992 = vsel %vm2454, %v3969, %v3971
      %v3993 = vsel %vm2454, %v3971, %v3973
      %v3994 = vsel %vm2454, %v3975, %v3977
      %v3995 = vsel %vm2454, %v3977, %v3979
      %v3996 = vsel %vm2454, %v3981, %v3983
      %v3997 = vsel %vm2454, %v3983, %v3985
      %v4011 = vsel %vm1355, %v3948, 0
      %v4014 = vsel %vm1355, %v3949, 0
      %4016 = vmatprep.subr.bf16.mxu0 0
      %4017 = vmatpush1.bf16.msra.mxu0 0
      %4018 = vmatprep.subr.bf16.mxu0 0
      %4019 = vmatpush1.bf16.msra.mxu0 0
      %4020 = vmatprep.subr.bf16.mxu0 %v3997
      %4021 = vmatpush1.bf16.msra.mxu0 %v3996
      %4022 = vmatprep.subr.bf16.mxu0 %v3995
      %4023 = vmatpush1.bf16.msra.mxu0 %v3994
      %4024 = vmatprep.subr.bf16.mxu0 %v3993
      %4025 = vmatpush1.bf16.msra.mxu0 %v3992
      %4026 = vmatprep.subr.bf16.mxu0 %v3991
      %4027 = vmatpush1.bf16.msra.mxu0 %v3990
      %4028 = vmatprep.subr.bf16.mxu0 %v3989
      %4029 = vmatpush1.bf16.msra.mxu0 %v3988
      %4030 = vmatprep.subr.bf16.mxu0 %v3987
      %4031 = vmatpush1.bf16.msra.mxu0 %v3986
      %4032 = vmatprep.subr.bf16.mxu0 0
      %4033 = vmatpush2.bf16.msra.mxu0 0
      %4034 = vmatprep.subr.bf16.mxu0 0
      %4035 = vmatpush2.bf16.msra.mxu0 0
      %4036 = vmatprep.subr.bf16.mxu0 0
      %4037 = vmatpush2.bf16.msra.mxu0 0
      %4038 = vmatprep.subr.bf16.mxu0 0
      %4039 = vmatpush2.bf16.msra.mxu0 0
      %4040 = vmatprep.subr.bf16.mxu0 0
      %4041 = vmatpush2.bf16.msra.mxu0 0
      %4042 = vmatprep.subr.bf16.mxu0 0
      %4043 = vmatpush2.bf16.msra.mxu0 0
      %4044 = vmatprep.subr.bf16.mxu0 0
      %4045 = vmatpush2.bf16.msra.mxu0 0
      %4046 = vmatprep.subr.bf16.mxu0 0
      %4047 = vmatpush2.bf16.msra.mxu0 0
      %4048 = vmatprep.mubr.bf16.mxu0 0
      %4049 = vmatmul.mubr.bf16.gmra.mxu0 %v4011
      %v4050 = vpop.f32.mrf.mxu0
      %v4051 = vadd.f32 0.0, %v4050
      %v4052 = vpop.f32.mrf.mxu0
      %v4053 = vadd.f32 0.0, %v4052
      %v4054 = vpop.f32.mrf.mxu0
      %v4055 = vadd.f32 0.0, %v4054
      %v4056 = vpop.f32.mrf.mxu0
      %v4057 = vadd.f32 0.0, %v4056
      %4058 = vmatprep.mubr.bf16.mxu0 0
      %4059 = vmatmul.mubr.bf16.gmra.mxu0 %v4014
      %v4060 = vpop.f32.mrf.mxu0
      %v4061 = vadd.f32 0.0, %v4060
      %v4062 = vpop.f32.mrf.mxu0
      %v4063 = vadd.f32 0.0, %v4062
      %v4064 = vpop.f32.mrf.mxu0
      %v4065 = vadd.f32 0.0, %v4064
      %v4066 = vpop.f32.mrf.mxu0
      %v4067 = vadd.f32 0.0, %v4066
      %4068 = vdwg.mxu0
      %v4069 = vadd.f32 %v3928, %v4051
      %v4070 = vadd.f32 %v3929, %v4053
      %v4071 = vadd.f32 %v3930, %v4055
      %v4072 = vadd.f32 %v3931, %v4057
      %v4073 = vadd.f32 %v3932, %v4061
      %v4074 = vadd.f32 %v3933, %v4063
      %v4075 = vadd.f32 %v3934, %v4065
      %v4076 = vadd.f32 %v3935, %v4067
      %v4077 = vadd.f32 %v4069, %v2549
      %v4078 = vadd.f32 %v4070, %v2549
      %v4079 = vadd.f32 %v4071, %v2554
      %v4080 = vadd.f32 %v4072, %v2554
      %v4081 = vadd.f32 %v4073, %v2559
      %v4082 = vadd.f32 %v4074, %v2559
      %v4083 = vadd.f32 %v4075, %v2564
      %v4084 = vadd.f32 %v4076, %v2564
      %v4085 = vmax.f32 %v4077, 0.0
      %v4086 = vmax.f32 %v4078, 0.0
      %v4087 = vmax.f32 %v4079, 0.0
      %v4088 = vmax.f32 %v4080, 0.0
      %v4089 = vmax.f32 %v4081, 0.0
      %v4090 = vmax.f32 %v4082, 0.0
      %v4091 = vmax.f32 %v4083, 0.0
      %v4092 = vmax.f32 %v4084, 0.0
      %v4093 = vld [vmem:[%s300 + $0xc] sm:$0xff]
      %v4094 = vld [vmem:[%s300 + $0x14] sm:$0xf]
      %v4095 = vld [vmem:[%s300 + $0x3c] sm:$0xff]
      %v4096 = vld [vmem:[%s300 + $0x44] sm:$0xf]
      %v4101 = vunpack.c.l.b16 %v4093
      %v4102 = vunpack.c.h.b16 %v4093
      %v4103 = vunpack.c.l.b16 %v4094
      %v4104 = vunpack.c.l.b16 %v4095
      %v4105 = vunpack.c.h.b16 %v4095
      %v4106 = vunpack.c.l.b16 %v4096
      %v4107 = vpack.c.b16 %v4104, %v4101
      %v4108 = vpack.c.b16 %v4105, %v4102
      %v4109 = vpack.c.b16 %v4106, %v4103
      %4110 = vrot.lane.b32.xlu0 %v4107, 96
      %v4111 = vpop.permute.xlu0 %4110
      %4112 = vrot.lane.b32.xlu0 %v4108, 96
      %v4113 = vpop.permute.xlu0 %4112
      %4114 = vrot.lane.b32.xlu0 %v4109, 96
      %v4115 = vpop.permute.xlu0 %4114
      %v4116 = vsel %vm1882, %v4111, %v4113
      %v4117 = vsel %vm1882, %v4113, %v4115
      %4120 = vmatprep.subr.bf16.mxu0 0
      %4121 = vmatpush1.bf16.msra.mxu0 0
      %4122 = vmatprep.subr.bf16.mxu0 0
      %4123 = vmatpush1.bf16.msra.mxu0 0
      %4124 = vmatprep.subr.bf16.mxu0 0
      %4125 = vmatpush1.bf16.msra.mxu0 0
      %4126 = vmatprep.subr.bf16.mxu0 0
      %4127 = vmatpush1.bf16.msra.mxu0 0
      %4128 = vmatprep.subr.bf16.mxu0 0
      %4129 = vmatpush1.bf16.msra.mxu0 0
      %4130 = vmatprep.subr.bf16.mxu0 0
      %4131 = vmatpush1.bf16.msra.mxu0 0
      %4132 = vmatprep.subr.bf16.mxu0 0
      %4133 = vmatpush1.bf16.msra.mxu0 0
      %4134 = vmatprep.subr.bf16.mxu0 %v4117
      %4135 = vmatpush1.bf16.msra.mxu0 %v4116
      %4136 = vmatprep.subr.bf16.mxu0 0
      %4137 = vmatpush2.bf16.msra.mxu0 0
      %4138 = vmatprep.subr.bf16.mxu0 0
      %4139 = vmatpush2.bf16.msra.mxu0 0
      %4140 = vmatprep.subr.bf16.mxu0 0
      %4141 = vmatpush2.bf16.msra.mxu0 0
      %4142 = vmatprep.subr.bf16.mxu0 0
      %4143 = vmatpush2.bf16.msra.mxu0 0
      %4144 = vmatprep.subr.bf16.mxu0 0
      %4145 = vmatpush2.bf16.msra.mxu0 0
      %4146 = vmatprep.subr.bf16.mxu0 0
      %4147 = vmatpush2.bf16.msra.mxu0 0
      %4148 = vmatprep.subr.bf16.mxu0 0
      %4149 = vmatpush2.bf16.msra.mxu0 0
      %4150 = vmatprep.subr.bf16.mxu0 0
      %4151 = vmatpush2.bf16.msra.mxu0 0
      %4152 = vmatprep.mubr.bf16.mxu0 0
      %4153 = vmatmul.mubr.bf16.gmra.mxu0 %v2640
      %v4154 = vpop.f32.mrf.mxu0
      %v4155 = vadd.f32 %v2589, %v4154
      %v4156 = vpop.f32.mrf.mxu0
      %v4157 = vadd.f32 %v2589, %v4156
      %v4158 = vpop.f32.mrf.mxu0
      %v4159 = vadd.f32 %v2594, %v4158
      %v4160 = vpop.f32.mrf.mxu0
      %v4161 = vadd.f32 %v2594, %v4160
      %4162 = vmatprep.mubr.bf16.mxu0 0
      %4163 = vmatmul.mubr.bf16.gmra.mxu0 %v2643
      %v4164 = vpop.f32.mrf.mxu0
      %v4165 = vadd.f32 %v2599, %v4164
      %v4166 = vpop.f32.mrf.mxu0
      %v4167 = vadd.f32 %v2599, %v4166
      %v4168 = vpop.f32.mrf.mxu0
      %v4169 = vadd.f32 %v2604, %v4168
      %v4170 = vpop.f32.mrf.mxu0
      %v4171 = vadd.f32 %v2604, %v4170
      %4172 = vdwg.mxu0
      %v4173 = vadd.f32 %v4085, %v4155
      %v4174 = vadd.f32 %v4086, %v4157
      %v4175 = vadd.f32 %v4087, %v4159
      %v4176 = vadd.f32 %v4088, %v4161
      %v4177 = vadd.f32 %v4089, %v4165
      %v4178 = vadd.f32 %v4090, %v4167
      %v4179 = vadd.f32 %v4091, %v4169
      %v4180 = vadd.f32 %v4092, %v4171
      %v4181 = vmax.f32 %v4173, 0.0
      %v4182 = vmax.f32 %v4174, 0.0
      %v4183 = vmax.f32 %v4175, 0.0
      %v4184 = vmax.f32 %v4176, 0.0
      %v4185 = vmax.f32 %v4177, 0.0
      %v4186 = vmax.f32 %v4178, 0.0
      %v4187 = vmax.f32 %v4179, 0.0
      %v4188 = vmax.f32 %v4180, 0.0
      %4189 = vst [vmem:[%s305 + $0x10] sm:$0xff] %v4181
      %4190 = vst [vmem:[%s305 + $0x18] sm:$0xff] %v4182
      %4191 = vst [vmem:[%s305 + $0x50] sm:$0xff] %v4183
      %4192 = vst [vmem:[%s305 + $0x58] sm:$0xff] %v4184
      %4193 = vst [vmem:[%s305 + $0x90] sm:$0xff] %v4185
      %4194 = vst [vmem:[%s305 + $0x98] sm:$0xff] %v4186
      %4195 = vst [vmem:[%s305 + $0xd0] sm:$0xff] %v4187
      %4196 = vst [vmem:[%s305 + $0xd8] sm:$0xff] %v4188
      %v4197 = vld [vmem:[#allocation2 + $0x60] sm:$0xff]
      %v4198 = vld [vmem:[#allocation2 + $0x68] sm:$0xf]
      %v4199 = vld [vmem:[#allocation2 + $0x6c] sm:$0xff]
      %v4200 = vld [vmem:[#allocation2 + $0x74] sm:$0xf]
      %v4201 = vld [vmem:[#allocation2 + $0x78] sm:$0xff]
      %v4202 = vld [vmem:[#allocation2 + $0x80] sm:$0xf]
      %v4203 = vld [vmem:[#allocation2 + $0x84] sm:$0xff]
      %v4204 = vld [vmem:[#allocation2 + $0x8c] sm:$0xf]
      %v4205 = vld [vmem:[#allocation2 + $0x90] sm:$0xff]
      %v4206 = vld [vmem:[#allocation2 + $0x98] sm:$0xf]
      %v4207 = vld [vmem:[#allocation2 + $0x9c] sm:$0xff]
      %v4208 = vld [vmem:[#allocation2 + $0xa4] sm:$0xf]
      %v4209 = vld [vmem:[#allocation2 + $0xa8] sm:$0xff]
      %v4210 = vld [vmem:[#allocation2 + $0xb0] sm:$0xf]
      %v4211 = vld [vmem:[#allocation2 + $0xb4] sm:$0xff]
      %v4212 = vld [vmem:[#allocation2 + $0xbc] sm:$0xf]
      %v4213 = vld [vmem:[#allocation2 + $0xc0] sm:$0xff]
      %v4214 = vld [vmem:[#allocation2 + $0xc8] sm:$0xf]
      %v4215 = vld [vmem:[#allocation2 + $0xcc] sm:$0xff]
      %v4216 = vld [vmem:[#allocation2 + $0xd4] sm:$0xf]
      %v4217 = vld [vmem:[#allocation2 + $0xd8] sm:$0xff]
      %v4218 = vld [vmem:[#allocation2 + $0xe0] sm:$0xf]
      %v4219 = vld [vmem:[#allocation2 + $0xe4] sm:$0xff]
      %v4220 = vld [vmem:[#allocation2 + $0xec] sm:$0xf]
      %v4221 = vld [vmem:[%s4] sm:$0xf]
      %v4222 = vld [vmem:[%s4 + $0x4] sm:$0xf]
      %v4223 = vld [vmem:[%s4 + $0x8] sm:$0xf]
      %v4224 = vld [vmem:[%s4 + $0xc] sm:$0xf]
      %v4225 = vld [vmem:[%s1201] sm:$0xf]
      %v4226 = vld [vmem:[%s1201 + $0x4] sm:$0xf]
      %v4227 = vld [vmem:[%s1201 + $0x8] sm:$0xf]
      %v4228 = vld [vmem:[%s1201 + $0xc] sm:$0xf]
      %v4233 = vunpack.c.l.b16 %v4225
      %v4234 = vunpack.c.l.b16 %v4226
      %v4235 = vunpack.c.l.b16 %v4227
      %v4236 = vunpack.c.l.b16 %v4228
      %v4237 = vpack.c.b16 %v4234, %v4233
      %v4238 = vpack.c.b16 %v4236, %v4235
      %v4263 = vunpack.c.l.b16 %v4197
      %v4264 = vunpack.c.h.b16 %v4197
      %v4265 = vunpack.c.l.b16 %v4198
      %v4266 = vunpack.c.l.b16 %v4199
      %v4267 = vunpack.c.h.b16 %v4199
      %v4268 = vunpack.c.l.b16 %v4200
      %v4269 = vunpack.c.l.b16 %v4201
      %v4270 = vunpack.c.h.b16 %v4201
      %v4271 = vunpack.c.l.b16 %v4202
      %v4272 = vunpack.c.l.b16 %v4203
      %v4273 = vunpack.c.h.b16 %v4203
      %v4274 = vunpack.c.l.b16 %v4204
      %v4275 = vunpack.c.l.b16 %v4205
      %v4276 = vunpack.c.h.b16 %v4205
      %v4277 = vunpack.c.l.b16 %v4206
      %v4278 = vunpack.c.l.b16 %v4207
      %v4279 = vunpack.c.h.b16 %v4207
      %v4280 = vunpack.c.l.b16 %v4208
      %v4281 = vunpack.c.l.b16 %v4209
      %v4282 = vunpack.c.h.b16 %v4209
      %v4283 = vunpack.c.l.b16 %v4210
      %v4284 = vunpack.c.l.b16 %v4211
      %v4285 = vunpack.c.h.b16 %v4211
      %v4286 = vunpack.c.l.b16 %v4212
      %v4287 = vunpack.c.l.b16 %v4213
      %v4288 = vunpack.c.h.b16 %v4213
      %v4289 = vunpack.c.l.b16 %v4214
      %v4290 = vunpack.c.l.b16 %v4215
      %v4291 = vunpack.c.h.b16 %v4215
      %v4292 = vunpack.c.l.b16 %v4216
      %v4293 = vunpack.c.l.b16 %v4217
      %v4294 = vunpack.c.h.b16 %v4217
      %v4295 = vunpack.c.l.b16 %v4218
      %v4296 = vunpack.c.l.b16 %v4219
      %v4297 = vunpack.c.h.b16 %v4219
      %v4298 = vunpack.c.l.b16 %v4220
      %v4299 = vpack.c.b16 %v4266, %v4263
      %v4300 = vpack.c.b16 %v4267, %v4264
      %v4301 = vpack.c.b16 %v4268, %v4265
      %v4302 = vpack.c.b16 %v4272, %v4269
      %v4303 = vpack.c.b16 %v4273, %v4270
      %v4304 = vpack.c.b16 %v4274, %v4271
      %v4305 = vpack.c.b16 %v4278, %v4275
      %v4306 = vpack.c.b16 %v4279, %v4276
      %v4307 = vpack.c.b16 %v4280, %v4277
      %v4308 = vpack.c.b16 %v4284, %v4281
      %v4309 = vpack.c.b16 %v4285, %v4282
      %v4310 = vpack.c.b16 %v4286, %v4283
      %v4311 = vpack.c.b16 %v4290, %v4287
      %v4312 = vpack.c.b16 %v4291, %v4288
      %v4313 = vpack.c.b16 %v4292, %v4289
      %v4314 = vpack.c.b16 %v4296, %v4293
      %v4315 = vpack.c.b16 %v4297, %v4294
      %v4316 = vpack.c.b16 %v4298, %v4295
      %4317 = vrot.lane.b32.xlu0 %v4299, 112
      %v4318 = vpop.permute.xlu0 %4317
      %4319 = vrot.lane.b32.xlu0 %v4300, 112
      %v4320 = vpop.permute.xlu0 %4319
      %4321 = vrot.lane.b32.xlu0 %v4301, 112
      %v4322 = vpop.permute.xlu0 %4321
      %4323 = vrot.lane.b32.xlu0 %v4302, 112
      %v4324 = vpop.permute.xlu0 %4323
      %4325 = vrot.lane.b32.xlu0 %v4303, 112
      %v4326 = vpop.permute.xlu0 %4325
      %4327 = vrot.lane.b32.xlu0 %v4304, 112
      %v4328 = vpop.permute.xlu0 %4327
      %4329 = vrot.lane.b32.xlu0 %v4305, 112
      %v4330 = vpop.permute.xlu0 %4329
      %4331 = vrot.lane.b32.xlu0 %v4306, 112
      %v4332 = vpop.permute.xlu0 %4331
      %4333 = vrot.lane.b32.xlu0 %v4307, 112
      %v4334 = vpop.permute.xlu0 %4333
      %4335 = vrot.lane.b32.xlu0 %v4308, 112
      %v4336 = vpop.permute.xlu0 %4335
      %4337 = vrot.lane.b32.xlu0 %v4309, 112
      %v4338 = vpop.permute.xlu0 %4337
      %4339 = vrot.lane.b32.xlu0 %v4310, 112
      %v4340 = vpop.permute.xlu0 %4339
      %4341 = vrot.lane.b32.xlu0 %v4311, 112
      %v4342 = vpop.permute.xlu0 %4341
      %4343 = vrot.lane.b32.xlu0 %v4312, 112
      %v4344 = vpop.permute.xlu0 %4343
      %4345 = vrot.lane.b32.xlu0 %v4313, 112
      %v4346 = vpop.permute.xlu0 %4345
      %4347 = vrot.lane.b32.xlu0 %v4314, 112
      %v4348 = vpop.permute.xlu0 %4347
      %4349 = vrot.lane.b32.xlu0 %v4315, 112
      %v4350 = vpop.permute.xlu0 %4349
      %4351 = vrot.lane.b32.xlu0 %v4316, 112
      %v4352 = vpop.permute.xlu0 %4351
      %v4353 = vsel %vm1330, %v4318, %v4320
      %v4354 = vsel %vm1330, %v4320, %v4322
      %v4355 = vsel %vm1330, %v4324, %v4326
      %v4356 = vsel %vm1330, %v4326, %v4328
      %v4357 = vsel %vm1330, %v4330, %v4332
      %v4358 = vsel %vm1330, %v4332, %v4334
      %v4359 = vsel %vm1330, %v4336, %v4338
      %v4360 = vsel %vm1330, %v4338, %v4340
      %v4361 = vsel %vm1330, %v4342, %v4344
      %v4362 = vsel %vm1330, %v4344, %v4346
      %v4363 = vsel %vm1330, %v4348, %v4350
      %v4364 = vsel %vm1330, %v4350, %v4352
      %v4378 = vsel %vm1355, %v4237, 0
      %v4381 = vsel %vm1355, %v4238, 0
      %4383 = vmatprep.subr.bf16.mxu0 0
      %4384 = vmatpush1.bf16.msra.mxu0 0
      %4385 = vmatprep.subr.bf16.mxu0 0
      %4386 = vmatpush1.bf16.msra.mxu0 0
      %4387 = vmatprep.subr.bf16.mxu0 %v4364
      %4388 = vmatpush1.bf16.msra.mxu0 %v4363
      %4389 = vmatprep.subr.bf16.mxu0 %v4362
      %4390 = vmatpush1.bf16.msra.mxu0 %v4361
      %4391 = vmatprep.subr.bf16.mxu0 %v4360
      %4392 = vmatpush1.bf16.msra.mxu0 %v4359
      %4393 = vmatprep.subr.bf16.mxu0 %v4358
      %4394 = vmatpush1.bf16.msra.mxu0 %v4357
      %4395 = vmatprep.subr.bf16.mxu0 %v4356
      %4396 = vmatpush1.bf16.msra.mxu0 %v4355
      %4397 = vmatprep.subr.bf16.mxu0 %v4354
      %4398 = vmatpush1.bf16.msra.mxu0 %v4353
      %4399 = vmatprep.subr.bf16.mxu0 0
      %4400 = vmatpush2.bf16.msra.mxu0 0
      %4401 = vmatprep.subr.bf16.mxu0 0
      %4402 = vmatpush2.bf16.msra.mxu0 0
      %4403 = vmatprep.subr.bf16.mxu0 0
      %4404 = vmatpush2.bf16.msra.mxu0 0
      %4405 = vmatprep.subr.bf16.mxu0 0
      %4406 = vmatpush2.bf16.msra.mxu0 0
      %4407 = vmatprep.subr.bf16.mxu0 0
      %4408 = vmatpush2.bf16.msra.mxu0 0
      %4409 = vmatprep.subr.bf16.mxu0 0
      %4410 = vmatpush2.bf16.msra.mxu0 0
      %4411 = vmatprep.subr.bf16.mxu0 0
      %4412 = vmatpush2.bf16.msra.mxu0 0
      %4413 = vmatprep.subr.bf16.mxu0 0
      %4414 = vmatpush2.bf16.msra.mxu0 0
      %4415 = vmatprep.mubr.bf16.mxu0 0
      %4416 = vmatmul.mubr.bf16.gmra.mxu0 %v4378
      %v4417 = vpop.f32.mrf.mxu0
      %v4418 = vadd.f32 0.0, %v4417
      %v4419 = vpop.f32.mrf.mxu0
      %v4420 = vadd.f32 0.0, %v4419
      %v4421 = vpop.f32.mrf.mxu0
      %v4422 = vadd.f32 0.0, %v4421
      %v4423 = vpop.f32.mrf.mxu0
      %v4424 = vadd.f32 0.0, %v4423
      %4425 = vmatprep.mubr.bf16.mxu0 0
      %4426 = vmatmul.mubr.bf16.gmra.mxu0 %v4381
      %v4427 = vpop.f32.mrf.mxu0
      %v4428 = vadd.f32 0.0, %v4427
      %v4429 = vpop.f32.mrf.mxu0
      %v4430 = vadd.f32 0.0, %v4429
      %v4431 = vpop.f32.mrf.mxu0
      %v4432 = vadd.f32 0.0, %v4431
      %v4433 = vpop.f32.mrf.mxu0
      %v4434 = vadd.f32 0.0, %v4433
      %4435 = vdwg.mxu0
      %v4440 = vunpack.c.l.b16 %v4221
      %v4441 = vunpack.c.l.b16 %v4222
      %v4442 = vunpack.c.l.b16 %v4223
      %v4443 = vunpack.c.l.b16 %v4224
      %v4444 = vpack.c.b16 %v4441, %v4440
      %v4445 = vpack.c.b16 %v4443, %v4442
      %4446 = vrot.lane.b32.xlu0 %v4299, 113
      %v4447 = vpop.permute.xlu0 %4446
      %4448 = vrot.lane.b32.xlu0 %v4300, 113
      %v4449 = vpop.permute.xlu0 %4448
      %4450 = vrot.lane.b32.xlu0 %v4301, 113
      %v4451 = vpop.permute.xlu0 %4450
      %4452 = vrot.lane.b32.xlu0 %v4302, 113
      %v4453 = vpop.permute.xlu0 %4452
      %4454 = vrot.lane.b32.xlu0 %v4303, 113
      %v4455 = vpop.permute.xlu0 %4454
      %4456 = vrot.lane.b32.xlu0 %v4304, 113
      %v4457 = vpop.permute.xlu0 %4456
      %4458 = vrot.lane.b32.xlu0 %v4305, 113
      %v4459 = vpop.permute.xlu0 %4458
      %4460 = vrot.lane.b32.xlu0 %v4306, 113
      %v4461 = vpop.permute.xlu0 %4460
      %4462 = vrot.lane.b32.xlu0 %v4307, 113
      %v4463 = vpop.permute.xlu0 %4462
      %4464 = vrot.lane.b32.xlu0 %v4308, 113
      %v4465 = vpop.permute.xlu0 %4464
      %4466 = vrot.lane.b32.xlu0 %v4309, 113
      %v4467 = vpop.permute.xlu0 %4466
      %4468 = vrot.lane.b32.xlu0 %v4310, 113
      %v4469 = vpop.permute.xlu0 %4468
      %4470 = vrot.lane.b32.xlu0 %v4311, 113
      %v4471 = vpop.permute.xlu0 %4470
      %4472 = vrot.lane.b32.xlu0 %v4312, 113
      %v4473 = vpop.permute.xlu0 %4472
      %4474 = vrot.lane.b32.xlu0 %v4313, 113
      %v4475 = vpop.permute.xlu0 %4474
      %4476 = vrot.lane.b32.xlu0 %v4314, 113
      %v4477 = vpop.permute.xlu0 %4476
      %4478 = vrot.lane.b32.xlu0 %v4315, 113
      %v4479 = vpop.permute.xlu0 %4478
      %4480 = vrot.lane.b32.xlu0 %v4316, 113
      %v4481 = vpop.permute.xlu0 %4480
      %v4482 = vsel %vm1461, %v4447, %v4449
      %v4483 = vsel %vm1461, %v4449, %v4451
      %v4484 = vsel %vm1461, %v4453, %v4455
      %v4485 = vsel %vm1461, %v4455, %v4457
      %v4486 = vsel %vm1461, %v4459, %v4461
      %v4487 = vsel %vm1461, %v4461, %v4463
      %v4488 = vsel %vm1461, %v4465, %v4467
      %v4489 = vsel %vm1461, %v4467, %v4469
      %v4490 = vsel %vm1461, %v4471, %v4473
      %v4491 = vsel %vm1461, %v4473, %v4475
      %v4492 = vsel %vm1461, %v4477, %v4479
      %v4493 = vsel %vm1461, %v4479, %v4481
      %v4507 = vsel %vm1355, %v4444, 0
      %v4510 = vsel %vm1355, %v4445, 0
      %4512 = vmatprep.subr.bf16.mxu0 0
      %4513 = vmatpush1.bf16.msra.mxu0 0
      %4514 = vmatprep.subr.bf16.mxu0 0
      %4515 = vmatpush1.bf16.msra.mxu0 0
      %4516 = vmatprep.subr.bf16.mxu0 %v4493
      %4517 = vmatpush1.bf16.msra.mxu0 %v4492
      %4518 = vmatprep.subr.bf16.mxu0 %v4491
      %4519 = vmatpush1.bf16.msra.mxu0 %v4490
      %4520 = vmatprep.subr.bf16.mxu0 %v4489
      %4521 = vmatpush1.bf16.msra.mxu0 %v4488
      %4522 = vmatprep.subr.bf16.mxu0 %v4487
      %4523 = vmatpush1.bf16.msra.mxu0 %v4486
      %4524 = vmatprep.subr.bf16.mxu0 %v4485
      %4525 = vmatpush1.bf16.msra.mxu0 %v4484
      %4526 = vmatprep.subr.bf16.mxu0 %v4483
      %4527 = vmatpush1.bf16.msra.mxu0 %v4482
      %4528 = vmatprep.subr.bf16.mxu0 0
      %4529 = vmatpush2.bf16.msra.mxu0 0
      %4530 = vmatprep.subr.bf16.mxu0 0
      %4531 = vmatpush2.bf16.msra.mxu0 0
      %4532 = vmatprep.subr.bf16.mxu0 0
      %4533 = vmatpush2.bf16.msra.mxu0 0
      %4534 = vmatprep.subr.bf16.mxu0 0
      %4535 = vmatpush2.bf16.msra.mxu0 0
      %4536 = vmatprep.subr.bf16.mxu0 0
      %4537 = vmatpush2.bf16.msra.mxu0 0
      %4538 = vmatprep.subr.bf16.mxu0 0
      %4539 = vmatpush2.bf16.msra.mxu0 0
      %4540 = vmatprep.subr.bf16.mxu0 0
      %4541 = vmatpush2.bf16.msra.mxu0 0
      %4542 = vmatprep.subr.bf16.mxu0 0
      %4543 = vmatpush2.bf16.msra.mxu0 0
      %4544 = vmatprep.mubr.bf16.mxu0 0
      %4545 = vmatmul.mubr.bf16.gmra.mxu0 %v4507
      %v4546 = vpop.f32.mrf.mxu0
      %v4547 = vadd.f32 %v4418, %v4546
      %v4548 = vpop.f32.mrf.mxu0
      %v4549 = vadd.f32 %v4420, %v4548
      %v4550 = vpop.f32.mrf.mxu0
      %v4551 = vadd.f32 %v4422, %v4550
      %v4552 = vpop.f32.mrf.mxu0
      %v4553 = vadd.f32 %v4424, %v4552
      %4554 = vmatprep.mubr.bf16.mxu0 0
      %4555 = vmatmul.mubr.bf16.gmra.mxu0 %v4510
      %v4556 = vpop.f32.mrf.mxu0
      %v4557 = vadd.f32 %v4428, %v4556
      %v4558 = vpop.f32.mrf.mxu0
      %v4559 = vadd.f32 %v4430, %v4558
      %v4560 = vpop.f32.mrf.mxu0
      %v4561 = vadd.f32 %v4432, %v4560
      %v4562 = vpop.f32.mrf.mxu0
      %v4563 = vadd.f32 %v4434, %v4562
      %4564 = vdwg.mxu0
      %v4565 = vld [vmem:[%s1545] sm:$0xf]
      %v4566 = vld [vmem:[%s1545 + $0x4] sm:$0xf]
      %v4567 = vld [vmem:[%s1545 + $0x8] sm:$0xf]
      %v4568 = vld [vmem:[%s1545 + $0xc] sm:$0xf]
      %v4573 = vunpack.c.l.b16 %v4565
      %v4574 = vunpack.c.l.b16 %v4566
      %v4575 = vunpack.c.l.b16 %v4567
      %v4576 = vunpack.c.l.b16 %v4568
      %v4577 = vpack.c.b16 %v4574, %v4573
      %v4578 = vpack.c.b16 %v4576, %v4575
      %4579 = vrot.lane.b32.xlu0 %v4299, 111
      %v4580 = vpop.permute.xlu0 %4579
      %4581 = vrot.lane.b32.xlu0 %v4300, 111
      %v4582 = vpop.permute.xlu0 %4581
      %4583 = vrot.lane.b32.xlu0 %v4301, 111
      %v4584 = vpop.permute.xlu0 %4583
      %4585 = vrot.lane.b32.xlu0 %v4302, 111
      %v4586 = vpop.permute.xlu0 %4585
      %4587 = vrot.lane.b32.xlu0 %v4303, 111
      %v4588 = vpop.permute.xlu0 %4587
      %4589 = vrot.lane.b32.xlu0 %v4304, 111
      %v4590 = vpop.permute.xlu0 %4589
      %4591 = vrot.lane.b32.xlu0 %v4305, 111
      %v4592 = vpop.permute.xlu0 %4591
      %4593 = vrot.lane.b32.xlu0 %v4306, 111
      %v4594 = vpop.permute.xlu0 %4593
      %4595 = vrot.lane.b32.xlu0 %v4307, 111
      %v4596 = vpop.permute.xlu0 %4595
      %4597 = vrot.lane.b32.xlu0 %v4308, 111
      %v4598 = vpop.permute.xlu0 %4597
      %4599 = vrot.lane.b32.xlu0 %v4309, 111
      %v4600 = vpop.permute.xlu0 %4599
      %4601 = vrot.lane.b32.xlu0 %v4310, 111
      %v4602 = vpop.permute.xlu0 %4601
      %4603 = vrot.lane.b32.xlu0 %v4311, 111
      %v4604 = vpop.permute.xlu0 %4603
      %4605 = vrot.lane.b32.xlu0 %v4312, 111
      %v4606 = vpop.permute.xlu0 %4605
      %4607 = vrot.lane.b32.xlu0 %v4313, 111
      %v4608 = vpop.permute.xlu0 %4607
      %4609 = vrot.lane.b32.xlu0 %v4314, 111
      %v4610 = vpop.permute.xlu0 %4609
      %4611 = vrot.lane.b32.xlu0 %v4315, 111
      %v4612 = vpop.permute.xlu0 %4611
      %4613 = vrot.lane.b32.xlu0 %v4316, 111
      %v4614 = vpop.permute.xlu0 %4613
      %v4615 = vsel %vm1596, %v4580, %v4582
      %v4616 = vsel %vm1596, %v4582, %v4584
      %v4617 = vsel %vm1596, %v4586, %v4588
      %v4618 = vsel %vm1596, %v4588, %v4590
      %v4619 = vsel %vm1596, %v4592, %v4594
      %v4620 = vsel %vm1596, %v4594, %v4596
      %v4621 = vsel %vm1596, %v4598, %v4600
      %v4622 = vsel %vm1596, %v4600, %v4602
      %v4623 = vsel %vm1596, %v4604, %v4606
      %v4624 = vsel %vm1596, %v4606, %v4608
      %v4625 = vsel %vm1596, %v4610, %v4612
      %v4626 = vsel %vm1596, %v4612, %v4614
      %v4640 = vsel %vm1355, %v4577, 0
      %v4643 = vsel %vm1355, %v4578, 0
      %4645 = vmatprep.subr.bf16.mxu0 0
      %4646 = vmatpush1.bf16.msra.mxu0 0
      %4647 = vmatprep.subr.bf16.mxu0 0
      %4648 = vmatpush1.bf16.msra.mxu0 0
      %4649 = vmatprep.subr.bf16.mxu0 %v4626
      %4650 = vmatpush1.bf16.msra.mxu0 %v4625
      %4651 = vmatprep.subr.bf16.mxu0 %v4624
      %4652 = vmatpush1.bf16.msra.mxu0 %v4623
      %4653 = vmatprep.subr.bf16.mxu0 %v4622
      %4654 = vmatpush1.bf16.msra.mxu0 %v4621
      %4655 = vmatprep.subr.bf16.mxu0 %v4620
      %4656 = vmatpush1.bf16.msra.mxu0 %v4619
      %4657 = vmatprep.subr.bf16.mxu0 %v4618
      %4658 = vmatpush1.bf16.msra.mxu0 %v4617
      %4659 = vmatprep.subr.bf16.mxu0 %v4616
      %4660 = vmatpush1.bf16.msra.mxu0 %v4615
      %4661 = vmatprep.subr.bf16.mxu0 0
      %4662 = vmatpush2.bf16.msra.mxu0 0
      %4663 = vmatprep.subr.bf16.mxu0 0
      %4664 = vmatpush2.bf16.msra.mxu0 0
      %4665 = vmatprep.subr.bf16.mxu0 0
      %4666 = vmatpush2.bf16.msra.mxu0 0
      %4667 = vmatprep.subr.bf16.mxu0 0
      %4668 = vmatpush2.bf16.msra.mxu0 0
      %4669 = vmatprep.subr.bf16.mxu0 0
      %4670 = vmatpush2.bf16.msra.mxu0 0
      %4671 = vmatprep.subr.bf16.mxu0 0
      %4672 = vmatpush2.bf16.msra.mxu0 0
      %4673 = vmatprep.subr.bf16.mxu0 0
      %4674 = vmatpush2.bf16.msra.mxu0 0
      %4675 = vmatprep.subr.bf16.mxu0 0
      %4676 = vmatpush2.bf16.msra.mxu0 0
      %4677 = vmatprep.mubr.bf16.mxu0 0
      %4678 = vmatmul.mubr.bf16.gmra.mxu0 %v4640
      %v4679 = vpop.f32.mrf.mxu0
      %v4680 = vadd.f32 0.0, %v4679
      %v4681 = vpop.f32.mrf.mxu0
      %v4682 = vadd.f32 0.0, %v4681
      %v4683 = vpop.f32.mrf.mxu0
      %v4684 = vadd.f32 0.0, %v4683
      %v4685 = vpop.f32.mrf.mxu0
      %v4686 = vadd.f32 0.0, %v4685
      %4687 = vmatprep.mubr.bf16.mxu0 0
      %4688 = vmatmul.mubr.bf16.gmra.mxu0 %v4643
      %v4689 = vpop.f32.mrf.mxu0
      %v4690 = vadd.f32 0.0, %v4689
      %v4691 = vpop.f32.mrf.mxu0
      %v4692 = vadd.f32 0.0, %v4691
      %v4693 = vpop.f32.mrf.mxu0
      %v4694 = vadd.f32 0.0, %v4693
      %v4695 = vpop.f32.mrf.mxu0
      %v4696 = vadd.f32 0.0, %v4695
      %4697 = vdwg.mxu0
      %v4698 = vadd.f32 %v4547, %v4680
      %v4699 = vadd.f32 %v4549, %v4682
      %v4700 = vadd.f32 %v4551, %v4684
      %v4701 = vadd.f32 %v4553, %v4686
      %v4702 = vadd.f32 %v4557, %v4690
      %v4703 = vadd.f32 %v4559, %v4692
      %v4704 = vadd.f32 %v4561, %v4694
      %v4705 = vadd.f32 %v4563, %v4696
      %v4706 = vld [vmem:[%s1688] sm:$0xf]
      %v4707 = vld [vmem:[%s1688 + $0x4] sm:$0xf]
      %v4708 = vld [vmem:[%s1688 + $0x8] sm:$0xf]
      %v4709 = vld [vmem:[%s1688 + $0xc] sm:$0xf]
      %v4714 = vunpack.c.l.b16 %v4706
      %v4715 = vunpack.c.l.b16 %v4707
      %v4716 = vunpack.c.l.b16 %v4708
      %v4717 = vunpack.c.l.b16 %v4709
      %v4718 = vpack.c.b16 %v4715, %v4714
      %v4719 = vpack.c.b16 %v4717, %v4716
      %4720 = vrot.lane.b32.xlu0 %v4299, 97
      %v4721 = vpop.permute.xlu0 %4720
      %4722 = vrot.lane.b32.xlu0 %v4300, 97
      %v4723 = vpop.permute.xlu0 %4722
      %4724 = vrot.lane.b32.xlu0 %v4301, 97
      %v4725 = vpop.permute.xlu0 %4724
      %4726 = vrot.lane.b32.xlu0 %v4302, 97
      %v4727 = vpop.permute.xlu0 %4726
      %4728 = vrot.lane.b32.xlu0 %v4303, 97
      %v4729 = vpop.permute.xlu0 %4728
      %4730 = vrot.lane.b32.xlu0 %v4304, 97
      %v4731 = vpop.permute.xlu0 %4730
      %4732 = vrot.lane.b32.xlu0 %v4305, 97
      %v4733 = vpop.permute.xlu0 %4732
      %4734 = vrot.lane.b32.xlu0 %v4306, 97
      %v4735 = vpop.permute.xlu0 %4734
      %4736 = vrot.lane.b32.xlu0 %v4307, 97
      %v4737 = vpop.permute.xlu0 %4736
      %4738 = vrot.lane.b32.xlu0 %v4308, 97
      %v4739 = vpop.permute.xlu0 %4738
      %4740 = vrot.lane.b32.xlu0 %v4309, 97
      %v4741 = vpop.permute.xlu0 %4740
      %4742 = vrot.lane.b32.xlu0 %v4310, 97
      %v4743 = vpop.permute.xlu0 %4742
      %4744 = vrot.lane.b32.xlu0 %v4311, 97
      %v4745 = vpop.permute.xlu0 %4744
      %4746 = vrot.lane.b32.xlu0 %v4312, 97
      %v4747 = vpop.permute.xlu0 %4746
      %4748 = vrot.lane.b32.xlu0 %v4313, 97
      %v4749 = vpop.permute.xlu0 %4748
      %4750 = vrot.lane.b32.xlu0 %v4314, 97
      %v4751 = vpop.permute.xlu0 %4750
      %4752 = vrot.lane.b32.xlu0 %v4315, 97
      %v4753 = vpop.permute.xlu0 %4752
      %4754 = vrot.lane.b32.xlu0 %v4316, 97
      %v4755 = vpop.permute.xlu0 %4754
      %v4756 = vsel %vm1739, %v4721, %v4723
      %v4757 = vsel %vm1739, %v4723, %v4725
      %v4758 = vsel %vm1739, %v4727, %v4729
      %v4759 = vsel %vm1739, %v4729, %v4731
      %v4760 = vsel %vm1739, %v4733, %v4735
      %v4761 = vsel %vm1739, %v4735, %v4737
      %v4762 = vsel %vm1739, %v4739, %v4741
      %v4763 = vsel %vm1739, %v4741, %v4743
      %v4764 = vsel %vm1739, %v4745, %v4747
      %v4765 = vsel %vm1739, %v4747, %v4749
      %v4766 = vsel %vm1739, %v4751, %v4753
      %v4767 = vsel %vm1739, %v4753, %v4755
      %v4781 = vsel %vm1355, %v4718, 0
      %v4784 = vsel %vm1355, %v4719, 0
      %4786 = vmatprep.subr.bf16.mxu0 0
      %4787 = vmatpush1.bf16.msra.mxu0 0
      %4788 = vmatprep.subr.bf16.mxu0 0
      %4789 = vmatpush1.bf16.msra.mxu0 0
      %4790 = vmatprep.subr.bf16.mxu0 %v4767
      %4791 = vmatpush1.bf16.msra.mxu0 %v4766
      %4792 = vmatprep.subr.bf16.mxu0 %v4765
      %4793 = vmatpush1.bf16.msra.mxu0 %v4764
      %4794 = vmatprep.subr.bf16.mxu0 %v4763
      %4795 = vmatpush1.bf16.msra.mxu0 %v4762
      %4796 = vmatprep.subr.bf16.mxu0 %v4761
      %4797 = vmatpush1.bf16.msra.mxu0 %v4760
      %4798 = vmatprep.subr.bf16.mxu0 %v4759
      %4799 = vmatpush1.bf16.msra.mxu0 %v4758
      %4800 = vmatprep.subr.bf16.mxu0 %v4757
      %4801 = vmatpush1.bf16.msra.mxu0 %v4756
      %4802 = vmatprep.subr.bf16.mxu0 0
      %4803 = vmatpush2.bf16.msra.mxu0 0
      %4804 = vmatprep.subr.bf16.mxu0 0
      %4805 = vmatpush2.bf16.msra.mxu0 0
      %4806 = vmatprep.subr.bf16.mxu0 0
      %4807 = vmatpush2.bf16.msra.mxu0 0
      %4808 = vmatprep.subr.bf16.mxu0 0
      %4809 = vmatpush2.bf16.msra.mxu0 0
      %4810 = vmatprep.subr.bf16.mxu0 0
      %4811 = vmatpush2.bf16.msra.mxu0 0
      %4812 = vmatprep.subr.bf16.mxu0 0
      %4813 = vmatpush2.bf16.msra.mxu0 0
      %4814 = vmatprep.subr.bf16.mxu0 0
      %4815 = vmatpush2.bf16.msra.mxu0 0
      %4816 = vmatprep.subr.bf16.mxu0 0
      %4817 = vmatpush2.bf16.msra.mxu0 0
      %4818 = vmatprep.mubr.bf16.mxu0 0
      %4819 = vmatmul.mubr.bf16.gmra.mxu0 %v4781
      %v4820 = vpop.f32.mrf.mxu0
      %v4821 = vadd.f32 0.0, %v4820
      %v4822 = vpop.f32.mrf.mxu0
      %v4823 = vadd.f32 0.0, %v4822
      %v4824 = vpop.f32.mrf.mxu0
      %v4825 = vadd.f32 0.0, %v4824
      %v4826 = vpop.f32.mrf.mxu0
      %v4827 = vadd.f32 0.0, %v4826
      %4828 = vmatprep.mubr.bf16.mxu0 0
      %4829 = vmatmul.mubr.bf16.gmra.mxu0 %v4784
      %v4830 = vpop.f32.mrf.mxu0
      %v4831 = vadd.f32 0.0, %v4830
      %v4832 = vpop.f32.mrf.mxu0
      %v4833 = vadd.f32 0.0, %v4832
      %v4834 = vpop.f32.mrf.mxu0
      %v4835 = vadd.f32 0.0, %v4834
      %v4836 = vpop.f32.mrf.mxu0
      %v4837 = vadd.f32 0.0, %v4836
      %4838 = vdwg.mxu0
      %v4839 = vadd.f32 %v4698, %v4821
      %v4840 = vadd.f32 %v4699, %v4823
      %v4841 = vadd.f32 %v4700, %v4825
      %v4842 = vadd.f32 %v4701, %v4827
      %v4843 = vadd.f32 %v4702, %v4831
      %v4844 = vadd.f32 %v4703, %v4833
      %v4845 = vadd.f32 %v4704, %v4835
      %v4846 = vadd.f32 %v4705, %v4837
      %v4847 = vld [vmem:[%s1831] sm:$0xf]
      %v4848 = vld [vmem:[%s1831 + $0x4] sm:$0xf]
      %v4849 = vld [vmem:[%s1831 + $0x8] sm:$0xf]
      %v4850 = vld [vmem:[%s1831 + $0xc] sm:$0xf]
      %v4855 = vunpack.c.l.b16 %v4847
      %v4856 = vunpack.c.l.b16 %v4848
      %v4857 = vunpack.c.l.b16 %v4849
      %v4858 = vunpack.c.l.b16 %v4850
      %v4859 = vpack.c.b16 %v4856, %v4855
      %v4860 = vpack.c.b16 %v4858, %v4857
      %4861 = vrot.lane.b32.xlu0 %v4299, 96
      %v4862 = vpop.permute.xlu0 %4861
      %4863 = vrot.lane.b32.xlu0 %v4300, 96
      %v4864 = vpop.permute.xlu0 %4863
      %4865 = vrot.lane.b32.xlu0 %v4301, 96
      %v4866 = vpop.permute.xlu0 %4865
      %4867 = vrot.lane.b32.xlu0 %v4302, 96
      %v4868 = vpop.permute.xlu0 %4867
      %4869 = vrot.lane.b32.xlu0 %v4303, 96
      %v4870 = vpop.permute.xlu0 %4869
      %4871 = vrot.lane.b32.xlu0 %v4304, 96
      %v4872 = vpop.permute.xlu0 %4871
      %4873 = vrot.lane.b32.xlu0 %v4305, 96
      %v4874 = vpop.permute.xlu0 %4873
      %4875 = vrot.lane.b32.xlu0 %v4306, 96
      %v4876 = vpop.permute.xlu0 %4875
      %4877 = vrot.lane.b32.xlu0 %v4307, 96
      %v4878 = vpop.permute.xlu0 %4877
      %4879 = vrot.lane.b32.xlu0 %v4308, 96
      %v4880 = vpop.permute.xlu0 %4879
      %4881 = vrot.lane.b32.xlu0 %v4309, 96
      %v4882 = vpop.permute.xlu0 %4881
      %4883 = vrot.lane.b32.xlu0 %v4310, 96
      %v4884 = vpop.permute.xlu0 %4883
      %4885 = vrot.lane.b32.xlu0 %v4311, 96
      %v4886 = vpop.permute.xlu0 %4885
      %4887 = vrot.lane.b32.xlu0 %v4312, 96
      %v4888 = vpop.permute.xlu0 %4887
      %4889 = vrot.lane.b32.xlu0 %v4313, 96
      %v4890 = vpop.permute.xlu0 %4889
      %4891 = vrot.lane.b32.xlu0 %v4314, 96
      %v4892 = vpop.permute.xlu0 %4891
      %4893 = vrot.lane.b32.xlu0 %v4315, 96
      %v4894 = vpop.permute.xlu0 %4893
      %4895 = vrot.lane.b32.xlu0 %v4316, 96
      %v4896 = vpop.permute.xlu0 %4895
      %v4897 = vsel %vm1882, %v4862, %v4864
      %v4898 = vsel %vm1882, %v4864, %v4866
      %v4899 = vsel %vm1882, %v4868, %v4870
      %v4900 = vsel %vm1882, %v4870, %v4872
      %v4901 = vsel %vm1882, %v4874, %v4876
      %v4902 = vsel %vm1882, %v4876, %v4878
      %v4903 = vsel %vm1882, %v4880, %v4882
      %v4904 = vsel %vm1882, %v4882, %v4884
      %v4905 = vsel %vm1882, %v4886, %v4888
      %v4906 = vsel %vm1882, %v4888, %v4890
      %v4907 = vsel %vm1882, %v4892, %v4894
      %v4908 = vsel %vm1882, %v4894, %v4896
      %v4922 = vsel %vm1355, %v4859, 0
      %v4925 = vsel %vm1355, %v4860, 0
      %4927 = vmatprep.subr.bf16.mxu0 0
      %4928 = vmatpush1.bf16.msra.mxu0 0
      %4929 = vmatprep.subr.bf16.mxu0 0
      %4930 = vmatpush1.bf16.msra.mxu0 0
      %4931 = vmatprep.subr.bf16.mxu0 %v4908
      %4932 = vmatpush1.bf16.msra.mxu0 %v4907
      %4933 = vmatprep.subr.bf16.mxu0 %v4906
      %4934 = vmatpush1.bf16.msra.mxu0 %v4905
      %4935 = vmatprep.subr.bf16.mxu0 %v4904
      %4936 = vmatpush1.bf16.msra.mxu0 %v4903
      %4937 = vmatprep.subr.bf16.mxu0 %v4902
      %4938 = vmatpush1.bf16.msra.mxu0 %v4901
      %4939 = vmatprep.subr.bf16.mxu0 %v4900
      %4940 = vmatpush1.bf16.msra.mxu0 %v4899
      %4941 = vmatprep.subr.bf16.mxu0 %v4898
      %4942 = vmatpush1.bf16.msra.mxu0 %v4897
      %4943 = vmatprep.subr.bf16.mxu0 0
      %4944 = vmatpush2.bf16.msra.mxu0 0
      %4945 = vmatprep.subr.bf16.mxu0 0
      %4946 = vmatpush2.bf16.msra.mxu0 0
      %4947 = vmatprep.subr.bf16.mxu0 0
      %4948 = vmatpush2.bf16.msra.mxu0 0
      %4949 = vmatprep.subr.bf16.mxu0 0
      %4950 = vmatpush2.bf16.msra.mxu0 0
      %4951 = vmatprep.subr.bf16.mxu0 0
      %4952 = vmatpush2.bf16.msra.mxu0 0
      %4953 = vmatprep.subr.bf16.mxu0 0
      %4954 = vmatpush2.bf16.msra.mxu0 0
      %4955 = vmatprep.subr.bf16.mxu0 0
      %4956 = vmatpush2.bf16.msra.mxu0 0
      %4957 = vmatprep.subr.bf16.mxu0 0
      %4958 = vmatpush2.bf16.msra.mxu0 0
      %4959 = vmatprep.mubr.bf16.mxu0 0
      %4960 = vmatmul.mubr.bf16.gmra.mxu0 %v4922
      %v4961 = vpop.f32.mrf.mxu0
      %v4962 = vadd.f32 0.0, %v4961
      %v4963 = vpop.f32.mrf.mxu0
      %v4964 = vadd.f32 0.0, %v4963
      %v4965 = vpop.f32.mrf.mxu0
      %v4966 = vadd.f32 0.0, %v4965
      %v4967 = vpop.f32.mrf.mxu0
      %v4968 = vadd.f32 0.0, %v4967
      %4969 = vmatprep.mubr.bf16.mxu0 0
      %4970 = vmatmul.mubr.bf16.gmra.mxu0 %v4925
      %v4971 = vpop.f32.mrf.mxu0
      %v4972 = vadd.f32 0.0, %v4971
      %v4973 = vpop.f32.mrf.mxu0
      %v4974 = vadd.f32 0.0, %v4973
      %v4975 = vpop.f32.mrf.mxu0
      %v4976 = vadd.f32 0.0, %v4975
      %v4977 = vpop.f32.mrf.mxu0
      %v4978 = vadd.f32 0.0, %v4977
      %4979 = vdwg.mxu0
      %v4980 = vadd.f32 %v4839, %v4962
      %v4981 = vadd.f32 %v4840, %v4964
      %v4982 = vadd.f32 %v4841, %v4966
      %v4983 = vadd.f32 %v4842, %v4968
      %v4984 = vadd.f32 %v4843, %v4972
      %v4985 = vadd.f32 %v4844, %v4974
      %v4986 = vadd.f32 %v4845, %v4976
      %v4987 = vadd.f32 %v4846, %v4978
      %v4988 = vld [vmem:[%s1974] sm:$0xf]
      %v4989 = vld [vmem:[%s1974 + $0x4] sm:$0xf]
      %v4990 = vld [vmem:[%s1974 + $0x8] sm:$0xf]
      %v4991 = vld [vmem:[%s1974 + $0xc] sm:$0xf]
      %v4996 = vunpack.c.l.b16 %v4988
      %v4997 = vunpack.c.l.b16 %v4989
      %v4998 = vunpack.c.l.b16 %v4990
      %v4999 = vunpack.c.l.b16 %v4991
      %v5000 = vpack.c.b16 %v4997, %v4996
      %v5001 = vpack.c.b16 %v4999, %v4998
      %5002 = vrot.lane.b32.xlu0 %v4299, 95
      %v5003 = vpop.permute.xlu0 %5002
      %5004 = vrot.lane.b32.xlu0 %v4300, 95
      %v5005 = vpop.permute.xlu0 %5004
      %5006 = vrot.lane.b32.xlu0 %v4301, 95
      %v5007 = vpop.permute.xlu0 %5006
      %5008 = vrot.lane.b32.xlu0 %v4302, 95
      %v5009 = vpop.permute.xlu0 %5008
      %5010 = vrot.lane.b32.xlu0 %v4303, 95
      %v5011 = vpop.permute.xlu0 %5010
      %5012 = vrot.lane.b32.xlu0 %v4304, 95
      %v5013 = vpop.permute.xlu0 %5012
      %5014 = vrot.lane.b32.xlu0 %v4305, 95
      %v5015 = vpop.permute.xlu0 %5014
      %5016 = vrot.lane.b32.xlu0 %v4306, 95
      %v5017 = vpop.permute.xlu0 %5016
      %5018 = vrot.lane.b32.xlu0 %v4307, 95
      %v5019 = vpop.permute.xlu0 %5018
      %5020 = vrot.lane.b32.xlu0 %v4308, 95
      %v5021 = vpop.permute.xlu0 %5020
      %5022 = vrot.lane.b32.xlu0 %v4309, 95
      %v5023 = vpop.permute.xlu0 %5022
      %5024 = vrot.lane.b32.xlu0 %v4310, 95
      %v5025 = vpop.permute.xlu0 %5024
      %5026 = vrot.lane.b32.xlu0 %v4311, 95
      %v5027 = vpop.permute.xlu0 %5026
      %5028 = vrot.lane.b32.xlu0 %v4312, 95
      %v5029 = vpop.permute.xlu0 %5028
      %5030 = vrot.lane.b32.xlu0 %v4313, 95
      %v5031 = vpop.permute.xlu0 %5030
      %5032 = vrot.lane.b32.xlu0 %v4314, 95
      %v5033 = vpop.permute.xlu0 %5032
      %5034 = vrot.lane.b32.xlu0 %v4315, 95
      %v5035 = vpop.permute.xlu0 %5034
      %5036 = vrot.lane.b32.xlu0 %v4316, 95
      %v5037 = vpop.permute.xlu0 %5036
      %v5038 = vsel %vm2025, %v5003, %v5005
      %v5039 = vsel %vm2025, %v5005, %v5007
      %v5040 = vsel %vm2025, %v5009, %v5011
      %v5041 = vsel %vm2025, %v5011, %v5013
      %v5042 = vsel %vm2025, %v5015, %v5017
      %v5043 = vsel %vm2025, %v5017, %v5019
      %v5044 = vsel %vm2025, %v5021, %v5023
      %v5045 = vsel %vm2025, %v5023, %v5025
      %v5046 = vsel %vm2025, %v5027, %v5029
      %v5047 = vsel %vm2025, %v5029, %v5031
      %v5048 = vsel %vm2025, %v5033, %v5035
      %v5049 = vsel %vm2025, %v5035, %v5037
      %v5063 = vsel %vm1355, %v5000, 0
      %v5066 = vsel %vm1355, %v5001, 0
      %5068 = vmatprep.subr.bf16.mxu0 0
      %5069 = vmatpush1.bf16.msra.mxu0 0
      %5070 = vmatprep.subr.bf16.mxu0 0
      %5071 = vmatpush1.bf16.msra.mxu0 0
      %5072 = vmatprep.subr.bf16.mxu0 %v5049
      %5073 = vmatpush1.bf16.msra.mxu0 %v5048
      %5074 = vmatprep.subr.bf16.mxu0 %v5047
      %5075 = vmatpush1.bf16.msra.mxu0 %v5046
      %5076 = vmatprep.subr.bf16.mxu0 %v5045
      %5077 = vmatpush1.bf16.msra.mxu0 %v5044
      %5078 = vmatprep.subr.bf16.mxu0 %v5043
      %5079 = vmatpush1.bf16.msra.mxu0 %v5042
      %5080 = vmatprep.subr.bf16.mxu0 %v5041
      %5081 = vmatpush1.bf16.msra.mxu0 %v5040
      %5082 = vmatprep.subr.bf16.mxu0 %v5039
      %5083 = vmatpush1.bf16.msra.mxu0 %v5038
      %5084 = vmatprep.subr.bf16.mxu0 0
      %5085 = vmatpush2.bf16.msra.mxu0 0
      %5086 = vmatprep.subr.bf16.mxu0 0
      %5087 = vmatpush2.bf16.msra.mxu0 0
      %5088 = vmatprep.subr.bf16.mxu0 0
      %5089 = vmatpush2.bf16.msra.mxu0 0
      %5090 = vmatprep.subr.bf16.mxu0 0
      %5091 = vmatpush2.bf16.msra.mxu0 0
      %5092 = vmatprep.subr.bf16.mxu0 0
      %5093 = vmatpush2.bf16.msra.mxu0 0
      %5094 = vmatprep.subr.bf16.mxu0 0
      %5095 = vmatpush2.bf16.msra.mxu0 0
      %5096 = vmatprep.subr.bf16.mxu0 0
      %5097 = vmatpush2.bf16.msra.mxu0 0
      %5098 = vmatprep.subr.bf16.mxu0 0
      %5099 = vmatpush2.bf16.msra.mxu0 0
      %5100 = vmatprep.mubr.bf16.mxu0 0
      %5101 = vmatmul.mubr.bf16.gmra.mxu0 %v5063
      %v5102 = vpop.f32.mrf.mxu0
      %v5103 = vadd.f32 0.0, %v5102
      %v5104 = vpop.f32.mrf.mxu0
      %v5105 = vadd.f32 0.0, %v5104
      %v5106 = vpop.f32.mrf.mxu0
      %v5107 = vadd.f32 0.0, %v5106
      %v5108 = vpop.f32.mrf.mxu0
      %v5109 = vadd.f32 0.0, %v5108
      %5110 = vmatprep.mubr.bf16.mxu0 0
      %5111 = vmatmul.mubr.bf16.gmra.mxu0 %v5066
      %v5112 = vpop.f32.mrf.mxu0
      %v5113 = vadd.f32 0.0, %v5112
      %v5114 = vpop.f32.mrf.mxu0
      %v5115 = vadd.f32 0.0, %v5114
      %v5116 = vpop.f32.mrf.mxu0
      %v5117 = vadd.f32 0.0, %v5116
      %v5118 = vpop.f32.mrf.mxu0
      %v5119 = vadd.f32 0.0, %v5118
      %5120 = vdwg.mxu0
      %v5121 = vadd.f32 %v4980, %v5103
      %v5122 = vadd.f32 %v4981, %v5105
      %v5123 = vadd.f32 %v4982, %v5107
      %v5124 = vadd.f32 %v4983, %v5109
      %v5125 = vadd.f32 %v4984, %v5113
      %v5126 = vadd.f32 %v4985, %v5115
      %v5127 = vadd.f32 %v4986, %v5117
      %v5128 = vadd.f32 %v4987, %v5119
      %v5129 = vld [vmem:[%s2117] sm:$0xf]
      %v5130 = vld [vmem:[%s2117 + $0x4] sm:$0xf]
      %v5131 = vld [vmem:[%s2117 + $0x8] sm:$0xf]
      %v5132 = vld [vmem:[%s2117 + $0xc] sm:$0xf]
      %v5137 = vunpack.c.l.b16 %v5129
      %v5138 = vunpack.c.l.b16 %v5130
      %v5139 = vunpack.c.l.b16 %v5131
      %v5140 = vunpack.c.l.b16 %v5132
      %v5141 = vpack.c.b16 %v5138, %v5137
      %v5142 = vpack.c.b16 %v5140, %v5139
      %5143 = vrot.lane.b32.xlu0 %v4299, 81
      %v5144 = vpop.permute.xlu0 %5143
      %5145 = vrot.lane.b32.xlu0 %v4300, 81
      %v5146 = vpop.permute.xlu0 %5145
      %5147 = vrot.lane.b32.xlu0 %v4301, 81
      %v5148 = vpop.permute.xlu0 %5147
      %5149 = vrot.lane.b32.xlu0 %v4302, 81
      %v5150 = vpop.permute.xlu0 %5149
      %5151 = vrot.lane.b32.xlu0 %v4303, 81
      %v5152 = vpop.permute.xlu0 %5151
      %5153 = vrot.lane.b32.xlu0 %v4304, 81
      %v5154 = vpop.permute.xlu0 %5153
      %5155 = vrot.lane.b32.xlu0 %v4305, 81
      %v5156 = vpop.permute.xlu0 %5155
      %5157 = vrot.lane.b32.xlu0 %v4306, 81
      %v5158 = vpop.permute.xlu0 %5157
      %5159 = vrot.lane.b32.xlu0 %v4307, 81
      %v5160 = vpop.permute.xlu0 %5159
      %5161 = vrot.lane.b32.xlu0 %v4308, 81
      %v5162 = vpop.permute.xlu0 %5161
      %5163 = vrot.lane.b32.xlu0 %v4309, 81
      %v5164 = vpop.permute.xlu0 %5163
      %5165 = vrot.lane.b32.xlu0 %v4310, 81
      %v5166 = vpop.permute.xlu0 %5165
      %5167 = vrot.lane.b32.xlu0 %v4311, 81
      %v5168 = vpop.permute.xlu0 %5167
      %5169 = vrot.lane.b32.xlu0 %v4312, 81
      %v5170 = vpop.permute.xlu0 %5169
      %5171 = vrot.lane.b32.xlu0 %v4313, 81
      %v5172 = vpop.permute.xlu0 %5171
      %5173 = vrot.lane.b32.xlu0 %v4314, 81
      %v5174 = vpop.permute.xlu0 %5173
      %5175 = vrot.lane.b32.xlu0 %v4315, 81
      %v5176 = vpop.permute.xlu0 %5175
      %5177 = vrot.lane.b32.xlu0 %v4316, 81
      %v5178 = vpop.permute.xlu0 %5177
      %v5179 = vsel %vm2168, %v5144, %v5146
      %v5180 = vsel %vm2168, %v5146, %v5148
      %v5181 = vsel %vm2168, %v5150, %v5152
      %v5182 = vsel %vm2168, %v5152, %v5154
      %v5183 = vsel %vm2168, %v5156, %v5158
      %v5184 = vsel %vm2168, %v5158, %v5160
      %v5185 = vsel %vm2168, %v5162, %v5164
      %v5186 = vsel %vm2168, %v5164, %v5166
      %v5187 = vsel %vm2168, %v5168, %v5170
      %v5188 = vsel %vm2168, %v5170, %v5172
      %v5189 = vsel %vm2168, %v5174, %v5176
      %v5190 = vsel %vm2168, %v5176, %v5178
      %v5204 = vsel %vm1355, %v5141, 0
      %v5207 = vsel %vm1355, %v5142, 0
      %5209 = vmatprep.subr.bf16.mxu0 0
      %5210 = vmatpush1.bf16.msra.mxu0 0
      %5211 = vmatprep.subr.bf16.mxu0 0
      %5212 = vmatpush1.bf16.msra.mxu0 0
      %5213 = vmatprep.subr.bf16.mxu0 %v5190
      %5214 = vmatpush1.bf16.msra.mxu0 %v5189
      %5215 = vmatprep.subr.bf16.mxu0 %v5188
      %5216 = vmatpush1.bf16.msra.mxu0 %v5187
      %5217 = vmatprep.subr.bf16.mxu0 %v5186
      %5218 = vmatpush1.bf16.msra.mxu0 %v5185
      %5219 = vmatprep.subr.bf16.mxu0 %v5184
      %5220 = vmatpush1.bf16.msra.mxu0 %v5183
      %5221 = vmatprep.subr.bf16.mxu0 %v5182
      %5222 = vmatpush1.bf16.msra.mxu0 %v5181
      %5223 = vmatprep.subr.bf16.mxu0 %v5180
      %5224 = vmatpush1.bf16.msra.mxu0 %v5179
      %5225 = vmatprep.subr.bf16.mxu0 0
      %5226 = vmatpush2.bf16.msra.mxu0 0
      %5227 = vmatprep.subr.bf16.mxu0 0
      %5228 = vmatpush2.bf16.msra.mxu0 0
      %5229 = vmatprep.subr.bf16.mxu0 0
      %5230 = vmatpush2.bf16.msra.mxu0 0
      %5231 = vmatprep.subr.bf16.mxu0 0
      %5232 = vmatpush2.bf16.msra.mxu0 0
      %5233 = vmatprep.subr.bf16.mxu0 0
      %5234 = vmatpush2.bf16.msra.mxu0 0
      %5235 = vmatprep.subr.bf16.mxu0 0
      %5236 = vmatpush2.bf16.msra.mxu0 0
      %5237 = vmatprep.subr.bf16.mxu0 0
      %5238 = vmatpush2.bf16.msra.mxu0 0
      %5239 = vmatprep.subr.bf16.mxu0 0
      %5240 = vmatpush2.bf16.msra.mxu0 0
      %5241 = vmatprep.mubr.bf16.mxu0 0
      %5242 = vmatmul.mubr.bf16.gmra.mxu0 %v5204
      %v5243 = vpop.f32.mrf.mxu0
      %v5244 = vadd.f32 0.0, %v5243
      %v5245 = vpop.f32.mrf.mxu0
      %v5246 = vadd.f32 0.0, %v5245
      %v5247 = vpop.f32.mrf.mxu0
      %v5248 = vadd.f32 0.0, %v5247
      %v5249 = vpop.f32.mrf.mxu0
      %v5250 = vadd.f32 0.0, %v5249
      %5251 = vmatprep.mubr.bf16.mxu0 0
      %5252 = vmatmul.mubr.bf16.gmra.mxu0 %v5207
      %v5253 = vpop.f32.mrf.mxu0
      %v5254 = vadd.f32 0.0, %v5253
      %v5255 = vpop.f32.mrf.mxu0
      %v5256 = vadd.f32 0.0, %v5255
      %v5257 = vpop.f32.mrf.mxu0
      %v5258 = vadd.f32 0.0, %v5257
      %v5259 = vpop.f32.mrf.mxu0
      %v5260 = vadd.f32 0.0, %v5259
      %5261 = vdwg.mxu0
      %v5262 = vadd.f32 %v5121, %v5244
      %v5263 = vadd.f32 %v5122, %v5246
      %v5264 = vadd.f32 %v5123, %v5248
      %v5265 = vadd.f32 %v5124, %v5250
      %v5266 = vadd.f32 %v5125, %v5254
      %v5267 = vadd.f32 %v5126, %v5256
      %v5268 = vadd.f32 %v5127, %v5258
      %v5269 = vadd.f32 %v5128, %v5260
      %v5270 = vld [vmem:[%s2260] sm:$0xf]
      %v5271 = vld [vmem:[%s2260 + $0x4] sm:$0xf]
      %v5272 = vld [vmem:[%s2260 + $0x8] sm:$0xf]
      %v5273 = vld [vmem:[%s2260 + $0xc] sm:$0xf]
      %v5278 = vunpack.c.l.b16 %v5270
      %v5279 = vunpack.c.l.b16 %v5271
      %v5280 = vunpack.c.l.b16 %v5272
      %v5281 = vunpack.c.l.b16 %v5273
      %v5282 = vpack.c.b16 %v5279, %v5278
      %v5283 = vpack.c.b16 %v5281, %v5280
      %5284 = vrot.lane.b32.xlu0 %v4299, 80
      %v5285 = vpop.permute.xlu0 %5284
      %5286 = vrot.lane.b32.xlu0 %v4300, 80
      %v5287 = vpop.permute.xlu0 %5286
      %5288 = vrot.lane.b32.xlu0 %v4301, 80
      %v5289 = vpop.permute.xlu0 %5288
      %5290 = vrot.lane.b32.xlu0 %v4302, 80
      %v5291 = vpop.permute.xlu0 %5290
      %5292 = vrot.lane.b32.xlu0 %v4303, 80
      %v5293 = vpop.permute.xlu0 %5292
      %5294 = vrot.lane.b32.xlu0 %v4304, 80
      %v5295 = vpop.permute.xlu0 %5294
      %5296 = vrot.lane.b32.xlu0 %v4305, 80
      %v5297 = vpop.permute.xlu0 %5296
      %5298 = vrot.lane.b32.xlu0 %v4306, 80
      %v5299 = vpop.permute.xlu0 %5298
      %5300 = vrot.lane.b32.xlu0 %v4307, 80
      %v5301 = vpop.permute.xlu0 %5300
      %5302 = vrot.lane.b32.xlu0 %v4308, 80
      %v5303 = vpop.permute.xlu0 %5302
      %5304 = vrot.lane.b32.xlu0 %v4309, 80
      %v5305 = vpop.permute.xlu0 %5304
      %5306 = vrot.lane.b32.xlu0 %v4310, 80
      %v5307 = vpop.permute.xlu0 %5306
      %5308 = vrot.lane.b32.xlu0 %v4311, 80
      %v5309 = vpop.permute.xlu0 %5308
      %5310 = vrot.lane.b32.xlu0 %v4312, 80
      %v5311 = vpop.permute.xlu0 %5310
      %5312 = vrot.lane.b32.xlu0 %v4313, 80
      %v5313 = vpop.permute.xlu0 %5312
      %5314 = vrot.lane.b32.xlu0 %v4314, 80
      %v5315 = vpop.permute.xlu0 %5314
      %5316 = vrot.lane.b32.xlu0 %v4315, 80
      %v5317 = vpop.permute.xlu0 %5316
      %5318 = vrot.lane.b32.xlu0 %v4316, 80
      %v5319 = vpop.permute.xlu0 %5318
      %v5320 = vsel %vm2311, %v5285, %v5287
      %v5321 = vsel %vm2311, %v5287, %v5289
      %v5322 = vsel %vm2311, %v5291, %v5293
      %v5323 = vsel %vm2311, %v5293, %v5295
      %v5324 = vsel %vm2311, %v5297, %v5299
      %v5325 = vsel %vm2311, %v5299, %v5301
      %v5326 = vsel %vm2311, %v5303, %v5305
      %v5327 = vsel %vm2311, %v5305, %v5307
      %v5328 = vsel %vm2311, %v5309, %v5311
      %v5329 = vsel %vm2311, %v5311, %v5313
      %v5330 = vsel %vm2311, %v5315, %v5317
      %v5331 = vsel %vm2311, %v5317, %v5319
      %v5345 = vsel %vm1355, %v5282, 0
      %v5348 = vsel %vm1355, %v5283, 0
      %5350 = vmatprep.subr.bf16.mxu0 0
      %5351 = vmatpush1.bf16.msra.mxu0 0
      %5352 = vmatprep.subr.bf16.mxu0 0
      %5353 = vmatpush1.bf16.msra.mxu0 0
      %5354 = vmatprep.subr.bf16.mxu0 %v5331
      %5355 = vmatpush1.bf16.msra.mxu0 %v5330
      %5356 = vmatprep.subr.bf16.mxu0 %v5329
      %5357 = vmatpush1.bf16.msra.mxu0 %v5328
      %5358 = vmatprep.subr.bf16.mxu0 %v5327
      %5359 = vmatpush1.bf16.msra.mxu0 %v5326
      %5360 = vmatprep.subr.bf16.mxu0 %v5325
      %5361 = vmatpush1.bf16.msra.mxu0 %v5324
      %5362 = vmatprep.subr.bf16.mxu0 %v5323
      %5363 = vmatpush1.bf16.msra.mxu0 %v5322
      %5364 = vmatprep.subr.bf16.mxu0 %v5321
      %5365 = vmatpush1.bf16.msra.mxu0 %v5320
      %5366 = vmatprep.subr.bf16.mxu0 0
      %5367 = vmatpush2.bf16.msra.mxu0 0
      %5368 = vmatprep.subr.bf16.mxu0 0
      %5369 = vmatpush2.bf16.msra.mxu0 0
      %5370 = vmatprep.subr.bf16.mxu0 0
      %5371 = vmatpush2.bf16.msra.mxu0 0
      %5372 = vmatprep.subr.bf16.mxu0 0
      %5373 = vmatpush2.bf16.msra.mxu0 0
      %5374 = vmatprep.subr.bf16.mxu0 0
      %5375 = vmatpush2.bf16.msra.mxu0 0
      %5376 = vmatprep.subr.bf16.mxu0 0
      %5377 = vmatpush2.bf16.msra.mxu0 0
      %5378 = vmatprep.subr.bf16.mxu0 0
      %5379 = vmatpush2.bf16.msra.mxu0 0
      %5380 = vmatprep.subr.bf16.mxu0 0
      %5381 = vmatpush2.bf16.msra.mxu0 0
      %5382 = vmatprep.mubr.bf16.mxu0 0
      %5383 = vmatmul.mubr.bf16.gmra.mxu0 %v5345
      %v5384 = vpop.f32.mrf.mxu0
      %v5385 = vadd.f32 0.0, %v5384
      %v5386 = vpop.f32.mrf.mxu0
      %v5387 = vadd.f32 0.0, %v5386
      %v5388 = vpop.f32.mrf.mxu0
      %v5389 = vadd.f32 0.0, %v5388
      %v5390 = vpop.f32.mrf.mxu0
      %v5391 = vadd.f32 0.0, %v5390
      %5392 = vmatprep.mubr.bf16.mxu0 0
      %5393 = vmatmul.mubr.bf16.gmra.mxu0 %v5348
      %v5394 = vpop.f32.mrf.mxu0
      %v5395 = vadd.f32 0.0, %v5394
      %v5396 = vpop.f32.mrf.mxu0
      %v5397 = vadd.f32 0.0, %v5396
      %v5398 = vpop.f32.mrf.mxu0
      %v5399 = vadd.f32 0.0, %v5398
      %v5400 = vpop.f32.mrf.mxu0
      %v5401 = vadd.f32 0.0, %v5400
      %5402 = vdwg.mxu0
      %v5403 = vadd.f32 %v5262, %v5385
      %v5404 = vadd.f32 %v5263, %v5387
      %v5405 = vadd.f32 %v5264, %v5389
      %v5406 = vadd.f32 %v5265, %v5391
      %v5407 = vadd.f32 %v5266, %v5395
      %v5408 = vadd.f32 %v5267, %v5397
      %v5409 = vadd.f32 %v5268, %v5399
      %v5410 = vadd.f32 %v5269, %v5401
      %v5411 = vld [vmem:[%s2403] sm:$0xf]
      %v5412 = vld [vmem:[%s2403 + $0x4] sm:$0xf]
      %v5413 = vld [vmem:[%s2403 + $0x8] sm:$0xf]
      %v5414 = vld [vmem:[%s2403 + $0xc] sm:$0xf]
      %v5419 = vunpack.c.l.b16 %v5411
      %v5420 = vunpack.c.l.b16 %v5412
      %v5421 = vunpack.c.l.b16 %v5413
      %v5422 = vunpack.c.l.b16 %v5414
      %v5423 = vpack.c.b16 %v5420, %v5419
      %v5424 = vpack.c.b16 %v5422, %v5421
      %5425 = vrot.lane.b32.xlu0 %v4299, 79
      %v5426 = vpop.permute.xlu0 %5425
      %5427 = vrot.lane.b32.xlu0 %v4300, 79
      %v5428 = vpop.permute.xlu0 %5427
      %5429 = vrot.lane.b32.xlu0 %v4301, 79
      %v5430 = vpop.permute.xlu0 %5429
      %5431 = vrot.lane.b32.xlu0 %v4302, 79
      %v5432 = vpop.permute.xlu0 %5431
      %5433 = vrot.lane.b32.xlu0 %v4303, 79
      %v5434 = vpop.permute.xlu0 %5433
      %5435 = vrot.lane.b32.xlu0 %v4304, 79
      %v5436 = vpop.permute.xlu0 %5435
      %5437 = vrot.lane.b32.xlu0 %v4305, 79
      %v5438 = vpop.permute.xlu0 %5437
      %5439 = vrot.lane.b32.xlu0 %v4306, 79
      %v5440 = vpop.permute.xlu0 %5439
      %5441 = vrot.lane.b32.xlu0 %v4307, 79
      %v5442 = vpop.permute.xlu0 %5441
      %5443 = vrot.lane.b32.xlu0 %v4308, 79
      %v5444 = vpop.permute.xlu0 %5443
      %5445 = vrot.lane.b32.xlu0 %v4309, 79
      %v5446 = vpop.permute.xlu0 %5445
      %5447 = vrot.lane.b32.xlu0 %v4310, 79
      %v5448 = vpop.permute.xlu0 %5447
      %5449 = vrot.lane.b32.xlu0 %v4311, 79
      %v5450 = vpop.permute.xlu0 %5449
      %5451 = vrot.lane.b32.xlu0 %v4312, 79
      %v5452 = vpop.permute.xlu0 %5451
      %5453 = vrot.lane.b32.xlu0 %v4313, 79
      %v5454 = vpop.permute.xlu0 %5453
      %5455 = vrot.lane.b32.xlu0 %v4314, 79
      %v5456 = vpop.permute.xlu0 %5455
      %5457 = vrot.lane.b32.xlu0 %v4315, 79
      %v5458 = vpop.permute.xlu0 %5457
      %5459 = vrot.lane.b32.xlu0 %v4316, 79
      %v5460 = vpop.permute.xlu0 %5459
      %v5461 = vsel %vm2454, %v5426, %v5428
      %v5462 = vsel %vm2454, %v5428, %v5430
      %v5463 = vsel %vm2454, %v5432, %v5434
      %v5464 = vsel %vm2454, %v5434, %v5436
      %v5465 = vsel %vm2454, %v5438, %v5440
      %v5466 = vsel %vm2454, %v5440, %v5442
      %v5467 = vsel %vm2454, %v5444, %v5446
      %v5468 = vsel %vm2454, %v5446, %v5448
      %v5469 = vsel %vm2454, %v5450, %v5452
      %v5470 = vsel %vm2454, %v5452, %v5454
      %v5471 = vsel %vm2454, %v5456, %v5458
      %v5472 = vsel %vm2454, %v5458, %v5460
      %v5486 = vsel %vm1355, %v5423, 0
      %v5489 = vsel %vm1355, %v5424, 0
      %5491 = vmatprep.subr.bf16.mxu0 0
      %5492 = vmatpush1.bf16.msra.mxu0 0
      %5493 = vmatprep.subr.bf16.mxu0 0
      %5494 = vmatpush1.bf16.msra.mxu0 0
      %5495 = vmatprep.subr.bf16.mxu0 %v5472
      %5496 = vmatpush1.bf16.msra.mxu0 %v5471
      %5497 = vmatprep.subr.bf16.mxu0 %v5470
      %5498 = vmatpush1.bf16.msra.mxu0 %v5469
      %5499 = vmatprep.subr.bf16.mxu0 %v5468
      %5500 = vmatpush1.bf16.msra.mxu0 %v5467
      %5501 = vmatprep.subr.bf16.mxu0 %v5466
      %5502 = vmatpush1.bf16.msra.mxu0 %v5465
      %5503 = vmatprep.subr.bf16.mxu0 %v5464
      %5504 = vmatpush1.bf16.msra.mxu0 %v5463
      %5505 = vmatprep.subr.bf16.mxu0 %v5462
      %5506 = vmatpush1.bf16.msra.mxu0 %v5461
      %5507 = vmatprep.subr.bf16.mxu0 0
      %5508 = vmatpush2.bf16.msra.mxu0 0
      %5509 = vmatprep.subr.bf16.mxu0 0
      %5510 = vmatpush2.bf16.msra.mxu0 0
      %5511 = vmatprep.subr.bf16.mxu0 0
      %5512 = vmatpush2.bf16.msra.mxu0 0
      %5513 = vmatprep.subr.bf16.mxu0 0
      %5514 = vmatpush2.bf16.msra.mxu0 0
      %5515 = vmatprep.subr.bf16.mxu0 0
      %5516 = vmatpush2.bf16.msra.mxu0 0
      %5517 = vmatprep.subr.bf16.mxu0 0
      %5518 = vmatpush2.bf16.msra.mxu0 0
      %5519 = vmatprep.subr.bf16.mxu0 0
      %5520 = vmatpush2.bf16.msra.mxu0 0
      %5521 = vmatprep.subr.bf16.mxu0 0
      %5522 = vmatpush2.bf16.msra.mxu0 0
      %5523 = vmatprep.mubr.bf16.mxu0 0
      %5524 = vmatmul.mubr.bf16.gmra.mxu0 %v5486
      %v5525 = vpop.f32.mrf.mxu0
      %v5526 = vadd.f32 0.0, %v5525
      %v5527 = vpop.f32.mrf.mxu0
      %v5528 = vadd.f32 0.0, %v5527
      %v5529 = vpop.f32.mrf.mxu0
      %v5530 = vadd.f32 0.0, %v5529
      %v5531 = vpop.f32.mrf.mxu0
      %v5532 = vadd.f32 0.0, %v5531
      %5533 = vmatprep.mubr.bf16.mxu0 0
      %5534 = vmatmul.mubr.bf16.gmra.mxu0 %v5489
      %v5535 = vpop.f32.mrf.mxu0
      %v5536 = vadd.f32 0.0, %v5535
      %v5537 = vpop.f32.mrf.mxu0
      %v5538 = vadd.f32 0.0, %v5537
      %v5539 = vpop.f32.mrf.mxu0
      %v5540 = vadd.f32 0.0, %v5539
      %v5541 = vpop.f32.mrf.mxu0
      %v5542 = vadd.f32 0.0, %v5541
      %5543 = vdwg.mxu0
      %v5544 = vadd.f32 %v5403, %v5526
      %v5545 = vadd.f32 %v5404, %v5528
      %v5546 = vadd.f32 %v5405, %v5530
      %v5547 = vadd.f32 %v5406, %v5532
      %v5548 = vadd.f32 %v5407, %v5536
      %v5549 = vadd.f32 %v5408, %v5538
      %v5550 = vadd.f32 %v5409, %v5540
      %v5551 = vadd.f32 %v5410, %v5542
      %v5552 = vadd.f32 %v5544, %v2549
      %v5553 = vadd.f32 %v5545, %v2549
      %v5554 = vadd.f32 %v5546, %v2554
      %v5555 = vadd.f32 %v5547, %v2554
      %v5556 = vadd.f32 %v5548, %v2559
      %v5557 = vadd.f32 %v5549, %v2559
      %v5558 = vadd.f32 %v5550, %v2564
      %v5559 = vadd.f32 %v5551, %v2564
      %v5560 = vmax.f32 %v5552, 0.0
      %v5561 = vmax.f32 %v5553, 0.0
      %v5562 = vmax.f32 %v5554, 0.0
      %v5563 = vmax.f32 %v5555, 0.0
      %v5564 = vmax.f32 %v5556, 0.0
      %v5565 = vmax.f32 %v5557, 0.0
      %v5566 = vmax.f32 %v5558, 0.0
      %v5567 = vmax.f32 %v5559, 0.0
      %v5568 = vld [vmem:[%s300 + $0x18] sm:$0xff]
      %v5569 = vld [vmem:[%s300 + $0x20] sm:$0xf]
      %v5570 = vld [vmem:[%s300 + $0x48] sm:$0xff]
      %v5571 = vld [vmem:[%s300 + $0x50] sm:$0xf]
      %v5576 = vunpack.c.l.b16 %v5568
      %v5577 = vunpack.c.h.b16 %v5568
      %v5578 = vunpack.c.l.b16 %v5569
      %v5579 = vunpack.c.l.b16 %v5570
      %v5580 = vunpack.c.h.b16 %v5570
      %v5581 = vunpack.c.l.b16 %v5571
      %v5582 = vpack.c.b16 %v5579, %v5576
      %v5583 = vpack.c.b16 %v5580, %v5577
      %v5584 = vpack.c.b16 %v5581, %v5578
      %5585 = vrot.lane.b32.xlu0 %v5582, 96
      %v5586 = vpop.permute.xlu0 %5585
      %5587 = vrot.lane.b32.xlu0 %v5583, 96
      %v5588 = vpop.permute.xlu0 %5587
      %5589 = vrot.lane.b32.xlu0 %v5584, 96
      %v5590 = vpop.permute.xlu0 %5589
      %v5591 = vsel %vm1882, %v5586, %v5588
      %v5592 = vsel %vm1882, %v5588, %v5590
      %5595 = vmatprep.subr.bf16.mxu0 0
      %5596 = vmatpush1.bf16.msra.mxu0 0
      %5597 = vmatprep.subr.bf16.mxu0 0
      %5598 = vmatpush1.bf16.msra.mxu0 0
      %5599 = vmatprep.subr.bf16.mxu0 0
      %5600 = vmatpush1.bf16.msra.mxu0 0
      %5601 = vmatprep.subr.bf16.mxu0 0
      %5602 = vmatpush1.bf16.msra.mxu0 0
      %5603 = vmatprep.subr.bf16.mxu0 0
      %5604 = vmatpush1.bf16.msra.mxu0 0
      %5605 = vmatprep.subr.bf16.mxu0 0
      %5606 = vmatpush1.bf16.msra.mxu0 0
      %5607 = vmatprep.subr.bf16.mxu0 0
      %5608 = vmatpush1.bf16.msra.mxu0 0
      %5609 = vmatprep.subr.bf16.mxu0 %v5592
      %5610 = vmatpush1.bf16.msra.mxu0 %v5591
      %5611 = vmatprep.subr.bf16.mxu0 0
      %5612 = vmatpush2.bf16.msra.mxu0 0
      %5613 = vmatprep.subr.bf16.mxu0 0
      %5614 = vmatpush2.bf16.msra.mxu0 0
      %5615 = vmatprep.subr.bf16.mxu0 0
      %5616 = vmatpush2.bf16.msra.mxu0 0
      %5617 = vmatprep.subr.bf16.mxu0 0
      %5618 = vmatpush2.bf16.msra.mxu0 0
      %5619 = vmatprep.subr.bf16.mxu0 0
      %5620 = vmatpush2.bf16.msra.mxu0 0
      %5621 = vmatprep.subr.bf16.mxu0 0
      %5622 = vmatpush2.bf16.msra.mxu0 0
      %5623 = vmatprep.subr.bf16.mxu0 0
      %5624 = vmatpush2.bf16.msra.mxu0 0
      %5625 = vmatprep.subr.bf16.mxu0 0
      %5626 = vmatpush2.bf16.msra.mxu0 0
      %5627 = vmatprep.mubr.bf16.mxu0 0
      %5628 = vmatmul.mubr.bf16.gmra.mxu0 %v2640
      %v5629 = vpop.f32.mrf.mxu0
      %v5630 = vadd.f32 %v2589, %v5629
      %v5631 = vpop.f32.mrf.mxu0
      %v5632 = vadd.f32 %v2589, %v5631
      %v5633 = vpop.f32.mrf.mxu0
      %v5634 = vadd.f32 %v2594, %v5633
      %v5635 = vpop.f32.mrf.mxu0
      %v5636 = vadd.f32 %v2594, %v5635
      %5637 = vmatprep.mubr.bf16.mxu0 0
      %5638 = vmatmul.mubr.bf16.gmra.mxu0 %v2643
      %v5639 = vpop.f32.mrf.mxu0
      %v5640 = vadd.f32 %v2599, %v5639
      %v5641 = vpop.f32.mrf.mxu0
      %v5642 = vadd.f32 %v2599, %v5641
      %v5643 = vpop.f32.mrf.mxu0
      %v5644 = vadd.f32 %v2604, %v5643
      %v5645 = vpop.f32.mrf.mxu0
      %v5646 = vadd.f32 %v2604, %v5645
      %5647 = vdwg.mxu0
      %v5648 = vadd.f32 %v5560, %v5630
      %v5649 = vadd.f32 %v5561, %v5632
      %v5650 = vadd.f32 %v5562, %v5634
      %v5651 = vadd.f32 %v5563, %v5636
      %v5652 = vadd.f32 %v5564, %v5640
      %v5653 = vadd.f32 %v5565, %v5642
      %v5654 = vadd.f32 %v5566, %v5644
      %v5655 = vadd.f32 %v5567, %v5646
      %v5656 = vmax.f32 %v5648, 0.0
      %v5657 = vmax.f32 %v5649, 0.0
      %v5658 = vmax.f32 %v5650, 0.0
      %v5659 = vmax.f32 %v5651, 0.0
      %v5660 = vmax.f32 %v5652, 0.0
      %v5661 = vmax.f32 %v5653, 0.0
      %v5662 = vmax.f32 %v5654, 0.0
      %v5663 = vmax.f32 %v5655, 0.0
      %5664 = vst [vmem:[%s305 + $0x20] sm:$0xff] %v5656
      %5665 = vst [vmem:[%s305 + $0x28] sm:$0xff] %v5657
      %5666 = vst [vmem:[%s305 + $0x60] sm:$0xff] %v5658
      %5667 = vst [vmem:[%s305 + $0x68] sm:$0xff] %v5659
      %5668 = vst [vmem:[%s305 + $0xa0] sm:$0xff] %v5660
      %5669 = vst [vmem:[%s305 + $0xa8] sm:$0xff] %v5661
      %5670 = vst [vmem:[%s305 + $0xe0] sm:$0xff] %v5662
      %5671 = vst [vmem:[%s305 + $0xe8] sm:$0xff] %v5663
      %v5672 = vld [vmem:[#allocation2 + $0x90] sm:$0xff]
      %v5673 = vld [vmem:[#allocation2 + $0x98] sm:$0xf]
      %v5674 = vld [vmem:[#allocation2 + $0x9c] sm:$0xff]
      %v5675 = vld [vmem:[#allocation2 + $0xa4] sm:$0xf]
      %v5676 = vld [vmem:[#allocation2 + $0xa8] sm:$0xff]
      %v5677 = vld [vmem:[#allocation2 + $0xb0] sm:$0xf]
      %v5678 = vld [vmem:[#allocation2 + $0xb4] sm:$0xff]
      %v5679 = vld [vmem:[#allocation2 + $0xbc] sm:$0xf]
      %v5680 = vld [vmem:[#allocation2 + $0xc0] sm:$0xff]
      %v5681 = vld [vmem:[#allocation2 + $0xc8] sm:$0xf]
      %v5682 = vld [vmem:[#allocation2 + $0xcc] sm:$0xff]
      %v5683 = vld [vmem:[#allocation2 + $0xd4] sm:$0xf]
      %v5684 = vld [vmem:[#allocation2 + $0xd8] sm:$0xff]
      %v5685 = vld [vmem:[#allocation2 + $0xe0] sm:$0xf]
      %v5686 = vld [vmem:[#allocation2 + $0xe4] sm:$0xff]
      %v5687 = vld [vmem:[#allocation2 + $0xec] sm:$0xf]
      %v5688 = vld [vmem:[#allocation2 + $0xf0] sm:$0xff]
      %v5689 = vld [vmem:[#allocation2 + $0xf8] sm:$0xf]
      %v5690 = vld [vmem:[#allocation2 + $0xfc] sm:$0xff]
      %v5691 = vld [vmem:[#allocation2 + $0x104] sm:$0xf]
      %v5692 = vld [vmem:[#allocation2 + $0x108] sm:$0xff]
      %v5693 = vld [vmem:[#allocation2 + $0x110] sm:$0xf]
      %v5694 = vld [vmem:[#allocation2 + $0x114] sm:$0xff]
      %v5695 = vld [vmem:[#allocation2 + $0x11c] sm:$0xf]
      %v5696 = vld [vmem:[%s4] sm:$0xf]
      %v5697 = vld [vmem:[%s4 + $0x4] sm:$0xf]
      %v5698 = vld [vmem:[%s4 + $0x8] sm:$0xf]
      %v5699 = vld [vmem:[%s4 + $0xc] sm:$0xf]
      %v5700 = vld [vmem:[%s1201] sm:$0xf]
      %v5701 = vld [vmem:[%s1201 + $0x4] sm:$0xf]
      %v5702 = vld [vmem:[%s1201 + $0x8] sm:$0xf]
      %v5703 = vld [vmem:[%s1201 + $0xc] sm:$0xf]
      %v5708 = vunpack.c.l.b16 %v5700
      %v5709 = vunpack.c.l.b16 %v5701
      %v5710 = vunpack.c.l.b16 %v5702
      %v5711 = vunpack.c.l.b16 %v5703
      %v5712 = vpack.c.b16 %v5709, %v5708
      %v5713 = vpack.c.b16 %v5711, %v5710
      %v5738 = vunpack.c.l.b16 %v5672
      %v5739 = vunpack.c.h.b16 %v5672
      %v5740 = vunpack.c.l.b16 %v5673
      %v5741 = vunpack.c.l.b16 %v5674
      %v5742 = vunpack.c.h.b16 %v5674
      %v5743 = vunpack.c.l.b16 %v5675
      %v5744 = vunpack.c.l.b16 %v5676
      %v5745 = vunpack.c.h.b16 %v5676
      %v5746 = vunpack.c.l.b16 %v5677
      %v5747 = vunpack.c.l.b16 %v5678
      %v5748 = vunpack.c.h.b16 %v5678
      %v5749 = vunpack.c.l.b16 %v5679
      %v5750 = vunpack.c.l.b16 %v5680
      %v5751 = vunpack.c.h.b16 %v5680
      %v5752 = vunpack.c.l.b16 %v5681
      %v5753 = vunpack.c.l.b16 %v5682
      %v5754 = vunpack.c.h.b16 %v5682
      %v5755 = vunpack.c.l.b16 %v5683
      %v5756 = vunpack.c.l.b16 %v5684
      %v5757 = vunpack.c.h.b16 %v5684
      %v5758 = vunpack.c.l.b16 %v5685
      %v5759 = vunpack.c.l.b16 %v5686
      %v5760 = vunpack.c.h.b16 %v5686
      %v5761 = vunpack.c.l.b16 %v5687
      %v5762 = vunpack.c.l.b16 %v5688
      %v5763 = vunpack.c.h.b16 %v5688
      %v5764 = vunpack.c.l.b16 %v5689
      %v5765 = vunpack.c.l.b16 %v5690
      %v5766 = vunpack.c.h.b16 %v5690
      %v5767 = vunpack.c.l.b16 %v5691
      %v5768 = vunpack.c.l.b16 %v5692
      %v5769 = vunpack.c.h.b16 %v5692
      %v5770 = vunpack.c.l.b16 %v5693
      %v5771 = vunpack.c.l.b16 %v5694
      %v5772 = vunpack.c.h.b16 %v5694
      %v5773 = vunpack.c.l.b16 %v5695
      %v5774 = vpack.c.b16 %v5741, %v5738
      %v5775 = vpack.c.b16 %v5742, %v5739
      %v5776 = vpack.c.b16 %v5743, %v5740
      %v5777 = vpack.c.b16 %v5747, %v5744
      %v5778 = vpack.c.b16 %v5748, %v5745
      %v5779 = vpack.c.b16 %v5749, %v5746
      %v5780 = vpack.c.b16 %v5753, %v5750
      %v5781 = vpack.c.b16 %v5754, %v5751
      %v5782 = vpack.c.b16 %v5755, %v5752
      %v5783 = vpack.c.b16 %v5759, %v5756
      %v5784 = vpack.c.b16 %v5760, %v5757
      %v5785 = vpack.c.b16 %v5761, %v5758
      %v5786 = vpack.c.b16 %v5765, %v5762
      %v5787 = vpack.c.b16 %v5766, %v5763
      %v5788 = vpack.c.b16 %v5767, %v5764
      %v5789 = vpack.c.b16 %v5771, %v5768
      %v5790 = vpack.c.b16 %v5772, %v5769
      %v5791 = vpack.c.b16 %v5773, %v5770
      %5792 = vrot.lane.b32.xlu0 %v5774, 112
      %v5793 = vpop.permute.xlu0 %5792
      %5794 = vrot.lane.b32.xlu0 %v5775, 112
      %v5795 = vpop.permute.xlu0 %5794
      %5796 = vrot.lane.b32.xlu0 %v5776, 112
      %v5797 = vpop.permute.xlu0 %5796
      %5798 = vrot.lane.b32.xlu0 %v5777, 112
      %v5799 = vpop.permute.xlu0 %5798
      %5800 = vrot.lane.b32.xlu0 %v5778, 112
      %v5801 = vpop.permute.xlu0 %5800
      %5802 = vrot.lane.b32.xlu0 %v5779, 112
      %v5803 = vpop.permute.xlu0 %5802
      %5804 = vrot.lane.b32.xlu0 %v5780, 112
      %v5805 = vpop.permute.xlu0 %5804
      %5806 = vrot.lane.b32.xlu0 %v5781, 112
      %v5807 = vpop.permute.xlu0 %5806
      %5808 = vrot.lane.b32.xlu0 %v5782, 112
      %v5809 = vpop.permute.xlu0 %5808
      %5810 = vrot.lane.b32.xlu0 %v5783, 112
      %v5811 = vpop.permute.xlu0 %5810
      %5812 = vrot.lane.b32.xlu0 %v5784, 112
      %v5813 = vpop.permute.xlu0 %5812
      %5814 = vrot.lane.b32.xlu0 %v5785, 112
      %v5815 = vpop.permute.xlu0 %5814
      %5816 = vrot.lane.b32.xlu0 %v5786, 112
      %v5817 = vpop.permute.xlu0 %5816
      %5818 = vrot.lane.b32.xlu0 %v5787, 112
      %v5819 = vpop.permute.xlu0 %5818
      %5820 = vrot.lane.b32.xlu0 %v5788, 112
      %v5821 = vpop.permute.xlu0 %5820
      %5822 = vrot.lane.b32.xlu0 %v5789, 112
      %v5823 = vpop.permute.xlu0 %5822
      %5824 = vrot.lane.b32.xlu0 %v5790, 112
      %v5825 = vpop.permute.xlu0 %5824
      %5826 = vrot.lane.b32.xlu0 %v5791, 112
      %v5827 = vpop.permute.xlu0 %5826
      %v5828 = vsel %vm1330, %v5793, %v5795
      %v5829 = vsel %vm1330, %v5795, %v5797
      %v5830 = vsel %vm1330, %v5799, %v5801
      %v5831 = vsel %vm1330, %v5801, %v5803
      %v5832 = vsel %vm1330, %v5805, %v5807
      %v5833 = vsel %vm1330, %v5807, %v5809
      %v5834 = vsel %vm1330, %v5811, %v5813
      %v5835 = vsel %vm1330, %v5813, %v5815
      %v5836 = vsel %vm1330, %v5817, %v5819
      %v5837 = vsel %vm1330, %v5819, %v5821
      %v5838 = vsel %vm1330, %v5823, %v5825
      %v5839 = vsel %vm1330, %v5825, %v5827
      %v5853 = vsel %vm1355, %v5712, 0
      %v5856 = vsel %vm1355, %v5713, 0
      %5858 = vmatprep.subr.bf16.mxu0 0
      %5859 = vmatpush1.bf16.msra.mxu0 0
      %5860 = vmatprep.subr.bf16.mxu0 0
      %5861 = vmatpush1.bf16.msra.mxu0 0
      %5862 = vmatprep.subr.bf16.mxu0 %v5839
      %5863 = vmatpush1.bf16.msra.mxu0 %v5838
      %5864 = vmatprep.subr.bf16.mxu0 %v5837
      %5865 = vmatpush1.bf16.msra.mxu0 %v5836
      %5866 = vmatprep.subr.bf16.mxu0 %v5835
      %5867 = vmatpush1.bf16.msra.mxu0 %v5834
      %5868 = vmatprep.subr.bf16.mxu0 %v5833
      %5869 = vmatpush1.bf16.msra.mxu0 %v5832
      %5870 = vmatprep.subr.bf16.mxu0 %v5831
      %5871 = vmatpush1.bf16.msra.mxu0 %v5830
      %5872 = vmatprep.subr.bf16.mxu0 %v5829
      %5873 = vmatpush1.bf16.msra.mxu0 %v5828
      %5874 = vmatprep.subr.bf16.mxu0 0
      %5875 = vmatpush2.bf16.msra.mxu0 0
      %5876 = vmatprep.subr.bf16.mxu0 0
      %5877 = vmatpush2.bf16.msra.mxu0 0
      %5878 = vmatprep.subr.bf16.mxu0 0
      %5879 = vmatpush2.bf16.msra.mxu0 0
      %5880 = vmatprep.subr.bf16.mxu0 0
      %5881 = vmatpush2.bf16.msra.mxu0 0
      %5882 = vmatprep.subr.bf16.mxu0 0
      %5883 = vmatpush2.bf16.msra.mxu0 0
      %5884 = vmatprep.subr.bf16.mxu0 0
      %5885 = vmatpush2.bf16.msra.mxu0 0
      %5886 = vmatprep.subr.bf16.mxu0 0
      %5887 = vmatpush2.bf16.msra.mxu0 0
      %5888 = vmatprep.subr.bf16.mxu0 0
      %5889 = vmatpush2.bf16.msra.mxu0 0
      %5890 = vmatprep.mubr.bf16.mxu0 0
      %5891 = vmatmul.mubr.bf16.gmra.mxu0 %v5853
      %v5892 = vpop.f32.mrf.mxu0
      %v5893 = vadd.f32 0.0, %v5892
      %v5894 = vpop.f32.mrf.mxu0
      %v5895 = vadd.f32 0.0, %v5894
      %v5896 = vpop.f32.mrf.mxu0
      %v5897 = vadd.f32 0.0, %v5896
      %v5898 = vpop.f32.mrf.mxu0
      %v5899 = vadd.f32 0.0, %v5898
      %5900 = vmatprep.mubr.bf16.mxu0 0
      %5901 = vmatmul.mubr.bf16.gmra.mxu0 %v5856
      %v5902 = vpop.f32.mrf.mxu0
      %v5903 = vadd.f32 0.0, %v5902
      %v5904 = vpop.f32.mrf.mxu0
      %v5905 = vadd.f32 0.0, %v5904
      %v5906 = vpop.f32.mrf.mxu0
      %v5907 = vadd.f32 0.0, %v5906
      %v5908 = vpop.f32.mrf.mxu0
      %v5909 = vadd.f32 0.0, %v5908
      %5910 = vdwg.mxu0
      %v5915 = vunpack.c.l.b16 %v5696
      %v5916 = vunpack.c.l.b16 %v5697
      %v5917 = vunpack.c.l.b16 %v5698
      %v5918 = vunpack.c.l.b16 %v5699
      %v5919 = vpack.c.b16 %v5916, %v5915
      %v5920 = vpack.c.b16 %v5918, %v5917
      %5921 = vrot.lane.b32.xlu0 %v5774, 113
      %v5922 = vpop.permute.xlu0 %5921
      %5923 = vrot.lane.b32.xlu0 %v5775, 113
      %v5924 = vpop.permute.xlu0 %5923
      %5925 = vrot.lane.b32.xlu0 %v5776, 113
      %v5926 = vpop.permute.xlu0 %5925
      %5927 = vrot.lane.b32.xlu0 %v5777, 113
      %v5928 = vpop.permute.xlu0 %5927
      %5929 = vrot.lane.b32.xlu0 %v5778, 113
      %v5930 = vpop.permute.xlu0 %5929
      %5931 = vrot.lane.b32.xlu0 %v5779, 113
      %v5932 = vpop.permute.xlu0 %5931
      %5933 = vrot.lane.b32.xlu0 %v5780, 113
      %v5934 = vpop.permute.xlu0 %5933
      %5935 = vrot.lane.b32.xlu0 %v5781, 113
      %v5936 = vpop.permute.xlu0 %5935
      %5937 = vrot.lane.b32.xlu0 %v5782, 113
      %v5938 = vpop.permute.xlu0 %5937
      %5939 = vrot.lane.b32.xlu0 %v5783, 113
      %v5940 = vpop.permute.xlu0 %5939
      %5941 = vrot.lane.b32.xlu0 %v5784, 113
      %v5942 = vpop.permute.xlu0 %5941
      %5943 = vrot.lane.b32.xlu0 %v5785, 113
      %v5944 = vpop.permute.xlu0 %5943
      %5945 = vrot.lane.b32.xlu0 %v5786, 113
      %v5946 = vpop.permute.xlu0 %5945
      %5947 = vrot.lane.b32.xlu0 %v5787, 113
      %v5948 = vpop.permute.xlu0 %5947
      %5949 = vrot.lane.b32.xlu0 %v5788, 113
      %v5950 = vpop.permute.xlu0 %5949
      %5951 = vrot.lane.b32.xlu0 %v5789, 113
      %v5952 = vpop.permute.xlu0 %5951
      %5953 = vrot.lane.b32.xlu0 %v5790, 113
      %v5954 = vpop.permute.xlu0 %5953
      %5955 = vrot.lane.b32.xlu0 %v5791, 113
      %v5956 = vpop.permute.xlu0 %5955
      %v5957 = vsel %vm1461, %v5922, %v5924
      %v5958 = vsel %vm1461, %v5924, %v5926
      %v5959 = vsel %vm1461, %v5928, %v5930
      %v5960 = vsel %vm1461, %v5930, %v5932
      %v5961 = vsel %vm1461, %v5934, %v5936
      %v5962 = vsel %vm1461, %v5936, %v5938
      %v5963 = vsel %vm1461, %v5940, %v5942
      %v5964 = vsel %vm1461, %v5942, %v5944
      %v5965 = vsel %vm1461, %v5946, %v5948
      %v5966 = vsel %vm1461, %v5948, %v5950
      %v5967 = vsel %vm1461, %v5952, %v5954
      %v5968 = vsel %vm1461, %v5954, %v5956
      %v5982 = vsel %vm1355, %v5919, 0
      %v5985 = vsel %vm1355, %v5920, 0
      %5987 = vmatprep.subr.bf16.mxu0 0
      %5988 = vmatpush1.bf16.msra.mxu0 0
      %5989 = vmatprep.subr.bf16.mxu0 0
      %5990 = vmatpush1.bf16.msra.mxu0 0
      %5991 = vmatprep.subr.bf16.mxu0 %v5968
      %5992 = vmatpush1.bf16.msra.mxu0 %v5967
      %5993 = vmatprep.subr.bf16.mxu0 %v5966
      %5994 = vmatpush1.bf16.msra.mxu0 %v5965
      %5995 = vmatprep.subr.bf16.mxu0 %v5964
      %5996 = vmatpush1.bf16.msra.mxu0 %v5963
      %5997 = vmatprep.subr.bf16.mxu0 %v5962
      %5998 = vmatpush1.bf16.msra.mxu0 %v5961
      %5999 = vmatprep.subr.bf16.mxu0 %v5960
      %6000 = vmatpush1.bf16.msra.mxu0 %v5959
      %6001 = vmatprep.subr.bf16.mxu0 %v5958
      %6002 = vmatpush1.bf16.msra.mxu0 %v5957
      %6003 = vmatprep.subr.bf16.mxu0 0
      %6004 = vmatpush2.bf16.msra.mxu0 0
      %6005 = vmatprep.subr.bf16.mxu0 0
      %6006 = vmatpush2.bf16.msra.mxu0 0
      %6007 = vmatprep.subr.bf16.mxu0 0
      %6008 = vmatpush2.bf16.msra.mxu0 0
      %6009 = vmatprep.subr.bf16.mxu0 0
      %6010 = vmatpush2.bf16.msra.mxu0 0
      %6011 = vmatprep.subr.bf16.mxu0 0
      %6012 = vmatpush2.bf16.msra.mxu0 0
      %6013 = vmatprep.subr.bf16.mxu0 0
      %6014 = vmatpush2.bf16.msra.mxu0 0
      %6015 = vmatprep.subr.bf16.mxu0 0
      %6016 = vmatpush2.bf16.msra.mxu0 0
      %6017 = vmatprep.subr.bf16.mxu0 0
      %6018 = vmatpush2.bf16.msra.mxu0 0
      %6019 = vmatprep.mubr.bf16.mxu0 0
      %6020 = vmatmul.mubr.bf16.gmra.mxu0 %v5982
      %v6021 = vpop.f32.mrf.mxu0
      %v6022 = vadd.f32 %v5893, %v6021
      %v6023 = vpop.f32.mrf.mxu0
      %v6024 = vadd.f32 %v5895, %v6023
      %v6025 = vpop.f32.mrf.mxu0
      %v6026 = vadd.f32 %v5897, %v6025
      %v6027 = vpop.f32.mrf.mxu0
      %v6028 = vadd.f32 %v5899, %v6027
      %6029 = vmatprep.mubr.bf16.mxu0 0
      %6030 = vmatmul.mubr.bf16.gmra.mxu0 %v5985
      %v6031 = vpop.f32.mrf.mxu0
      %v6032 = vadd.f32 %v5903, %v6031
      %v6033 = vpop.f32.mrf.mxu0
      %v6034 = vadd.f32 %v5905, %v6033
      %v6035 = vpop.f32.mrf.mxu0
      %v6036 = vadd.f32 %v5907, %v6035
      %v6037 = vpop.f32.mrf.mxu0
      %v6038 = vadd.f32 %v5909, %v6037
      %6039 = vdwg.mxu0
      %v6040 = vld [vmem:[%s1545] sm:$0xf]
      %v6041 = vld [vmem:[%s1545 + $0x4] sm:$0xf]
      %v6042 = vld [vmem:[%s1545 + $0x8] sm:$0xf]
      %v6043 = vld [vmem:[%s1545 + $0xc] sm:$0xf]
      %v6048 = vunpack.c.l.b16 %v6040
      %v6049 = vunpack.c.l.b16 %v6041
      %v6050 = vunpack.c.l.b16 %v6042
      %v6051 = vunpack.c.l.b16 %v6043
      %v6052 = vpack.c.b16 %v6049, %v6048
      %v6053 = vpack.c.b16 %v6051, %v6050
      %6054 = vrot.lane.b32.xlu0 %v5774, 111
      %v6055 = vpop.permute.xlu0 %6054
      %6056 = vrot.lane.b32.xlu0 %v5775, 111
      %v6057 = vpop.permute.xlu0 %6056
      %6058 = vrot.lane.b32.xlu0 %v5776, 111
      %v6059 = vpop.permute.xlu0 %6058
      %6060 = vrot.lane.b32.xlu0 %v5777, 111
      %v6061 = vpop.permute.xlu0 %6060
      %6062 = vrot.lane.b32.xlu0 %v5778, 111
      %v6063 = vpop.permute.xlu0 %6062
      %6064 = vrot.lane.b32.xlu0 %v5779, 111
      %v6065 = vpop.permute.xlu0 %6064
      %6066 = vrot.lane.b32.xlu0 %v5780, 111
      %v6067 = vpop.permute.xlu0 %6066
      %6068 = vrot.lane.b32.xlu0 %v5781, 111
      %v6069 = vpop.permute.xlu0 %6068
      %6070 = vrot.lane.b32.xlu0 %v5782, 111
      %v6071 = vpop.permute.xlu0 %6070
      %6072 = vrot.lane.b32.xlu0 %v5783, 111
      %v6073 = vpop.permute.xlu0 %6072
      %6074 = vrot.lane.b32.xlu0 %v5784, 111
      %v6075 = vpop.permute.xlu0 %6074
      %6076 = vrot.lane.b32.xlu0 %v5785, 111
      %v6077 = vpop.permute.xlu0 %6076
      %6078 = vrot.lane.b32.xlu0 %v5786, 111
      %v6079 = vpop.permute.xlu0 %6078
      %6080 = vrot.lane.b32.xlu0 %v5787, 111
      %v6081 = vpop.permute.xlu0 %6080
      %6082 = vrot.lane.b32.xlu0 %v5788, 111
      %v6083 = vpop.permute.xlu0 %6082
      %6084 = vrot.lane.b32.xlu0 %v5789, 111
      %v6085 = vpop.permute.xlu0 %6084
      %6086 = vrot.lane.b32.xlu0 %v5790, 111
      %v6087 = vpop.permute.xlu0 %6086
      %6088 = vrot.lane.b32.xlu0 %v5791, 111
      %v6089 = vpop.permute.xlu0 %6088
      %v6090 = vsel %vm1596, %v6055, %v6057
      %v6091 = vsel %vm1596, %v6057, %v6059
      %v6092 = vsel %vm1596, %v6061, %v6063
      %v6093 = vsel %vm1596, %v6063, %v6065
      %v6094 = vsel %vm1596, %v6067, %v6069
      %v6095 = vsel %vm1596, %v6069, %v6071
      %v6096 = vsel %vm1596, %v6073, %v6075
      %v6097 = vsel %vm1596, %v6075, %v6077
      %v6098 = vsel %vm1596, %v6079, %v6081
      %v6099 = vsel %vm1596, %v6081, %v6083
      %v6100 = vsel %vm1596, %v6085, %v6087
      %v6101 = vsel %vm1596, %v6087, %v6089
      %v6115 = vsel %vm1355, %v6052, 0
      %v6118 = vsel %vm1355, %v6053, 0
      %6120 = vmatprep.subr.bf16.mxu0 0
      %6121 = vmatpush1.bf16.msra.mxu0 0
      %6122 = vmatprep.subr.bf16.mxu0 0
      %6123 = vmatpush1.bf16.msra.mxu0 0
      %6124 = vmatprep.subr.bf16.mxu0 %v6101
      %6125 = vmatpush1.bf16.msra.mxu0 %v6100
      %6126 = vmatprep.subr.bf16.mxu0 %v6099
      %6127 = vmatpush1.bf16.msra.mxu0 %v6098
      %6128 = vmatprep.subr.bf16.mxu0 %v6097
      %6129 = vmatpush1.bf16.msra.mxu0 %v6096
      %6130 = vmatprep.subr.bf16.mxu0 %v6095
      %6131 = vmatpush1.bf16.msra.mxu0 %v6094
      %6132 = vmatprep.subr.bf16.mxu0 %v6093
      %6133 = vmatpush1.bf16.msra.mxu0 %v6092
      %6134 = vmatprep.subr.bf16.mxu0 %v6091
      %6135 = vmatpush1.bf16.msra.mxu0 %v6090
      %6136 = vmatprep.subr.bf16.mxu0 0
      %6137 = vmatpush2.bf16.msra.mxu0 0
      %6138 = vmatprep.subr.bf16.mxu0 0
      %6139 = vmatpush2.bf16.msra.mxu0 0
      %6140 = vmatprep.subr.bf16.mxu0 0
      %6141 = vmatpush2.bf16.msra.mxu0 0
      %6142 = vmatprep.subr.bf16.mxu0 0
      %6143 = vmatpush2.bf16.msra.mxu0 0
      %6144 = vmatprep.subr.bf16.mxu0 0
      %6145 = vmatpush2.bf16.msra.mxu0 0
      %6146 = vmatprep.subr.bf16.mxu0 0
      %6147 = vmatpush2.bf16.msra.mxu0 0
      %6148 = vmatprep.subr.bf16.mxu0 0
      %6149 = vmatpush2.bf16.msra.mxu0 0
      %6150 = vmatprep.subr.bf16.mxu0 0
      %6151 = vmatpush2.bf16.msra.mxu0 0
      %6152 = vmatprep.mubr.bf16.mxu0 0
      %6153 = vmatmul.mubr.bf16.gmra.mxu0 %v6115
      %v6154 = vpop.f32.mrf.mxu0
      %v6155 = vadd.f32 0.0, %v6154
      %v6156 = vpop.f32.mrf.mxu0
      %v6157 = vadd.f32 0.0, %v6156
      %v6158 = vpop.f32.mrf.mxu0
      %v6159 = vadd.f32 0.0, %v6158
      %v6160 = vpop.f32.mrf.mxu0
      %v6161 = vadd.f32 0.0, %v6160
      %6162 = vmatprep.mubr.bf16.mxu0 0
      %6163 = vmatmul.mubr.bf16.gmra.mxu0 %v6118
      %v6164 = vpop.f32.mrf.mxu0
      %v6165 = vadd.f32 0.0, %v6164
      %v6166 = vpop.f32.mrf.mxu0
      %v6167 = vadd.f32 0.0, %v6166
      %v6168 = vpop.f32.mrf.mxu0
      %v6169 = vadd.f32 0.0, %v6168
      %v6170 = vpop.f32.mrf.mxu0
      %v6171 = vadd.f32 0.0, %v6170
      %6172 = vdwg.mxu0
      %v6173 = vadd.f32 %v6022, %v6155
      %v6174 = vadd.f32 %v6024, %v6157
      %v6175 = vadd.f32 %v6026, %v6159
      %v6176 = vadd.f32 %v6028, %v6161
      %v6177 = vadd.f32 %v6032, %v6165
      %v6178 = vadd.f32 %v6034, %v6167
      %v6179 = vadd.f32 %v6036, %v6169
      %v6180 = vadd.f32 %v6038, %v6171
      %v6181 = vld [vmem:[%s1688] sm:$0xf]
      %v6182 = vld [vmem:[%s1688 + $0x4] sm:$0xf]
      %v6183 = vld [vmem:[%s1688 + $0x8] sm:$0xf]
      %v6184 = vld [vmem:[%s1688 + $0xc] sm:$0xf]
      %v6189 = vunpack.c.l.b16 %v6181
      %v6190 = vunpack.c.l.b16 %v6182
      %v6191 = vunpack.c.l.b16 %v6183
      %v6192 = vunpack.c.l.b16 %v6184
      %v6193 = vpack.c.b16 %v6190, %v6189
      %v6194 = vpack.c.b16 %v6192, %v6191
      %6195 = vrot.lane.b32.xlu0 %v5774, 97
      %v6196 = vpop.permute.xlu0 %6195
      %6197 = vrot.lane.b32.xlu0 %v5775, 97
      %v6198 = vpop.permute.xlu0 %6197
      %6199 = vrot.lane.b32.xlu0 %v5776, 97
      %v6200 = vpop.permute.xlu0 %6199
      %6201 = vrot.lane.b32.xlu0 %v5777, 97
      %v6202 = vpop.permute.xlu0 %6201
      %6203 = vrot.lane.b32.xlu0 %v5778, 97
      %v6204 = vpop.permute.xlu0 %6203
      %6205 = vrot.lane.b32.xlu0 %v5779, 97
      %v6206 = vpop.permute.xlu0 %6205
      %6207 = vrot.lane.b32.xlu0 %v5780, 97
      %v6208 = vpop.permute.xlu0 %6207
      %6209 = vrot.lane.b32.xlu0 %v5781, 97
      %v6210 = vpop.permute.xlu0 %6209
      %6211 = vrot.lane.b32.xlu0 %v5782, 97
      %v6212 = vpop.permute.xlu0 %6211
      %6213 = vrot.lane.b32.xlu0 %v5783, 97
      %v6214 = vpop.permute.xlu0 %6213
      %6215 = vrot.lane.b32.xlu0 %v5784, 97
      %v6216 = vpop.permute.xlu0 %6215
      %6217 = vrot.lane.b32.xlu0 %v5785, 97
      %v6218 = vpop.permute.xlu0 %6217
      %6219 = vrot.lane.b32.xlu0 %v5786, 97
      %v6220 = vpop.permute.xlu0 %6219
      %6221 = vrot.lane.b32.xlu0 %v5787, 97
      %v6222 = vpop.permute.xlu0 %6221
      %6223 = vrot.lane.b32.xlu0 %v5788, 97
      %v6224 = vpop.permute.xlu0 %6223
      %6225 = vrot.lane.b32.xlu0 %v5789, 97
      %v6226 = vpop.permute.xlu0 %6225
      %6227 = vrot.lane.b32.xlu0 %v5790, 97
      %v6228 = vpop.permute.xlu0 %6227
      %6229 = vrot.lane.b32.xlu0 %v5791, 97
      %v6230 = vpop.permute.xlu0 %6229
      %v6231 = vsel %vm1739, %v6196, %v6198
      %v6232 = vsel %vm1739, %v6198, %v6200
      %v6233 = vsel %vm1739, %v6202, %v6204
      %v6234 = vsel %vm1739, %v6204, %v6206
      %v6235 = vsel %vm1739, %v6208, %v6210
      %v6236 = vsel %vm1739, %v6210, %v6212
      %v6237 = vsel %vm1739, %v6214, %v6216
      %v6238 = vsel %vm1739, %v6216, %v6218
      %v6239 = vsel %vm1739, %v6220, %v6222
      %v6240 = vsel %vm1739, %v6222, %v6224
      %v6241 = vsel %vm1739, %v6226, %v6228
      %v6242 = vsel %vm1739, %v6228, %v6230
      %v6256 = vsel %vm1355, %v6193, 0
      %v6259 = vsel %vm1355, %v6194, 0
      %6261 = vmatprep.subr.bf16.mxu0 0
      %6262 = vmatpush1.bf16.msra.mxu0 0
      %6263 = vmatprep.subr.bf16.mxu0 0
      %6264 = vmatpush1.bf16.msra.mxu0 0
      %6265 = vmatprep.subr.bf16.mxu0 %v6242
      %6266 = vmatpush1.bf16.msra.mxu0 %v6241
      %6267 = vmatprep.subr.bf16.mxu0 %v6240
      %6268 = vmatpush1.bf16.msra.mxu0 %v6239
      %6269 = vmatprep.subr.bf16.mxu0 %v6238
      %6270 = vmatpush1.bf16.msra.mxu0 %v6237
      %6271 = vmatprep.subr.bf16.mxu0 %v6236
      %6272 = vmatpush1.bf16.msra.mxu0 %v6235
      %6273 = vmatprep.subr.bf16.mxu0 %v6234
      %6274 = vmatpush1.bf16.msra.mxu0 %v6233
      %6275 = vmatprep.subr.bf16.mxu0 %v6232
      %6276 = vmatpush1.bf16.msra.mxu0 %v6231
      %6277 = vmatprep.subr.bf16.mxu0 0
      %6278 = vmatpush2.bf16.msra.mxu0 0
      %6279 = vmatprep.subr.bf16.mxu0 0
      %6280 = vmatpush2.bf16.msra.mxu0 0
      %6281 = vmatprep.subr.bf16.mxu0 0
      %6282 = vmatpush2.bf16.msra.mxu0 0
      %6283 = vmatprep.subr.bf16.mxu0 0
      %6284 = vmatpush2.bf16.msra.mxu0 0
      %6285 = vmatprep.subr.bf16.mxu0 0
      %6286 = vmatpush2.bf16.msra.mxu0 0
      %6287 = vmatprep.subr.bf16.mxu0 0
      %6288 = vmatpush2.bf16.msra.mxu0 0
      %6289 = vmatprep.subr.bf16.mxu0 0
      %6290 = vmatpush2.bf16.msra.mxu0 0
      %6291 = vmatprep.subr.bf16.mxu0 0
      %6292 = vmatpush2.bf16.msra.mxu0 0
      %6293 = vmatprep.mubr.bf16.mxu0 0
      %6294 = vmatmul.mubr.bf16.gmra.mxu0 %v6256
      %v6295 = vpop.f32.mrf.mxu0
      %v6296 = vadd.f32 0.0, %v6295
      %v6297 = vpop.f32.mrf.mxu0
      %v6298 = vadd.f32 0.0, %v6297
      %v6299 = vpop.f32.mrf.mxu0
      %v6300 = vadd.f32 0.0, %v6299
      %v6301 = vpop.f32.mrf.mxu0
      %v6302 = vadd.f32 0.0, %v6301
      %6303 = vmatprep.mubr.bf16.mxu0 0
      %6304 = vmatmul.mubr.bf16.gmra.mxu0 %v6259
      %v6305 = vpop.f32.mrf.mxu0
      %v6306 = vadd.f32 0.0, %v6305
      %v6307 = vpop.f32.mrf.mxu0
      %v6308 = vadd.f32 0.0, %v6307
      %v6309 = vpop.f32.mrf.mxu0
      %v6310 = vadd.f32 0.0, %v6309
      %v6311 = vpop.f32.mrf.mxu0
      %v6312 = vadd.f32 0.0, %v6311
      %6313 = vdwg.mxu0
      %v6314 = vadd.f32 %v6173, %v6296
      %v6315 = vadd.f32 %v6174, %v6298
      %v6316 = vadd.f32 %v6175, %v6300
      %v6317 = vadd.f32 %v6176, %v6302
      %v6318 = vadd.f32 %v6177, %v6306
      %v6319 = vadd.f32 %v6178, %v6308
      %v6320 = vadd.f32 %v6179, %v6310
      %v6321 = vadd.f32 %v6180, %v6312
      %v6322 = vld [vmem:[%s1831] sm:$0xf]
      %v6323 = vld [vmem:[%s1831 + $0x4] sm:$0xf]
      %v6324 = vld [vmem:[%s1831 + $0x8] sm:$0xf]
      %v6325 = vld [vmem:[%s1831 + $0xc] sm:$0xf]
      %v6330 = vunpack.c.l.b16 %v6322
      %v6331 = vunpack.c.l.b16 %v6323
      %v6332 = vunpack.c.l.b16 %v6324
      %v6333 = vunpack.c.l.b16 %v6325
      %v6334 = vpack.c.b16 %v6331, %v6330
      %v6335 = vpack.c.b16 %v6333, %v6332
      %6336 = vrot.lane.b32.xlu0 %v5774, 96
      %v6337 = vpop.permute.xlu0 %6336
      %6338 = vrot.lane.b32.xlu0 %v5775, 96
      %v6339 = vpop.permute.xlu0 %6338
      %6340 = vrot.lane.b32.xlu0 %v5776, 96
      %v6341 = vpop.permute.xlu0 %6340
      %6342 = vrot.lane.b32.xlu0 %v5777, 96
      %v6343 = vpop.permute.xlu0 %6342
      %6344 = vrot.lane.b32.xlu0 %v5778, 96
      %v6345 = vpop.permute.xlu0 %6344
      %6346 = vrot.lane.b32.xlu0 %v5779, 96
      %v6347 = vpop.permute.xlu0 %6346
      %6348 = vrot.lane.b32.xlu0 %v5780, 96
      %v6349 = vpop.permute.xlu0 %6348
      %6350 = vrot.lane.b32.xlu0 %v5781, 96
      %v6351 = vpop.permute.xlu0 %6350
      %6352 = vrot.lane.b32.xlu0 %v5782, 96
      %v6353 = vpop.permute.xlu0 %6352
      %6354 = vrot.lane.b32.xlu0 %v5783, 96
      %v6355 = vpop.permute.xlu0 %6354
      %6356 = vrot.lane.b32.xlu0 %v5784, 96
      %v6357 = vpop.permute.xlu0 %6356
      %6358 = vrot.lane.b32.xlu0 %v5785, 96
      %v6359 = vpop.permute.xlu0 %6358
      %6360 = vrot.lane.b32.xlu0 %v5786, 96
      %v6361 = vpop.permute.xlu0 %6360
      %6362 = vrot.lane.b32.xlu0 %v5787, 96
      %v6363 = vpop.permute.xlu0 %6362
      %6364 = vrot.lane.b32.xlu0 %v5788, 96
      %v6365 = vpop.permute.xlu0 %6364
      %6366 = vrot.lane.b32.xlu0 %v5789, 96
      %v6367 = vpop.permute.xlu0 %6366
      %6368 = vrot.lane.b32.xlu0 %v5790, 96
      %v6369 = vpop.permute.xlu0 %6368
      %6370 = vrot.lane.b32.xlu0 %v5791, 96
      %v6371 = vpop.permute.xlu0 %6370
      %v6372 = vsel %vm1882, %v6337, %v6339
      %v6373 = vsel %vm1882, %v6339, %v6341
      %v6374 = vsel %vm1882, %v6343, %v6345
      %v6375 = vsel %vm1882, %v6345, %v6347
      %v6376 = vsel %vm1882, %v6349, %v6351
      %v6377 = vsel %vm1882, %v6351, %v6353
      %v6378 = vsel %vm1882, %v6355, %v6357
      %v6379 = vsel %vm1882, %v6357, %v6359
      %v6380 = vsel %vm1882, %v6361, %v6363
      %v6381 = vsel %vm1882, %v6363, %v6365
      %v6382 = vsel %vm1882, %v6367, %v6369
      %v6383 = vsel %vm1882, %v6369, %v6371
      %v6397 = vsel %vm1355, %v6334, 0
      %v6400 = vsel %vm1355, %v6335, 0
      %6402 = vmatprep.subr.bf16.mxu0 0
      %6403 = vmatpush1.bf16.msra.mxu0 0
      %6404 = vmatprep.subr.bf16.mxu0 0
      %6405 = vmatpush1.bf16.msra.mxu0 0
      %6406 = vmatprep.subr.bf16.mxu0 %v6383
      %6407 = vmatpush1.bf16.msra.mxu0 %v6382
      %6408 = vmatprep.subr.bf16.mxu0 %v6381
      %6409 = vmatpush1.bf16.msra.mxu0 %v6380
      %6410 = vmatprep.subr.bf16.mxu0 %v6379
      %6411 = vmatpush1.bf16.msra.mxu0 %v6378
      %6412 = vmatprep.subr.bf16.mxu0 %v6377
      %6413 = vmatpush1.bf16.msra.mxu0 %v6376
      %6414 = vmatprep.subr.bf16.mxu0 %v6375
      %6415 = vmatpush1.bf16.msra.mxu0 %v6374
      %6416 = vmatprep.subr.bf16.mxu0 %v6373
      %6417 = vmatpush1.bf16.msra.mxu0 %v6372
      %6418 = vmatprep.subr.bf16.mxu0 0
      %6419 = vmatpush2.bf16.msra.mxu0 0
      %6420 = vmatprep.subr.bf16.mxu0 0
      %6421 = vmatpush2.bf16.msra.mxu0 0
      %6422 = vmatprep.subr.bf16.mxu0 0
      %6423 = vmatpush2.bf16.msra.mxu0 0
      %6424 = vmatprep.subr.bf16.mxu0 0
      %6425 = vmatpush2.bf16.msra.mxu0 0
      %6426 = vmatprep.subr.bf16.mxu0 0
      %6427 = vmatpush2.bf16.msra.mxu0 0
      %6428 = vmatprep.subr.bf16.mxu0 0
      %6429 = vmatpush2.bf16.msra.mxu0 0
      %6430 = vmatprep.subr.bf16.mxu0 0
      %6431 = vmatpush2.bf16.msra.mxu0 0
      %6432 = vmatprep.subr.bf16.mxu0 0
      %6433 = vmatpush2.bf16.msra.mxu0 0
      %6434 = vmatprep.mubr.bf16.mxu0 0
      %6435 = vmatmul.mubr.bf16.gmra.mxu0 %v6397
      %v6436 = vpop.f32.mrf.mxu0
      %v6437 = vadd.f32 0.0, %v6436
      %v6438 = vpop.f32.mrf.mxu0
      %v6439 = vadd.f32 0.0, %v6438
      %v6440 = vpop.f32.mrf.mxu0
      %v6441 = vadd.f32 0.0, %v6440
      %v6442 = vpop.f32.mrf.mxu0
      %v6443 = vadd.f32 0.0, %v6442
      %6444 = vmatprep.mubr.bf16.mxu0 0
      %6445 = vmatmul.mubr.bf16.gmra.mxu0 %v6400
      %v6446 = vpop.f32.mrf.mxu0
      %v6447 = vadd.f32 0.0, %v6446
      %v6448 = vpop.f32.mrf.mxu0
      %v6449 = vadd.f32 0.0, %v6448
      %v6450 = vpop.f32.mrf.mxu0
      %v6451 = vadd.f32 0.0, %v6450
      %v6452 = vpop.f32.mrf.mxu0
      %v6453 = vadd.f32 0.0, %v6452
      %6454 = vdwg.mxu0
      %v6455 = vadd.f32 %v6314, %v6437
      %v6456 = vadd.f32 %v6315, %v6439
      %v6457 = vadd.f32 %v6316, %v6441
      %v6458 = vadd.f32 %v6317, %v6443
      %v6459 = vadd.f32 %v6318, %v6447
      %v6460 = vadd.f32 %v6319, %v6449
      %v6461 = vadd.f32 %v6320, %v6451
      %v6462 = vadd.f32 %v6321, %v6453
      %v6463 = vld [vmem:[%s1974] sm:$0xf]
      %v6464 = vld [vmem:[%s1974 + $0x4] sm:$0xf]
      %v6465 = vld [vmem:[%s1974 + $0x8] sm:$0xf]
      %v6466 = vld [vmem:[%s1974 + $0xc] sm:$0xf]
      %v6471 = vunpack.c.l.b16 %v6463
      %v6472 = vunpack.c.l.b16 %v6464
      %v6473 = vunpack.c.l.b16 %v6465
      %v6474 = vunpack.c.l.b16 %v6466
      %v6475 = vpack.c.b16 %v6472, %v6471
      %v6476 = vpack.c.b16 %v6474, %v6473
      %6477 = vrot.lane.b32.xlu0 %v5774, 95
      %v6478 = vpop.permute.xlu0 %6477
      %6479 = vrot.lane.b32.xlu0 %v5775, 95
      %v6480 = vpop.permute.xlu0 %6479
      %6481 = vrot.lane.b32.xlu0 %v5776, 95
      %v6482 = vpop.permute.xlu0 %6481
      %6483 = vrot.lane.b32.xlu0 %v5777, 95
      %v6484 = vpop.permute.xlu0 %6483
      %6485 = vrot.lane.b32.xlu0 %v5778, 95
      %v6486 = vpop.permute.xlu0 %6485
      %6487 = vrot.lane.b32.xlu0 %v5779, 95
      %v6488 = vpop.permute.xlu0 %6487
      %6489 = vrot.lane.b32.xlu0 %v5780, 95
      %v6490 = vpop.permute.xlu0 %6489
      %6491 = vrot.lane.b32.xlu0 %v5781, 95
      %v6492 = vpop.permute.xlu0 %6491
      %6493 = vrot.lane.b32.xlu0 %v5782, 95
      %v6494 = vpop.permute.xlu0 %6493
      %6495 = vrot.lane.b32.xlu0 %v5783, 95
      %v6496 = vpop.permute.xlu0 %6495
      %6497 = vrot.lane.b32.xlu0 %v5784, 95
      %v6498 = vpop.permute.xlu0 %6497
      %6499 = vrot.lane.b32.xlu0 %v5785, 95
      %v6500 = vpop.permute.xlu0 %6499
      %6501 = vrot.lane.b32.xlu0 %v5786, 95
      %v6502 = vpop.permute.xlu0 %6501
      %6503 = vrot.lane.b32.xlu0 %v5787, 95
      %v6504 = vpop.permute.xlu0 %6503
      %6505 = vrot.lane.b32.xlu0 %v5788, 95
      %v6506 = vpop.permute.xlu0 %6505
      %6507 = vrot.lane.b32.xlu0 %v5789, 95
      %v6508 = vpop.permute.xlu0 %6507
      %6509 = vrot.lane.b32.xlu0 %v5790, 95
      %v6510 = vpop.permute.xlu0 %6509
      %6511 = vrot.lane.b32.xlu0 %v5791, 95
      %v6512 = vpop.permute.xlu0 %6511
      %v6513 = vsel %vm2025, %v6478, %v6480
      %v6514 = vsel %vm2025, %v6480, %v6482
      %v6515 = vsel %vm2025, %v6484, %v6486
      %v6516 = vsel %vm2025, %v6486, %v6488
      %v6517 = vsel %vm2025, %v6490, %v6492
      %v6518 = vsel %vm2025, %v6492, %v6494
      %v6519 = vsel %vm2025, %v6496, %v6498
      %v6520 = vsel %vm2025, %v6498, %v6500
      %v6521 = vsel %vm2025, %v6502, %v6504
      %v6522 = vsel %vm2025, %v6504, %v6506
      %v6523 = vsel %vm2025, %v6508, %v6510
      %v6524 = vsel %vm2025, %v6510, %v6512
      %v6538 = vsel %vm1355, %v6475, 0
      %v6541 = vsel %vm1355, %v6476, 0
      %6543 = vmatprep.subr.bf16.mxu0 0
      %6544 = vmatpush1.bf16.msra.mxu0 0
      %6545 = vmatprep.subr.bf16.mxu0 0
      %6546 = vmatpush1.bf16.msra.mxu0 0
      %6547 = vmatprep.subr.bf16.mxu0 %v6524
      %6548 = vmatpush1.bf16.msra.mxu0 %v6523
      %6549 = vmatprep.subr.bf16.mxu0 %v6522
      %6550 = vmatpush1.bf16.msra.mxu0 %v6521
      %6551 = vmatprep.subr.bf16.mxu0 %v6520
      %6552 = vmatpush1.bf16.msra.mxu0 %v6519
      %6553 = vmatprep.subr.bf16.mxu0 %v6518
      %6554 = vmatpush1.bf16.msra.mxu0 %v6517
      %6555 = vmatprep.subr.bf16.mxu0 %v6516
      %6556 = vmatpush1.bf16.msra.mxu0 %v6515
      %6557 = vmatprep.subr.bf16.mxu0 %v6514
      %6558 = vmatpush1.bf16.msra.mxu0 %v6513
      %6559 = vmatprep.subr.bf16.mxu0 0
      %6560 = vmatpush2.bf16.msra.mxu0 0
      %6561 = vmatprep.subr.bf16.mxu0 0
      %6562 = vmatpush2.bf16.msra.mxu0 0
      %6563 = vmatprep.subr.bf16.mxu0 0
      %6564 = vmatpush2.bf16.msra.mxu0 0
      %6565 = vmatprep.subr.bf16.mxu0 0
      %6566 = vmatpush2.bf16.msra.mxu0 0
      %6567 = vmatprep.subr.bf16.mxu0 0
      %6568 = vmatpush2.bf16.msra.mxu0 0
      %6569 = vmatprep.subr.bf16.mxu0 0
      %6570 = vmatpush2.bf16.msra.mxu0 0
      %6571 = vmatprep.subr.bf16.mxu0 0
      %6572 = vmatpush2.bf16.msra.mxu0 0
      %6573 = vmatprep.subr.bf16.mxu0 0
      %6574 = vmatpush2.bf16.msra.mxu0 0
      %6575 = vmatprep.mubr.bf16.mxu0 0
      %6576 = vmatmul.mubr.bf16.gmra.mxu0 %v6538
      %v6577 = vpop.f32.mrf.mxu0
      %v6578 = vadd.f32 0.0, %v6577
      %v6579 = vpop.f32.mrf.mxu0
      %v6580 = vadd.f32 0.0, %v6579
      %v6581 = vpop.f32.mrf.mxu0
      %v6582 = vadd.f32 0.0, %v6581
      %v6583 = vpop.f32.mrf.mxu0
      %v6584 = vadd.f32 0.0, %v6583
      %6585 = vmatprep.mubr.bf16.mxu0 0
      %6586 = vmatmul.mubr.bf16.gmra.mxu0 %v6541
      %v6587 = vpop.f32.mrf.mxu0
      %v6588 = vadd.f32 0.0, %v6587
      %v6589 = vpop.f32.mrf.mxu0
      %v6590 = vadd.f32 0.0, %v6589
      %v6591 = vpop.f32.mrf.mxu0
      %v6592 = vadd.f32 0.0, %v6591
      %v6593 = vpop.f32.mrf.mxu0
      %v6594 = vadd.f32 0.0, %v6593
      %6595 = vdwg.mxu0
      %v6596 = vadd.f32 %v6455, %v6578
      %v6597 = vadd.f32 %v6456, %v6580
      %v6598 = vadd.f32 %v6457, %v6582
      %v6599 = vadd.f32 %v6458, %v6584
      %v6600 = vadd.f32 %v6459, %v6588
      %v6601 = vadd.f32 %v6460, %v6590
      %v6602 = vadd.f32 %v6461, %v6592
      %v6603 = vadd.f32 %v6462, %v6594
      %v6604 = vld [vmem:[%s2117] sm:$0xf]
      %v6605 = vld [vmem:[%s2117 + $0x4] sm:$0xf]
      %v6606 = vld [vmem:[%s2117 + $0x8] sm:$0xf]
      %v6607 = vld [vmem:[%s2117 + $0xc] sm:$0xf]
      %v6612 = vunpack.c.l.b16 %v6604
      %v6613 = vunpack.c.l.b16 %v6605
      %v6614 = vunpack.c.l.b16 %v6606
      %v6615 = vunpack.c.l.b16 %v6607
      %v6616 = vpack.c.b16 %v6613, %v6612
      %v6617 = vpack.c.b16 %v6615, %v6614
      %6618 = vrot.lane.b32.xlu0 %v5774, 81
      %v6619 = vpop.permute.xlu0 %6618
      %6620 = vrot.lane.b32.xlu0 %v5775, 81
      %v6621 = vpop.permute.xlu0 %6620
      %6622 = vrot.lane.b32.xlu0 %v5776, 81
      %v6623 = vpop.permute.xlu0 %6622
      %6624 = vrot.lane.b32.xlu0 %v5777, 81
      %v6625 = vpop.permute.xlu0 %6624
      %6626 = vrot.lane.b32.xlu0 %v5778, 81
      %v6627 = vpop.permute.xlu0 %6626
      %6628 = vrot.lane.b32.xlu0 %v5779, 81
      %v6629 = vpop.permute.xlu0 %6628
      %6630 = vrot.lane.b32.xlu0 %v5780, 81
      %v6631 = vpop.permute.xlu0 %6630
      %6632 = vrot.lane.b32.xlu0 %v5781, 81
      %v6633 = vpop.permute.xlu0 %6632
      %6634 = vrot.lane.b32.xlu0 %v5782, 81
      %v6635 = vpop.permute.xlu0 %6634
      %6636 = vrot.lane.b32.xlu0 %v5783, 81
      %v6637 = vpop.permute.xlu0 %6636
      %6638 = vrot.lane.b32.xlu0 %v5784, 81
      %v6639 = vpop.permute.xlu0 %6638
      %6640 = vrot.lane.b32.xlu0 %v5785, 81
      %v6641 = vpop.permute.xlu0 %6640
      %6642 = vrot.lane.b32.xlu0 %v5786, 81
      %v6643 = vpop.permute.xlu0 %6642
      %6644 = vrot.lane.b32.xlu0 %v5787, 81
      %v6645 = vpop.permute.xlu0 %6644
      %6646 = vrot.lane.b32.xlu0 %v5788, 81
      %v6647 = vpop.permute.xlu0 %6646
      %6648 = vrot.lane.b32.xlu0 %v5789, 81
      %v6649 = vpop.permute.xlu0 %6648
      %6650 = vrot.lane.b32.xlu0 %v5790, 81
      %v6651 = vpop.permute.xlu0 %6650
      %6652 = vrot.lane.b32.xlu0 %v5791, 81
      %v6653 = vpop.permute.xlu0 %6652
      %v6654 = vsel %vm2168, %v6619, %v6621
      %v6655 = vsel %vm2168, %v6621, %v6623
      %v6656 = vsel %vm2168, %v6625, %v6627
      %v6657 = vsel %vm2168, %v6627, %v6629
      %v6658 = vsel %vm2168, %v6631, %v6633
      %v6659 = vsel %vm2168, %v6633, %v6635
      %v6660 = vsel %vm2168, %v6637, %v6639
      %v6661 = vsel %vm2168, %v6639, %v6641
      %v6662 = vsel %vm2168, %v6643, %v6645
      %v6663 = vsel %vm2168, %v6645, %v6647
      %v6664 = vsel %vm2168, %v6649, %v6651
      %v6665 = vsel %vm2168, %v6651, %v6653
      %v6679 = vsel %vm1355, %v6616, 0
      %v6682 = vsel %vm1355, %v6617, 0
      %6684 = vmatprep.subr.bf16.mxu0 0
      %6685 = vmatpush1.bf16.msra.mxu0 0
      %6686 = vmatprep.subr.bf16.mxu0 0
      %6687 = vmatpush1.bf16.msra.mxu0 0
      %6688 = vmatprep.subr.bf16.mxu0 %v6665
      %6689 = vmatpush1.bf16.msra.mxu0 %v6664
      %6690 = vmatprep.subr.bf16.mxu0 %v6663
      %6691 = vmatpush1.bf16.msra.mxu0 %v6662
      %6692 = vmatprep.subr.bf16.mxu0 %v6661
      %6693 = vmatpush1.bf16.msra.mxu0 %v6660
      %6694 = vmatprep.subr.bf16.mxu0 %v6659
      %6695 = vmatpush1.bf16.msra.mxu0 %v6658
      %6696 = vmatprep.subr.bf16.mxu0 %v6657
      %6697 = vmatpush1.bf16.msra.mxu0 %v6656
      %6698 = vmatprep.subr.bf16.mxu0 %v6655
      %6699 = vmatpush1.bf16.msra.mxu0 %v6654
      %6700 = vmatprep.subr.bf16.mxu0 0
      %6701 = vmatpush2.bf16.msra.mxu0 0
      %6702 = vmatprep.subr.bf16.mxu0 0
      %6703 = vmatpush2.bf16.msra.mxu0 0
      %6704 = vmatprep.subr.bf16.mxu0 0
      %6705 = vmatpush2.bf16.msra.mxu0 0
      %6706 = vmatprep.subr.bf16.mxu0 0
      %6707 = vmatpush2.bf16.msra.mxu0 0
      %6708 = vmatprep.subr.bf16.mxu0 0
      %6709 = vmatpush2.bf16.msra.mxu0 0
      %6710 = vmatprep.subr.bf16.mxu0 0
      %6711 = vmatpush2.bf16.msra.mxu0 0
      %6712 = vmatprep.subr.bf16.mxu0 0
      %6713 = vmatpush2.bf16.msra.mxu0 0
      %6714 = vmatprep.subr.bf16.mxu0 0
      %6715 = vmatpush2.bf16.msra.mxu0 0
      %6716 = vmatprep.mubr.bf16.mxu0 0
      %6717 = vmatmul.mubr.bf16.gmra.mxu0 %v6679
      %v6718 = vpop.f32.mrf.mxu0
      %v6719 = vadd.f32 0.0, %v6718
      %v6720 = vpop.f32.mrf.mxu0
      %v6721 = vadd.f32 0.0, %v6720
      %v6722 = vpop.f32.mrf.mxu0
      %v6723 = vadd.f32 0.0, %v6722
      %v6724 = vpop.f32.mrf.mxu0
      %v6725 = vadd.f32 0.0, %v6724
      %6726 = vmatprep.mubr.bf16.mxu0 0
      %6727 = vmatmul.mubr.bf16.gmra.mxu0 %v6682
      %v6728 = vpop.f32.mrf.mxu0
      %v6729 = vadd.f32 0.0, %v6728
      %v6730 = vpop.f32.mrf.mxu0
      %v6731 = vadd.f32 0.0, %v6730
      %v6732 = vpop.f32.mrf.mxu0
      %v6733 = vadd.f32 0.0, %v6732
      %v6734 = vpop.f32.mrf.mxu0
      %v6735 = vadd.f32 0.0, %v6734
      %6736 = vdwg.mxu0
      %v6737 = vadd.f32 %v6596, %v6719
      %v6738 = vadd.f32 %v6597, %v6721
      %v6739 = vadd.f32 %v6598, %v6723
      %v6740 = vadd.f32 %v6599, %v6725
      %v6741 = vadd.f32 %v6600, %v6729
      %v6742 = vadd.f32 %v6601, %v6731
      %v6743 = vadd.f32 %v6602, %v6733
      %v6744 = vadd.f32 %v6603, %v6735
      %v6745 = vld [vmem:[%s2260] sm:$0xf]
      %v6746 = vld [vmem:[%s2260 + $0x4] sm:$0xf]
      %v6747 = vld [vmem:[%s2260 + $0x8] sm:$0xf]
      %v6748 = vld [vmem:[%s2260 + $0xc] sm:$0xf]
      %v6753 = vunpack.c.l.b16 %v6745
      %v6754 = vunpack.c.l.b16 %v6746
      %v6755 = vunpack.c.l.b16 %v6747
      %v6756 = vunpack.c.l.b16 %v6748
      %v6757 = vpack.c.b16 %v6754, %v6753
      %v6758 = vpack.c.b16 %v6756, %v6755
      %6759 = vrot.lane.b32.xlu0 %v5774, 80
      %v6760 = vpop.permute.xlu0 %6759
      %6761 = vrot.lane.b32.xlu0 %v5775, 80
      %v6762 = vpop.permute.xlu0 %6761
      %6763 = vrot.lane.b32.xlu0 %v5776, 80
      %v6764 = vpop.permute.xlu0 %6763
      %6765 = vrot.lane.b32.xlu0 %v5777, 80
      %v6766 = vpop.permute.xlu0 %6765
      %6767 = vrot.lane.b32.xlu0 %v5778, 80
      %v6768 = vpop.permute.xlu0 %6767
      %6769 = vrot.lane.b32.xlu0 %v5779, 80
      %v6770 = vpop.permute.xlu0 %6769
      %6771 = vrot.lane.b32.xlu0 %v5780, 80
      %v6772 = vpop.permute.xlu0 %6771
      %6773 = vrot.lane.b32.xlu0 %v5781, 80
      %v6774 = vpop.permute.xlu0 %6773
      %6775 = vrot.lane.b32.xlu0 %v5782, 80
      %v6776 = vpop.permute.xlu0 %6775
      %6777 = vrot.lane.b32.xlu0 %v5783, 80
      %v6778 = vpop.permute.xlu0 %6777
      %6779 = vrot.lane.b32.xlu0 %v5784, 80
      %v6780 = vpop.permute.xlu0 %6779
      %6781 = vrot.lane.b32.xlu0 %v5785, 80
      %v6782 = vpop.permute.xlu0 %6781
      %6783 = vrot.lane.b32.xlu0 %v5786, 80
      %v6784 = vpop.permute.xlu0 %6783
      %6785 = vrot.lane.b32.xlu0 %v5787, 80
      %v6786 = vpop.permute.xlu0 %6785
      %6787 = vrot.lane.b32.xlu0 %v5788, 80
      %v6788 = vpop.permute.xlu0 %6787
      %6789 = vrot.lane.b32.xlu0 %v5789, 80
      %v6790 = vpop.permute.xlu0 %6789
      %6791 = vrot.lane.b32.xlu0 %v5790, 80
      %v6792 = vpop.permute.xlu0 %6791
      %6793 = vrot.lane.b32.xlu0 %v5791, 80
      %v6794 = vpop.permute.xlu0 %6793
      %v6795 = vsel %vm2311, %v6760, %v6762
      %v6796 = vsel %vm2311, %v6762, %v6764
      %v6797 = vsel %vm2311, %v6766, %v6768
      %v6798 = vsel %vm2311, %v6768, %v6770
      %v6799 = vsel %vm2311, %v6772, %v6774
      %v6800 = vsel %vm2311, %v6774, %v6776
      %v6801 = vsel %vm2311, %v6778, %v6780
      %v6802 = vsel %vm2311, %v6780, %v6782
      %v6803 = vsel %vm2311, %v6784, %v6786
      %v6804 = vsel %vm2311, %v6786, %v6788
      %v6805 = vsel %vm2311, %v6790, %v6792
      %v6806 = vsel %vm2311, %v6792, %v6794
      %v6820 = vsel %vm1355, %v6757, 0
      %v6823 = vsel %vm1355, %v6758, 0
      %6825 = vmatprep.subr.bf16.mxu0 0
      %6826 = vmatpush1.bf16.msra.mxu0 0
      %6827 = vmatprep.subr.bf16.mxu0 0
      %6828 = vmatpush1.bf16.msra.mxu0 0
      %6829 = vmatprep.subr.bf16.mxu0 %v6806
      %6830 = vmatpush1.bf16.msra.mxu0 %v6805
      %6831 = vmatprep.subr.bf16.mxu0 %v6804
      %6832 = vmatpush1.bf16.msra.mxu0 %v6803
      %6833 = vmatprep.subr.bf16.mxu0 %v6802
      %6834 = vmatpush1.bf16.msra.mxu0 %v6801
      %6835 = vmatprep.subr.bf16.mxu0 %v6800
      %6836 = vmatpush1.bf16.msra.mxu0 %v6799
      %6837 = vmatprep.subr.bf16.mxu0 %v6798
      %6838 = vmatpush1.bf16.msra.mxu0 %v6797
      %6839 = vmatprep.subr.bf16.mxu0 %v6796
      %6840 = vmatpush1.bf16.msra.mxu0 %v6795
      %6841 = vmatprep.subr.bf16.mxu0 0
      %6842 = vmatpush2.bf16.msra.mxu0 0
      %6843 = vmatprep.subr.bf16.mxu0 0
      %6844 = vmatpush2.bf16.msra.mxu0 0
      %6845 = vmatprep.subr.bf16.mxu0 0
      %6846 = vmatpush2.bf16.msra.mxu0 0
      %6847 = vmatprep.subr.bf16.mxu0 0
      %6848 = vmatpush2.bf16.msra.mxu0 0
      %6849 = vmatprep.subr.bf16.mxu0 0
      %6850 = vmatpush2.bf16.msra.mxu0 0
      %6851 = vmatprep.subr.bf16.mxu0 0
      %6852 = vmatpush2.bf16.msra.mxu0 0
      %6853 = vmatprep.subr.bf16.mxu0 0
      %6854 = vmatpush2.bf16.msra.mxu0 0
      %6855 = vmatprep.subr.bf16.mxu0 0
      %6856 = vmatpush2.bf16.msra.mxu0 0
      %6857 = vmatprep.mubr.bf16.mxu0 0
      %6858 = vmatmul.mubr.bf16.gmra.mxu0 %v6820
      %v6859 = vpop.f32.mrf.mxu0
      %v6860 = vadd.f32 0.0, %v6859
      %v6861 = vpop.f32.mrf.mxu0
      %v6862 = vadd.f32 0.0, %v6861
      %v6863 = vpop.f32.mrf.mxu0
      %v6864 = vadd.f32 0.0, %v6863
      %v6865 = vpop.f32.mrf.mxu0
      %v6866 = vadd.f32 0.0, %v6865
      %6867 = vmatprep.mubr.bf16.mxu0 0
      %6868 = vmatmul.mubr.bf16.gmra.mxu0 %v6823
      %v6869 = vpop.f32.mrf.mxu0
      %v6870 = vadd.f32 0.0, %v6869
      %v6871 = vpop.f32.mrf.mxu0
      %v6872 = vadd.f32 0.0, %v6871
      %v6873 = vpop.f32.mrf.mxu0
      %v6874 = vadd.f32 0.0, %v6873
      %v6875 = vpop.f32.mrf.mxu0
      %v6876 = vadd.f32 0.0, %v6875
      %6877 = vdwg.mxu0
      %v6878 = vadd.f32 %v6737, %v6860
      %v6879 = vadd.f32 %v6738, %v6862
      %v6880 = vadd.f32 %v6739, %v6864
      %v6881 = vadd.f32 %v6740, %v6866
      %v6882 = vadd.f32 %v6741, %v6870
      %v6883 = vadd.f32 %v6742, %v6872
      %v6884 = vadd.f32 %v6743, %v6874
      %v6885 = vadd.f32 %v6744, %v6876
      %v6886 = vld [vmem:[%s2403] sm:$0xf]
      %v6887 = vld [vmem:[%s2403 + $0x4] sm:$0xf]
      %v6888 = vld [vmem:[%s2403 + $0x8] sm:$0xf]
      %v6889 = vld [vmem:[%s2403 + $0xc] sm:$0xf]
      %v6894 = vunpack.c.l.b16 %v6886
      %v6895 = vunpack.c.l.b16 %v6887
      %v6896 = vunpack.c.l.b16 %v6888
      %v6897 = vunpack.c.l.b16 %v6889
      %v6898 = vpack.c.b16 %v6895, %v6894
      %v6899 = vpack.c.b16 %v6897, %v6896
      %6900 = vrot.lane.b32.xlu0 %v5774, 79
      %v6901 = vpop.permute.xlu0 %6900
      %6902 = vrot.lane.b32.xlu0 %v5775, 79
      %v6903 = vpop.permute.xlu0 %6902
      %6904 = vrot.lane.b32.xlu0 %v5776, 79
      %v6905 = vpop.permute.xlu0 %6904
      %6906 = vrot.lane.b32.xlu0 %v5777, 79
      %v6907 = vpop.permute.xlu0 %6906
      %6908 = vrot.lane.b32.xlu0 %v5778, 79
      %v6909 = vpop.permute.xlu0 %6908
      %6910 = vrot.lane.b32.xlu0 %v5779, 79
      %v6911 = vpop.permute.xlu0 %6910
      %6912 = vrot.lane.b32.xlu0 %v5780, 79
      %v6913 = vpop.permute.xlu0 %6912
      %6914 = vrot.lane.b32.xlu0 %v5781, 79
      %v6915 = vpop.permute.xlu0 %6914
      %6916 = vrot.lane.b32.xlu0 %v5782, 79
      %v6917 = vpop.permute.xlu0 %6916
      %6918 = vrot.lane.b32.xlu0 %v5783, 79
      %v6919 = vpop.permute.xlu0 %6918
      %6920 = vrot.lane.b32.xlu0 %v5784, 79
      %v6921 = vpop.permute.xlu0 %6920
      %6922 = vrot.lane.b32.xlu0 %v5785, 79
      %v6923 = vpop.permute.xlu0 %6922
      %6924 = vrot.lane.b32.xlu0 %v5786, 79
      %v6925 = vpop.permute.xlu0 %6924
      %6926 = vrot.lane.b32.xlu0 %v5787, 79
      %v6927 = vpop.permute.xlu0 %6926
      %6928 = vrot.lane.b32.xlu0 %v5788, 79
      %v6929 = vpop.permute.xlu0 %6928
      %6930 = vrot.lane.b32.xlu0 %v5789, 79
      %v6931 = vpop.permute.xlu0 %6930
      %6932 = vrot.lane.b32.xlu0 %v5790, 79
      %v6933 = vpop.permute.xlu0 %6932
      %6934 = vrot.lane.b32.xlu0 %v5791, 79
      %v6935 = vpop.permute.xlu0 %6934
      %v6936 = vsel %vm2454, %v6901, %v6903
      %v6937 = vsel %vm2454, %v6903, %v6905
      %v6938 = vsel %vm2454, %v6907, %v6909
      %v6939 = vsel %vm2454, %v6909, %v6911
      %v6940 = vsel %vm2454, %v6913, %v6915
      %v6941 = vsel %vm2454, %v6915, %v6917
      %v6942 = vsel %vm2454, %v6919, %v6921
      %v6943 = vsel %vm2454, %v6921, %v6923
      %v6944 = vsel %vm2454, %v6925, %v6927
      %v6945 = vsel %vm2454, %v6927, %v6929
      %v6946 = vsel %vm2454, %v6931, %v6933
      %v6947 = vsel %vm2454, %v6933, %v6935
      %v6961 = vsel %vm1355, %v6898, 0
      %v6964 = vsel %vm1355, %v6899, 0
      %6966 = vmatprep.subr.bf16.mxu0 0
      %6967 = vmatpush1.bf16.msra.mxu0 0
      %6968 = vmatprep.subr.bf16.mxu0 0
      %6969 = vmatpush1.bf16.msra.mxu0 0
      %6970 = vmatprep.subr.bf16.mxu0 %v6947
      %6971 = vmatpush1.bf16.msra.mxu0 %v6946
      %6972 = vmatprep.subr.bf16.mxu0 %v6945
      %6973 = vmatpush1.bf16.msra.mxu0 %v6944
      %6974 = vmatprep.subr.bf16.mxu0 %v6943
      %6975 = vmatpush1.bf16.msra.mxu0 %v6942
      %6976 = vmatprep.subr.bf16.mxu0 %v6941
      %6977 = vmatpush1.bf16.msra.mxu0 %v6940
      %6978 = vmatprep.subr.bf16.mxu0 %v6939
      %6979 = vmatpush1.bf16.msra.mxu0 %v6938
      %6980 = vmatprep.subr.bf16.mxu0 %v6937
      %6981 = vmatpush1.bf16.msra.mxu0 %v6936
      %6982 = vmatprep.subr.bf16.mxu0 0
      %6983 = vmatpush2.bf16.msra.mxu0 0
      %6984 = vmatprep.subr.bf16.mxu0 0
      %6985 = vmatpush2.bf16.msra.mxu0 0
      %6986 = vmatprep.subr.bf16.mxu0 0
      %6987 = vmatpush2.bf16.msra.mxu0 0
      %6988 = vmatprep.subr.bf16.mxu0 0
      %6989 = vmatpush2.bf16.msra.mxu0 0
      %6990 = vmatprep.subr.bf16.mxu0 0
      %6991 = vmatpush2.bf16.msra.mxu0 0
      %6992 = vmatprep.subr.bf16.mxu0 0
      %6993 = vmatpush2.bf16.msra.mxu0 0
      %6994 = vmatprep.subr.bf16.mxu0 0
      %6995 = vmatpush2.bf16.msra.mxu0 0
      %6996 = vmatprep.subr.bf16.mxu0 0
      %6997 = vmatpush2.bf16.msra.mxu0 0
      %6998 = vmatprep.mubr.bf16.mxu0 0
      %6999 = vmatmul.mubr.bf16.gmra.mxu0 %v6961
      %v7000 = vpop.f32.mrf.mxu0
      %v7001 = vadd.f32 0.0, %v7000
      %v7002 = vpop.f32.mrf.mxu0
      %v7003 = vadd.f32 0.0, %v7002
      %v7004 = vpop.f32.mrf.mxu0
      %v7005 = vadd.f32 0.0, %v7004
      %v7006 = vpop.f32.mrf.mxu0
      %v7007 = vadd.f32 0.0, %v7006
      %7008 = vmatprep.mubr.bf16.mxu0 0
      %7009 = vmatmul.mubr.bf16.gmra.mxu0 %v6964
      %v7010 = vpop.f32.mrf.mxu0
      %v7011 = vadd.f32 0.0, %v7010
      %v7012 = vpop.f32.mrf.mxu0
      %v7013 = vadd.f32 0.0, %v7012
      %v7014 = vpop.f32.mrf.mxu0
      %v7015 = vadd.f32 0.0, %v7014
      %v7016 = vpop.f32.mrf.mxu0
      %v7017 = vadd.f32 0.0, %v7016
      %7018 = vdwg.mxu0
      %v7019 = vadd.f32 %v6878, %v7001
      %v7020 = vadd.f32 %v6879, %v7003
      %v7021 = vadd.f32 %v6880, %v7005
      %v7022 = vadd.f32 %v6881, %v7007
      %v7023 = vadd.f32 %v6882, %v7011
      %v7024 = vadd.f32 %v6883, %v7013
      %v7025 = vadd.f32 %v6884, %v7015
      %v7026 = vadd.f32 %v6885, %v7017
      %v7027 = vadd.f32 %v7019, %v2549
      %v7028 = vadd.f32 %v7020, %v2549
      %v7029 = vadd.f32 %v7021, %v2554
      %v7030 = vadd.f32 %v7022, %v2554
      %v7031 = vadd.f32 %v7023, %v2559
      %v7032 = vadd.f32 %v7024, %v2559
      %v7033 = vadd.f32 %v7025, %v2564
      %v7034 = vadd.f32 %v7026, %v2564
      %v7035 = vmax.f32 %v7027, 0.0
      %v7036 = vmax.f32 %v7028, 0.0
      %v7037 = vmax.f32 %v7029, 0.0
      %v7038 = vmax.f32 %v7030, 0.0
      %v7039 = vmax.f32 %v7031, 0.0
      %v7040 = vmax.f32 %v7032, 0.0
      %v7041 = vmax.f32 %v7033, 0.0
      %v7042 = vmax.f32 %v7034, 0.0
      %v7043 = vld [vmem:[%s300 + $0x24] sm:$0xff]
      %v7044 = vld [vmem:[%s300 + $0x2c] sm:$0xf]
      %v7045 = vld [vmem:[%s300 + $0x54] sm:$0xff]
      %v7046 = vld [vmem:[%s300 + $0x5c] sm:$0xf]
      %v7051 = vunpack.c.l.b16 %v7043
      %v7052 = vunpack.c.h.b16 %v7043
      %v7053 = vunpack.c.l.b16 %v7044
      %v7054 = vunpack.c.l.b16 %v7045
      %v7055 = vunpack.c.h.b16 %v7045
      %v7056 = vunpack.c.l.b16 %v7046
      %v7057 = vpack.c.b16 %v7054, %v7051
      %v7058 = vpack.c.b16 %v7055, %v7052
      %v7059 = vpack.c.b16 %v7056, %v7053
      %7060 = vrot.lane.b32.xlu0 %v7057, 96
      %v7061 = vpop.permute.xlu0 %7060
      %7062 = vrot.lane.b32.xlu0 %v7058, 96
      %v7063 = vpop.permute.xlu0 %7062
      %7064 = vrot.lane.b32.xlu0 %v7059, 96
      %v7065 = vpop.permute.xlu0 %7064
      %v7066 = vsel %vm1882, %v7061, %v7063
      %v7067 = vsel %vm1882, %v7063, %v7065
      %7070 = vmatprep.subr.bf16.mxu0 0
      %7071 = vmatpush1.bf16.msra.mxu0 0
      %7072 = vmatprep.subr.bf16.mxu0 0
      %7073 = vmatpush1.bf16.msra.mxu0 0
      %7074 = vmatprep.subr.bf16.mxu0 0
      %7075 = vmatpush1.bf16.msra.mxu0 0
      %7076 = vmatprep.subr.bf16.mxu0 0
      %7077 = vmatpush1.bf16.msra.mxu0 0
      %7078 = vmatprep.subr.bf16.mxu0 0
      %7079 = vmatpush1.bf16.msra.mxu0 0
      %7080 = vmatprep.subr.bf16.mxu0 0
      %7081 = vmatpush1.bf16.msra.mxu0 0
      %7082 = vmatprep.subr.bf16.mxu0 0
      %7083 = vmatpush1.bf16.msra.mxu0 0
      %7084 = vmatprep.subr.bf16.mxu0 %v7067
      %7085 = vmatpush1.bf16.msra.mxu0 %v7066
      %7086 = vmatprep.subr.bf16.mxu0 0
      %7087 = vmatpush2.bf16.msra.mxu0 0
      %7088 = vmatprep.subr.bf16.mxu0 0
      %7089 = vmatpush2.bf16.msra.mxu0 0
      %7090 = vmatprep.subr.bf16.mxu0 0
      %7091 = vmatpush2.bf16.msra.mxu0 0
      %7092 = vmatprep.subr.bf16.mxu0 0
      %7093 = vmatpush2.bf16.msra.mxu0 0
      %7094 = vmatprep.subr.bf16.mxu0 0
      %7095 = vmatpush2.bf16.msra.mxu0 0
      %7096 = vmatprep.subr.bf16.mxu0 0
      %7097 = vmatpush2.bf16.msra.mxu0 0
      %7098 = vmatprep.subr.bf16.mxu0 0
      %7099 = vmatpush2.bf16.msra.mxu0 0
      %7100 = vmatprep.subr.bf16.mxu0 0
      %7101 = vmatpush2.bf16.msra.mxu0 0
      %7102 = vmatprep.mubr.bf16.mxu0 0
      %7103 = vmatmul.mubr.bf16.gmra.mxu0 %v2640
      %v7104 = vpop.f32.mrf.mxu0
      %v7105 = vadd.f32 %v2589, %v7104
      %v7106 = vpop.f32.mrf.mxu0
      %v7107 = vadd.f32 %v2589, %v7106
      %v7108 = vpop.f32.mrf.mxu0
      %v7109 = vadd.f32 %v2594, %v7108
      %v7110 = vpop.f32.mrf.mxu0
      %v7111 = vadd.f32 %v2594, %v7110
      %7112 = vmatprep.mubr.bf16.mxu0 0
      %7113 = vmatmul.mubr.bf16.gmra.mxu0 %v2643
      %v7114 = vpop.f32.mrf.mxu0
      %v7115 = vadd.f32 %v2599, %v7114
      %v7116 = vpop.f32.mrf.mxu0
      %v7117 = vadd.f32 %v2599, %v7116
      %v7118 = vpop.f32.mrf.mxu0
      %v7119 = vadd.f32 %v2604, %v7118
      %v7120 = vpop.f32.mrf.mxu0
      %v7121 = vadd.f32 %v2604, %v7120
      %7122 = vdwg.mxu0
      %v7123 = vadd.f32 %v7035, %v7105
      %v7124 = vadd.f32 %v7036, %v7107
      %v7125 = vadd.f32 %v7037, %v7109
      %v7126 = vadd.f32 %v7038, %v7111
      %v7127 = vadd.f32 %v7039, %v7115
      %v7128 = vadd.f32 %v7040, %v7117
      %v7129 = vadd.f32 %v7041, %v7119
      %v7130 = vadd.f32 %v7042, %v7121
      %v7131 = vmax.f32 %v7123, 0.0
      %v7132 = vmax.f32 %v7124, 0.0
      %v7133 = vmax.f32 %v7125, 0.0
      %v7134 = vmax.f32 %v7126, 0.0
      %v7135 = vmax.f32 %v7127, 0.0
      %v7136 = vmax.f32 %v7128, 0.0
      %v7137 = vmax.f32 %v7129, 0.0
      %v7138 = vmax.f32 %v7130, 0.0
      %7139 = vst [vmem:[%s305 + $0x30] sm:$0xff] %v7131
      %7140 = vst [vmem:[%s305 + $0x38] sm:$0xff] %v7132
      %7141 = vst [vmem:[%s305 + $0x70] sm:$0xff] %v7133
      %7142 = vst [vmem:[%s305 + $0x78] sm:$0xff] %v7134
      %7143 = vst [vmem:[%s305 + $0xb0] sm:$0xff] %v7135
      %7144 = vst [vmem:[%s305 + $0xb8] sm:$0xff] %v7136
      %7145 = vst [vmem:[%s305 + $0xf0] sm:$0xff] %v7137
      %7146 = vst [vmem:[%s305 + $0xf8] sm:$0xff] %v7138
      %p7147 = scmp.lt.s32.totalorder %s19, 1
      %s7148 = scalar_select %p7147, %s19, 1
      %s7149 = smul.addr %s7148, 32
      %s7150 = smul.addr %s7149, 8
      %s7151 = scalar_lea.vmem %s8, %s7150
      // Predicated region
      $region53: #{decoder_res_block.1} parent=51 // pred_check
        %p7152 = pneg %p210
      $region54: #{decoder_res_block.1} parent=51 // pred_check_branch
        %7154 = sbr.rel (%p7152) target = $region56
      $region55: #{decoder_res_block.1} parent=51 // pred_region
        _
      $region56: #{decoder_res_block.1} parent=51 // pred_fallthru
        _
    $region52: #{decoder_res_block.1} parent=5 // pred_fallthru
      _
    %p7155 = scmp.le.s32.totalorder 2, %s14
    // Predicated region
    $region57: #{decoder_res_block.1} parent=5 // pred_check
      %p7156 = pneg %p7155
    $region58: #{decoder_res_block.1} parent=5 // pred_check_branch
      %7158 = sbr.rel (%p7156) target = $region60
    $region59: #{decoder_res_block.1} parent=5 // pred_region
      %s7159 = ssub.s32 %s14, 2
      // Predicated region
      $region61: #{decoder_res_block.1} parent=59 // pred_check
        %p7160 = pneg %p216
      $region62: #{decoder_res_block.1} parent=59 // pred_check_branch
        %7162 = sbr.rel (%p7160) target = $region64
      $region63: #{decoder_res_block.1} parent=59 // pred_region
        %p7163 = scmp.lt.s32.totalorder %s20, 1
        %s7164 = scalar_select %p7163, %s20, 1
        %s7165 = smul.addr %s7164, 32
        %s7166 = smul.addr %s7165, 8
        %s7167 = scalar_lea.vmem %s8, %s7166
      $region64: #{decoder_res_block.1} parent=59 // pred_fallthru
        _
    $region60: #{decoder_res_block.1} parent=5 // pred_fallthru
      _
  $region6: #{decoder_res_block.1} parent=0 // loop_footer
    %s18 = sadd.s32 1, %s14
  $region7: #{decoder_res_block.1} parent=0 // loop_footer_branch
    %13 = sbr.rel target = $region3
  $region8: #{decoder_res_block.1} parent=0 // loop_exit
    _

</llo_original>
